<compile_context>
chip_gen: v6e
topology: v6e:2x2x1
jax: 0.10.0
libtpu: 0.0.40
codegen_flags: <defaults>
</compile_context>

<pallas_src>
import math

import jax
import jax.numpy as jnp
from jax.experimental import pallas as pl
from jax.experimental.pallas import tpu as pltpu

LANE = 128  # lane width used for slab packing and the lane-dense logits output


# ----------------------------- in-kernel math helpers -----------------------------

def _ln(x, g, b, eps=1e-5):
    """Row-wise LayerNorm in f32 (eps matches nn.LayerNorm default)."""
    mu = jnp.mean(x, axis=-1, keepdims=True)
    var = jnp.mean(jnp.square(x - mu), axis=-1, keepdims=True)
    return (x - mu) * jax.lax.rsqrt(var + eps) * g + b


def _attention(xn, ctxn, ah, W, P, *, heads, dim_head, batch, nq, nk):
    """Multi-head attention.
    xn:   (batch*nq, Dq) normed queries (f32)
    ctxn: (batch*nk, Dc) normed context (f32)
    Merged bf16 projections + batched per-head score/value einsums + merged output proj.
    """
    inner = heads * dim_head
    scale = dim_head ** (-0.5)

    qf = jnp.dot(xn.astype(jnp.bfloat16), W(ah["wq"]), preferred_element_type=jnp.float32)
    kf = jnp.dot(ctxn.astype(jnp.bfloat16), W(ah["wk"]), preferred_element_type=jnp.float32)
    vf = jnp.dot(ctxn.astype(jnp.bfloat16), W(ah["wv"]), preferred_element_type=jnp.float32)

    qb = qf.astype(jnp.bfloat16).reshape(batch, nq, inner)
    kb = kf.astype(jnp.bfloat16).reshape(batch, nk, inner)
    vb = vf.astype(jnp.bfloat16).reshape(batch, nk, inner)

    heads_out = []
    for h in range(heads):                      # static loop; scores are per-head anyway
        sl = slice(h * dim_head, (h + 1) * dim_head)
        sim = jnp.einsum("bnd,bmd->bnm", qb[:, :, sl], kb[:, :, sl],
                         preferred_element_type=jnp.float32) * scale
        sim = sim - jnp.max(sim, axis=-1, keepdims=True)           # softmax in f32
        p = jnp.exp(sim)
        p = p * pl.reciprocal(jnp.sum(p, axis=-1, keepdims=True), approx=True)
        heads_out.append(jnp.einsum("bnm,bmd->bnd", p.astype(jnp.bfloat16), vb[:, :, sl],
                                    preferred_element_type=jnp.float32))

    o = heads_out[0] if heads == 1 else jnp.concatenate(heads_out, axis=-1)   # (B, nq, inner)
    o = o.reshape(batch * nq, inner).astype(jnp.bfloat16)
    return jnp.dot(o, W(ah["wo"]), preferred_element_type=jnp.float32) + P(ah["bo"])


def _ff(xn, fh, W, P):
    """FeedForward: Linear(dim, 8*dim) -> GEGLU -> Linear(4*dim, dim), fully fused.
    GEGLU halves come from pre-split weight columns (same math as chunk(2, dim=-1))."""
    xb = xn.astype(jnp.bfloat16)
    ha = jnp.dot(xb, W(fh["w1a"]), preferred_element_type=jnp.float32) + P(fh["b1a"])
    hg = jnp.dot(xb, W(fh["w1g"]), preferred_element_type=jnp.float32) + P(fh["b1g"])
    gelu = 0.5 * hg * (1.0 + jax.lax.erf(hg * (1.0 / math.sqrt(2.0))))   # exact GELU (erf)
    h = (ha * gelu).astype(jnp.bfloat16)
    return jnp.dot(h, W(fh["w2"]), preferred_element_type=jnp.float32) + P(fh["b2"])


# ----------------------------- fourier position encoding (JAX glue) ---------------

def fourier_encode(x, max_freq, num_bands, base):
    """helpers.fourier_encode (logspace variant, matches the freq_base-taking version)."""
    x = x[..., None]
    scales = jnp.logspace(0.0, math.log(max_freq / 2) / math.log(base),
                          num=num_bands, base=base, dtype=jnp.float32)
    scales = scales.reshape((1,) * (x.ndim - 1) + (num_bands,))
    xs = x * scales * math.pi
    return jnp.concatenate([jnp.sin(xs), jnp.cos(xs), x], axis=-1)


# ----------------------------- host-side parameter packing ------------------------

class _SlabPacker:
    """Packs 2-D parameter blocks into one (rows, 128) slab.
    Returns static (offset, rows, cols) handles for in-kernel slicing."""

    def __init__(self, row_align):
        self.row_align = row_align
        self.blocks = []
        self.offset = 0

    def add(self, arr, full_width=False):
        arr = jnp.asarray(arr, jnp.float32)
        r, c = arr.shape
        assert c <= LANE, "TODO(synk): weights wider than 128 need multi-tile packing"
        rp = ((r + self.row_align - 1) // self.row_align) * self.row_align
        buf = jnp.zeros((rp, LANE), jnp.float32).at[:r, :c].set(arr)
        handle = (self.offset, r, LANE if full_width else c)
        self.blocks.append(buf)
        self.offset += rp
        return handle

    def finalize(self, dtype):
        return jnp.concatenate(self.blocks, axis=0).astype(dtype)


def pack_params(params):
    wp = _SlabPacker(row_align=16)   # bf16 matmul-weight slab (bf16 sublane tile = 16 rows)
    vp = _SlabPacker(row_align=8)    # f32 vector slab (LN params, biases)

    def pack_attn(a):
        return {"wq": wp.add(a["wq"]), "wk": wp.add(a["wk"]), "wv": wp.add(a["wv"]),
                "wo": wp.add(a["wo"]), "bo": vp.add(a["bo"])}

    def pack_ff(f):
        return {"w1a": wp.add(f["w1a"]), "w1g": wp.add(f["w1g"]), "w2": wp.add(f["w2"]),
                "b1a": vp.add(f["b1a"]), "b1g": vp.add(f["b1g"]), "b2": vp.add(f["b2"])}

    handles = {"layers": []}
    for layer in params["layers"]:
        ca, cf = layer["cross_attn"], layer["cross_ff"]
        hl = {"cross_attn": {"norm_g": vp.add(ca["norm_g"]), "norm_b": vp.add(ca["norm_b"]),
                             "norm_ctx_g": vp.add(ca["norm_ctx_g"]),
                             "norm_ctx_b": vp.add(ca["norm_ctx_b"]),
                             "attn": pack_attn(ca["attn"])},
              "cross_ff": {"norm_g": vp.add(cf["norm_g"]), "norm_b": vp.add(cf["norm_b"]),
                           "ff": pack_ff(cf["ff"])},
              "self_attns": []}
        for blk in layer["self_attns"]:
            ab, fb = blk["attn_block"], blk["ff_block"]
            hl["self_attns"].append(
                {"attn_block": {"norm_g": vp.add(ab["norm_g"]), "norm_b": vp.add(ab["norm_b"]),
                                "attn": pack_attn(ab["attn"])},
                 "ff_block": {"norm_g": vp.add(fb["norm_g"]), "norm_b": vp.add(fb["norm_b"]),
                              "ff": pack_ff(fb["ff"])}})
        handles["layers"].append(hl)

    handles["logits_norm_g"] = vp.add(params["logits_norm_g"])
    handles["logits_norm_b"] = vp.add(params["logits_norm_b"])
    # full_width -> zero-padded columns give a lane-dense (128-wide) logits output.
    handles["logits_w"] = wp.add(params["logits_w"], full_width=True)
    handles["logits_b"] = vp.add(params["logits_b"], full_width=True)

    return wp.finalize(jnp.bfloat16), vp.finalize(jnp.float32), handles


# ----------------------------- fused Perceiver forward ----------------------------

def make_forward(params, cfg):
    wslab, pslab, handles = pack_params(params)
    latents = params["latents"].astype(jnp.float32)
    L, D = latents.shape
    C = cfg["num_classes"]
    assert C <= LANE, "TODO(synk): >128 classes need a wider logits tile"

    def forward(data):
        b = data.shape[0]
        axis = data.shape[1:-1]
        assert len(axis) == cfg["input_axis"]
        data = data.astype(jnp.float32)

        if cfg["fourier_encode_data"]:
            pos_axes = [jnp.linspace(-1.0, 1.0, n, dtype=jnp.float32) for n in axis]
            pos = jnp.stack(jnp.meshgrid(*pos_axes, indexing="ij"), axis=-1)
            enc = fourier_encode(pos, cfg["max_freq"], cfg["num_freq_bands"], cfg["freq_base"])
            enc = enc.reshape(axis + (-1,))
            enc = jnp.broadcast_to(enc[None], (b,) + enc.shape)
            data = jnp.concatenate([data, enc], axis=-1)

        tokens = data.reshape(b, -1, data.shape[-1])                  # (B, M, Din)
        B, M, Din = tokens.shape
        tokens_flat = tokens.reshape(B * M, Din)                      # flattened context
        x0 = jnp.tile(latents, (B, 1))                                # (B*L, D) initial latents

        def kernel(tok_ref, x0_ref, w_ref, p_ref, o_ref):
            def W(h):                         # bf16 matmul weight slice (static offsets)
                off, r, c = h
                return w_ref[off:off + r, :c]

            def P(h):                         # f32 vector slice (LN params / biases)
                off, r, c = h
                return p_ref[off:off + r, :c]

            ctx = tok_ref[...]                # (B*M, Din) f32, VMEM-resident all layers
            x = x0_ref[...]                   # (B*L, D)  f32 latent state

            for lh in handles["layers"]:
                ca = lh["cross_attn"]
                xn = _ln(x, P(ca["norm_g"]), P(ca["norm_b"]))
                cn = _ln(ctx, P(ca["norm_ctx_g"]), P(ca["norm_ctx_b"]))
                x = x + _attention(xn, cn, ca["attn"], W, P,
                                   heads=cfg["cross_heads"],
                                   dim_head=cfg["cross_dim_head"],
                                   batch=B, nq=L, nk=M)

                cf = lh["cross_ff"]
                x = x + _ff(_ln(x, P(cf["norm_g"]), P(cf["norm_b"])), cf["ff"], W, P)

                for blk in lh["self_attns"]:
                    ab = blk["attn_block"]
                    xn = _ln(x, P(ab["norm_g"]), P(ab["norm_b"]))
                    x = x + _attention(xn, xn, ab["attn"], W, P,
                                       heads=cfg["latent_heads"],
                                       dim_head=cfg["latent_dim_head"],
                                       batch=B, nq=L, nk=L)
                    fb = blk["ff_block"]
                    x = x + _ff(_ln(x, P(fb["norm_g"]), P(fb["norm_b"])), fb["ff"], W, P)

            pooled = jnp.mean(x.reshape(B, L, D), axis=1)             # (B, D) mean over latents
            pooled = _ln(pooled, P(handles["logits_norm_g"]), P(handles["logits_norm_b"]))
            logits = jnp.dot(pooled.astype(jnp.bfloat16), W(handles["logits_w"]),
                             preferred_element_type=jnp.float32) + P(handles["logits_b"])
            o_ref[...] = logits               # lane-dense (B, 128) store

        out = pl.pallas_call(
            kernel,
            out_shape=jax.ShapeDtypeStruct((B, LANE), jnp.float32),
            in_specs=[pl.BlockSpec(memory_space=pltpu.MemorySpace.VMEM)] * 4,
            out_specs=pl.BlockSpec(memory_space=pltpu.MemorySpace.VMEM),
            compiler_params=pltpu.CompilerParams(vmem_limit_bytes=32 * 1024 * 1024),
        )(tokens_flat, x0, wslab, pslab)
        return out[:, :C]                                             # slice off the lane padding

    return forward


# ----------------------------- deterministic parameter init -----------------------

def init_linear(key, din, dout, bias=True):
    kw, kb = jax.random.split(key)
    bound = 1.0 / math.sqrt(din)
    w = jax.random.uniform(kw, (din, dout), jnp.float32, -bound, bound)
    b = jax.random.uniform(kb, (1, dout), jnp.float32, -bound, bound) if bias else None
    return w, b


def init_attention(key, query_dim, context_dim, heads, dim_head):
    inner = heads * dim_head
    k1, k2, k3 = jax.random.split(key, 3)
    wq, _ = init_linear(k1, query_dim, inner, bias=False)             # to_q
    wkv, _ = init_linear(k2, context_dim, 2 * inner, bias=False)      # to_kv
    wo, bo = init_linear(k3, inner, query_dim, bias=True)             # to_out[0]
    # k/v halves of to_kv (same math as .chunk(2, dim=-1)); heads handled in-kernel.
    return {"wq": wq, "wk": wkv[:, :inner], "wv": wkv[:, inner:], "wo": wo, "bo": bo}


def init_ff(key, dim, mult=4):
    k1, k2 = jax.random.split(key)
    w1, b1 = init_linear(k1, dim, dim * mult * 2)
    w2, b2 = init_linear(k2, dim * mult, dim)
    hidden = dim * mult
    # Pre-split GEGLU halves (identical to chunk(2, dim=-1) of the w1 projection output).
    return {"w1a": w1[:, :hidden], "b1a": b1[:, :hidden],
            "w1g": w1[:, hidden:], "b1g": b1[:, hidden:],
            "w2": w2, "b2": b2}


def ln_params(dim):
    return jnp.ones((1, dim), jnp.float32), jnp.zeros((1, dim), jnp.float32)


def make_perceiver_params(key, cfg):
    fourier_channels = (cfg["input_axis"] * (cfg["num_freq_bands"] * 2 + 1)
                        if cfg["fourier_encode_data"] else 0)
    input_dim = fourier_channels + cfg["input_channels"]
    D = cfg["latent_dim"]

    keys = iter(jax.random.split(key, 256))
    params = {"latents": jax.random.normal(next(keys), (cfg["num_latents"], D), jnp.float32)}

    layers = []
    for _ in range(cfg["depth"]):
        ng, nb = ln_params(D)
        ncg, ncb = ln_params(input_dim)
        cross_attn = {"norm_g": ng, "norm_b": nb, "norm_ctx_g": ncg, "norm_ctx_b": ncb,
                      "attn": init_attention(next(keys), D, input_dim,
                                             cfg["cross_heads"], cfg["cross_dim_head"])}
        fg, fb = ln_params(D)
        cross_ff = {"norm_g": fg, "norm_b": fb, "ff": init_ff(next(keys), D)}

        self_blocks = []
        for _ in range(cfg["self_per_cross_attn"]):
            ag, ab = ln_params(D)
            sg, sb = ln_params(D)
            self_blocks.append({
                "attn_block": {"norm_g": ag, "norm_b": ab,
                               "attn": init_attention(next(keys), D, D,
                                                      cfg["latent_heads"], cfg["latent_dim_head"])},
                "ff_block": {"norm_g": sg, "norm_b": sb, "ff": init_ff(next(keys), D)},
            })
        layers.append({"cross_attn": cross_attn, "cross_ff": cross_ff, "self_attns": self_blocks})
    params["layers"] = layers

    params["logits_norm_g"], params["logits_norm_b"] = ln_params(D)
    params["logits_w"], params["logits_b"] = init_linear(next(keys), D, cfg["num_classes"])
    return params


# ----------------------------- main ------------------------------------------------

if __name__ == "__main__":
    cfg = dict(
        num_freq_bands=2, depth=2, max_freq=10.0, freq_base=2,
        input_channels=4, input_axis=2,
        num_latents=16, latent_dim=32,
        cross_heads=1, latent_heads=4, cross_dim_head=16, latent_dim_head=8,
        num_classes=10, fourier_encode_data=True, self_per_cross_attn=1,
    )

    key = jax.random.PRNGKey(0)
    k_data, k_params = jax.random.split(key)
    data = jax.random.normal(k_data, (2, 8, 8, cfg["input_channels"]), jnp.float32)  # (B, H, W, C)
    params = make_perceiver_params(k_params, cfg)

    fwd = jax.jit(make_forward(params, cfg))
    logits = fwd(data)
    jax.block_until_ready(logits)

    assert logits.shape == (2, cfg["num_classes"])
    assert bool(jnp.all(jnp.isfinite(logits)))
    print("KERNEL_OK")
</pallas_src>

<mosaic_0001>
module attributes {stable_mosaic.version = 11 : i64} {
  func.func @kernel(%arg0: memref<128x14xf32, #tpu.memory_space<vmem>>, %arg1: memref<32x32xf32, #tpu.memory_space<vmem>>, %arg2: memref<1216x128xbf16, #tpu.memory_space<vmem>>, %arg3: memref<312x128xf32, #tpu.memory_space<vmem>>, %arg4: memref<2x128xf32, #tpu.memory_space<vmem>>) attributes {dimension_semantics = [], scalar_prefetch = 0 : i64, scratch_operands = 0 : i64, tpu.core_type = #tpu.core_type<tc>} {
    %c0 = arith.constant 0 : index
    %c0_0 = arith.constant 0 : index
    %0 = vector.load %arg0[%c0, %c0_0] : memref<128x14xf32, #tpu.memory_space<vmem>>, vector<128x14xf32>
    %c0_1 = arith.constant 0 : index
    %c0_2 = arith.constant 0 : index
    %1 = vector.load %arg1[%c0_1, %c0_2] : memref<32x32xf32, #tpu.memory_space<vmem>>, vector<32x32xf32>
    %c0_3 = arith.constant 0 : index
    %c0_4 = arith.constant 0 : index
    %2 = vector.load %arg3[%c0_3, %c0_4] : memref<312x128xf32, #tpu.memory_space<vmem>>, vector<1x32xf32>
    %c8 = arith.constant 8 : index
    %c0_5 = arith.constant 0 : index
    %3 = vector.load %arg3[%c8, %c0_5] : memref<312x128xf32, #tpu.memory_space<vmem>>, vector<1x32xf32>
    %cst = arith.constant dense<0.000000e+00> : vector<32xf32>
    %4 = vector.multi_reduction <add>, %1, %cst [1] : vector<32x32xf32> to vector<32xf32>
    %5 = vector.shape_cast %4 : vector<32xf32> to vector<32x1xf32>
    %cst_6 = arith.constant 3.200000e+01 : f32
    %6 = vector.broadcast %cst_6 : f32 to vector<32x1xf32>
    %7 = arith.divf %5, %6 : vector<32x1xf32>
    %8 = vector.broadcast %7 : vector<32x1xf32> to vector<32x32xf32>
    %9 = arith.subf %1, %8 : vector<32x32xf32>
    %10 = arith.mulf %9, %9 : vector<32x32xf32>
    %cst_7 = arith.constant dense<0.000000e+00> : vector<32xf32>
    %11 = vector.multi_reduction <add>, %10, %cst_7 [1] : vector<32x32xf32> to vector<32xf32>
    %12 = vector.shape_cast %11 : vector<32xf32> to vector<32x1xf32>
    %cst_8 = arith.constant 3.200000e+01 : f32
    %13 = vector.broadcast %cst_8 : f32 to vector<32x1xf32>
    %14 = arith.divf %12, %13 : vector<32x1xf32>
    %15 = vector.broadcast %7 : vector<32x1xf32> to vector<32x32xf32>
    %16 = arith.subf %1, %15 : vector<32x32xf32>
    %cst_9 = arith.constant 9.99999974E-6 : f32
    %17 = vector.broadcast %cst_9 : f32 to vector<32x1xf32>
    %18 = arith.addf %14, %17 : vector<32x1xf32>
    %19 = math.rsqrt %18 : vector<32x1xf32>
    %20 = vector.broadcast %19 : vector<32x1xf32> to vector<32x32xf32>
    %21 = arith.mulf %16, %20 : vector<32x32xf32>
    %22 = vector.broadcast %2 : vector<1x32xf32> to vector<32x32xf32>
    %23 = arith.mulf %21, %22 : vector<32x32xf32>
    %24 = vector.broadcast %3 : vector<1x32xf32> to vector<32x32xf32>
    %25 = arith.addf %23, %24 : vector<32x32xf32>
    %c16 = arith.constant 16 : index
    %c0_10 = arith.constant 0 : index
    %26 = vector.load %arg3[%c16, %c0_10] : memref<312x128xf32, #tpu.memory_space<vmem>>, vector<1x14xf32>
    %c24 = arith.constant 24 : index
    %c0_11 = arith.constant 0 : index
    %27 = vector.load %arg3[%c24, %c0_11] : memref<312x128xf32, #tpu.memory_space<vmem>>, vector<1x14xf32>
    %cst_12 = arith.constant dense<0.000000e+00> : vector<128xf32>
    %28 = vector.multi_reduction <add>, %0, %cst_12 [1] : vector<128x14xf32> to vector<128xf32>
    %29 = vector.shape_cast %28 : vector<128xf32> to vector<128x1xf32>
    %cst_13 = arith.constant 1.400000e+01 : f32
    %30 = vector.broadcast %cst_13 : f32 to vector<128x1xf32>
    %31 = arith.divf %29, %30 : vector<128x1xf32>
    %32 = vector.broadcast %31 : vector<128x1xf32> to vector<128x14xf32>
    %33 = arith.subf %0, %32 : vector<128x14xf32>
    %34 = arith.mulf %33, %33 : vector<128x14xf32>
    %cst_14 = arith.constant dense<0.000000e+00> : vector<128xf32>
    %35 = vector.multi_reduction <add>, %34, %cst_14 [1] : vector<128x14xf32> to vector<128xf32>
    %36 = vector.shape_cast %35 : vector<128xf32> to vector<128x1xf32>
    %cst_15 = arith.constant 1.400000e+01 : f32
    %37 = vector.broadcast %cst_15 : f32 to vector<128x1xf32>
    %38 = arith.divf %36, %37 : vector<128x1xf32>
    %39 = vector.broadcast %31 : vector<128x1xf32> to vector<128x14xf32>
    %40 = arith.subf %0, %39 : vector<128x14xf32>
    %cst_16 = arith.constant 9.99999974E-6 : f32
    %41 = vector.broadcast %cst_16 : f32 to vector<128x1xf32>
    %42 = arith.addf %38, %41 : vector<128x1xf32>
    %43 = math.rsqrt %42 : vector<128x1xf32>
    %44 = vector.broadcast %43 : vector<128x1xf32> to vector<128x14xf32>
    %45 = arith.mulf %40, %44 : vector<128x14xf32>
    %46 = vector.broadcast %26 : vector<1x14xf32> to vector<128x14xf32>
    %47 = arith.mulf %45, %46 : vector<128x14xf32>
    %48 = vector.broadcast %27 : vector<1x14xf32> to vector<128x14xf32>
    %49 = arith.addf %47, %48 : vector<128x14xf32>
    %50 = arith.truncf %25 : vector<32x32xf32> to vector<32x32xbf16>
    %c0_17 = arith.constant 0 : index
    %c0_18 = arith.constant 0 : index
    %51 = vector.load %arg2[%c0_17, %c0_18] : memref<1216x128xbf16, #tpu.memory_space<vmem>>, vector<32x16xbf16>
    %cst_19 = arith.constant dense<0.000000e+00> : vector<32x16xf32>
    %52 = tpu.matmul %50, %51, %cst_19 {dimension_numbers = #tpu.dot_dimension_numbers<[1], [0], [0], [1], [0, 0, 1, 1], [], []>} : vector<32x32xbf16>, vector<32x16xbf16>, vector<32x16xf32> -> vector<32x16xf32>
    %53 = arith.truncf %49 : vector<128x14xf32> to vector<128x14xbf16>
    %c32 = arith.constant 32 : index
    %c0_20 = arith.constant 0 : index
    %54 = vector.load %arg2[%c32, %c0_20] : memref<1216x128xbf16, #tpu.memory_space<vmem>>, vector<14x16xbf16>
    %cst_21 = arith.constant dense<0.000000e+00> : vector<128x16xf32>
    %55 = tpu.matmul %53, %54, %cst_21 {dimension_numbers = #tpu.dot_dimension_numbers<[1], [0], [0], [1], [0, 0, 1, 1], [], []>} : vector<128x14xbf16>, vector<14x16xbf16>, vector<128x16xf32> -> vector<128x16xf32>
    %56 = arith.truncf %49 : vector<128x14xf32> to vector<128x14xbf16>
    %c48 = arith.constant 48 : index
    %c0_22 = arith.constant 0 : index
    %57 = vector.load %arg2[%c48, %c0_22] : memref<1216x128xbf16, #tpu.memory_space<vmem>>, vector<14x16xbf16>
    %cst_23 = arith.constant dense<0.000000e+00> : vector<128x16xf32>
    %58 = tpu.matmul %56, %57, %cst_23 {dimension_numbers = #tpu.dot_dimension_numbers<[1], [0], [0], [1], [0, 0, 1, 1], [], []>} : vector<128x14xbf16>, vector<14x16xbf16>, vector<128x16xf32> -> vector<128x16xf32>
    %59 = arith.truncf %52 : vector<32x16xf32> to vector<32x16xbf16>
    %60 = vector.shape_cast %59 : vector<32x16xbf16> to vector<2x16x16xbf16>
    %61 = arith.truncf %55 : vector<128x16xf32> to vector<128x16xbf16>
    %62 = vector.shape_cast %61 : vector<128x16xbf16> to vector<2x64x16xbf16>
    %63 = arith.truncf %58 : vector<128x16xf32> to vector<128x16xbf16>
    %64 = vector.shape_cast %63 : vector<128x16xbf16> to vector<2x64x16xbf16>
    "tpu.trace_start"() <{level = 10 : i32, message = "bnd,bmd->bnm"}> : () -> ()
    %cst_24 = arith.constant dense<0.000000e+00> : vector<2x16x64xf32>
    %65 = tpu.matmul %60, %62, %cst_24 {dimension_numbers = #tpu.dot_dimension_numbers<[2], [2], [1], [1], [0, 0, 0, 1, 1, 1], [0], [0]>} : vector<2x16x16xbf16>, vector<2x64x16xbf16>, vector<2x16x64xf32> -> vector<2x16x64xf32>
    "tpu.trace_stop"() : () -> ()
    %cst_25 = arith.constant 2.500000e-01 : f32
    %66 = vector.broadcast %cst_25 : f32 to vector<2x16x64xf32>
    %67 = arith.mulf %65, %66 : vector<2x16x64xf32>
    %cst_26 = arith.constant dense<0xFF800000> : vector<2x16xf32>
    %68 = vector.multi_reduction <maximumf>, %67, %cst_26 [2] : vector<2x16x64xf32> to vector<2x16xf32>
    %69 = vector.shape_cast %68 : vector<2x16xf32> to vector<2x16x1xf32>
    %70 = vector.broadcast %69 : vector<2x16x1xf32> to vector<2x16x64xf32>
    %71 = arith.subf %67, %70 : vector<2x16x64xf32>
    %72 = math.exp %71 : vector<2x16x64xf32>
    %cst_27 = arith.constant dense<0.000000e+00> : vector<2x16xf32>
    %73 = vector.multi_reduction <add>, %72, %cst_27 [2] : vector<2x16x64xf32> to vector<2x16xf32>
    %74 = vector.shape_cast %73 : vector<2x16xf32> to vector<2x16x1xf32>
    %75 = tpu.reciprocal %74 {approx = true} : vector<2x16x1xf32> -> vector<2x16x1xf32>
    %76 = vector.broadcast %75 : vector<2x16x1xf32> to vector<2x16x64xf32>
    %77 = arith.mulf %72, %76 : vector<2x16x64xf32>
    %78 = arith.truncf %77 : vector<2x16x64xf32> to vector<2x16x64xbf16>
    "tpu.trace_start"() <{level = 10 : i32, message = "bnm,bmd->bnd"}> : () -> ()
    %cst_28 = arith.constant dense<0.000000e+00> : vector<2x16x16xf32>
    %79 = tpu.matmul %78, %64, %cst_28 {dimension_numbers = #tpu.dot_dimension_numbers<[2], [1], [1], [2], [0, 0, 0, 1, 1, 2], [0], [0]>} : vector<2x16x64xbf16>, vector<2x64x16xbf16>, vector<2x16x16xf32> -> vector<2x16x16xf32>
    "tpu.trace_stop"() : () -> ()
    %80 = vector.shape_cast %79 : vector<2x16x16xf32> to vector<32x16xf32>
    %81 = arith.truncf %80 : vector<32x16xf32> to vector<32x16xbf16>
    %c64 = arith.constant 64 : index
    %c0_29 = arith.constant 0 : index
    %82 = vector.load %arg2[%c64, %c0_29] : memref<1216x128xbf16, #tpu.memory_space<vmem>>, vector<16x32xbf16>
    %cst_30 = arith.constant dense<0.000000e+00> : vector<32x32xf32>
    %83 = tpu.matmul %81, %82, %cst_30 {dimension_numbers = #tpu.dot_dimension_numbers<[1], [0], [0], [1], [0, 0, 1, 1], [], []>} : vector<32x16xbf16>, vector<16x32xbf16>, vector<32x32xf32> -> vector<32x32xf32>
    %c32_31 = arith.constant 32 : index
    %c0_32 = arith.constant 0 : index
    %84 = vector.load %arg3[%c32_31, %c0_32] : memref<312x128xf32, #tpu.memory_space<vmem>>, vector<1x32xf32>
    %85 = vector.broadcast %84 : vector<1x32xf32> to vector<32x32xf32>
    %86 = arith.addf %83, %85 : vector<32x32xf32>
    %87 = arith.addf %1, %86 : vector<32x32xf32>
    %c40 = arith.constant 40 : index
    %c0_33 = arith.constant 0 : index
    %88 = vector.load %arg3[%c40, %c0_33] : memref<312x128xf32, #tpu.memory_space<vmem>>, vector<1x32xf32>
    %c48_34 = arith.constant 48 : index
    %c0_35 = arith.constant 0 : index
    %89 = vector.load %arg3[%c48_34, %c0_35] : memref<312x128xf32, #tpu.memory_space<vmem>>, vector<1x32xf32>
    %cst_36 = arith.constant dense<0.000000e+00> : vector<32xf32>
    %90 = vector.multi_reduction <add>, %87, %cst_36 [1] : vector<32x32xf32> to vector<32xf32>
    %91 = vector.shape_cast %90 : vector<32xf32> to vector<32x1xf32>
    %cst_37 = arith.constant 3.200000e+01 : f32
    %92 = vector.broadcast %cst_37 : f32 to vector<32x1xf32>
    %93 = arith.divf %91, %92 : vector<32x1xf32>
    %94 = vector.broadcast %93 : vector<32x1xf32> to vector<32x32xf32>
    %95 = arith.subf %87, %94 : vector<32x32xf32>
    %96 = arith.mulf %95, %95 : vector<32x32xf32>
    %cst_38 = arith.constant dense<0.000000e+00> : vector<32xf32>
    %97 = vector.multi_reduction <add>, %96, %cst_38 [1] : vector<32x32xf32> to vector<32xf32>
    %98 = vector.shape_cast %97 : vector<32xf32> to vector<32x1xf32>
    %cst_39 = arith.constant 3.200000e+01 : f32
    %99 = vector.broadcast %cst_39 : f32 to vector<32x1xf32>
    %100 = arith.divf %98, %99 : vector<32x1xf32>
    %101 = vector.broadcast %93 : vector<32x1xf32> to vector<32x32xf32>
    %102 = arith.subf %87, %101 : vector<32x32xf32>
    %cst_40 = arith.constant 9.99999974E-6 : f32
    %103 = vector.broadcast %cst_40 : f32 to vector<32x1xf32>
    %104 = arith.addf %100, %103 : vector<32x1xf32>
    %105 = math.rsqrt %104 : vector<32x1xf32>
    %106 = vector.broadcast %105 : vector<32x1xf32> to vector<32x32xf32>
    %107 = arith.mulf %102, %106 : vector<32x32xf32>
    %108 = vector.broadcast %88 : vector<1x32xf32> to vector<32x32xf32>
    %109 = arith.mulf %107, %108 : vector<32x32xf32>
    %110 = vector.broadcast %89 : vector<1x32xf32> to vector<32x32xf32>
    %111 = arith.addf %109, %110 : vector<32x32xf32>
    %112 = arith.truncf %111 : vector<32x32xf32> to vector<32x32xbf16>
    %c80 = arith.constant 80 : index
    %c0_41 = arith.constant 0 : index
    %113 = vector.load %arg2[%c80, %c0_41] : memref<1216x128xbf16, #tpu.memory_space<vmem>>, vector<32x128xbf16>
    %cst_42 = arith.constant dense<0.000000e+00> : vector<32x128xf32>
    %114 = tpu.matmul %112, %113, %cst_42 {dimension_numbers = #tpu.dot_dimension_numbers<[1], [0], [0], [1], [0, 0, 1, 1], [], []>} : vector<32x32xbf16>, vector<32x128xbf16>, vector<32x128xf32> -> vector<32x128xf32>
    %c56 = arith.constant 56 : index
    %c0_43 = arith.constant 0 : index
    %115 = vector.load %arg3[%c56, %c0_43] : memref<312x128xf32, #tpu.memory_space<vmem>>, vector<1x128xf32>
    %116 = vector.broadcast %115 : vector<1x128xf32> to vector<32x128xf32>
    %117 = arith.addf %114, %116 : vector<32x128xf32>
    %c112 = arith.constant 112 : index
    %c0_44 = arith.constant 0 : index
    %118 = vector.load %arg2[%c112, %c0_44] : memref<1216x128xbf16, #tpu.memory_space<vmem>>, vector<32x128xbf16>
    %cst_45 = arith.constant dense<0.000000e+00> : vector<32x128xf32>
    %119 = tpu.matmul %112, %118, %cst_45 {dimension_numbers = #tpu.dot_dimension_numbers<[1], [0], [0], [1], [0, 0, 1, 1], [], []>} : vector<32x32xbf16>, vector<32x128xbf16>, vector<32x128xf32> -> vector<32x128xf32>
    %c64_46 = arith.constant 64 : index
    %c0_47 = arith.constant 0 : index
    %120 = vector.load %arg3[%c64_46, %c0_47] : memref<312x128xf32, #tpu.memory_space<vmem>>, vector<1x128xf32>
    %121 = vector.broadcast %120 : vector<1x128xf32> to vector<32x128xf32>
    %122 = arith.addf %119, %121 : vector<32x128xf32>
    %cst_48 = arith.constant 5.000000e-01 : f32
    %123 = vector.broadcast %cst_48 : f32 to vector<32x128xf32>
    %124 = arith.mulf %123, %122 : vector<32x128xf32>
    %cst_49 = arith.constant 0.707106769 : f32
    %125 = vector.broadcast %cst_49 : f32 to vector<32x128xf32>
    %126 = arith.mulf %122, %125 : vector<32x128xf32>
    %127 = math.erf %126 : vector<32x128xf32>
    %cst_50 = arith.constant 1.000000e+00 : f32
    %128 = vector.broadcast %cst_50 : f32 to vector<32x128xf32>
    %129 = arith.addf %128, %127 : vector<32x128xf32>
    %130 = arith.mulf %124, %129 : vector<32x128xf32>
    %131 = arith.mulf %117, %130 : vector<32x128xf32>
    %132 = arith.truncf %131 : vector<32x128xf32> to vector<32x128xbf16>
    %c144 = arith.constant 144 : index
    %c0_51 = arith.constant 0 : index
    %133 = vector.load %arg2[%c144, %c0_51] : memref<1216x128xbf16, #tpu.memory_space<vmem>>, vector<128x32xbf16>
    %cst_52 = arith.constant dense<0.000000e+00> : vector<32x32xf32>
    %134 = tpu.matmul %132, %133, %cst_52 {dimension_numbers = #tpu.dot_dimension_numbers<[1], [0], [0], [1], [0, 0, 1, 1], [], []>} : vector<32x128xbf16>, vector<128x32xbf16>, vector<32x32xf32> -> vector<32x32xf32>
    %c72 = arith.constant 72 : index
    %c0_53 = arith.constant 0 : index
    %135 = vector.load %arg3[%c72, %c0_53] : memref<312x128xf32, #tpu.memory_space<vmem>>, vector<1x32xf32>
    %136 = vector.broadcast %135 : vector<1x32xf32> to vector<32x32xf32>
    %137 = arith.addf %134, %136 : vector<32x32xf32>
    %138 = arith.addf %87, %137 : vector<32x32xf32>
    %c80_54 = arith.constant 80 : index
    %c0_55 = arith.constant 0 : index
    %139 = vector.load %arg3[%c80_54, %c0_55] : memref<312x128xf32, #tpu.memory_space<vmem>>, vector<1x32xf32>
    %c88 = arith.constant 88 : index
    %c0_56 = arith.constant 0 : index
    %140 = vector.load %arg3[%c88, %c0_56] : memref<312x128xf32, #tpu.memory_space<vmem>>, vector<1x32xf32>
    %cst_57 = arith.constant dense<0.000000e+00> : vector<32xf32>
    %141 = vector.multi_reduction <add>, %138, %cst_57 [1] : vector<32x32xf32> to vector<32xf32>
    %142 = vector.shape_cast %141 : vector<32xf32> to vector<32x1xf32>
    %cst_58 = arith.constant 3.200000e+01 : f32
    %143 = vector.broadcast %cst_58 : f32 to vector<32x1xf32>
    %144 = arith.divf %142, %143 : vector<32x1xf32>
    %145 = vector.broadcast %144 : vector<32x1xf32> to vector<32x32xf32>
    %146 = arith.subf %138, %145 : vector<32x32xf32>
    %147 = arith.mulf %146, %146 : vector<32x32xf32>
    %cst_59 = arith.constant dense<0.000000e+00> : vector<32xf32>
    %148 = vector.multi_reduction <add>, %147, %cst_59 [1] : vector<32x32xf32> to vector<32xf32>
    %149 = vector.shape_cast %148 : vector<32xf32> to vector<32x1xf32>
    %cst_60 = arith.constant 3.200000e+01 : f32
    %150 = vector.broadcast %cst_60 : f32 to vector<32x1xf32>
    %151 = arith.divf %149, %150 : vector<32x1xf32>
    %152 = vector.broadcast %144 : vector<32x1xf32> to vector<32x32xf32>
    %153 = arith.subf %138, %152 : vector<32x32xf32>
    %cst_61 = arith.constant 9.99999974E-6 : f32
    %154 = vector.broadcast %cst_61 : f32 to vector<32x1xf32>
    %155 = arith.addf %151, %154 : vector<32x1xf32>
    %156 = math.rsqrt %155 : vector<32x1xf32>
    %157 = vector.broadcast %156 : vector<32x1xf32> to vector<32x32xf32>
    %158 = arith.mulf %153, %157 : vector<32x32xf32>
    %159 = vector.broadcast %139 : vector<1x32xf32> to vector<32x32xf32>
    %160 = arith.mulf %158, %159 : vector<32x32xf32>
    %161 = vector.broadcast %140 : vector<1x32xf32> to vector<32x32xf32>
    %162 = arith.addf %160, %161 : vector<32x32xf32>
    %163 = arith.truncf %162 : vector<32x32xf32> to vector<32x32xbf16>
    %c272 = arith.constant 272 : index
    %c0_62 = arith.constant 0 : index
    %164 = vector.load %arg2[%c272, %c0_62] : memref<1216x128xbf16, #tpu.memory_space<vmem>>, vector<32x32xbf16>
    %cst_63 = arith.constant dense<0.000000e+00> : vector<32x32xf32>
    %165 = tpu.matmul %163, %164, %cst_63 {dimension_numbers = #tpu.dot_dimension_numbers<[1], [0], [0], [1], [0, 0, 1, 1], [], []>} : vector<32x32xbf16>, vector<32x32xbf16>, vector<32x32xf32> -> vector<32x32xf32>
    %166 = arith.truncf %162 : vector<32x32xf32> to vector<32x32xbf16>
    %c304 = arith.constant 304 : index
    %c0_64 = arith.constant 0 : index
    %167 = vector.load %arg2[%c304, %c0_64] : memref<1216x128xbf16, #tpu.memory_space<vmem>>, vector<32x32xbf16>
    %cst_65 = arith.constant dense<0.000000e+00> : vector<32x32xf32>
    %168 = tpu.matmul %166, %167, %cst_65 {dimension_numbers = #tpu.dot_dimension_numbers<[1], [0], [0], [1], [0, 0, 1, 1], [], []>} : vector<32x32xbf16>, vector<32x32xbf16>, vector<32x32xf32> -> vector<32x32xf32>
    %169 = arith.truncf %162 : vector<32x32xf32> to vector<32x32xbf16>
    %c336 = arith.constant 336 : index
    %c0_66 = arith.constant 0 : index
    %170 = vector.load %arg2[%c336, %c0_66] : memref<1216x128xbf16, #tpu.memory_space<vmem>>, vector<32x32xbf16>
    %cst_67 = arith.constant dense<0.000000e+00> : vector<32x32xf32>
    %171 = tpu.matmul %169, %170, %cst_67 {dimension_numbers = #tpu.dot_dimension_numbers<[1], [0], [0], [1], [0, 0, 1, 1], [], []>} : vector<32x32xbf16>, vector<32x32xbf16>, vector<32x32xf32> -> vector<32x32xf32>
    %172 = arith.truncf %165 : vector<32x32xf32> to vector<32x32xbf16>
    %173 = vector.shape_cast %172 : vector<32x32xbf16> to vector<2x16x32xbf16>
    %174 = arith.truncf %168 : vector<32x32xf32> to vector<32x32xbf16>
    %175 = vector.shape_cast %174 : vector<32x32xbf16> to vector<2x16x32xbf16>
    %176 = arith.truncf %171 : vector<32x32xf32> to vector<32x32xbf16>
    %177 = vector.shape_cast %176 : vector<32x32xbf16> to vector<2x16x32xbf16>
    %178 = vector.extract_strided_slice %173 {offsets = [0, 0, 0], sizes = [2, 16, 8], strides = [1, 1, 1]} : vector<2x16x32xbf16> to vector<2x16x8xbf16>
    %179 = vector.extract_strided_slice %175 {offsets = [0, 0, 0], sizes = [2, 16, 8], strides = [1, 1, 1]} : vector<2x16x32xbf16> to vector<2x16x8xbf16>
    "tpu.trace_start"() <{level = 10 : i32, message = "bnd,bmd->bnm"}> : () -> ()
    %cst_68 = arith.constant dense<0.000000e+00> : vector<2x16x16xf32>
    %180 = tpu.matmul %178, %179, %cst_68 {dimension_numbers = #tpu.dot_dimension_numbers<[2], [2], [1], [1], [0, 0, 0, 1, 1, 1], [0], [0]>} : vector<2x16x8xbf16>, vector<2x16x8xbf16>, vector<2x16x16xf32> -> vector<2x16x16xf32>
    "tpu.trace_stop"() : () -> ()
    %cst_69 = arith.constant 0.353553385 : f32
    %181 = vector.broadcast %cst_69 : f32 to vector<2x16x16xf32>
    %182 = arith.mulf %180, %181 : vector<2x16x16xf32>
    %cst_70 = arith.constant dense<0xFF800000> : vector<2x16xf32>
    %183 = vector.multi_reduction <maximumf>, %182, %cst_70 [2] : vector<2x16x16xf32> to vector<2x16xf32>
    %184 = vector.shape_cast %183 : vector<2x16xf32> to vector<2x16x1xf32>
    %185 = vector.broadcast %184 : vector<2x16x1xf32> to vector<2x16x16xf32>
    %186 = arith.subf %182, %185 : vector<2x16x16xf32>
    %187 = math.exp %186 : vector<2x16x16xf32>
    %cst_71 = arith.constant dense<0.000000e+00> : vector<2x16xf32>
    %188 = vector.multi_reduction <add>, %187, %cst_71 [2] : vector<2x16x16xf32> to vector<2x16xf32>
    %189 = vector.shape_cast %188 : vector<2x16xf32> to vector<2x16x1xf32>
    %190 = tpu.reciprocal %189 {approx = true} : vector<2x16x1xf32> -> vector<2x16x1xf32>
    %191 = vector.broadcast %190 : vector<2x16x1xf32> to vector<2x16x16xf32>
    %192 = arith.mulf %187, %191 : vector<2x16x16xf32>
    %193 = arith.truncf %192 : vector<2x16x16xf32> to vector<2x16x16xbf16>
    %194 = vector.extract_strided_slice %177 {offsets = [0, 0, 0], sizes = [2, 16, 8], strides = [1, 1, 1]} : vector<2x16x32xbf16> to vector<2x16x8xbf16>
    "tpu.trace_start"() <{level = 10 : i32, message = "bnm,bmd->bnd"}> : () -> ()
    %cst_72 = arith.constant dense<0.000000e+00> : vector<2x16x8xf32>
    %195 = tpu.matmul %193, %194, %cst_72 {dimension_numbers = #tpu.dot_dimension_numbers<[2], [1], [1], [2], [0, 0, 0, 1, 1, 2], [0], [0]>} : vector<2x16x16xbf16>, vector<2x16x8xbf16>, vector<2x16x8xf32> -> vector<2x16x8xf32>
    "tpu.trace_stop"() : () -> ()
    %196 = vector.extract_strided_slice %173 {offsets = [0, 0, 8], sizes = [2, 16, 8], strides = [1, 1, 1]} : vector<2x16x32xbf16> to vector<2x16x8xbf16>
    %197 = vector.extract_strided_slice %175 {offsets = [0, 0, 8], sizes = [2, 16, 8], strides = [1, 1, 1]} : vector<2x16x32xbf16> to vector<2x16x8xbf16>
    "tpu.trace_start"() <{level = 10 : i32, message = "bnd,bmd->bnm"}> : () -> ()
    %cst_73 = arith.constant dense<0.000000e+00> : vector<2x16x16xf32>
    %198 = tpu.matmul %196, %197, %cst_73 {dimension_numbers = #tpu.dot_dimension_numbers<[2], [2], [1], [1], [0, 0, 0, 1, 1, 1], [0], [0]>} : vector<2x16x8xbf16>, vector<2x16x8xbf16>, vector<2x16x16xf32> -> vector<2x16x16xf32>
    "tpu.trace_stop"() : () -> ()
    %cst_74 = arith.constant 0.353553385 : f32
    %199 = vector.broadcast %cst_74 : f32 to vector<2x16x16xf32>
    %200 = arith.mulf %198, %199 : vector<2x16x16xf32>
    %cst_75 = arith.constant dense<0xFF800000> : vector<2x16xf32>
    %201 = vector.multi_reduction <maximumf>, %200, %cst_75 [2] : vector<2x16x16xf32> to vector<2x16xf32>
    %202 = vector.shape_cast %201 : vector<2x16xf32> to vector<2x16x1xf32>
    %203 = vector.broadcast %202 : vector<2x16x1xf32> to vector<2x16x16xf32>
    %204 = arith.subf %200, %203 : vector<2x16x16xf32>
    %205 = math.exp %204 : vector<2x16x16xf32>
    %cst_76 = arith.constant dense<0.000000e+00> : vector<2x16xf32>
    %206 = vector.multi_reduction <add>, %205, %cst_76 [2] : vector<2x16x16xf32> to vector<2x16xf32>
    %207 = vector.shape_cast %206 : vector<2x16xf32> to vector<2x16x1xf32>
    %208 = tpu.reciprocal %207 {approx = true} : vector<2x16x1xf32> -> vector<2x16x1xf32>
    %209 = vector.broadcast %208 : vector<2x16x1xf32> to vector<2x16x16xf32>
    %210 = arith.mulf %205, %209 : vector<2x16x16xf32>
    %211 = arith.truncf %210 : vector<2x16x16xf32> to vector<2x16x16xbf16>
    %212 = vector.extract_strided_slice %177 {offsets = [0, 0, 8], sizes = [2, 16, 8], strides = [1, 1, 1]} : vector<2x16x32xbf16> to vector<2x16x8xbf16>
    "tpu.trace_start"() <{level = 10 : i32, message = "bnm,bmd->bnd"}> : () -> ()
    %cst_77 = arith.constant dense<0.000000e+00> : vector<2x16x8xf32>
    %213 = tpu.matmul %211, %212, %cst_77 {dimension_numbers = #tpu.dot_dimension_numbers<[2], [1], [1], [2], [0, 0, 0, 1, 1, 2], [0], [0]>} : vector<2x16x16xbf16>, vector<2x16x8xbf16>, vector<2x16x8xf32> -> vector<2x16x8xf32>
    "tpu.trace_stop"() : () -> ()
    %214 = vector.extract_strided_slice %173 {offsets = [0, 0, 16], sizes = [2, 16, 8], strides = [1, 1, 1]} : vector<2x16x32xbf16> to vector<2x16x8xbf16>
    %215 = vector.extract_strided_slice %175 {offsets = [0, 0, 16], sizes = [2, 16, 8], strides = [1, 1, 1]} : vector<2x16x32xbf16> to vector<2x16x8xbf16>
    "tpu.trace_start"() <{level = 10 : i32, message = "bnd,bmd->bnm"}> : () -> ()
    %cst_78 = arith.constant dense<0.000000e+00> : vector<2x16x16xf32>
    %216 = tpu.matmul %214, %215, %cst_78 {dimension_numbers = #tpu.dot_dimension_numbers<[2], [2], [1], [1], [0, 0, 0, 1, 1, 1], [0], [0]>} : vector<2x16x8xbf16>, vector<2x16x8xbf16>, vector<2x16x16xf32> -> vector<2x16x16xf32>
    "tpu.trace_stop"() : () -> ()
    %cst_79 = arith.constant 0.353553385 : f32
    %217 = vector.broadcast %cst_79 : f32 to vector<2x16x16xf32>
    %218 = arith.mulf %216, %217 : vector<2x16x16xf32>
    %cst_80 = arith.constant dense<0xFF800000> : vector<2x16xf32>
    %219 = vector.multi_reduction <maximumf>, %218, %cst_80 [2] : vector<2x16x16xf32> to vector<2x16xf32>
    %220 = vector.shape_cast %219 : vector<2x16xf32> to vector<2x16x1xf32>
    %221 = vector.broadcast %220 : vector<2x16x1xf32> to vector<2x16x16xf32>
    %222 = arith.subf %218, %221 : vector<2x16x16xf32>
    %223 = math.exp %222 : vector<2x16x16xf32>
    %cst_81 = arith.constant dense<0.000000e+00> : vector<2x16xf32>
    %224 = vector.multi_reduction <add>, %223, %cst_81 [2] : vector<2x16x16xf32> to vector<2x16xf32>
    %225 = vector.shape_cast %224 : vector<2x16xf32> to vector<2x16x1xf32>
    %226 = tpu.reciprocal %225 {approx = true} : vector<2x16x1xf32> -> vector<2x16x1xf32>
    %227 = vector.broadcast %226 : vector<2x16x1xf32> to vector<2x16x16xf32>
    %228 = arith.mulf %223, %227 : vector<2x16x16xf32>
    %229 = arith.truncf %228 : vector<2x16x16xf32> to vector<2x16x16xbf16>
    %230 = vector.extract_strided_slice %177 {offsets = [0, 0, 16], sizes = [2, 16, 8], strides = [1, 1, 1]} : vector<2x16x32xbf16> to vector<2x16x8xbf16>
    "tpu.trace_start"() <{level = 10 : i32, message = "bnm,bmd->bnd"}> : () -> ()
    %cst_82 = arith.constant dense<0.000000e+00> : vector<2x16x8xf32>
    %231 = tpu.matmul %229, %230, %cst_82 {dimension_numbers = #tpu.dot_dimension_numbers<[2], [1], [1], [2], [0, 0, 0, 1, 1, 2], [0], [0]>} : vector<2x16x16xbf16>, vector<2x16x8xbf16>, vector<2x16x8xf32> -> vector<2x16x8xf32>
    "tpu.trace_stop"() : () -> ()
    %232 = vector.extract_strided_slice %173 {offsets = [0, 0, 24], sizes = [2, 16, 8], strides = [1, 1, 1]} : vector<2x16x32xbf16> to vector<2x16x8xbf16>
    %233 = vector.extract_strided_slice %175 {offsets = [0, 0, 24], sizes = [2, 16, 8], strides = [1, 1, 1]} : vector<2x16x32xbf16> to vector<2x16x8xbf16>
    "tpu.trace_start"() <{level = 10 : i32, message = "bnd,bmd->bnm"}> : () -> ()
    %cst_83 = arith.constant dense<0.000000e+00> : vector<2x16x16xf32>
    %234 = tpu.matmul %232, %233, %cst_83 {dimension_numbers = #tpu.dot_dimension_numbers<[2], [2], [1], [1], [0, 0, 0, 1, 1, 1], [0], [0]>} : vector<2x16x8xbf16>, vector<2x16x8xbf16>, vector<2x16x16xf32> -> vector<2x16x16xf32>
    "tpu.trace_stop"() : () -> ()
    %cst_84 = arith.constant 0.353553385 : f32
    %235 = vector.broadcast %cst_84 : f32 to vector<2x16x16xf32>
    %236 = arith.mulf %234, %235 : vector<2x16x16xf32>
    %cst_85 = arith.constant dense<0xFF800000> : vector<2x16xf32>
    %237 = vector.multi_reduction <maximumf>, %236, %cst_85 [2] : vector<2x16x16xf32> to vector<2x16xf32>
    %238 = vector.shape_cast %237 : vector<2x16xf32> to vector<2x16x1xf32>
    %239 = vector.broadcast %238 : vector<2x16x1xf32> to vector<2x16x16xf32>
    %240 = arith.subf %236, %239 : vector<2x16x16xf32>
    %241 = math.exp %240 : vector<2x16x16xf32>
    %cst_86 = arith.constant dense<0.000000e+00> : vector<2x16xf32>
    %242 = vector.multi_reduction <add>, %241, %cst_86 [2] : vector<2x16x16xf32> to vector<2x16xf32>
    %243 = vector.shape_cast %242 : vector<2x16xf32> to vector<2x16x1xf32>
    %244 = tpu.reciprocal %243 {approx = true} : vector<2x16x1xf32> -> vector<2x16x1xf32>
    %245 = vector.broadcast %244 : vector<2x16x1xf32> to vector<2x16x16xf32>
    %246 = arith.mulf %241, %245 : vector<2x16x16xf32>
    %247 = arith.truncf %246 : vector<2x16x16xf32> to vector<2x16x16xbf16>
    %248 = vector.extract_strided_slice %177 {offsets = [0, 0, 24], sizes = [2, 16, 8], strides = [1, 1, 1]} : vector<2x16x32xbf16> to vector<2x16x8xbf16>
    "tpu.trace_start"() <{level = 10 : i32, message = "bnm,bmd->bnd"}> : () -> ()
    %cst_87 = arith.constant dense<0.000000e+00> : vector<2x16x8xf32>
    %249 = tpu.matmul %247, %248, %cst_87 {dimension_numbers = #tpu.dot_dimension_numbers<[2], [1], [1], [2], [0, 0, 0, 1, 1, 2], [0], [0]>} : vector<2x16x16xbf16>, vector<2x16x8xbf16>, vector<2x16x8xf32> -> vector<2x16x8xf32>
    "tpu.trace_stop"() : () -> ()
    %250 = tpu.concatenate %195, %213, %231, %249 in 2 : vector<2x16x8xf32>, vector<2x16x8xf32>, vector<2x16x8xf32>, vector<2x16x8xf32> -> vector<2x16x32xf32>
    %251 = vector.shape_cast %250 : vector<2x16x32xf32> to vector<32x32xf32>
    %252 = arith.truncf %251 : vector<32x32xf32> to vector<32x32xbf16>
    %c368 = arith.constant 368 : index
    %c0_88 = arith.constant 0 : index
    %253 = vector.load %arg2[%c368, %c0_88] : memref<1216x128xbf16, #tpu.memory_space<vmem>>, vector<32x32xbf16>
    %cst_89 = arith.constant dense<0.000000e+00> : vector<32x32xf32>
    %254 = tpu.matmul %252, %253, %cst_89 {dimension_numbers = #tpu.dot_dimension_numbers<[1], [0], [0], [1], [0, 0, 1, 1], [], []>} : vector<32x32xbf16>, vector<32x32xbf16>, vector<32x32xf32> -> vector<32x32xf32>
    %c96 = arith.constant 96 : index
    %c0_90 = arith.constant 0 : index
    %255 = vector.load %arg3[%c96, %c0_90] : memref<312x128xf32, #tpu.memory_space<vmem>>, vector<1x32xf32>
    %256 = vector.broadcast %255 : vector<1x32xf32> to vector<32x32xf32>
    %257 = arith.addf %254, %256 : vector<32x32xf32>
    %258 = arith.addf %138, %257 : vector<32x32xf32>
    %c104 = arith.constant 104 : index
    %c0_91 = arith.constant 0 : index
    %259 = vector.load %arg3[%c104, %c0_91] : memref<312x128xf32, #tpu.memory_space<vmem>>, vector<1x32xf32>
    %c112_92 = arith.constant 112 : index
    %c0_93 = arith.constant 0 : index
    %260 = vector.load %arg3[%c112_92, %c0_93] : memref<312x128xf32, #tpu.memory_space<vmem>>, vector<1x32xf32>
    %cst_94 = arith.constant dense<0.000000e+00> : vector<32xf32>
    %261 = vector.multi_reduction <add>, %258, %cst_94 [1] : vector<32x32xf32> to vector<32xf32>
    %262 = vector.shape_cast %261 : vector<32xf32> to vector<32x1xf32>
    %cst_95 = arith.constant 3.200000e+01 : f32
    %263 = vector.broadcast %cst_95 : f32 to vector<32x1xf32>
    %264 = arith.divf %262, %263 : vector<32x1xf32>
    %265 = vector.broadcast %264 : vector<32x1xf32> to vector<32x32xf32>
    %266 = arith.subf %258, %265 : vector<32x32xf32>
    %267 = arith.mulf %266, %266 : vector<32x32xf32>
    %cst_96 = arith.constant dense<0.000000e+00> : vector<32xf32>
    %268 = vector.multi_reduction <add>, %267, %cst_96 [1] : vector<32x32xf32> to vector<32xf32>
    %269 = vector.shape_cast %268 : vector<32xf32> to vector<32x1xf32>
    %cst_97 = arith.constant 3.200000e+01 : f32
    %270 = vector.broadcast %cst_97 : f32 to vector<32x1xf32>
    %271 = arith.divf %269, %270 : vector<32x1xf32>
    %272 = vector.broadcast %264 : vector<32x1xf32> to vector<32x32xf32>
    %273 = arith.subf %258, %272 : vector<32x32xf32>
    %cst_98 = arith.constant 9.99999974E-6 : f32
    %274 = vector.broadcast %cst_98 : f32 to vector<32x1xf32>
    %275 = arith.addf %271, %274 : vector<32x1xf32>
    %276 = math.rsqrt %275 : vector<32x1xf32>
    %277 = vector.broadcast %276 : vector<32x1xf32> to vector<32x32xf32>
    %278 = arith.mulf %273, %277 : vector<32x32xf32>
    %279 = vector.broadcast %259 : vector<1x32xf32> to vector<32x32xf32>
    %280 = arith.mulf %278, %279 : vector<32x32xf32>
    %281 = vector.broadcast %260 : vector<1x32xf32> to vector<32x32xf32>
    %282 = arith.addf %280, %281 : vector<32x32xf32>
    %283 = arith.truncf %282 : vector<32x32xf32> to vector<32x32xbf16>
    %c400 = arith.constant 400 : index
    %c0_99 = arith.constant 0 : index
    %284 = vector.load %arg2[%c400, %c0_99] : memref<1216x128xbf16, #tpu.memory_space<vmem>>, vector<32x128xbf16>
    %cst_100 = arith.constant dense<0.000000e+00> : vector<32x128xf32>
    %285 = tpu.matmul %283, %284, %cst_100 {dimension_numbers = #tpu.dot_dimension_numbers<[1], [0], [0], [1], [0, 0, 1, 1], [], []>} : vector<32x32xbf16>, vector<32x128xbf16>, vector<32x128xf32> -> vector<32x128xf32>
    %c120 = arith.constant 120 : index
    %c0_101 = arith.constant 0 : index
    %286 = vector.load %arg3[%c120, %c0_101] : memref<312x128xf32, #tpu.memory_space<vmem>>, vector<1x128xf32>
    %287 = vector.broadcast %286 : vector<1x128xf32> to vector<32x128xf32>
    %288 = arith.addf %285, %287 : vector<32x128xf32>
    %c432 = arith.constant 432 : index
    %c0_102 = arith.constant 0 : index
    %289 = vector.load %arg2[%c432, %c0_102] : memref<1216x128xbf16, #tpu.memory_space<vmem>>, vector<32x128xbf16>
    %cst_103 = arith.constant dense<0.000000e+00> : vector<32x128xf32>
    %290 = tpu.matmul %283, %289, %cst_103 {dimension_numbers = #tpu.dot_dimension_numbers<[1], [0], [0], [1], [0, 0, 1, 1], [], []>} : vector<32x32xbf16>, vector<32x128xbf16>, vector<32x128xf32> -> vector<32x128xf32>
    %c128 = arith.constant 128 : index
    %c0_104 = arith.constant 0 : index
    %291 = vector.load %arg3[%c128, %c0_104] : memref<312x128xf32, #tpu.memory_space<vmem>>, vector<1x128xf32>
    %292 = vector.broadcast %291 : vector<1x128xf32> to vector<32x128xf32>
    %293 = arith.addf %290, %292 : vector<32x128xf32>
    %cst_105 = arith.constant 5.000000e-01 : f32
    %294 = vector.broadcast %cst_105 : f32 to vector<32x128xf32>
    %295 = arith.mulf %294, %293 : vector<32x128xf32>
    %cst_106 = arith.constant 0.707106769 : f32
    %296 = vector.broadcast %cst_106 : f32 to vector<32x128xf32>
    %297 = arith.mulf %293, %296 : vector<32x128xf32>
    %298 = math.erf %297 : vector<32x128xf32>
    %cst_107 = arith.constant 1.000000e+00 : f32
    %299 = vector.broadcast %cst_107 : f32 to vector<32x128xf32>
    %300 = arith.addf %299, %298 : vector<32x128xf32>
    %301 = arith.mulf %295, %300 : vector<32x128xf32>
    %302 = arith.mulf %288, %301 : vector<32x128xf32>
    %303 = arith.truncf %302 : vector<32x128xf32> to vector<32x128xbf16>
    %c464 = arith.constant 464 : index
    %c0_108 = arith.constant 0 : index
    %304 = vector.load %arg2[%c464, %c0_108] : memref<1216x128xbf16, #tpu.memory_space<vmem>>, vector<128x32xbf16>
    %cst_109 = arith.constant dense<0.000000e+00> : vector<32x32xf32>
    %305 = tpu.matmul %303, %304, %cst_109 {dimension_numbers = #tpu.dot_dimension_numbers<[1], [0], [0], [1], [0, 0, 1, 1], [], []>} : vector<32x128xbf16>, vector<128x32xbf16>, vector<32x32xf32> -> vector<32x32xf32>
    %c136 = arith.constant 136 : index
    %c0_110 = arith.constant 0 : index
    %306 = vector.load %arg3[%c136, %c0_110] : memref<312x128xf32, #tpu.memory_space<vmem>>, vector<1x32xf32>
    %307 = vector.broadcast %306 : vector<1x32xf32> to vector<32x32xf32>
    %308 = arith.addf %305, %307 : vector<32x32xf32>
    %309 = arith.addf %258, %308 : vector<32x32xf32>
    %c144_111 = arith.constant 144 : index
    %c0_112 = arith.constant 0 : index
    %310 = vector.load %arg3[%c144_111, %c0_112] : memref<312x128xf32, #tpu.memory_space<vmem>>, vector<1x32xf32>
    %c152 = arith.constant 152 : index
    %c0_113 = arith.constant 0 : index
    %311 = vector.load %arg3[%c152, %c0_113] : memref<312x128xf32, #tpu.memory_space<vmem>>, vector<1x32xf32>
    %cst_114 = arith.constant dense<0.000000e+00> : vector<32xf32>
    %312 = vector.multi_reduction <add>, %309, %cst_114 [1] : vector<32x32xf32> to vector<32xf32>
    %313 = vector.shape_cast %312 : vector<32xf32> to vector<32x1xf32>
    %cst_115 = arith.constant 3.200000e+01 : f32
    %314 = vector.broadcast %cst_115 : f32 to vector<32x1xf32>
    %315 = arith.divf %313, %314 : vector<32x1xf32>
    %316 = vector.broadcast %315 : vector<32x1xf32> to vector<32x32xf32>
    %317 = arith.subf %309, %316 : vector<32x32xf32>
    %318 = arith.mulf %317, %317 : vector<32x32xf32>
    %cst_116 = arith.constant dense<0.000000e+00> : vector<32xf32>
    %319 = vector.multi_reduction <add>, %318, %cst_116 [1] : vector<32x32xf32> to vector<32xf32>
    %320 = vector.shape_cast %319 : vector<32xf32> to vector<32x1xf32>
    %cst_117 = arith.constant 3.200000e+01 : f32
    %321 = vector.broadcast %cst_117 : f32 to vector<32x1xf32>
    %322 = arith.divf %320, %321 : vector<32x1xf32>
    %323 = vector.broadcast %315 : vector<32x1xf32> to vector<32x32xf32>
    %324 = arith.subf %309, %323 : vector<32x32xf32>
    %cst_118 = arith.constant 9.99999974E-6 : f32
    %325 = vector.broadcast %cst_118 : f32 to vector<32x1xf32>
    %326 = arith.addf %322, %325 : vector<32x1xf32>
    %327 = math.rsqrt %326 : vector<32x1xf32>
    %328 = vector.broadcast %327 : vector<32x1xf32> to vector<32x32xf32>
    %329 = arith.mulf %324, %328 : vector<32x32xf32>
    %330 = vector.broadcast %310 : vector<1x32xf32> to vector<32x32xf32>
    %331 = arith.mulf %329, %330 : vector<32x32xf32>
    %332 = vector.broadcast %311 : vector<1x32xf32> to vector<32x32xf32>
    %333 = arith.addf %331, %332 : vector<32x32xf32>
    %c160 = arith.constant 160 : index
    %c0_119 = arith.constant 0 : index
    %334 = vector.load %arg3[%c160, %c0_119] : memref<312x128xf32, #tpu.memory_space<vmem>>, vector<1x14xf32>
    %c168 = arith.constant 168 : index
    %c0_120 = arith.constant 0 : index
    %335 = vector.load %arg3[%c168, %c0_120] : memref<312x128xf32, #tpu.memory_space<vmem>>, vector<1x14xf32>
    %cst_121 = arith.constant dense<0.000000e+00> : vector<128xf32>
    %336 = vector.multi_reduction <add>, %0, %cst_121 [1] : vector<128x14xf32> to vector<128xf32>
    %337 = vector.shape_cast %336 : vector<128xf32> to vector<128x1xf32>
    %cst_122 = arith.constant 1.400000e+01 : f32
    %338 = vector.broadcast %cst_122 : f32 to vector<128x1xf32>
    %339 = arith.divf %337, %338 : vector<128x1xf32>
    %340 = vector.broadcast %339 : vector<128x1xf32> to vector<128x14xf32>
    %341 = arith.subf %0, %340 : vector<128x14xf32>
    %342 = arith.mulf %341, %341 : vector<128x14xf32>
    %cst_123 = arith.constant dense<0.000000e+00> : vector<128xf32>
    %343 = vector.multi_reduction <add>, %342, %cst_123 [1] : vector<128x14xf32> to vector<128xf32>
    %344 = vector.shape_cast %343 : vector<128xf32> to vector<128x1xf32>
    %cst_124 = arith.constant 1.400000e+01 : f32
    %345 = vector.broadcast %cst_124 : f32 to vector<128x1xf32>
    %346 = arith.divf %344, %345 : vector<128x1xf32>
    %347 = vector.broadcast %339 : vector<128x1xf32> to vector<128x14xf32>
    %348 = arith.subf %0, %347 : vector<128x14xf32>
    %cst_125 = arith.constant 9.99999974E-6 : f32
    %349 = vector.broadcast %cst_125 : f32 to vector<128x1xf32>
    %350 = arith.addf %346, %349 : vector<128x1xf32>
    %351 = math.rsqrt %350 : vector<128x1xf32>
    %352 = vector.broadcast %351 : vector<128x1xf32> to vector<128x14xf32>
    %353 = arith.mulf %348, %352 : vector<128x14xf32>
    %354 = vector.broadcast %334 : vector<1x14xf32> to vector<128x14xf32>
    %355 = arith.mulf %353, %354 : vector<128x14xf32>
    %356 = vector.broadcast %335 : vector<1x14xf32> to vector<128x14xf32>
    %357 = arith.addf %355, %356 : vector<128x14xf32>
    %358 = arith.truncf %333 : vector<32x32xf32> to vector<32x32xbf16>
    %c592 = arith.constant 592 : index
    %c0_126 = arith.constant 0 : index
    %359 = vector.load %arg2[%c592, %c0_126] : memref<1216x128xbf16, #tpu.memory_space<vmem>>, vector<32x16xbf16>
    %cst_127 = arith.constant dense<0.000000e+00> : vector<32x16xf32>
    %360 = tpu.matmul %358, %359, %cst_127 {dimension_numbers = #tpu.dot_dimension_numbers<[1], [0], [0], [1], [0, 0, 1, 1], [], []>} : vector<32x32xbf16>, vector<32x16xbf16>, vector<32x16xf32> -> vector<32x16xf32>
    %361 = arith.truncf %357 : vector<128x14xf32> to vector<128x14xbf16>
    %c624 = arith.constant 624 : index
    %c0_128 = arith.constant 0 : index
    %362 = vector.load %arg2[%c624, %c0_128] : memref<1216x128xbf16, #tpu.memory_space<vmem>>, vector<14x16xbf16>
    %cst_129 = arith.constant dense<0.000000e+00> : vector<128x16xf32>
    %363 = tpu.matmul %361, %362, %cst_129 {dimension_numbers = #tpu.dot_dimension_numbers<[1], [0], [0], [1], [0, 0, 1, 1], [], []>} : vector<128x14xbf16>, vector<14x16xbf16>, vector<128x16xf32> -> vector<128x16xf32>
    %364 = arith.truncf %357 : vector<128x14xf32> to vector<128x14xbf16>
    %c640 = arith.constant 640 : index
    %c0_130 = arith.constant 0 : index
    %365 = vector.load %arg2[%c640, %c0_130] : memref<1216x128xbf16, #tpu.memory_space<vmem>>, vector<14x16xbf16>
    %cst_131 = arith.constant dense<0.000000e+00> : vector<128x16xf32>
    %366 = tpu.matmul %364, %365, %cst_131 {dimension_numbers = #tpu.dot_dimension_numbers<[1], [0], [0], [1], [0, 0, 1, 1], [], []>} : vector<128x14xbf16>, vector<14x16xbf16>, vector<128x16xf32> -> vector<128x16xf32>
    %367 = arith.truncf %360 : vector<32x16xf32> to vector<32x16xbf16>
    %368 = vector.shape_cast %367 : vector<32x16xbf16> to vector<2x16x16xbf16>
    %369 = arith.truncf %363 : vector<128x16xf32> to vector<128x16xbf16>
    %370 = vector.shape_cast %369 : vector<128x16xbf16> to vector<2x64x16xbf16>
    %371 = arith.truncf %366 : vector<128x16xf32> to vector<128x16xbf16>
    %372 = vector.shape_cast %371 : vector<128x16xbf16> to vector<2x64x16xbf16>
    "tpu.trace_start"() <{level = 10 : i32, message = "bnd,bmd->bnm"}> : () -> ()
    %cst_132 = arith.constant dense<0.000000e+00> : vector<2x16x64xf32>
    %373 = tpu.matmul %368, %370, %cst_132 {dimension_numbers = #tpu.dot_dimension_numbers<[2], [2], [1], [1], [0, 0, 0, 1, 1, 1], [0], [0]>} : vector<2x16x16xbf16>, vector<2x64x16xbf16>, vector<2x16x64xf32> -> vector<2x16x64xf32>
    "tpu.trace_stop"() : () -> ()
    %cst_133 = arith.constant 2.500000e-01 : f32
    %374 = vector.broadcast %cst_133 : f32 to vector<2x16x64xf32>
    %375 = arith.mulf %373, %374 : vector<2x16x64xf32>
    %cst_134 = arith.constant dense<0xFF800000> : vector<2x16xf32>
    %376 = vector.multi_reduction <maximumf>, %375, %cst_134 [2] : vector<2x16x64xf32> to vector<2x16xf32>
    %377 = vector.shape_cast %376 : vector<2x16xf32> to vector<2x16x1xf32>
    %378 = vector.broadcast %377 : vector<2x16x1xf32> to vector<2x16x64xf32>
    %379 = arith.subf %375, %378 : vector<2x16x64xf32>
    %380 = math.exp %379 : vector<2x16x64xf32>
    %cst_135 = arith.constant dense<0.000000e+00> : vector<2x16xf32>
    %381 = vector.multi_reduction <add>, %380, %cst_135 [2] : vector<2x16x64xf32> to vector<2x16xf32>
    %382 = vector.shape_cast %381 : vector<2x16xf32> to vector<2x16x1xf32>
    %383 = tpu.reciprocal %382 {approx = true} : vector<2x16x1xf32> -> vector<2x16x1xf32>
    %384 = vector.broadcast %383 : vector<2x16x1xf32> to vector<2x16x64xf32>
    %385 = arith.mulf %380, %384 : vector<2x16x64xf32>
    %386 = arith.truncf %385 : vector<2x16x64xf32> to vector<2x16x64xbf16>
    "tpu.trace_start"() <{level = 10 : i32, message = "bnm,bmd->bnd"}> : () -> ()
    %cst_136 = arith.constant dense<0.000000e+00> : vector<2x16x16xf32>
    %387 = tpu.matmul %386, %372, %cst_136 {dimension_numbers = #tpu.dot_dimension_numbers<[2], [1], [1], [2], [0, 0, 0, 1, 1, 2], [0], [0]>} : vector<2x16x64xbf16>, vector<2x64x16xbf16>, vector<2x16x16xf32> -> vector<2x16x16xf32>
    "tpu.trace_stop"() : () -> ()
    %388 = vector.shape_cast %387 : vector<2x16x16xf32> to vector<32x16xf32>
    %389 = arith.truncf %388 : vector<32x16xf32> to vector<32x16xbf16>
    %c656 = arith.constant 656 : index
    %c0_137 = arith.constant 0 : index
    %390 = vector.load %arg2[%c656, %c0_137] : memref<1216x128xbf16, #tpu.memory_space<vmem>>, vector<16x32xbf16>
    %cst_138 = arith.constant dense<0.000000e+00> : vector<32x32xf32>
    %391 = tpu.matmul %389, %390, %cst_138 {dimension_numbers = #tpu.dot_dimension_numbers<[1], [0], [0], [1], [0, 0, 1, 1], [], []>} : vector<32x16xbf16>, vector<16x32xbf16>, vector<32x32xf32> -> vector<32x32xf32>
    %c176 = arith.constant 176 : index
    %c0_139 = arith.constant 0 : index
    %392 = vector.load %arg3[%c176, %c0_139] : memref<312x128xf32, #tpu.memory_space<vmem>>, vector<1x32xf32>
    %393 = vector.broadcast %392 : vector<1x32xf32> to vector<32x32xf32>
    %394 = arith.addf %391, %393 : vector<32x32xf32>
    %395 = arith.addf %309, %394 : vector<32x32xf32>
    %c184 = arith.constant 184 : index
    %c0_140 = arith.constant 0 : index
    %396 = vector.load %arg3[%c184, %c0_140] : memref<312x128xf32, #tpu.memory_space<vmem>>, vector<1x32xf32>
    %c192 = arith.constant 192 : index
    %c0_141 = arith.constant 0 : index
    %397 = vector.load %arg3[%c192, %c0_141] : memref<312x128xf32, #tpu.memory_space<vmem>>, vector<1x32xf32>
    %cst_142 = arith.constant dense<0.000000e+00> : vector<32xf32>
    %398 = vector.multi_reduction <add>, %395, %cst_142 [1] : vector<32x32xf32> to vector<32xf32>
    %399 = vector.shape_cast %398 : vector<32xf32> to vector<32x1xf32>
    %cst_143 = arith.constant 3.200000e+01 : f32
    %400 = vector.broadcast %cst_143 : f32 to vector<32x1xf32>
    %401 = arith.divf %399, %400 : vector<32x1xf32>
    %402 = vector.broadcast %401 : vector<32x1xf32> to vector<32x32xf32>
    %403 = arith.subf %395, %402 : vector<32x32xf32>
    %404 = arith.mulf %403, %403 : vector<32x32xf32>
    %cst_144 = arith.constant dense<0.000000e+00> : vector<32xf32>
    %405 = vector.multi_reduction <add>, %404, %cst_144 [1] : vector<32x32xf32> to vector<32xf32>
    %406 = vector.shape_cast %405 : vector<32xf32> to vector<32x1xf32>
    %cst_145 = arith.constant 3.200000e+01 : f32
    %407 = vector.broadcast %cst_145 : f32 to vector<32x1xf32>
    %408 = arith.divf %406, %407 : vector<32x1xf32>
    %409 = vector.broadcast %401 : vector<32x1xf32> to vector<32x32xf32>
    %410 = arith.subf %395, %409 : vector<32x32xf32>
    %cst_146 = arith.constant 9.99999974E-6 : f32
    %411 = vector.broadcast %cst_146 : f32 to vector<32x1xf32>
    %412 = arith.addf %408, %411 : vector<32x1xf32>
    %413 = math.rsqrt %412 : vector<32x1xf32>
    %414 = vector.broadcast %413 : vector<32x1xf32> to vector<32x32xf32>
    %415 = arith.mulf %410, %414 : vector<32x32xf32>
    %416 = vector.broadcast %396 : vector<1x32xf32> to vector<32x32xf32>
    %417 = arith.mulf %415, %416 : vector<32x32xf32>
    %418 = vector.broadcast %397 : vector<1x32xf32> to vector<32x32xf32>
    %419 = arith.addf %417, %418 : vector<32x32xf32>
    %420 = arith.truncf %419 : vector<32x32xf32> to vector<32x32xbf16>
    %c672 = arith.constant 672 : index
    %c0_147 = arith.constant 0 : index
    %421 = vector.load %arg2[%c672, %c0_147] : memref<1216x128xbf16, #tpu.memory_space<vmem>>, vector<32x128xbf16>
    %cst_148 = arith.constant dense<0.000000e+00> : vector<32x128xf32>
    %422 = tpu.matmul %420, %421, %cst_148 {dimension_numbers = #tpu.dot_dimension_numbers<[1], [0], [0], [1], [0, 0, 1, 1], [], []>} : vector<32x32xbf16>, vector<32x128xbf16>, vector<32x128xf32> -> vector<32x128xf32>
    %c200 = arith.constant 200 : index
    %c0_149 = arith.constant 0 : index
    %423 = vector.load %arg3[%c200, %c0_149] : memref<312x128xf32, #tpu.memory_space<vmem>>, vector<1x128xf32>
    %424 = vector.broadcast %423 : vector<1x128xf32> to vector<32x128xf32>
    %425 = arith.addf %422, %424 : vector<32x128xf32>
    %c704 = arith.constant 704 : index
    %c0_150 = arith.constant 0 : index
    %426 = vector.load %arg2[%c704, %c0_150] : memref<1216x128xbf16, #tpu.memory_space<vmem>>, vector<32x128xbf16>
    %cst_151 = arith.constant dense<0.000000e+00> : vector<32x128xf32>
    %427 = tpu.matmul %420, %426, %cst_151 {dimension_numbers = #tpu.dot_dimension_numbers<[1], [0], [0], [1], [0, 0, 1, 1], [], []>} : vector<32x32xbf16>, vector<32x128xbf16>, vector<32x128xf32> -> vector<32x128xf32>
    %c208 = arith.constant 208 : index
    %c0_152 = arith.constant 0 : index
    %428 = vector.load %arg3[%c208, %c0_152] : memref<312x128xf32, #tpu.memory_space<vmem>>, vector<1x128xf32>
    %429 = vector.broadcast %428 : vector<1x128xf32> to vector<32x128xf32>
    %430 = arith.addf %427, %429 : vector<32x128xf32>
    %cst_153 = arith.constant 5.000000e-01 : f32
    %431 = vector.broadcast %cst_153 : f32 to vector<32x128xf32>
    %432 = arith.mulf %431, %430 : vector<32x128xf32>
    %cst_154 = arith.constant 0.707106769 : f32
    %433 = vector.broadcast %cst_154 : f32 to vector<32x128xf32>
    %434 = arith.mulf %430, %433 : vector<32x128xf32>
    %435 = math.erf %434 : vector<32x128xf32>
    %cst_155 = arith.constant 1.000000e+00 : f32
    %436 = vector.broadcast %cst_155 : f32 to vector<32x128xf32>
    %437 = arith.addf %436, %435 : vector<32x128xf32>
    %438 = arith.mulf %432, %437 : vector<32x128xf32>
    %439 = arith.mulf %425, %438 : vector<32x128xf32>
    %440 = arith.truncf %439 : vector<32x128xf32> to vector<32x128xbf16>
    %c736 = arith.constant 736 : index
    %c0_156 = arith.constant 0 : index
    %441 = vector.load %arg2[%c736, %c0_156] : memref<1216x128xbf16, #tpu.memory_space<vmem>>, vector<128x32xbf16>
    %cst_157 = arith.constant dense<0.000000e+00> : vector<32x32xf32>
    %442 = tpu.matmul %440, %441, %cst_157 {dimension_numbers = #tpu.dot_dimension_numbers<[1], [0], [0], [1], [0, 0, 1, 1], [], []>} : vector<32x128xbf16>, vector<128x32xbf16>, vector<32x32xf32> -> vector<32x32xf32>
    %c216 = arith.constant 216 : index
    %c0_158 = arith.constant 0 : index
    %443 = vector.load %arg3[%c216, %c0_158] : memref<312x128xf32, #tpu.memory_space<vmem>>, vector<1x32xf32>
    %444 = vector.broadcast %443 : vector<1x32xf32> to vector<32x32xf32>
    %445 = arith.addf %442, %444 : vector<32x32xf32>
    %446 = arith.addf %395, %445 : vector<32x32xf32>
    %c224 = arith.constant 224 : index
    %c0_159 = arith.constant 0 : index
    %447 = vector.load %arg3[%c224, %c0_159] : memref<312x128xf32, #tpu.memory_space<vmem>>, vector<1x32xf32>
    %c232 = arith.constant 232 : index
    %c0_160 = arith.constant 0 : index
    %448 = vector.load %arg3[%c232, %c0_160] : memref<312x128xf32, #tpu.memory_space<vmem>>, vector<1x32xf32>
    %cst_161 = arith.constant dense<0.000000e+00> : vector<32xf32>
    %449 = vector.multi_reduction <add>, %446, %cst_161 [1] : vector<32x32xf32> to vector<32xf32>
    %450 = vector.shape_cast %449 : vector<32xf32> to vector<32x1xf32>
    %cst_162 = arith.constant 3.200000e+01 : f32
    %451 = vector.broadcast %cst_162 : f32 to vector<32x1xf32>
    %452 = arith.divf %450, %451 : vector<32x1xf32>
    %453 = vector.broadcast %452 : vector<32x1xf32> to vector<32x32xf32>
    %454 = arith.subf %446, %453 : vector<32x32xf32>
    %455 = arith.mulf %454, %454 : vector<32x32xf32>
    %cst_163 = arith.constant dense<0.000000e+00> : vector<32xf32>
    %456 = vector.multi_reduction <add>, %455, %cst_163 [1] : vector<32x32xf32> to vector<32xf32>
    %457 = vector.shape_cast %456 : vector<32xf32> to vector<32x1xf32>
    %cst_164 = arith.constant 3.200000e+01 : f32
    %458 = vector.broadcast %cst_164 : f32 to vector<32x1xf32>
    %459 = arith.divf %457, %458 : vector<32x1xf32>
    %460 = vector.broadcast %452 : vector<32x1xf32> to vector<32x32xf32>
    %461 = arith.subf %446, %460 : vector<32x32xf32>
    %cst_165 = arith.constant 9.99999974E-6 : f32
    %462 = vector.broadcast %cst_165 : f32 to vector<32x1xf32>
    %463 = arith.addf %459, %462 : vector<32x1xf32>
    %464 = math.rsqrt %463 : vector<32x1xf32>
    %465 = vector.broadcast %464 : vector<32x1xf32> to vector<32x32xf32>
    %466 = arith.mulf %461, %465 : vector<32x32xf32>
    %467 = vector.broadcast %447 : vector<1x32xf32> to vector<32x32xf32>
    %468 = arith.mulf %466, %467 : vector<32x32xf32>
    %469 = vector.broadcast %448 : vector<1x32xf32> to vector<32x32xf32>
    %470 = arith.addf %468, %469 : vector<32x32xf32>
    %471 = arith.truncf %470 : vector<32x32xf32> to vector<32x32xbf16>
    %c864 = arith.constant 864 : index
    %c0_166 = arith.constant 0 : index
    %472 = vector.load %arg2[%c864, %c0_166] : memref<1216x128xbf16, #tpu.memory_space<vmem>>, vector<32x32xbf16>
    %cst_167 = arith.constant dense<0.000000e+00> : vector<32x32xf32>
    %473 = tpu.matmul %471, %472, %cst_167 {dimension_numbers = #tpu.dot_dimension_numbers<[1], [0], [0], [1], [0, 0, 1, 1], [], []>} : vector<32x32xbf16>, vector<32x32xbf16>, vector<32x32xf32> -> vector<32x32xf32>
    %474 = arith.truncf %470 : vector<32x32xf32> to vector<32x32xbf16>
    %c896 = arith.constant 896 : index
    %c0_168 = arith.constant 0 : index
    %475 = vector.load %arg2[%c896, %c0_168] : memref<1216x128xbf16, #tpu.memory_space<vmem>>, vector<32x32xbf16>
    %cst_169 = arith.constant dense<0.000000e+00> : vector<32x32xf32>
    %476 = tpu.matmul %474, %475, %cst_169 {dimension_numbers = #tpu.dot_dimension_numbers<[1], [0], [0], [1], [0, 0, 1, 1], [], []>} : vector<32x32xbf16>, vector<32x32xbf16>, vector<32x32xf32> -> vector<32x32xf32>
    %477 = arith.truncf %470 : vector<32x32xf32> to vector<32x32xbf16>
    %c928 = arith.constant 928 : index
    %c0_170 = arith.constant 0 : index
    %478 = vector.load %arg2[%c928, %c0_170] : memref<1216x128xbf16, #tpu.memory_space<vmem>>, vector<32x32xbf16>
    %cst_171 = arith.constant dense<0.000000e+00> : vector<32x32xf32>
    %479 = tpu.matmul %477, %478, %cst_171 {dimension_numbers = #tpu.dot_dimension_numbers<[1], [0], [0], [1], [0, 0, 1, 1], [], []>} : vector<32x32xbf16>, vector<32x32xbf16>, vector<32x32xf32> -> vector<32x32xf32>
    %480 = arith.truncf %473 : vector<32x32xf32> to vector<32x32xbf16>
    %481 = vector.shape_cast %480 : vector<32x32xbf16> to vector<2x16x32xbf16>
    %482 = arith.truncf %476 : vector<32x32xf32> to vector<32x32xbf16>
    %483 = vector.shape_cast %482 : vector<32x32xbf16> to vector<2x16x32xbf16>
    %484 = arith.truncf %479 : vector<32x32xf32> to vector<32x32xbf16>
    %485 = vector.shape_cast %484 : vector<32x32xbf16> to vector<2x16x32xbf16>
    %486 = vector.extract_strided_slice %481 {offsets = [0, 0, 0], sizes = [2, 16, 8], strides = [1, 1, 1]} : vector<2x16x32xbf16> to vector<2x16x8xbf16>
    %487 = vector.extract_strided_slice %483 {offsets = [0, 0, 0], sizes = [2, 16, 8], strides = [1, 1, 1]} : vector<2x16x32xbf16> to vector<2x16x8xbf16>
    "tpu.trace_start"() <{level = 10 : i32, message = "bnd,bmd->bnm"}> : () -> ()
    %cst_172 = arith.constant dense<0.000000e+00> : vector<2x16x16xf32>
    %488 = tpu.matmul %486, %487, %cst_172 {dimension_numbers = #tpu.dot_dimension_numbers<[2], [2], [1], [1], [0, 0, 0, 1, 1, 1], [0], [0]>} : vector<2x16x8xbf16>, vector<2x16x8xbf16>, vector<2x16x16xf32> -> vector<2x16x16xf32>
    "tpu.trace_stop"() : () -> ()
    %cst_173 = arith.constant 0.353553385 : f32
    %489 = vector.broadcast %cst_173 : f32 to vector<2x16x16xf32>
    %490 = arith.mulf %488, %489 : vector<2x16x16xf32>
    %cst_174 = arith.constant dense<0xFF800000> : vector<2x16xf32>
    %491 = vector.multi_reduction <maximumf>, %490, %cst_174 [2] : vector<2x16x16xf32> to vector<2x16xf32>
    %492 = vector.shape_cast %491 : vector<2x16xf32> to vector<2x16x1xf32>
    %493 = vector.broadcast %492 : vector<2x16x1xf32> to vector<2x16x16xf32>
    %494 = arith.subf %490, %493 : vector<2x16x16xf32>
    %495 = math.exp %494 : vector<2x16x16xf32>
    %cst_175 = arith.constant dense<0.000000e+00> : vector<2x16xf32>
    %496 = vector.multi_reduction <add>, %495, %cst_175 [2] : vector<2x16x16xf32> to vector<2x16xf32>
    %497 = vector.shape_cast %496 : vector<2x16xf32> to vector<2x16x1xf32>
    %498 = tpu.reciprocal %497 {approx = true} : vector<2x16x1xf32> -> vector<2x16x1xf32>
    %499 = vector.broadcast %498 : vector<2x16x1xf32> to vector<2x16x16xf32>
    %500 = arith.mulf %495, %499 : vector<2x16x16xf32>
    %501 = arith.truncf %500 : vector<2x16x16xf32> to vector<2x16x16xbf16>
    %502 = vector.extract_strided_slice %485 {offsets = [0, 0, 0], sizes = [2, 16, 8], strides = [1, 1, 1]} : vector<2x16x32xbf16> to vector<2x16x8xbf16>
    "tpu.trace_start"() <{level = 10 : i32, message = "bnm,bmd->bnd"}> : () -> ()
    %cst_176 = arith.constant dense<0.000000e+00> : vector<2x16x8xf32>
    %503 = tpu.matmul %501, %502, %cst_176 {dimension_numbers = #tpu.dot_dimension_numbers<[2], [1], [1], [2], [0, 0, 0, 1, 1, 2], [0], [0]>} : vector<2x16x16xbf16>, vector<2x16x8xbf16>, vector<2x16x8xf32> -> vector<2x16x8xf32>
    "tpu.trace_stop"() : () -> ()
    %504 = vector.extract_strided_slice %481 {offsets = [0, 0, 8], sizes = [2, 16, 8], strides = [1, 1, 1]} : vector<2x16x32xbf16> to vector<2x16x8xbf16>
    %505 = vector.extract_strided_slice %483 {offsets = [0, 0, 8], sizes = [2, 16, 8], strides = [1, 1, 1]} : vector<2x16x32xbf16> to vector<2x16x8xbf16>
    "tpu.trace_start"() <{level = 10 : i32, message = "bnd,bmd->bnm"}> : () -> ()
    %cst_177 = arith.constant dense<0.000000e+00> : vector<2x16x16xf32>
    %506 = tpu.matmul %504, %505, %cst_177 {dimension_numbers = #tpu.dot_dimension_numbers<[2], [2], [1], [1], [0, 0, 0, 1, 1, 1], [0], [0]>} : vector<2x16x8xbf16>, vector<2x16x8xbf16>, vector<2x16x16xf32> -> vector<2x16x16xf32>
    "tpu.trace_stop"() : () -> ()
    %cst_178 = arith.constant 0.353553385 : f32
    %507 = vector.broadcast %cst_178 : f32 to vector<2x16x16xf32>
    %508 = arith.mulf %506, %507 : vector<2x16x16xf32>
    %cst_179 = arith.constant dense<0xFF800000> : vector<2x16xf32>
    %509 = vector.multi_reduction <maximumf>, %508, %cst_179 [2] : vector<2x16x16xf32> to vector<2x16xf32>
    %510 = vector.shape_cast %509 : vector<2x16xf32> to vector<2x16x1xf32>
    %511 = vector.broadcast %510 : vector<2x16x1xf32> to vector<2x16x16xf32>
    %512 = arith.subf %508, %511 : vector<2x16x16xf32>
    %513 = math.exp %512 : vector<2x16x16xf32>
    %cst_180 = arith.constant dense<0.000000e+00> : vector<2x16xf32>
    %514 = vector.multi_reduction <add>, %513, %cst_180 [2] : vector<2x16x16xf32> to vector<2x16xf32>
    %515 = vector.shape_cast %514 : vector<2x16xf32> to vector<2x16x1xf32>
    %516 = tpu.reciprocal %515 {approx = true} : vector<2x16x1xf32> -> vector<2x16x1xf32>
    %517 = vector.broadcast %516 : vector<2x16x1xf32> to vector<2x16x16xf32>
    %518 = arith.mulf %513, %517 : vector<2x16x16xf32>
    %519 = arith.truncf %518 : vector<2x16x16xf32> to vector<2x16x16xbf16>
    %520 = vector.extract_strided_slice %485 {offsets = [0, 0, 8], sizes = [2, 16, 8], strides = [1, 1, 1]} : vector<2x16x32xbf16> to vector<2x16x8xbf16>
    "tpu.trace_start"() <{level = 10 : i32, message = "bnm,bmd->bnd"}> : () -> ()
    %cst_181 = arith.constant dense<0.000000e+00> : vector<2x16x8xf32>
    %521 = tpu.matmul %519, %520, %cst_181 {dimension_numbers = #tpu.dot_dimension_numbers<[2], [1], [1], [2], [0, 0, 0, 1, 1, 2], [0], [0]>} : vector<2x16x16xbf16>, vector<2x16x8xbf16>, vector<2x16x8xf32> -> vector<2x16x8xf32>
    "tpu.trace_stop"() : () -> ()
    %522 = vector.extract_strided_slice %481 {offsets = [0, 0, 16], sizes = [2, 16, 8], strides = [1, 1, 1]} : vector<2x16x32xbf16> to vector<2x16x8xbf16>
    %523 = vector.extract_strided_slice %483 {offsets = [0, 0, 16], sizes = [2, 16, 8], strides = [1, 1, 1]} : vector<2x16x32xbf16> to vector<2x16x8xbf16>
    "tpu.trace_start"() <{level = 10 : i32, message = "bnd,bmd->bnm"}> : () -> ()
    %cst_182 = arith.constant dense<0.000000e+00> : vector<2x16x16xf32>
    %524 = tpu.matmul %522, %523, %cst_182 {dimension_numbers = #tpu.dot_dimension_numbers<[2], [2], [1], [1], [0, 0, 0, 1, 1, 1], [0], [0]>} : vector<2x16x8xbf16>, vector<2x16x8xbf16>, vector<2x16x16xf32> -> vector<2x16x16xf32>
    "tpu.trace_stop"() : () -> ()
    %cst_183 = arith.constant 0.353553385 : f32
    %525 = vector.broadcast %cst_183 : f32 to vector<2x16x16xf32>
    %526 = arith.mulf %524, %525 : vector<2x16x16xf32>
    %cst_184 = arith.constant dense<0xFF800000> : vector<2x16xf32>
    %527 = vector.multi_reduction <maximumf>, %526, %cst_184 [2] : vector<2x16x16xf32> to vector<2x16xf32>
    %528 = vector.shape_cast %527 : vector<2x16xf32> to vector<2x16x1xf32>
    %529 = vector.broadcast %528 : vector<2x16x1xf32> to vector<2x16x16xf32>
    %530 = arith.subf %526, %529 : vector<2x16x16xf32>
    %531 = math.exp %530 : vector<2x16x16xf32>
    %cst_185 = arith.constant dense<0.000000e+00> : vector<2x16xf32>
    %532 = vector.multi_reduction <add>, %531, %cst_185 [2] : vector<2x16x16xf32> to vector<2x16xf32>
    %533 = vector.shape_cast %532 : vector<2x16xf32> to vector<2x16x1xf32>
    %534 = tpu.reciprocal %533 {approx = true} : vector<2x16x1xf32> -> vector<2x16x1xf32>
    %535 = vector.broadcast %534 : vector<2x16x1xf32> to vector<2x16x16xf32>
    %536 = arith.mulf %531, %535 : vector<2x16x16xf32>
    %537 = arith.truncf %536 : vector<2x16x16xf32> to vector<2x16x16xbf16>
    %538 = vector.extract_strided_slice %485 {offsets = [0, 0, 16], sizes = [2, 16, 8], strides = [1, 1, 1]} : vector<2x16x32xbf16> to vector<2x16x8xbf16>
    "tpu.trace_start"() <{level = 10 : i32, message = "bnm,bmd->bnd"}> : () -> ()
    %cst_186 = arith.constant dense<0.000000e+00> : vector<2x16x8xf32>
    %539 = tpu.matmul %537, %538, %cst_186 {dimension_numbers = #tpu.dot_dimension_numbers<[2], [1], [1], [2], [0, 0, 0, 1, 1, 2], [0], [0]>} : vector<2x16x16xbf16>, vector<2x16x8xbf16>, vector<2x16x8xf32> -> vector<2x16x8xf32>
    "tpu.trace_stop"() : () -> ()
    %540 = vector.extract_strided_slice %481 {offsets = [0, 0, 24], sizes = [2, 16, 8], strides = [1, 1, 1]} : vector<2x16x32xbf16> to vector<2x16x8xbf16>
    %541 = vector.extract_strided_slice %483 {offsets = [0, 0, 24], sizes = [2, 16, 8], strides = [1, 1, 1]} : vector<2x16x32xbf16> to vector<2x16x8xbf16>
    "tpu.trace_start"() <{level = 10 : i32, message = "bnd,bmd->bnm"}> : () -> ()
    %cst_187 = arith.constant dense<0.000000e+00> : vector<2x16x16xf32>
    %542 = tpu.matmul %540, %541, %cst_187 {dimension_numbers = #tpu.dot_dimension_numbers<[2], [2], [1], [1], [0, 0, 0, 1, 1, 1], [0], [0]>} : vector<2x16x8xbf16>, vector<2x16x8xbf16>, vector<2x16x16xf32> -> vector<2x16x16xf32>
    "tpu.trace_stop"() : () -> ()
    %cst_188 = arith.constant 0.353553385 : f32
    %543 = vector.broadcast %cst_188 : f32 to vector<2x16x16xf32>
    %544 = arith.mulf %542, %543 : vector<2x16x16xf32>
    %cst_189 = arith.constant dense<0xFF800000> : vector<2x16xf32>
    %545 = vector.multi_reduction <maximumf>, %544, %cst_189 [2] : vector<2x16x16xf32> to vector<2x16xf32>
    %546 = vector.shape_cast %545 : vector<2x16xf32> to vector<2x16x1xf32>
    %547 = vector.broadcast %546 : vector<2x16x1xf32> to vector<2x16x16xf32>
    %548 = arith.subf %544, %547 : vector<2x16x16xf32>
    %549 = math.exp %548 : vector<2x16x16xf32>
    %cst_190 = arith.constant dense<0.000000e+00> : vector<2x16xf32>
    %550 = vector.multi_reduction <add>, %549, %cst_190 [2] : vector<2x16x16xf32> to vector<2x16xf32>
    %551 = vector.shape_cast %550 : vector<2x16xf32> to vector<2x16x1xf32>
    %552 = tpu.reciprocal %551 {approx = true} : vector<2x16x1xf32> -> vector<2x16x1xf32>
    %553 = vector.broadcast %552 : vector<2x16x1xf32> to vector<2x16x16xf32>
    %554 = arith.mulf %549, %553 : vector<2x16x16xf32>
    %555 = arith.truncf %554 : vector<2x16x16xf32> to vector<2x16x16xbf16>
    %556 = vector.extract_strided_slice %485 {offsets = [0, 0, 24], sizes = [2, 16, 8], strides = [1, 1, 1]} : vector<2x16x32xbf16> to vector<2x16x8xbf16>
    "tpu.trace_start"() <{level = 10 : i32, message = "bnm,bmd->bnd"}> : () -> ()
    %cst_191 = arith.constant dense<0.000000e+00> : vector<2x16x8xf32>
    %557 = tpu.matmul %555, %556, %cst_191 {dimension_numbers = #tpu.dot_dimension_numbers<[2], [1], [1], [2], [0, 0, 0, 1, 1, 2], [0], [0]>} : vector<2x16x16xbf16>, vector<2x16x8xbf16>, vector<2x16x8xf32> -> vector<2x16x8xf32>
    "tpu.trace_stop"() : () -> ()
    %558 = tpu.concatenate %503, %521, %539, %557 in 2 : vector<2x16x8xf32>, vector<2x16x8xf32>, vector<2x16x8xf32>, vector<2x16x8xf32> -> vector<2x16x32xf32>
    %559 = vector.shape_cast %558 : vector<2x16x32xf32> to vector<32x32xf32>
    %560 = arith.truncf %559 : vector<32x32xf32> to vector<32x32xbf16>
    %c960 = arith.constant 960 : index
    %c0_192 = arith.constant 0 : index
    %561 = vector.load %arg2[%c960, %c0_192] : memref<1216x128xbf16, #tpu.memory_space<vmem>>, vector<32x32xbf16>
    %cst_193 = arith.constant dense<0.000000e+00> : vector<32x32xf32>
    %562 = tpu.matmul %560, %561, %cst_193 {dimension_numbers = #tpu.dot_dimension_numbers<[1], [0], [0], [1], [0, 0, 1, 1], [], []>} : vector<32x32xbf16>, vector<32x32xbf16>, vector<32x32xf32> -> vector<32x32xf32>
    %c240 = arith.constant 240 : index
    %c0_194 = arith.constant 0 : index
    %563 = vector.load %arg3[%c240, %c0_194] : memref<312x128xf32, #tpu.memory_space<vmem>>, vector<1x32xf32>
    %564 = vector.broadcast %563 : vector<1x32xf32> to vector<32x32xf32>
    %565 = arith.addf %562, %564 : vector<32x32xf32>
    %566 = arith.addf %446, %565 : vector<32x32xf32>
    %c248 = arith.constant 248 : index
    %c0_195 = arith.constant 0 : index
    %567 = vector.load %arg3[%c248, %c0_195] : memref<312x128xf32, #tpu.memory_space<vmem>>, vector<1x32xf32>
    %c256 = arith.constant 256 : index
    %c0_196 = arith.constant 0 : index
    %568 = vector.load %arg3[%c256, %c0_196] : memref<312x128xf32, #tpu.memory_space<vmem>>, vector<1x32xf32>
    %cst_197 = arith.constant dense<0.000000e+00> : vector<32xf32>
    %569 = vector.multi_reduction <add>, %566, %cst_197 [1] : vector<32x32xf32> to vector<32xf32>
    %570 = vector.shape_cast %569 : vector<32xf32> to vector<32x1xf32>
    %cst_198 = arith.constant 3.200000e+01 : f32
    %571 = vector.broadcast %cst_198 : f32 to vector<32x1xf32>
    %572 = arith.divf %570, %571 : vector<32x1xf32>
    %573 = vector.broadcast %572 : vector<32x1xf32> to vector<32x32xf32>
    %574 = arith.subf %566, %573 : vector<32x32xf32>
    %575 = arith.mulf %574, %574 : vector<32x32xf32>
    %cst_199 = arith.constant dense<0.000000e+00> : vector<32xf32>
    %576 = vector.multi_reduction <add>, %575, %cst_199 [1] : vector<32x32xf32> to vector<32xf32>
    %577 = vector.shape_cast %576 : vector<32xf32> to vector<32x1xf32>
    %cst_200 = arith.constant 3.200000e+01 : f32
    %578 = vector.broadcast %cst_200 : f32 to vector<32x1xf32>
    %579 = arith.divf %577, %578 : vector<32x1xf32>
    %580 = vector.broadcast %572 : vector<32x1xf32> to vector<32x32xf32>
    %581 = arith.subf %566, %580 : vector<32x32xf32>
    %cst_201 = arith.constant 9.99999974E-6 : f32
    %582 = vector.broadcast %cst_201 : f32 to vector<32x1xf32>
    %583 = arith.addf %579, %582 : vector<32x1xf32>
    %584 = math.rsqrt %583 : vector<32x1xf32>
    %585 = vector.broadcast %584 : vector<32x1xf32> to vector<32x32xf32>
    %586 = arith.mulf %581, %585 : vector<32x32xf32>
    %587 = vector.broadcast %567 : vector<1x32xf32> to vector<32x32xf32>
    %588 = arith.mulf %586, %587 : vector<32x32xf32>
    %589 = vector.broadcast %568 : vector<1x32xf32> to vector<32x32xf32>
    %590 = arith.addf %588, %589 : vector<32x32xf32>
    %591 = arith.truncf %590 : vector<32x32xf32> to vector<32x32xbf16>
    %c992 = arith.constant 992 : index
    %c0_202 = arith.constant 0 : index
    %592 = vector.load %arg2[%c992, %c0_202] : memref<1216x128xbf16, #tpu.memory_space<vmem>>, vector<32x128xbf16>
    %cst_203 = arith.constant dense<0.000000e+00> : vector<32x128xf32>
    %593 = tpu.matmul %591, %592, %cst_203 {dimension_numbers = #tpu.dot_dimension_numbers<[1], [0], [0], [1], [0, 0, 1, 1], [], []>} : vector<32x32xbf16>, vector<32x128xbf16>, vector<32x128xf32> -> vector<32x128xf32>
    %c264 = arith.constant 264 : index
    %c0_204 = arith.constant 0 : index
    %594 = vector.load %arg3[%c264, %c0_204] : memref<312x128xf32, #tpu.memory_space<vmem>>, vector<1x128xf32>
    %595 = vector.broadcast %594 : vector<1x128xf32> to vector<32x128xf32>
    %596 = arith.addf %593, %595 : vector<32x128xf32>
    %c1024 = arith.constant 1024 : index
    %c0_205 = arith.constant 0 : index
    %597 = vector.load %arg2[%c1024, %c0_205] : memref<1216x128xbf16, #tpu.memory_space<vmem>>, vector<32x128xbf16>
    %cst_206 = arith.constant dense<0.000000e+00> : vector<32x128xf32>
    %598 = tpu.matmul %591, %597, %cst_206 {dimension_numbers = #tpu.dot_dimension_numbers<[1], [0], [0], [1], [0, 0, 1, 1], [], []>} : vector<32x32xbf16>, vector<32x128xbf16>, vector<32x128xf32> -> vector<32x128xf32>
    %c272_207 = arith.constant 272 : index
    %c0_208 = arith.constant 0 : index
    %599 = vector.load %arg3[%c272_207, %c0_208] : memref<312x128xf32, #tpu.memory_space<vmem>>, vector<1x128xf32>
    %600 = vector.broadcast %599 : vector<1x128xf32> to vector<32x128xf32>
    %601 = arith.addf %598, %600 : vector<32x128xf32>
    %cst_209 = arith.constant 5.000000e-01 : f32
    %602 = vector.broadcast %cst_209 : f32 to vector<32x128xf32>
    %603 = arith.mulf %602, %601 : vector<32x128xf32>
    %cst_210 = arith.constant 0.707106769 : f32
    %604 = vector.broadcast %cst_210 : f32 to vector<32x128xf32>
    %605 = arith.mulf %601, %604 : vector<32x128xf32>
    %606 = math.erf %605 : vector<32x128xf32>
    %cst_211 = arith.constant 1.000000e+00 : f32
    %607 = vector.broadcast %cst_211 : f32 to vector<32x128xf32>
    %608 = arith.addf %607, %606 : vector<32x128xf32>
    %609 = arith.mulf %603, %608 : vector<32x128xf32>
    %610 = arith.mulf %596, %609 : vector<32x128xf32>
    %611 = arith.truncf %610 : vector<32x128xf32> to vector<32x128xbf16>
    %c1056 = arith.constant 1056 : index
    %c0_212 = arith.constant 0 : index
    %612 = vector.load %arg2[%c1056, %c0_212] : memref<1216x128xbf16, #tpu.memory_space<vmem>>, vector<128x32xbf16>
    %cst_213 = arith.constant dense<0.000000e+00> : vector<32x32xf32>
    %613 = tpu.matmul %611, %612, %cst_213 {dimension_numbers = #tpu.dot_dimension_numbers<[1], [0], [0], [1], [0, 0, 1, 1], [], []>} : vector<32x128xbf16>, vector<128x32xbf16>, vector<32x32xf32> -> vector<32x32xf32>
    %c280 = arith.constant 280 : index
    %c0_214 = arith.constant 0 : index
    %614 = vector.load %arg3[%c280, %c0_214] : memref<312x128xf32, #tpu.memory_space<vmem>>, vector<1x32xf32>
    %615 = vector.broadcast %614 : vector<1x32xf32> to vector<32x32xf32>
    %616 = arith.addf %613, %615 : vector<32x32xf32>
    %617 = arith.addf %566, %616 : vector<32x32xf32>
    %618 = vector.shape_cast %617 : vector<32x32xf32> to vector<2x16x32xf32>
    %cst_215 = arith.constant dense<0.000000e+00> : vector<2x32xf32>
    %619 = vector.multi_reduction <add>, %618, %cst_215 [1] : vector<2x16x32xf32> to vector<2x32xf32>
    %cst_216 = arith.constant 1.600000e+01 : f32
    %620 = vector.broadcast %cst_216 : f32 to vector<2x32xf32>
    %621 = arith.divf %619, %620 : vector<2x32xf32>
    %c288 = arith.constant 288 : index
    %c0_217 = arith.constant 0 : index
    %622 = vector.load %arg3[%c288, %c0_217] : memref<312x128xf32, #tpu.memory_space<vmem>>, vector<1x32xf32>
    %c296 = arith.constant 296 : index
    %c0_218 = arith.constant 0 : index
    %623 = vector.load %arg3[%c296, %c0_218] : memref<312x128xf32, #tpu.memory_space<vmem>>, vector<1x32xf32>
    %cst_219 = arith.constant dense<0.000000e+00> : vector<2xf32>
    %624 = vector.multi_reduction <add>, %621, %cst_219 [1] : vector<2x32xf32> to vector<2xf32>
    %625 = vector.shape_cast %624 : vector<2xf32> to vector<2x1xf32>
    %cst_220 = arith.constant 3.200000e+01 : f32
    %626 = vector.broadcast %cst_220 : f32 to vector<2x1xf32>
    %627 = arith.divf %625, %626 : vector<2x1xf32>
    %628 = vector.broadcast %627 : vector<2x1xf32> to vector<2x32xf32>
    %629 = arith.subf %621, %628 : vector<2x32xf32>
    %630 = arith.mulf %629, %629 : vector<2x32xf32>
    %cst_221 = arith.constant dense<0.000000e+00> : vector<2xf32>
    %631 = vector.multi_reduction <add>, %630, %cst_221 [1] : vector<2x32xf32> to vector<2xf32>
    %632 = vector.shape_cast %631 : vector<2xf32> to vector<2x1xf32>
    %cst_222 = arith.constant 3.200000e+01 : f32
    %633 = vector.broadcast %cst_222 : f32 to vector<2x1xf32>
    %634 = arith.divf %632, %633 : vector<2x1xf32>
    %635 = vector.broadcast %627 : vector<2x1xf32> to vector<2x32xf32>
    %636 = arith.subf %621, %635 : vector<2x32xf32>
    %cst_223 = arith.constant 9.99999974E-6 : f32
    %637 = vector.broadcast %cst_223 : f32 to vector<2x1xf32>
    %638 = arith.addf %634, %637 : vector<2x1xf32>
    %639 = math.rsqrt %638 : vector<2x1xf32>
    %640 = vector.broadcast %639 : vector<2x1xf32> to vector<2x32xf32>
    %641 = arith.mulf %636, %640 : vector<2x32xf32>
    %642 = vector.broadcast %622 : vector<1x32xf32> to vector<2x32xf32>
    %643 = arith.mulf %641, %642 : vector<2x32xf32>
    %644 = vector.broadcast %623 : vector<1x32xf32> to vector<2x32xf32>
    %645 = arith.addf %643, %644 : vector<2x32xf32>
    %646 = arith.truncf %645 : vector<2x32xf32> to vector<2x32xbf16>
    %c1184 = arith.constant 1184 : index
    %c0_224 = arith.constant 0 : index
    %647 = vector.load %arg2[%c1184, %c0_224] : memref<1216x128xbf16, #tpu.memory_space<vmem>>, vector<32x128xbf16>
    %cst_225 = arith.constant dense<0.000000e+00> : vector<2x128xf32>
    %648 = tpu.matmul %646, %647, %cst_225 {dimension_numbers = #tpu.dot_dimension_numbers<[1], [0], [0], [1], [0, 0, 1, 1], [], []>} : vector<2x32xbf16>, vector<32x128xbf16>, vector<2x128xf32> -> vector<2x128xf32>
    %c304_226 = arith.constant 304 : index
    %c0_227 = arith.constant 0 : index
    %649 = vector.load %arg3[%c304_226, %c0_227] : memref<312x128xf32, #tpu.memory_space<vmem>>, vector<1x128xf32>
    %650 = vector.broadcast %649 : vector<1x128xf32> to vector<2x128xf32>
    %651 = arith.addf %648, %650 : vector<2x128xf32>
    %c0_228 = arith.constant 0 : index
    %c0_229 = arith.constant 0 : index
    %652 = vector.load %arg4[%c0_228, %c0_229] : memref<2x128xf32, #tpu.memory_space<vmem>>, vector<2x128xf32>
    tpu.vector_store %arg4[%c0_228, %c0_229], %651 {strides = array<i32>} : memref<2x128xf32, #tpu.memory_space<vmem>>, vector<2x128xf32>,
    return
  }
}

</mosaic_0001>

<llo_original>
// kernel: forward.1
$region0: #{forward.1}
  #allocation0 [shape = 'u32[]', space=smem, size = 0x4, offset = 0x4, fixed_abs, tag = 'smem constant byte address 0x4 - core index']
  #allocation1 [shape = 'u32[144,128]{1,0:T(1,128)}', space=vmem, size = 0x12000, scoped, tag = 'internal scratch']
  %s0 = inlined_call_operand.vmem [shape: f32[128,14], index: 0, kind: input, shape index: {}]
  %s1 = inlined_call_operand.vmem [shape: f32[32,32], index: 1, kind: input, shape index: {}]
  %s2 = inlined_call_operand.vmem [shape: bf16[1216,128], index: 2, kind: input, shape index: {}]
  %s3 = inlined_call_operand.vmem [shape: f32[312,128], index: 3, kind: input, shape index: {}]
  %s4 = inlined_call_operand.hbm [shape: f32[2,128], index: 4, kind: output, shape index: {}]
  %s5 = sld [smem:[#allocation0]]
  $region26: #{forward.1} parent=0
    _
  %s7 = ssub.s32 1, %s5
  %s8 = scalar_select 0, %s7, %s5
  $region1: #{forward.1} parent=0
    #allocation2 [shape = 'u8[1024]{0}', space=vmem, size = 0x400, scoped, tag = 'output window, operand 0, single buffered']
    #allocation3 [shape = 's32[1]{0}', space=sflag, size = 0x4, scoped, tag = 'scoped memory for forward.1']
    %9 = vsyncpa [#allocation3], 0
    // Predicated region
    $region2: #{forward.1} parent=1 // pred_check
      _
    $region3: #{forward.1} parent=1 // pred_check_branch
      %11 = sbr.rel (0) target = $region5
    $region4: #{forward.1} parent=1 // pred_region
      _
    $region5: #{forward.1} parent=1 // pred_fallthru
      _
    // Predicated region
    $region6: #{forward.1} parent=1 // pred_check
      _
    $region7: #{forward.1} parent=1 // pred_check_branch
      %13 = sbr.rel (0) target = $region9
    $region8: #{forward.1} parent=1 // pred_region
      _
    $region9: #{forward.1} parent=1 // pred_fallthru
      _
    // Predicated region
    $region10: #{forward.1} parent=1 // pred_check
      _
    $region11: #{forward.1} parent=1 // pred_check_branch
      %15 = sbr.rel (0) target = $region13
    $region12: #{forward.1} parent=1 // pred_region
      _
    $region13: #{forward.1} parent=1 // pred_fallthru
      _
    // Predicated region
    $region14: #{forward.1} parent=1 // pred_check
      _
    $region15: #{forward.1} parent=1 // pred_check_branch
      %17 = sbr.rel (0) target = $region17
    $region16: #{forward.1} parent=1 // pred_region
      _
    $region17: #{forward.1} parent=1 // pred_fallthru
      _
    %v19 = vld [vmem:[%s0] sm:$0xff]
    %v20 = vld [vmem:[%s0 + $0x8] sm:$0xff]
    %v21 = vld [vmem:[%s0 + $0x10] sm:$0xff]
    %v22 = vld [vmem:[%s0 + $0x18] sm:$0xff]
    %v23 = vld [vmem:[%s0 + $0x20] sm:$0xff]
    %v24 = vld [vmem:[%s0 + $0x28] sm:$0xff]
    %v25 = vld [vmem:[%s0 + $0x30] sm:$0xff]
    %v26 = vld [vmem:[%s0 + $0x38] sm:$0xff]
    %v27 = vld [vmem:[%s0 + $0x40] sm:$0xff]
    %v28 = vld [vmem:[%s0 + $0x48] sm:$0xff]
    %v29 = vld [vmem:[%s0 + $0x50] sm:$0xff]
    %v30 = vld [vmem:[%s0 + $0x58] sm:$0xff]
    %v31 = vld [vmem:[%s0 + $0x60] sm:$0xff]
    %v32 = vld [vmem:[%s0 + $0x68] sm:$0xff]
    %v33 = vld [vmem:[%s0 + $0x70] sm:$0xff]
    %v34 = vld [vmem:[%s0 + $0x78] sm:$0xff]
    %v35 = vld [vmem:[%s1] sm:$0xff]
    %v36 = vld [vmem:[%s1 + $0x8] sm:$0xff]
    %v37 = vld [vmem:[%s1 + $0x10] sm:$0xff]
    %v38 = vld [vmem:[%s1 + $0x18] sm:$0xff]
    %v39 = vld [vmem:[%s3] sm:$0x1]
    %v40 = vld [vmem:[%s3 + $0x8] sm:$0x1]
    %vm41 = vcmask 261120
    %v42 = vsel %vm41, %v35, 0.0
    %43 = vadd.xlane.f32.xlu0 %v42
    %v44 = vpop.xlane.xlu0 %43
    %v45 = vsel %vm41, %v36, 0.0
    %46 = vadd.xlane.f32.xlu0 %v45
    %v47 = vpop.xlane.xlu0 %46
    %v48 = vsel %vm41, %v37, 0.0
    %49 = vadd.xlane.f32.xlu0 %v48
    %v50 = vpop.xlane.xlu0 %49
    %v51 = vsel %vm41, %v38, 0.0
    %52 = vadd.xlane.f32.xlu0 %v51
    %v53 = vpop.xlane.xlu0 %52
    %v54 = vrcp.pop 32.0
    %v55 = vmul.f32 %v44, %v54
    %v56 = vmul.f32 %v47, %v54
    %v57 = vmul.f32 %v50, %v54
    %v58 = vmul.f32 %v53, %v54
    %v59 = vsub.f32 %v35, %v55
    %v60 = vsub.f32 %v36, %v56
    %v61 = vsub.f32 %v37, %v57
    %v62 = vsub.f32 %v38, %v58
    %v63 = vmul.f32 %v59, %v59
    %v64 = vmul.f32 %v60, %v60
    %v65 = vmul.f32 %v61, %v61
    %v66 = vmul.f32 %v62, %v62
    %v67 = vsel %vm41, %v63, 0.0
    %68 = vadd.xlane.f32.xlu0 %v67
    %v69 = vpop.xlane.xlu0 %68
    %v70 = vsel %vm41, %v64, 0.0
    %71 = vadd.xlane.f32.xlu0 %v70
    %v72 = vpop.xlane.xlu0 %71
    %v73 = vsel %vm41, %v65, 0.0
    %74 = vadd.xlane.f32.xlu0 %v73
    %v75 = vpop.xlane.xlu0 %74
    %v76 = vsel %vm41, %v66, 0.0
    %77 = vadd.xlane.f32.xlu0 %v76
    %v78 = vpop.xlane.xlu0 %77
    %v79 = vmul.f32 %v69, %v54
    %v80 = vmul.f32 %v72, %v54
    %v81 = vmul.f32 %v75, %v54
    %v82 = vmul.f32 %v78, %v54
    %v83 = vadd.f32 %v79, 1e-05
    %v84 = vadd.f32 %v80, 1e-05
    %v85 = vadd.f32 %v81, 1e-05
    %v86 = vadd.f32 %v82, 1e-05
    %v87 = vrsqrt.pop %v83
    %v88 = vrsqrt.pop %v84
    %v89 = vrsqrt.pop %v85
    %v90 = vrsqrt.pop %v86
    %v91 = vmul.f32 %v59, %v87
    %v92 = vmul.f32 %v60, %v88
    %v93 = vmul.f32 %v61, %v89
    %v94 = vmul.f32 %v62, %v90
    %v95 = vlaneseq
    %v96 = vshrl.u32 %v95, 7
    %v97 = vsub.s32 0, %v96
    %v98 = vrot.slane %v39, %v97
    %v99 = vmul.f32 %v91, %v98
    %v100 = vmul.f32 %v92, %v98
    %v101 = vmul.f32 %v93, %v98
    %v102 = vmul.f32 %v94, %v98
    %v103 = vlaneseq
    %v104 = vshrl.u32 %v103, 7
    %v105 = vsub.s32 0, %v104
    %v106 = vrot.slane %v40, %v105
    %v107 = vadd.f32 %v99, %v106
    %v108 = vadd.f32 %v100, %v106
    %v109 = vadd.f32 %v101, %v106
    %v110 = vadd.f32 %v102, %v106
    %v111 = vld [vmem:[%s3 + $0x10] sm:$0x1]
    %v112 = vld [vmem:[%s3 + $0x18] sm:$0x1]
    %vm113 = vcmask 113664
    %v114 = vsel %vm113, %v19, 0.0
    %115 = vadd.xlane.f32.xlu0 %v114
    %v116 = vpop.xlane.xlu0 %115
    %v117 = vsel %vm113, %v20, 0.0
    %118 = vadd.xlane.f32.xlu0 %v117
    %v119 = vpop.xlane.xlu0 %118
    %v120 = vsel %vm113, %v21, 0.0
    %121 = vadd.xlane.f32.xlu0 %v120
    %v122 = vpop.xlane.xlu0 %121
    %v123 = vsel %vm113, %v22, 0.0
    %124 = vadd.xlane.f32.xlu0 %v123
    %v125 = vpop.xlane.xlu0 %124
    %v126 = vsel %vm113, %v23, 0.0
    %127 = vadd.xlane.f32.xlu0 %v126
    %v128 = vpop.xlane.xlu0 %127
    %v129 = vsel %vm113, %v24, 0.0
    %130 = vadd.xlane.f32.xlu0 %v129
    %v131 = vpop.xlane.xlu0 %130
    %v132 = vsel %vm113, %v25, 0.0
    %133 = vadd.xlane.f32.xlu0 %v132
    %v134 = vpop.xlane.xlu0 %133
    %v135 = vsel %vm113, %v26, 0.0
    %136 = vadd.xlane.f32.xlu0 %v135
    %v137 = vpop.xlane.xlu0 %136
    %v138 = vsel %vm113, %v27, 0.0
    %139 = vadd.xlane.f32.xlu0 %v138
    %v140 = vpop.xlane.xlu0 %139
    %v141 = vsel %vm113, %v28, 0.0
    %142 = vadd.xlane.f32.xlu0 %v141
    %v143 = vpop.xlane.xlu0 %142
    %v144 = vsel %vm113, %v29, 0.0
    %145 = vadd.xlane.f32.xlu0 %v144
    %v146 = vpop.xlane.xlu0 %145
    %v147 = vsel %vm113, %v30, 0.0
    %148 = vadd.xlane.f32.xlu0 %v147
    %v149 = vpop.xlane.xlu0 %148
    %v150 = vsel %vm113, %v31, 0.0
    %151 = vadd.xlane.f32.xlu0 %v150
    %v152 = vpop.xlane.xlu0 %151
    %v153 = vsel %vm113, %v32, 0.0
    %154 = vadd.xlane.f32.xlu0 %v153
    %v155 = vpop.xlane.xlu0 %154
    %v156 = vsel %vm113, %v33, 0.0
    %157 = vadd.xlane.f32.xlu0 %v156
    %v158 = vpop.xlane.xlu0 %157
    %v159 = vsel %vm113, %v34, 0.0
    %160 = vadd.xlane.f32.xlu0 %v159
    %v161 = vpop.xlane.xlu0 %160
    %v162 = vrcp.pop 14.0
    %v163 = vmul.f32 %v116, %v162
    %v164 = vmul.f32 %v119, %v162
    %v165 = vmul.f32 %v122, %v162
    %v166 = vmul.f32 %v125, %v162
    %v167 = vmul.f32 %v128, %v162
    %v168 = vmul.f32 %v131, %v162
    %v169 = vmul.f32 %v134, %v162
    %v170 = vmul.f32 %v137, %v162
    %v171 = vmul.f32 %v140, %v162
    %v172 = vmul.f32 %v143, %v162
    %v173 = vmul.f32 %v146, %v162
    %v174 = vmul.f32 %v149, %v162
    %v175 = vmul.f32 %v152, %v162
    %v176 = vmul.f32 %v155, %v162
    %v177 = vmul.f32 %v158, %v162
    %v178 = vmul.f32 %v161, %v162
    %v179 = vsub.f32 %v19, %v163
    %v180 = vsub.f32 %v20, %v164
    %v181 = vsub.f32 %v21, %v165
    %v182 = vsub.f32 %v22, %v166
    %v183 = vsub.f32 %v23, %v167
    %v184 = vsub.f32 %v24, %v168
    %v185 = vsub.f32 %v25, %v169
    %v186 = vsub.f32 %v26, %v170
    %v187 = vsub.f32 %v27, %v171
    %v188 = vsub.f32 %v28, %v172
    %v189 = vsub.f32 %v29, %v173
    %v190 = vsub.f32 %v30, %v174
    %v191 = vsub.f32 %v31, %v175
    %v192 = vsub.f32 %v32, %v176
    %v193 = vsub.f32 %v33, %v177
    %v194 = vsub.f32 %v34, %v178
    %v195 = vmul.f32 %v179, %v179
    %v196 = vmul.f32 %v180, %v180
    %v197 = vmul.f32 %v181, %v181
    %v198 = vmul.f32 %v182, %v182
    %v199 = vmul.f32 %v183, %v183
    %v200 = vmul.f32 %v184, %v184
    %v201 = vmul.f32 %v185, %v185
    %v202 = vmul.f32 %v186, %v186
    %v203 = vmul.f32 %v187, %v187
    %v204 = vmul.f32 %v188, %v188
    %v205 = vmul.f32 %v189, %v189
    %v206 = vmul.f32 %v190, %v190
    %v207 = vmul.f32 %v191, %v191
    %v208 = vmul.f32 %v192, %v192
    %v209 = vmul.f32 %v193, %v193
    %v210 = vmul.f32 %v194, %v194
    %v211 = vsel %vm113, %v195, 0.0
    %212 = vadd.xlane.f32.xlu0 %v211
    %v213 = vpop.xlane.xlu0 %212
    %v214 = vsel %vm113, %v196, 0.0
    %215 = vadd.xlane.f32.xlu0 %v214
    %v216 = vpop.xlane.xlu0 %215
    %v217 = vsel %vm113, %v197, 0.0
    %218 = vadd.xlane.f32.xlu0 %v217
    %v219 = vpop.xlane.xlu0 %218
    %v220 = vsel %vm113, %v198, 0.0
    %221 = vadd.xlane.f32.xlu0 %v220
    %v222 = vpop.xlane.xlu0 %221
    %v223 = vsel %vm113, %v199, 0.0
    %224 = vadd.xlane.f32.xlu0 %v223
    %v225 = vpop.xlane.xlu0 %224
    %v226 = vsel %vm113, %v200, 0.0
    %227 = vadd.xlane.f32.xlu0 %v226
    %v228 = vpop.xlane.xlu0 %227
    %v229 = vsel %vm113, %v201, 0.0
    %230 = vadd.xlane.f32.xlu0 %v229
    %v231 = vpop.xlane.xlu0 %230
    %v232 = vsel %vm113, %v202, 0.0
    %233 = vadd.xlane.f32.xlu0 %v232
    %v234 = vpop.xlane.xlu0 %233
    %v235 = vsel %vm113, %v203, 0.0
    %236 = vadd.xlane.f32.xlu0 %v235
    %v237 = vpop.xlane.xlu0 %236
    %v238 = vsel %vm113, %v204, 0.0
    %239 = vadd.xlane.f32.xlu0 %v238
    %v240 = vpop.xlane.xlu0 %239
    %v241 = vsel %vm113, %v205, 0.0
    %242 = vadd.xlane.f32.xlu0 %v241
    %v243 = vpop.xlane.xlu0 %242
    %v244 = vsel %vm113, %v206, 0.0
    %245 = vadd.xlane.f32.xlu0 %v244
    %v246 = vpop.xlane.xlu0 %245
    %v247 = vsel %vm113, %v207, 0.0
    %248 = vadd.xlane.f32.xlu0 %v247
    %v249 = vpop.xlane.xlu0 %248
    %v250 = vsel %vm113, %v208, 0.0
    %251 = vadd.xlane.f32.xlu0 %v250
    %v252 = vpop.xlane.xlu0 %251
    %v253 = vsel %vm113, %v209, 0.0
    %254 = vadd.xlane.f32.xlu0 %v253
    %v255 = vpop.xlane.xlu0 %254
    %v256 = vsel %vm113, %v210, 0.0
    %257 = vadd.xlane.f32.xlu0 %v256
    %v258 = vpop.xlane.xlu0 %257
    %v259 = vmul.f32 %v213, %v162
    %v260 = vmul.f32 %v216, %v162
    %v261 = vmul.f32 %v219, %v162
    %v262 = vmul.f32 %v222, %v162
    %v263 = vmul.f32 %v225, %v162
    %v264 = vmul.f32 %v228, %v162
    %v265 = vmul.f32 %v231, %v162
    %v266 = vmul.f32 %v234, %v162
    %v267 = vmul.f32 %v237, %v162
    %v268 = vmul.f32 %v240, %v162
    %v269 = vmul.f32 %v243, %v162
    %v270 = vmul.f32 %v246, %v162
    %v271 = vmul.f32 %v249, %v162
    %v272 = vmul.f32 %v252, %v162
    %v273 = vmul.f32 %v255, %v162
    %v274 = vmul.f32 %v258, %v162
    %v275 = vadd.f32 %v259, 1e-05
    %v276 = vadd.f32 %v260, 1e-05
    %v277 = vadd.f32 %v261, 1e-05
    %v278 = vadd.f32 %v262, 1e-05
    %v279 = vadd.f32 %v263, 1e-05
    %v280 = vadd.f32 %v264, 1e-05
    %v281 = vadd.f32 %v265, 1e-05
    %v282 = vadd.f32 %v266, 1e-05
    %v283 = vadd.f32 %v267, 1e-05
    %v284 = vadd.f32 %v268, 1e-05
    %v285 = vadd.f32 %v269, 1e-05
    %v286 = vadd.f32 %v270, 1e-05
    %v287 = vadd.f32 %v271, 1e-05
    %v288 = vadd.f32 %v272, 1e-05
    %v289 = vadd.f32 %v273, 1e-05
    %v290 = vadd.f32 %v274, 1e-05
    %v291 = vrsqrt.pop %v275
    %v292 = vrsqrt.pop %v276
    %v293 = vrsqrt.pop %v277
    %v294 = vrsqrt.pop %v278
    %v295 = vrsqrt.pop %v279
    %v296 = vrsqrt.pop %v280
    %v297 = vrsqrt.pop %v281
    %v298 = vrsqrt.pop %v282
    %v299 = vrsqrt.pop %v283
    %v300 = vrsqrt.pop %v284
    %v301 = vrsqrt.pop %v285
    %v302 = vrsqrt.pop %v286
    %v303 = vrsqrt.pop %v287
    %v304 = vrsqrt.pop %v288
    %v305 = vrsqrt.pop %v289
    %v306 = vrsqrt.pop %v290
    %v307 = vmul.f32 %v179, %v291
    %v308 = vmul.f32 %v180, %v292
    %v309 = vmul.f32 %v181, %v293
    %v310 = vmul.f32 %v182, %v294
    %v311 = vmul.f32 %v183, %v295
    %v312 = vmul.f32 %v184, %v296
    %v313 = vmul.f32 %v185, %v297
    %v314 = vmul.f32 %v186, %v298
    %v315 = vmul.f32 %v187, %v299
    %v316 = vmul.f32 %v188, %v300
    %v317 = vmul.f32 %v189, %v301
    %v318 = vmul.f32 %v190, %v302
    %v319 = vmul.f32 %v191, %v303
    %v320 = vmul.f32 %v192, %v304
    %v321 = vmul.f32 %v193, %v305
    %v322 = vmul.f32 %v194, %v306
    %v323 = vlaneseq
    %v324 = vshrl.u32 %v323, 7
    %v325 = vsub.s32 0, %v324
    %v326 = vrot.slane %v111, %v325
    %v327 = vmul.f32 %v307, %v326
    %v328 = vmul.f32 %v308, %v326
    %v329 = vmul.f32 %v309, %v326
    %v330 = vmul.f32 %v310, %v326
    %v331 = vmul.f32 %v311, %v326
    %v332 = vmul.f32 %v312, %v326
    %v333 = vmul.f32 %v313, %v326
    %v334 = vmul.f32 %v314, %v326
    %v335 = vmul.f32 %v315, %v326
    %v336 = vmul.f32 %v316, %v326
    %v337 = vmul.f32 %v317, %v326
    %v338 = vmul.f32 %v318, %v326
    %v339 = vmul.f32 %v319, %v326
    %v340 = vmul.f32 %v320, %v326
    %v341 = vmul.f32 %v321, %v326
    %v342 = vmul.f32 %v322, %v326
    %v343 = vlaneseq
    %v344 = vshrl.u32 %v343, 7
    %v345 = vsub.s32 0, %v344
    %v346 = vrot.slane %v112, %v345
    %v347 = vadd.f32 %v327, %v346
    %v348 = vadd.f32 %v328, %v346
    %v349 = vadd.f32 %v329, %v346
    %v350 = vadd.f32 %v330, %v346
    %v351 = vadd.f32 %v331, %v346
    %v352 = vadd.f32 %v332, %v346
    %v353 = vadd.f32 %v333, %v346
    %v354 = vadd.f32 %v334, %v346
    %v355 = vadd.f32 %v335, %v346
    %v356 = vadd.f32 %v336, %v346
    %v357 = vadd.f32 %v337, %v346
    %v358 = vadd.f32 %v338, %v346
    %v359 = vadd.f32 %v339, %v346
    %v360 = vadd.f32 %v340, %v346
    %v361 = vadd.f32 %v341, %v346
    %v362 = vadd.f32 %v342, %v346
    %v363 = vpack.c.bf16 %v108, %v107
    %v364 = vpack.c.bf16 %v110, %v109
    %v365 = vld [vmem:[%s2] sm:$0xf]
    %v366 = vld [vmem:[%s2 + $0x4] sm:$0xf]
    %v367 = vld [vmem:[%s2 + $0x8] sm:$0xf]
    %v368 = vld [vmem:[%s2 + $0xc] sm:$0xf]
    %v373 = vunpack.c.l.b16 %v365
    %v374 = vunpack.c.l.b16 %v366
    %v375 = vunpack.c.l.b16 %v367
    %v376 = vunpack.c.l.b16 %v368
    %v377 = vpack.c.b16 %v374, %v373
    %v378 = vpack.c.b16 %v376, %v375
    %v382 = vsel %vm41, %v363, 0
    %v385 = vsel %vm41, %v364, 0
    %387 = vmatprep.subr.bf16.mxu0 0
    %388 = vmatpush1.bf16.msra.mxu0 0
    %389 = vmatprep.subr.bf16.mxu0 0
    %390 = vmatpush1.bf16.msra.mxu0 0
    %391 = vmatprep.subr.bf16.mxu0 0
    %392 = vmatpush1.bf16.msra.mxu0 0
    %393 = vmatprep.subr.bf16.mxu0 0
    %394 = vmatpush1.bf16.msra.mxu0 0
    %395 = vmatprep.subr.bf16.mxu0 0
    %396 = vmatpush1.bf16.msra.mxu0 0
    %397 = vmatprep.subr.bf16.mxu0 0
    %398 = vmatpush1.bf16.msra.mxu0 0
    %399 = vmatprep.subr.bf16.mxu0 0
    %400 = vmatpush1.bf16.msra.mxu0 %v378
    %401 = vmatprep.subr.bf16.mxu0 0
    %402 = vmatpush1.bf16.msra.mxu0 %v377
    %403 = vmatprep.subr.bf16.mxu0 0
    %404 = vmatpush2.bf16.msra.mxu0 0
    %405 = vmatprep.subr.bf16.mxu0 0
    %406 = vmatpush2.bf16.msra.mxu0 0
    %407 = vmatprep.subr.bf16.mxu0 0
    %408 = vmatpush2.bf16.msra.mxu0 0
    %409 = vmatprep.subr.bf16.mxu0 0
    %410 = vmatpush2.bf16.msra.mxu0 0
    %411 = vmatprep.subr.bf16.mxu0 0
    %412 = vmatpush2.bf16.msra.mxu0 0
    %413 = vmatprep.subr.bf16.mxu0 0
    %414 = vmatpush2.bf16.msra.mxu0 0
    %415 = vmatprep.subr.bf16.mxu0 0
    %416 = vmatpush2.bf16.msra.mxu0 0
    %417 = vmatprep.subr.bf16.mxu0 0
    %418 = vmatpush2.bf16.msra.mxu0 0
    %419 = vmatprep.mubr.bf16.mxu0 0
    %420 = vmatmul.mubr.bf16.gmra.mxu0 %v382
    %v421 = vpop.f32.mrf.mxu0
    %v422 = vadd.f32 0.0, %v421
    %v423 = vpop.f32.mrf.mxu0
    %v424 = vpop.f32.mrf.mxu0
    %v425 = vadd.f32 0.0, %v424
    %v426 = vpop.f32.mrf.mxu0
    %427 = vmatprep.mubr.bf16.mxu0 0
    %428 = vmatmul.mubr.bf16.gmra.mxu0 %v385
    %v429 = vpop.f32.mrf.mxu0
    %v430 = vadd.f32 0.0, %v429
    %v431 = vpop.f32.mrf.mxu0
    %v432 = vpop.f32.mrf.mxu0
    %v433 = vadd.f32 0.0, %v432
    %v434 = vpop.f32.mrf.mxu0
    %435 = vdwg.mxu0
    %v436 = vpack.c.bf16 %v348, %v347
    %v437 = vpack.c.bf16 %v350, %v349
    %v438 = vpack.c.bf16 %v352, %v351
    %v439 = vpack.c.bf16 %v354, %v353
    %v440 = vpack.c.bf16 %v356, %v355
    %v441 = vpack.c.bf16 %v358, %v357
    %v442 = vpack.c.bf16 %v360, %v359
    %v443 = vpack.c.bf16 %v362, %v361
    %v444 = vld [vmem:[%s2 + $0x10] sm:$0xf]
    %v445 = vld [vmem:[%s2 + $0x14] sm:$0x7]
    %v448 = vunpack.c.l.b16 %v444
    %v449 = vunpack.c.l.b16 %v445
    %v450 = vpack.c.b16 %v449, %v448
    %v452 = vsel %vm113, %v436, 0
    %v455 = vsel %vm113, %v437, 0
    %v458 = vsel %vm113, %v438, 0
    %v461 = vsel %vm113, %v439, 0
    %v464 = vsel %vm113, %v440, 0
    %v467 = vsel %vm113, %v441, 0
    %v470 = vsel %vm113, %v442, 0
    %v473 = vsel %vm113, %v443, 0
    %vm475 = vcmask 1046528
    %v477 = vsel %vm475, %v450, 0
    %479 = vmatprep.subr.bf16.mxu0 0
    %480 = vmatpush1.bf16.msra.mxu0 0
    %481 = vmatprep.subr.bf16.mxu0 0
    %482 = vmatpush1.bf16.msra.mxu0 0
    %483 = vmatprep.subr.bf16.mxu0 0
    %484 = vmatpush1.bf16.msra.mxu0 0
    %485 = vmatprep.subr.bf16.mxu0 0
    %486 = vmatpush1.bf16.msra.mxu0 0
    %487 = vmatprep.subr.bf16.mxu0 0
    %488 = vmatpush1.bf16.msra.mxu0 0
    %489 = vmatprep.subr.bf16.mxu0 0
    %490 = vmatpush1.bf16.msra.mxu0 0
    %491 = vmatprep.subr.bf16.mxu0 0
    %492 = vmatpush1.bf16.msra.mxu0 0
    %493 = vmatprep.subr.bf16.mxu0 0
    %494 = vmatpush1.bf16.msra.mxu0 %v477
    %495 = vmatprep.subr.bf16.mxu0 0
    %496 = vmatpush2.bf16.msra.mxu0 0
    %497 = vmatprep.subr.bf16.mxu0 0
    %498 = vmatpush2.bf16.msra.mxu0 0
    %499 = vmatprep.subr.bf16.mxu0 0
    %500 = vmatpush2.bf16.msra.mxu0 0
    %501 = vmatprep.subr.bf16.mxu0 0
    %502 = vmatpush2.bf16.msra.mxu0 0
    %503 = vmatprep.subr.bf16.mxu0 0
    %504 = vmatpush2.bf16.msra.mxu0 0
    %505 = vmatprep.subr.bf16.mxu0 0
    %506 = vmatpush2.bf16.msra.mxu0 0
    %507 = vmatprep.subr.bf16.mxu0 0
    %508 = vmatpush2.bf16.msra.mxu0 0
    %509 = vmatprep.subr.bf16.mxu0 0
    %510 = vmatpush2.bf16.msra.mxu0 0
    %511 = vmatprep.mubr.bf16.mxu0 0
    %512 = vmatmul.mubr.bf16.gmra.mxu0 %v452
    %v513 = vpop.f32.mrf.mxu0
    %v514 = vadd.f32 0.0, %v513
    %v515 = vpop.f32.mrf.mxu0
    %v516 = vpop.f32.mrf.mxu0
    %v517 = vadd.f32 0.0, %v516
    %v518 = vpop.f32.mrf.mxu0
    %519 = vmatprep.mubr.bf16.mxu0 0
    %520 = vmatmul.mubr.bf16.gmra.mxu0 %v455
    %v521 = vpop.f32.mrf.mxu0
    %v522 = vadd.f32 0.0, %v521
    %v523 = vpop.f32.mrf.mxu0
    %v524 = vpop.f32.mrf.mxu0
    %v525 = vadd.f32 0.0, %v524
    %v526 = vpop.f32.mrf.mxu0
    %527 = vmatprep.mubr.bf16.mxu0 0
    %528 = vmatmul.mubr.bf16.gmra.mxu0 %v458
    %v529 = vpop.f32.mrf.mxu0
    %v530 = vadd.f32 0.0, %v529
    %v531 = vpop.f32.mrf.mxu0
    %v532 = vpop.f32.mrf.mxu0
    %v533 = vadd.f32 0.0, %v532
    %v534 = vpop.f32.mrf.mxu0
    %535 = vmatprep.mubr.bf16.mxu0 0
    %536 = vmatmul.mubr.bf16.gmra.mxu0 %v461
    %v537 = vpop.f32.mrf.mxu0
    %v538 = vadd.f32 0.0, %v537
    %v539 = vpop.f32.mrf.mxu0
    %v540 = vpop.f32.mrf.mxu0
    %v541 = vadd.f32 0.0, %v540
    %v542 = vpop.f32.mrf.mxu0
    %543 = vmatprep.mubr.bf16.mxu0 0
    %544 = vmatmul.mubr.bf16.gmra.mxu0 %v464
    %v545 = vpop.f32.mrf.mxu0
    %v546 = vadd.f32 0.0, %v545
    %v547 = vpop.f32.mrf.mxu0
    %v548 = vpop.f32.mrf.mxu0
    %v549 = vadd.f32 0.0, %v548
    %v550 = vpop.f32.mrf.mxu0
    %551 = vmatprep.mubr.bf16.mxu0 0
    %552 = vmatmul.mubr.bf16.gmra.mxu0 %v467
    %v553 = vpop.f32.mrf.mxu0
    %v554 = vadd.f32 0.0, %v553
    %v555 = vpop.f32.mrf.mxu0
    %v556 = vpop.f32.mrf.mxu0
    %v557 = vadd.f32 0.0, %v556
    %v558 = vpop.f32.mrf.mxu0
    %559 = vmatprep.mubr.bf16.mxu0 0
    %560 = vmatmul.mubr.bf16.gmra.mxu0 %v470
    %v561 = vpop.f32.mrf.mxu0
    %v562 = vadd.f32 0.0, %v561
    %v563 = vpop.f32.mrf.mxu0
    %v564 = vpop.f32.mrf.mxu0
    %v565 = vadd.f32 0.0, %v564
    %v566 = vpop.f32.mrf.mxu0
    %567 = vmatprep.mubr.bf16.mxu0 0
    %568 = vmatmul.mubr.bf16.gmra.mxu0 %v473
    %v569 = vpop.f32.mrf.mxu0
    %v570 = vadd.f32 0.0, %v569
    %v571 = vpop.f32.mrf.mxu0
    %v572 = vpop.f32.mrf.mxu0
    %v573 = vadd.f32 0.0, %v572
    %v574 = vpop.f32.mrf.mxu0
    %575 = vdwg.mxu0
    %v576 = vld [vmem:[%s2 + $0x18] sm:$0xf]
    %v577 = vld [vmem:[%s2 + $0x1c] sm:$0x7]
    %v580 = vunpack.c.l.b16 %v576
    %v581 = vunpack.c.l.b16 %v577
    %v582 = vpack.c.b16 %v581, %v580
    %v584 = vsel %vm475, %v582, 0
    %586 = vmatprep.subr.bf16.mxu0 0
    %587 = vmatpush1.bf16.msra.mxu0 0
    %588 = vmatprep.subr.bf16.mxu0 0
    %589 = vmatpush1.bf16.msra.mxu0 0
    %590 = vmatprep.subr.bf16.mxu0 0
    %591 = vmatpush1.bf16.msra.mxu0 0
    %592 = vmatprep.subr.bf16.mxu0 0
    %593 = vmatpush1.bf16.msra.mxu0 0
    %594 = vmatprep.subr.bf16.mxu0 0
    %595 = vmatpush1.bf16.msra.mxu0 0
    %596 = vmatprep.subr.bf16.mxu0 0
    %597 = vmatpush1.bf16.msra.mxu0 0
    %598 = vmatprep.subr.bf16.mxu0 0
    %599 = vmatpush1.bf16.msra.mxu0 0
    %600 = vmatprep.subr.bf16.mxu0 0
    %601 = vmatpush1.bf16.msra.mxu0 %v584
    %602 = vmatprep.subr.bf16.mxu0 0
    %603 = vmatpush2.bf16.msra.mxu0 0
    %604 = vmatprep.subr.bf16.mxu0 0
    %605 = vmatpush2.bf16.msra.mxu0 0
    %606 = vmatprep.subr.bf16.mxu0 0
    %607 = vmatpush2.bf16.msra.mxu0 0
    %608 = vmatprep.subr.bf16.mxu0 0
    %609 = vmatpush2.bf16.msra.mxu0 0
    %610 = vmatprep.subr.bf16.mxu0 0
    %611 = vmatpush2.bf16.msra.mxu0 0
    %612 = vmatprep.subr.bf16.mxu0 0
    %613 = vmatpush2.bf16.msra.mxu0 0
    %614 = vmatprep.subr.bf16.mxu0 0
    %615 = vmatpush2.bf16.msra.mxu0 0
    %616 = vmatprep.subr.bf16.mxu0 0
    %617 = vmatpush2.bf16.msra.mxu0 0
    %618 = vmatprep.mubr.bf16.mxu0 0
    %619 = vmatmul.mubr.bf16.gmra.mxu0 %v452
    %v620 = vpop.f32.mrf.mxu0
    %v621 = vadd.f32 0.0, %v620
    %v622 = vpop.f32.mrf.mxu0
    %v623 = vpop.f32.mrf.mxu0
    %v624 = vadd.f32 0.0, %v623
    %v625 = vpop.f32.mrf.mxu0
    %626 = vmatprep.mubr.bf16.mxu0 0
    %627 = vmatmul.mubr.bf16.gmra.mxu0 %v455
    %v628 = vpop.f32.mrf.mxu0
    %v629 = vadd.f32 0.0, %v628
    %v630 = vpop.f32.mrf.mxu0
    %v631 = vpop.f32.mrf.mxu0
    %v632 = vadd.f32 0.0, %v631
    %v633 = vpop.f32.mrf.mxu0
    %634 = vmatprep.mubr.bf16.mxu0 0
    %635 = vmatmul.mubr.bf16.gmra.mxu0 %v458
    %v636 = vpop.f32.mrf.mxu0
    %v637 = vadd.f32 0.0, %v636
    %v638 = vpop.f32.mrf.mxu0
    %v639 = vpop.f32.mrf.mxu0
    %v640 = vadd.f32 0.0, %v639
    %v641 = vpop.f32.mrf.mxu0
    %642 = vmatprep.mubr.bf16.mxu0 0
    %643 = vmatmul.mubr.bf16.gmra.mxu0 %v461
    %v644 = vpop.f32.mrf.mxu0
    %v645 = vadd.f32 0.0, %v644
    %v646 = vpop.f32.mrf.mxu0
    %v647 = vpop.f32.mrf.mxu0
    %v648 = vadd.f32 0.0, %v647
    %v649 = vpop.f32.mrf.mxu0
    %650 = vmatprep.mubr.bf16.mxu0 0
    %651 = vmatmul.mubr.bf16.gmra.mxu0 %v464
    %v652 = vpop.f32.mrf.mxu0
    %v653 = vadd.f32 0.0, %v652
    %v654 = vpop.f32.mrf.mxu0
    %v655 = vpop.f32.mrf.mxu0
    %v656 = vadd.f32 0.0, %v655
    %v657 = vpop.f32.mrf.mxu0
    %658 = vmatprep.mubr.bf16.mxu0 0
    %659 = vmatmul.mubr.bf16.gmra.mxu0 %v467
    %v660 = vpop.f32.mrf.mxu0
    %v661 = vadd.f32 0.0, %v660
    %v662 = vpop.f32.mrf.mxu0
    %v663 = vpop.f32.mrf.mxu0
    %v664 = vadd.f32 0.0, %v663
    %v665 = vpop.f32.mrf.mxu0
    %666 = vmatprep.mubr.bf16.mxu0 0
    %667 = vmatmul.mubr.bf16.gmra.mxu0 %v470
    %v668 = vpop.f32.mrf.mxu0
    %v669 = vadd.f32 0.0, %v668
    %v670 = vpop.f32.mrf.mxu0
    %v671 = vpop.f32.mrf.mxu0
    %v672 = vadd.f32 0.0, %v671
    %v673 = vpop.f32.mrf.mxu0
    %674 = vmatprep.mubr.bf16.mxu0 0
    %675 = vmatmul.mubr.bf16.gmra.mxu0 %v473
    %v676 = vpop.f32.mrf.mxu0
    %v677 = vadd.f32 0.0, %v676
    %v678 = vpop.f32.mrf.mxu0
    %v679 = vpop.f32.mrf.mxu0
    %v680 = vadd.f32 0.0, %v679
    %v681 = vpop.f32.mrf.mxu0
    %682 = vdwg.mxu0
    %v683 = vpack.c.bf16 %v425, %v422
    %v684 = vpack.c.bf16 %v433, %v430
    %v685 = vpack.c.bf16 %v517, %v514
    %v686 = vpack.c.bf16 %v525, %v522
    %v687 = vpack.c.bf16 %v533, %v530
    %v688 = vpack.c.bf16 %v541, %v538
    %v689 = vpack.c.bf16 %v549, %v546
    %v690 = vpack.c.bf16 %v557, %v554
    %v691 = vpack.c.bf16 %v565, %v562
    %v692 = vpack.c.bf16 %v573, %v570
    %v693 = vpack.c.bf16 %v624, %v621
    %v694 = vpack.c.bf16 %v632, %v629
    %v695 = vpack.c.bf16 %v640, %v637
    %v696 = vpack.c.bf16 %v648, %v645
    %v697 = vpack.c.bf16 %v656, %v653
    %v698 = vpack.c.bf16 %v664, %v661
    %v699 = vpack.c.bf16 %v672, %v669
    %v700 = vpack.c.bf16 %v680, %v677
    %vm701 = vcmask 130048
    %v703 = vsel %vm701, %v683, 0
    %v706 = vsel %vm701, %v685, 0
    %v709 = vsel %vm701, %v686, 0
    %v712 = vsel %vm701, %v687, 0
    %v715 = vsel %vm701, %v688, 0
    %717 = vmatprep.subr.bf16.mxu0 0
    %718 = vmatpush1.bf16.xpose.msra.mxu0 0
    %719 = vmatprep.subr.bf16.mxu0 0
    %720 = vmatpush1.bf16.xpose.msra.mxu0 0
    %721 = vmatprep.subr.bf16.mxu0 0
    %722 = vmatpush1.bf16.xpose.msra.mxu0 0
    %723 = vmatprep.subr.bf16.mxu0 0
    %724 = vmatpush1.bf16.xpose.msra.mxu0 0
    %725 = vmatprep.subr.bf16.mxu0 0
    %726 = vmatpush1.bf16.xpose.msra.mxu0 %v715
    %727 = vmatprep.subr.bf16.mxu0 0
    %728 = vmatpush1.bf16.xpose.msra.mxu0 %v712
    %729 = vmatprep.subr.bf16.mxu0 0
    %730 = vmatpush1.bf16.xpose.msra.mxu0 %v709
    %731 = vmatprep.subr.bf16.mxu0 0
    %732 = vmatpush1.bf16.xpose.msra.mxu0 %v706
    %733 = vmatprep.subr.bf16.mxu0 0
    %734 = vmatpush2.bf16.xpose.msra.mxu0 0
    %735 = vmatprep.subr.bf16.mxu0 0
    %736 = vmatpush2.bf16.xpose.msra.mxu0 0
    %737 = vmatprep.subr.bf16.mxu0 0
    %738 = vmatpush2.bf16.xpose.msra.mxu0 0
    %739 = vmatprep.subr.bf16.mxu0 0
    %740 = vmatpush2.bf16.xpose.msra.mxu0 0
    %741 = vmatprep.subr.bf16.mxu0 0
    %742 = vmatpush2.bf16.xpose.msra.mxu0 0
    %743 = vmatprep.subr.bf16.mxu0 0
    %744 = vmatpush2.bf16.xpose.msra.mxu0 0
    %745 = vmatprep.subr.bf16.mxu0 0
    %746 = vmatpush2.bf16.xpose.msra.mxu0 0
    %747 = vmatprep.subr.bf16.mxu0 0
    %748 = vmatpush2.bf16.xpose.msra.mxu0 0
    %749 = vmatprep.mubr.bf16.mxu0 0
    %750 = vmatmul.mubr.bf16.gmra.mxu0 %v703
    %v751 = vpop.f32.mrf.mxu0
    %v752 = vadd.f32 0.0, %v751
    %v753 = vpop.f32.mrf.mxu0
    %v754 = vpop.f32.mrf.mxu0
    %v755 = vadd.f32 0.0, %v754
    %v756 = vpop.f32.mrf.mxu0
    %757 = vdwg.mxu0
    %v759 = vsel %vm701, %v684, 0
    %v762 = vsel %vm701, %v689, 0
    %v765 = vsel %vm701, %v690, 0
    %v768 = vsel %vm701, %v691, 0
    %v771 = vsel %vm701, %v692, 0
    %773 = vmatprep.subr.bf16.mxu0 0
    %774 = vmatpush1.bf16.xpose.msra.mxu0 0
    %775 = vmatprep.subr.bf16.mxu0 0
    %776 = vmatpush1.bf16.xpose.msra.mxu0 0
    %777 = vmatprep.subr.bf16.mxu0 0
    %778 = vmatpush1.bf16.xpose.msra.mxu0 0
    %779 = vmatprep.subr.bf16.mxu0 0
    %780 = vmatpush1.bf16.xpose.msra.mxu0 0
    %781 = vmatprep.subr.bf16.mxu0 0
    %782 = vmatpush1.bf16.xpose.msra.mxu0 %v771
    %783 = vmatprep.subr.bf16.mxu0 0
    %784 = vmatpush1.bf16.xpose.msra.mxu0 %v768
    %785 = vmatprep.subr.bf16.mxu0 0
    %786 = vmatpush1.bf16.xpose.msra.mxu0 %v765
    %787 = vmatprep.subr.bf16.mxu0 0
    %788 = vmatpush1.bf16.xpose.msra.mxu0 %v762
    %789 = vmatprep.subr.bf16.mxu0 0
    %790 = vmatpush2.bf16.xpose.msra.mxu0 0
    %791 = vmatprep.subr.bf16.mxu0 0
    %792 = vmatpush2.bf16.xpose.msra.mxu0 0
    %793 = vmatprep.subr.bf16.mxu0 0
    %794 = vmatpush2.bf16.xpose.msra.mxu0 0
    %795 = vmatprep.subr.bf16.mxu0 0
    %796 = vmatpush2.bf16.xpose.msra.mxu0 0
    %797 = vmatprep.subr.bf16.mxu0 0
    %798 = vmatpush2.bf16.xpose.msra.mxu0 0
    %799 = vmatprep.subr.bf16.mxu0 0
    %800 = vmatpush2.bf16.xpose.msra.mxu0 0
    %801 = vmatprep.subr.bf16.mxu0 0
    %802 = vmatpush2.bf16.xpose.msra.mxu0 0
    %803 = vmatprep.subr.bf16.mxu0 0
    %804 = vmatpush2.bf16.xpose.msra.mxu0 0
    %805 = vmatprep.mubr.bf16.mxu0 0
    %806 = vmatmul.mubr.bf16.gmra.mxu0 %v759
    %v807 = vpop.f32.mrf.mxu0
    %v808 = vadd.f32 0.0, %v807
    %v809 = vpop.f32.mrf.mxu0
    %v810 = vpop.f32.mrf.mxu0
    %v811 = vadd.f32 0.0, %v810
    %v812 = vpop.f32.mrf.mxu0
    %813 = vdwg.mxu0
    %v814 = vmul.f32 %v752, 0.25
    %v815 = vmul.f32 %v755, 0.25
    %v816 = vmul.f32 %v808, 0.25
    %v817 = vmul.f32 %v811, 0.25
    %vm818 = vcmask 523264
    %v819 = vsel %vm818, %v814, -inf
    %820 = vmax.xlane.f32.xlu0 %v819
    %v821 = vpop.xlane.xlu0 %820
    %v822 = vsel %vm818, %v815, -inf
    %823 = vmax.xlane.f32.xlu0 %v822
    %v824 = vpop.xlane.xlu0 %823
    %v825 = vsel %vm818, %v816, -inf
    %826 = vmax.xlane.f32.xlu0 %v825
    %v827 = vpop.xlane.xlu0 %826
    %v828 = vsel %vm818, %v817, -inf
    %829 = vmax.xlane.f32.xlu0 %v828
    %v830 = vpop.xlane.xlu0 %829
    %v831 = vsub.f32 %v814, %v821
    %v832 = vsub.f32 %v815, %v824
    %v833 = vsub.f32 %v816, %v827
    %v834 = vsub.f32 %v817, %v830
    %v835 = vmul.f32 %v831, 1.442695
    %v836 = vpow.pop %v835
    %v837 = vmul.f32 %v832, 1.442695
    %v838 = vpow.pop %v837
    %v839 = vmul.f32 %v833, 1.442695
    %v840 = vpow.pop %v839
    %v841 = vmul.f32 %v834, 1.442695
    %v842 = vpow.pop %v841
    %v843 = vsel %vm818, %v836, 0.0
    %844 = vadd.xlane.f32.xlu0 %v843
    %v845 = vpop.xlane.xlu0 %844
    %v846 = vsel %vm818, %v838, 0.0
    %847 = vadd.xlane.f32.xlu0 %v846
    %v848 = vpop.xlane.xlu0 %847
    %v849 = vsel %vm818, %v840, 0.0
    %850 = vadd.xlane.f32.xlu0 %v849
    %v851 = vpop.xlane.xlu0 %850
    %v852 = vsel %vm818, %v842, 0.0
    %853 = vadd.xlane.f32.xlu0 %v852
    %v854 = vpop.xlane.xlu0 %853
    %v855 = vrcp.pop %v845
    %v856 = vrcp.pop %v848
    %v857 = vrcp.pop %v851
    %v858 = vrcp.pop %v854
    %v859 = vmul.f32 %v836, %v855
    %v860 = vmul.f32 %v838, %v856
    %v861 = vmul.f32 %v840, %v857
    %v862 = vmul.f32 %v842, %v858
    %v863 = vpack.c.bf16 %v860, %v859
    %v864 = vpack.c.bf16 %v862, %v861
    %v866 = vsel %vm818, %v863, 0
    %868 = vmatprep.subr.bf16.mxu0 0
    %869 = vmatpush1.bf16.msra.mxu0 0
    %870 = vmatprep.subr.bf16.mxu0 0
    %871 = vmatpush1.bf16.msra.mxu0 0
    %872 = vmatprep.subr.bf16.mxu0 0
    %873 = vmatpush1.bf16.msra.mxu0 0
    %874 = vmatprep.subr.bf16.mxu0 0
    %875 = vmatpush1.bf16.msra.mxu0 0
    %876 = vmatprep.subr.bf16.mxu0 0
    %877 = vmatpush1.bf16.msra.mxu0 %v696
    %878 = vmatprep.subr.bf16.mxu0 0
    %879 = vmatpush1.bf16.msra.mxu0 %v695
    %880 = vmatprep.subr.bf16.mxu0 0
    %881 = vmatpush1.bf16.msra.mxu0 %v694
    %882 = vmatprep.subr.bf16.mxu0 0
    %883 = vmatpush1.bf16.msra.mxu0 %v693
    %884 = vmatprep.subr.bf16.mxu0 0
    %885 = vmatpush2.bf16.msra.mxu0 0
    %886 = vmatprep.subr.bf16.mxu0 0
    %887 = vmatpush2.bf16.msra.mxu0 0
    %888 = vmatprep.subr.bf16.mxu0 0
    %889 = vmatpush2.bf16.msra.mxu0 0
    %890 = vmatprep.subr.bf16.mxu0 0
    %891 = vmatpush2.bf16.msra.mxu0 0
    %892 = vmatprep.subr.bf16.mxu0 0
    %893 = vmatpush2.bf16.msra.mxu0 0
    %894 = vmatprep.subr.bf16.mxu0 0
    %895 = vmatpush2.bf16.msra.mxu0 0
    %896 = vmatprep.subr.bf16.mxu0 0
    %897 = vmatpush2.bf16.msra.mxu0 0
    %898 = vmatprep.subr.bf16.mxu0 0
    %899 = vmatpush2.bf16.msra.mxu0 0
    %900 = vmatprep.mubr.bf16.mxu0 0
    %901 = vmatmul.mubr.bf16.gmra.mxu0 %v866
    %v902 = vpop.f32.mrf.mxu0
    %v903 = vadd.f32 0.0, %v902
    %v904 = vpop.f32.mrf.mxu0
    %v905 = vpop.f32.mrf.mxu0
    %v906 = vadd.f32 0.0, %v905
    %v907 = vpop.f32.mrf.mxu0
    %908 = vdwg.mxu0
    %v910 = vsel %vm818, %v864, 0
    %912 = vmatprep.subr.bf16.mxu0 0
    %913 = vmatpush1.bf16.msra.mxu0 0
    %914 = vmatprep.subr.bf16.mxu0 0
    %915 = vmatpush1.bf16.msra.mxu0 0
    %916 = vmatprep.subr.bf16.mxu0 0
    %917 = vmatpush1.bf16.msra.mxu0 0
    %918 = vmatprep.subr.bf16.mxu0 0
    %919 = vmatpush1.bf16.msra.mxu0 0
    %920 = vmatprep.subr.bf16.mxu0 0
    %921 = vmatpush1.bf16.msra.mxu0 %v700
    %922 = vmatprep.subr.bf16.mxu0 0
    %923 = vmatpush1.bf16.msra.mxu0 %v699
    %924 = vmatprep.subr.bf16.mxu0 0
    %925 = vmatpush1.bf16.msra.mxu0 %v698
    %926 = vmatprep.subr.bf16.mxu0 0
    %927 = vmatpush1.bf16.msra.mxu0 %v697
    %928 = vmatprep.subr.bf16.mxu0 0
    %929 = vmatpush2.bf16.msra.mxu0 0
    %930 = vmatprep.subr.bf16.mxu0 0
    %931 = vmatpush2.bf16.msra.mxu0 0
    %932 = vmatprep.subr.bf16.mxu0 0
    %933 = vmatpush2.bf16.msra.mxu0 0
    %934 = vmatprep.subr.bf16.mxu0 0
    %935 = vmatpush2.bf16.msra.mxu0 0
    %936 = vmatprep.subr.bf16.mxu0 0
    %937 = vmatpush2.bf16.msra.mxu0 0
    %938 = vmatprep.subr.bf16.mxu0 0
    %939 = vmatpush2.bf16.msra.mxu0 0
    %940 = vmatprep.subr.bf16.mxu0 0
    %941 = vmatpush2.bf16.msra.mxu0 0
    %942 = vmatprep.subr.bf16.mxu0 0
    %943 = vmatpush2.bf16.msra.mxu0 0
    %944 = vmatprep.mubr.bf16.mxu0 0
    %945 = vmatmul.mubr.bf16.gmra.mxu0 %v910
    %v946 = vpop.f32.mrf.mxu0
    %v947 = vadd.f32 0.0, %v946
    %v948 = vpop.f32.mrf.mxu0
    %v949 = vpop.f32.mrf.mxu0
    %v950 = vadd.f32 0.0, %v949
    %v951 = vpop.f32.mrf.mxu0
    %952 = vdwg.mxu0
    %v953 = vpack.c.bf16 %v906, %v903
    %v954 = vpack.c.bf16 %v950, %v947
    %v955 = vld [vmem:[%s2 + $0x20] sm:$0xf]
    %v956 = vld [vmem:[%s2 + $0x24] sm:$0xf]
    %v957 = vld [vmem:[%s3 + $0x20] sm:$0x1]
    %v958 = vlaneseq
    %v959 = vshrl.u32 %v958, 7
    %v960 = vsub.s32 0, %v959
    %v961 = vrot.slane %v957, %v960
    %v964 = vunpack.c.l.b16 %v955
    %v965 = vunpack.c.l.b16 %v956
    %v966 = vpack.c.b16 %v965, %v964
    %v969 = vsel %vm701, %v953, 0
    %v972 = vsel %vm701, %v954, 0
    %974 = vmatprep.subr.bf16.mxu0 0
    %975 = vmatpush1.bf16.msra.mxu0 0
    %976 = vmatprep.subr.bf16.mxu0 0
    %977 = vmatpush1.bf16.msra.mxu0 0
    %978 = vmatprep.subr.bf16.mxu0 0
    %979 = vmatpush1.bf16.msra.mxu0 0
    %980 = vmatprep.subr.bf16.mxu0 0
    %981 = vmatpush1.bf16.msra.mxu0 0
    %982 = vmatprep.subr.bf16.mxu0 0
    %983 = vmatpush1.bf16.msra.mxu0 0
    %984 = vmatprep.subr.bf16.mxu0 0
    %985 = vmatpush1.bf16.msra.mxu0 0
    %986 = vmatprep.subr.bf16.mxu0 0
    %987 = vmatpush1.bf16.msra.mxu0 0
    %988 = vmatprep.subr.bf16.mxu0 0
    %989 = vmatpush1.bf16.msra.mxu0 %v966
    %990 = vmatprep.subr.bf16.mxu0 0
    %991 = vmatpush2.bf16.msra.mxu0 0
    %992 = vmatprep.subr.bf16.mxu0 0
    %993 = vmatpush2.bf16.msra.mxu0 0
    %994 = vmatprep.subr.bf16.mxu0 0
    %995 = vmatpush2.bf16.msra.mxu0 0
    %996 = vmatprep.subr.bf16.mxu0 0
    %997 = vmatpush2.bf16.msra.mxu0 0
    %998 = vmatprep.subr.bf16.mxu0 0
    %999 = vmatpush2.bf16.msra.mxu0 0
    %1000 = vmatprep.subr.bf16.mxu0 0
    %1001 = vmatpush2.bf16.msra.mxu0 0
    %1002 = vmatprep.subr.bf16.mxu0 0
    %1003 = vmatpush2.bf16.msra.mxu0 0
    %1004 = vmatprep.subr.bf16.mxu0 0
    %1005 = vmatpush2.bf16.msra.mxu0 0
    %1006 = vmatprep.mubr.bf16.mxu0 0
    %1007 = vmatmul.mubr.bf16.gmra.mxu0 %v969
    %v1008 = vpop.f32.mrf.mxu0
    %v1009 = vadd.f32 %v961, %v1008
    %v1010 = vpop.f32.mrf.mxu0
    %v1011 = vpop.f32.mrf.mxu0
    %v1012 = vadd.f32 %v961, %v1011
    %v1013 = vpop.f32.mrf.mxu0
    %1014 = vmatprep.mubr.bf16.mxu0 0
    %1015 = vmatmul.mubr.bf16.gmra.mxu0 %v972
    %v1016 = vpop.f32.mrf.mxu0
    %v1017 = vadd.f32 %v961, %v1016
    %v1018 = vpop.f32.mrf.mxu0
    %v1019 = vpop.f32.mrf.mxu0
    %v1020 = vadd.f32 %v961, %v1019
    %v1021 = vpop.f32.mrf.mxu0
    %1022 = vdwg.mxu0
    %v1023 = vadd.f32 %v35, %v1009
    %v1024 = vadd.f32 %v36, %v1012
    %v1025 = vadd.f32 %v37, %v1017
    %v1026 = vadd.f32 %v38, %v1020
    %v1027 = vld [vmem:[%s3 + $0x28] sm:$0x1]
    %v1028 = vld [vmem:[%s3 + $0x30] sm:$0x1]
    %v1029 = vsel %vm41, %v1023, 0.0
    %1030 = vadd.xlane.f32.xlu0 %v1029
    %v1031 = vpop.xlane.xlu0 %1030
    %v1032 = vsel %vm41, %v1024, 0.0
    %1033 = vadd.xlane.f32.xlu0 %v1032
    %v1034 = vpop.xlane.xlu0 %1033
    %v1035 = vsel %vm41, %v1025, 0.0
    %1036 = vadd.xlane.f32.xlu0 %v1035
    %v1037 = vpop.xlane.xlu0 %1036
    %v1038 = vsel %vm41, %v1026, 0.0
    %1039 = vadd.xlane.f32.xlu0 %v1038
    %v1040 = vpop.xlane.xlu0 %1039
    %v1041 = vmul.f32 %v1031, %v54
    %v1042 = vmul.f32 %v1034, %v54
    %v1043 = vmul.f32 %v1037, %v54
    %v1044 = vmul.f32 %v1040, %v54
    %v1045 = vsub.f32 %v1023, %v1041
    %v1046 = vsub.f32 %v1024, %v1042
    %v1047 = vsub.f32 %v1025, %v1043
    %v1048 = vsub.f32 %v1026, %v1044
    %v1049 = vmul.f32 %v1045, %v1045
    %v1050 = vmul.f32 %v1046, %v1046
    %v1051 = vmul.f32 %v1047, %v1047
    %v1052 = vmul.f32 %v1048, %v1048
    %v1053 = vsel %vm41, %v1049, 0.0
    %1054 = vadd.xlane.f32.xlu0 %v1053
    %v1055 = vpop.xlane.xlu0 %1054
    %v1056 = vsel %vm41, %v1050, 0.0
    %1057 = vadd.xlane.f32.xlu0 %v1056
    %v1058 = vpop.xlane.xlu0 %1057
    %v1059 = vsel %vm41, %v1051, 0.0
    %1060 = vadd.xlane.f32.xlu0 %v1059
    %v1061 = vpop.xlane.xlu0 %1060
    %v1062 = vsel %vm41, %v1052, 0.0
    %1063 = vadd.xlane.f32.xlu0 %v1062
    %v1064 = vpop.xlane.xlu0 %1063
    %v1065 = vmul.f32 %v1055, %v54
    %v1066 = vmul.f32 %v1058, %v54
    %v1067 = vmul.f32 %v1061, %v54
    %v1068 = vmul.f32 %v1064, %v54
    %v1069 = vadd.f32 %v1065, 1e-05
    %v1070 = vadd.f32 %v1066, 1e-05
    %v1071 = vadd.f32 %v1067, 1e-05
    %v1072 = vadd.f32 %v1068, 1e-05
    %v1073 = vrsqrt.pop %v1069
    %v1074 = vrsqrt.pop %v1070
    %v1075 = vrsqrt.pop %v1071
    %v1076 = vrsqrt.pop %v1072
    %v1077 = vmul.f32 %v1045, %v1073
    %v1078 = vmul.f32 %v1046, %v1074
    %v1079 = vmul.f32 %v1047, %v1075
    %v1080 = vmul.f32 %v1048, %v1076
    %v1081 = vlaneseq
    %v1082 = vshrl.u32 %v1081, 7
    %v1083 = vsub.s32 0, %v1082
    %v1084 = vrot.slane %v1027, %v1083
    %v1085 = vmul.f32 %v1077, %v1084
    %v1086 = vmul.f32 %v1078, %v1084
    %v1087 = vmul.f32 %v1079, %v1084
    %v1088 = vmul.f32 %v1080, %v1084
    %v1089 = vlaneseq
    %v1090 = vshrl.u32 %v1089, 7
    %v1091 = vsub.s32 0, %v1090
    %v1092 = vrot.slane %v1028, %v1091
    %v1093 = vadd.f32 %v1085, %v1092
    %v1094 = vadd.f32 %v1086, %v1092
    %v1095 = vadd.f32 %v1087, %v1092
    %v1096 = vadd.f32 %v1088, %v1092
    %v1097 = vpack.c.bf16 %v1094, %v1093
    %v1098 = vpack.c.bf16 %v1096, %v1095
    %v1099 = vld [vmem:[%s2 + $0x28] sm:$0xf]
    %v1100 = vld [vmem:[%s2 + $0x2c] sm:$0xf]
    %v1101 = vld [vmem:[%s2 + $0x30] sm:$0xf]
    %v1102 = vld [vmem:[%s2 + $0x34] sm:$0xf]
    %v1103 = vld [vmem:[%s3 + $0x38] sm:$0x1]
    %v1104 = vlaneseq
    %v1105 = vshrl.u32 %v1104, 7
    %v1106 = vsub.s32 0, %v1105
    %v1107 = vrot.slane %v1103, %v1106
    %v1112 = vunpack.c.l.b16 %v1099
    %v1113 = vunpack.c.l.b16 %v1100
    %v1114 = vunpack.c.l.b16 %v1101
    %v1115 = vunpack.c.l.b16 %v1102
    %v1116 = vpack.c.b16 %v1113, %v1112
    %v1117 = vpack.c.b16 %v1115, %v1114
    %v1121 = vsel %vm41, %v1097, 0
    %v1124 = vsel %vm41, %v1098, 0
    %1126 = vmatprep.subr.bf16.mxu0 0
    %1127 = vmatpush1.bf16.msra.mxu0 0
    %1128 = vmatprep.subr.bf16.mxu0 0
    %1129 = vmatpush1.bf16.msra.mxu0 0
    %1130 = vmatprep.subr.bf16.mxu0 0
    %1131 = vmatpush1.bf16.msra.mxu0 0
    %1132 = vmatprep.subr.bf16.mxu0 0
    %1133 = vmatpush1.bf16.msra.mxu0 0
    %1134 = vmatprep.subr.bf16.mxu0 0
    %1135 = vmatpush1.bf16.msra.mxu0 0
    %1136 = vmatprep.subr.bf16.mxu0 0
    %1137 = vmatpush1.bf16.msra.mxu0 0
    %1138 = vmatprep.subr.bf16.mxu0 0
    %1139 = vmatpush1.bf16.msra.mxu0 %v1117
    %1140 = vmatprep.subr.bf16.mxu0 0
    %1141 = vmatpush1.bf16.msra.mxu0 %v1116
    %1142 = vmatprep.subr.bf16.mxu0 0
    %1143 = vmatpush2.bf16.msra.mxu0 0
    %1144 = vmatprep.subr.bf16.mxu0 0
    %1145 = vmatpush2.bf16.msra.mxu0 0
    %1146 = vmatprep.subr.bf16.mxu0 0
    %1147 = vmatpush2.bf16.msra.mxu0 0
    %1148 = vmatprep.subr.bf16.mxu0 0
    %1149 = vmatpush2.bf16.msra.mxu0 0
    %1150 = vmatprep.subr.bf16.mxu0 0
    %1151 = vmatpush2.bf16.msra.mxu0 0
    %1152 = vmatprep.subr.bf16.mxu0 0
    %1153 = vmatpush2.bf16.msra.mxu0 0
    %1154 = vmatprep.subr.bf16.mxu0 0
    %1155 = vmatpush2.bf16.msra.mxu0 0
    %1156 = vmatprep.subr.bf16.mxu0 0
    %1157 = vmatpush2.bf16.msra.mxu0 0
    %1158 = vmatprep.mubr.bf16.mxu0 0
    %1159 = vmatmul.mubr.bf16.gmra.mxu0 %v1121
    %v1160 = vpop.f32.mrf.mxu0
    %v1161 = vadd.f32 %v1107, %v1160
    %v1162 = vpop.f32.mrf.mxu0
    %v1163 = vpop.f32.mrf.mxu0
    %v1164 = vadd.f32 %v1107, %v1163
    %v1165 = vpop.f32.mrf.mxu0
    %1166 = vmatprep.mubr.bf16.mxu0 0
    %1167 = vmatmul.mubr.bf16.gmra.mxu0 %v1124
    %v1168 = vpop.f32.mrf.mxu0
    %v1169 = vadd.f32 %v1107, %v1168
    %v1170 = vpop.f32.mrf.mxu0
    %v1171 = vpop.f32.mrf.mxu0
    %v1172 = vadd.f32 %v1107, %v1171
    %v1173 = vpop.f32.mrf.mxu0
    %1174 = vdwg.mxu0
    %v1175 = vld [vmem:[%s2 + $0x38] sm:$0xf]
    %v1176 = vld [vmem:[%s2 + $0x3c] sm:$0xf]
    %v1177 = vld [vmem:[%s2 + $0x40] sm:$0xf]
    %v1178 = vld [vmem:[%s2 + $0x44] sm:$0xf]
    %v1179 = vld [vmem:[%s3 + $0x40] sm:$0x1]
    %v1180 = vlaneseq
    %v1181 = vshrl.u32 %v1180, 7
    %v1182 = vsub.s32 0, %v1181
    %v1183 = vrot.slane %v1179, %v1182
    %v1188 = vunpack.c.l.b16 %v1175
    %v1189 = vunpack.c.l.b16 %v1176
    %v1190 = vunpack.c.l.b16 %v1177
    %v1191 = vunpack.c.l.b16 %v1178
    %v1192 = vpack.c.b16 %v1189, %v1188
    %v1193 = vpack.c.b16 %v1191, %v1190
    %1196 = vmatprep.subr.bf16.mxu0 0
    %1197 = vmatpush1.bf16.msra.mxu0 0
    %1198 = vmatprep.subr.bf16.mxu0 0
    %1199 = vmatpush1.bf16.msra.mxu0 0
    %1200 = vmatprep.subr.bf16.mxu0 0
    %1201 = vmatpush1.bf16.msra.mxu0 0
    %1202 = vmatprep.subr.bf16.mxu0 0
    %1203 = vmatpush1.bf16.msra.mxu0 0
    %1204 = vmatprep.subr.bf16.mxu0 0
    %1205 = vmatpush1.bf16.msra.mxu0 0
    %1206 = vmatprep.subr.bf16.mxu0 0
    %1207 = vmatpush1.bf16.msra.mxu0 0
    %1208 = vmatprep.subr.bf16.mxu0 0
    %1209 = vmatpush1.bf16.msra.mxu0 %v1193
    %1210 = vmatprep.subr.bf16.mxu0 0
    %1211 = vmatpush1.bf16.msra.mxu0 %v1192
    %1212 = vmatprep.subr.bf16.mxu0 0
    %1213 = vmatpush2.bf16.msra.mxu0 0
    %1214 = vmatprep.subr.bf16.mxu0 0
    %1215 = vmatpush2.bf16.msra.mxu0 0
    %1216 = vmatprep.subr.bf16.mxu0 0
    %1217 = vmatpush2.bf16.msra.mxu0 0
    %1218 = vmatprep.subr.bf16.mxu0 0
    %1219 = vmatpush2.bf16.msra.mxu0 0
    %1220 = vmatprep.subr.bf16.mxu0 0
    %1221 = vmatpush2.bf16.msra.mxu0 0
    %1222 = vmatprep.subr.bf16.mxu0 0
    %1223 = vmatpush2.bf16.msra.mxu0 0
    %1224 = vmatprep.subr.bf16.mxu0 0
    %1225 = vmatpush2.bf16.msra.mxu0 0
    %1226 = vmatprep.subr.bf16.mxu0 0
    %1227 = vmatpush2.bf16.msra.mxu0 0
    %1228 = vmatprep.mubr.bf16.mxu0 0
    %1229 = vmatmul.mubr.bf16.gmra.mxu0 %v1121
    %v1230 = vpop.f32.mrf.mxu0
    %v1231 = vadd.f32 %v1183, %v1230
    %v1232 = vpop.f32.mrf.mxu0
    %v1233 = vpop.f32.mrf.mxu0
    %v1234 = vadd.f32 %v1183, %v1233
    %v1235 = vpop.f32.mrf.mxu0
    %1236 = vmatprep.mubr.bf16.mxu0 0
    %1237 = vmatmul.mubr.bf16.gmra.mxu0 %v1124
    %v1238 = vpop.f32.mrf.mxu0
    %v1239 = vadd.f32 %v1183, %v1238
    %v1240 = vpop.f32.mrf.mxu0
    %v1241 = vpop.f32.mrf.mxu0
    %v1242 = vadd.f32 %v1183, %v1241
    %v1243 = vpop.f32.mrf.mxu0
    %1244 = vdwg.mxu0
    %v1245 = vmul.f32 %v1231, 0.5
    %v1246 = vmul.f32 %v1234, 0.5
    %v1247 = vmul.f32 %v1239, 0.5
    %v1248 = vmul.f32 %v1242, 0.5
    %v1249 = vmul.f32 %v1231, 0.70710677
    %v1250 = vmul.f32 %v1234, 0.70710677
    %v1251 = vmul.f32 %v1239, 0.70710677
    %v1252 = vmul.f32 %v1242, 0.70710677
    %v1253 = verf.f32.pop %v1249
    %v1254 = verf.f32.pop %v1250
    %v1255 = verf.f32.pop %v1251
    %v1256 = verf.f32.pop %v1252
    %v1257 = vadd.f32 %v1253, 1.0
    %v1258 = vadd.f32 %v1254, 1.0
    %v1259 = vadd.f32 %v1255, 1.0
    %v1260 = vadd.f32 %v1256, 1.0
    %v1261 = vmul.f32 %v1245, %v1257
    %v1262 = vmul.f32 %v1246, %v1258
    %v1263 = vmul.f32 %v1247, %v1259
    %v1264 = vmul.f32 %v1248, %v1260
    %v1265 = vmul.f32 %v1161, %v1261
    %v1266 = vmul.f32 %v1164, %v1262
    %v1267 = vmul.f32 %v1169, %v1263
    %v1268 = vmul.f32 %v1172, %v1264
    %v1269 = vpack.c.bf16 %v1266, %v1265
    %v1270 = vpack.c.bf16 %v1268, %v1267
    %v1271 = vld [vmem:[%s2 + $0x48] sm:$0xf]
    %v1272 = vld [vmem:[%s2 + $0x4c] sm:$0xf]
    %v1273 = vld [vmem:[%s2 + $0x50] sm:$0xf]
    %v1274 = vld [vmem:[%s2 + $0x54] sm:$0xf]
    %v1275 = vld [vmem:[%s2 + $0x58] sm:$0xf]
    %v1276 = vld [vmem:[%s2 + $0x5c] sm:$0xf]
    %v1277 = vld [vmem:[%s2 + $0x60] sm:$0xf]
    %v1278 = vld [vmem:[%s2 + $0x64] sm:$0xf]
    %v1279 = vld [vmem:[%s2 + $0x68] sm:$0xf]
    %v1280 = vld [vmem:[%s2 + $0x6c] sm:$0xf]
    %v1281 = vld [vmem:[%s2 + $0x70] sm:$0xf]
    %v1282 = vld [vmem:[%s2 + $0x74] sm:$0xf]
    %v1283 = vld [vmem:[%s2 + $0x78] sm:$0xf]
    %v1284 = vld [vmem:[%s2 + $0x7c] sm:$0xf]
    %v1285 = vld [vmem:[%s2 + $0x80] sm:$0xf]
    %v1286 = vld [vmem:[%s2 + $0x84] sm:$0xf]
    %v1287 = vld [vmem:[%s3 + $0x48] sm:$0x1]
    %v1288 = vlaneseq
    %v1289 = vshrl.u32 %v1288, 7
    %v1290 = vsub.s32 0, %v1289
    %v1291 = vrot.slane %v1287, %v1290
    %v1308 = vunpack.c.l.b16 %v1271
    %v1309 = vunpack.c.l.b16 %v1272
    %v1310 = vunpack.c.l.b16 %v1273
    %v1311 = vunpack.c.l.b16 %v1274
    %v1312 = vunpack.c.l.b16 %v1275
    %v1313 = vunpack.c.l.b16 %v1276
    %v1314 = vunpack.c.l.b16 %v1277
    %v1315 = vunpack.c.l.b16 %v1278
    %v1316 = vunpack.c.l.b16 %v1279
    %v1317 = vunpack.c.l.b16 %v1280
    %v1318 = vunpack.c.l.b16 %v1281
    %v1319 = vunpack.c.l.b16 %v1282
    %v1320 = vunpack.c.l.b16 %v1283
    %v1321 = vunpack.c.l.b16 %v1284
    %v1322 = vunpack.c.l.b16 %v1285
    %v1323 = vunpack.c.l.b16 %v1286
    %v1324 = vpack.c.b16 %v1309, %v1308
    %v1325 = vpack.c.b16 %v1311, %v1310
    %v1326 = vpack.c.b16 %v1313, %v1312
    %v1327 = vpack.c.b16 %v1315, %v1314
    %v1328 = vpack.c.b16 %v1317, %v1316
    %v1329 = vpack.c.b16 %v1319, %v1318
    %v1330 = vpack.c.b16 %v1321, %v1320
    %v1331 = vpack.c.b16 %v1323, %v1322
    %1340 = vmatprep.subr.bf16.mxu0 0
    %1341 = vmatpush1.bf16.msra.mxu0 %v1331
    %1342 = vmatprep.subr.bf16.mxu0 0
    %1343 = vmatpush1.bf16.msra.mxu0 %v1330
    %1344 = vmatprep.subr.bf16.mxu0 0
    %1345 = vmatpush1.bf16.msra.mxu0 %v1329
    %1346 = vmatprep.subr.bf16.mxu0 0
    %1347 = vmatpush1.bf16.msra.mxu0 %v1328
    %1348 = vmatprep.subr.bf16.mxu0 0
    %1349 = vmatpush1.bf16.msra.mxu0 %v1327
    %1350 = vmatprep.subr.bf16.mxu0 0
    %1351 = vmatpush1.bf16.msra.mxu0 %v1326
    %1352 = vmatprep.subr.bf16.mxu0 0
    %1353 = vmatpush1.bf16.msra.mxu0 %v1325
    %1354 = vmatprep.subr.bf16.mxu0 0
    %1355 = vmatpush1.bf16.msra.mxu0 %v1324
    %1356 = vmatprep.subr.bf16.mxu0 0
    %1357 = vmatpush2.bf16.msra.mxu0 0
    %1358 = vmatprep.subr.bf16.mxu0 0
    %1359 = vmatpush2.bf16.msra.mxu0 0
    %1360 = vmatprep.subr.bf16.mxu0 0
    %1361 = vmatpush2.bf16.msra.mxu0 0
    %1362 = vmatprep.subr.bf16.mxu0 0
    %1363 = vmatpush2.bf16.msra.mxu0 0
    %1364 = vmatprep.subr.bf16.mxu0 0
    %1365 = vmatpush2.bf16.msra.mxu0 0
    %1366 = vmatprep.subr.bf16.mxu0 0
    %1367 = vmatpush2.bf16.msra.mxu0 0
    %1368 = vmatprep.subr.bf16.mxu0 0
    %1369 = vmatpush2.bf16.msra.mxu0 0
    %1370 = vmatprep.subr.bf16.mxu0 0
    %1371 = vmatpush2.bf16.msra.mxu0 0
    %1372 = vmatprep.mubr.bf16.mxu0 0
    %1373 = vmatmul.mubr.bf16.gmra.mxu0 %v1269
    %v1374 = vpop.f32.mrf.mxu0
    %v1375 = vadd.f32 %v1291, %v1374
    %v1376 = vpop.f32.mrf.mxu0
    %v1377 = vpop.f32.mrf.mxu0
    %v1378 = vadd.f32 %v1291, %v1377
    %v1379 = vpop.f32.mrf.mxu0
    %1380 = vmatprep.mubr.bf16.mxu0 0
    %1381 = vmatmul.mubr.bf16.gmra.mxu0 %v1270
    %v1382 = vpop.f32.mrf.mxu0
    %v1383 = vadd.f32 %v1291, %v1382
    %v1384 = vpop.f32.mrf.mxu0
    %v1385 = vpop.f32.mrf.mxu0
    %v1386 = vadd.f32 %v1291, %v1385
    %v1387 = vpop.f32.mrf.mxu0
    %1388 = vdwg.mxu0
    %v1389 = vadd.f32 %v1023, %v1375
    %v1390 = vadd.f32 %v1024, %v1378
    %v1391 = vadd.f32 %v1025, %v1383
    %v1392 = vadd.f32 %v1026, %v1386
    %v1393 = vld [vmem:[%s3 + $0x50] sm:$0x1]
    %v1394 = vld [vmem:[%s3 + $0x58] sm:$0x1]
    %v1395 = vsel %vm41, %v1389, 0.0
    %1396 = vadd.xlane.f32.xlu0 %v1395
    %v1397 = vpop.xlane.xlu0 %1396
    %v1398 = vsel %vm41, %v1390, 0.0
    %1399 = vadd.xlane.f32.xlu0 %v1398
    %v1400 = vpop.xlane.xlu0 %1399
    %v1401 = vsel %vm41, %v1391, 0.0
    %1402 = vadd.xlane.f32.xlu0 %v1401
    %v1403 = vpop.xlane.xlu0 %1402
    %v1404 = vsel %vm41, %v1392, 0.0
    %1405 = vadd.xlane.f32.xlu0 %v1404
    %v1406 = vpop.xlane.xlu0 %1405
    %v1407 = vmul.f32 %v1397, %v54
    %v1408 = vmul.f32 %v1400, %v54
    %v1409 = vmul.f32 %v1403, %v54
    %v1410 = vmul.f32 %v1406, %v54
    %v1411 = vsub.f32 %v1389, %v1407
    %v1412 = vsub.f32 %v1390, %v1408
    %v1413 = vsub.f32 %v1391, %v1409
    %v1414 = vsub.f32 %v1392, %v1410
    %v1415 = vmul.f32 %v1411, %v1411
    %v1416 = vmul.f32 %v1412, %v1412
    %v1417 = vmul.f32 %v1413, %v1413
    %v1418 = vmul.f32 %v1414, %v1414
    %v1419 = vsel %vm41, %v1415, 0.0
    %1420 = vadd.xlane.f32.xlu0 %v1419
    %v1421 = vpop.xlane.xlu0 %1420
    %v1422 = vsel %vm41, %v1416, 0.0
    %1423 = vadd.xlane.f32.xlu0 %v1422
    %v1424 = vpop.xlane.xlu0 %1423
    %v1425 = vsel %vm41, %v1417, 0.0
    %1426 = vadd.xlane.f32.xlu0 %v1425
    %v1427 = vpop.xlane.xlu0 %1426
    %v1428 = vsel %vm41, %v1418, 0.0
    %1429 = vadd.xlane.f32.xlu0 %v1428
    %v1430 = vpop.xlane.xlu0 %1429
    %v1431 = vmul.f32 %v1421, %v54
    %v1432 = vmul.f32 %v1424, %v54
    %v1433 = vmul.f32 %v1427, %v54
    %v1434 = vmul.f32 %v1430, %v54
    %v1435 = vadd.f32 %v1431, 1e-05
    %v1436 = vadd.f32 %v1432, 1e-05
    %v1437 = vadd.f32 %v1433, 1e-05
    %v1438 = vadd.f32 %v1434, 1e-05
    %v1439 = vrsqrt.pop %v1435
    %v1440 = vrsqrt.pop %v1436
    %v1441 = vrsqrt.pop %v1437
    %v1442 = vrsqrt.pop %v1438
    %v1443 = vmul.f32 %v1411, %v1439
    %v1444 = vmul.f32 %v1412, %v1440
    %v1445 = vmul.f32 %v1413, %v1441
    %v1446 = vmul.f32 %v1414, %v1442
    %v1447 = vlaneseq
    %v1448 = vshrl.u32 %v1447, 7
    %v1449 = vsub.s32 0, %v1448
    %v1450 = vrot.slane %v1393, %v1449
    %v1451 = vmul.f32 %v1443, %v1450
    %v1452 = vmul.f32 %v1444, %v1450
    %v1453 = vmul.f32 %v1445, %v1450
    %v1454 = vmul.f32 %v1446, %v1450
    %v1455 = vlaneseq
    %v1456 = vshrl.u32 %v1455, 7
    %v1457 = vsub.s32 0, %v1456
    %v1458 = vrot.slane %v1394, %v1457
    %v1459 = vadd.f32 %v1451, %v1458
    %v1460 = vadd.f32 %v1452, %v1458
    %v1461 = vadd.f32 %v1453, %v1458
    %v1462 = vadd.f32 %v1454, %v1458
    %v1463 = vpack.c.bf16 %v1460, %v1459
    %v1464 = vpack.c.bf16 %v1462, %v1461
    %v1465 = vld [vmem:[%s2 + $0x88] sm:$0xf]
    %v1466 = vld [vmem:[%s2 + $0x8c] sm:$0xf]
    %v1467 = vld [vmem:[%s2 + $0x90] sm:$0xf]
    %v1468 = vld [vmem:[%s2 + $0x94] sm:$0xf]
    %v1473 = vunpack.c.l.b16 %v1465
    %v1474 = vunpack.c.l.b16 %v1466
    %v1475 = vunpack.c.l.b16 %v1467
    %v1476 = vunpack.c.l.b16 %v1468
    %v1477 = vpack.c.b16 %v1474, %v1473
    %v1478 = vpack.c.b16 %v1476, %v1475
    %v1482 = vsel %vm41, %v1463, 0
    %v1485 = vsel %vm41, %v1464, 0
    %1487 = vmatprep.subr.bf16.mxu0 0
    %1488 = vmatpush1.bf16.msra.mxu0 0
    %1489 = vmatprep.subr.bf16.mxu0 0
    %1490 = vmatpush1.bf16.msra.mxu0 0
    %1491 = vmatprep.subr.bf16.mxu0 0
    %1492 = vmatpush1.bf16.msra.mxu0 0
    %1493 = vmatprep.subr.bf16.mxu0 0
    %1494 = vmatpush1.bf16.msra.mxu0 0
    %1495 = vmatprep.subr.bf16.mxu0 0
    %1496 = vmatpush1.bf16.msra.mxu0 0
    %1497 = vmatprep.subr.bf16.mxu0 0
    %1498 = vmatpush1.bf16.msra.mxu0 0
    %1499 = vmatprep.subr.bf16.mxu0 0
    %1500 = vmatpush1.bf16.msra.mxu0 %v1478
    %1501 = vmatprep.subr.bf16.mxu0 0
    %1502 = vmatpush1.bf16.msra.mxu0 %v1477
    %1503 = vmatprep.subr.bf16.mxu0 0
    %1504 = vmatpush2.bf16.msra.mxu0 0
    %1505 = vmatprep.subr.bf16.mxu0 0
    %1506 = vmatpush2.bf16.msra.mxu0 0
    %1507 = vmatprep.subr.bf16.mxu0 0
    %1508 = vmatpush2.bf16.msra.mxu0 0
    %1509 = vmatprep.subr.bf16.mxu0 0
    %1510 = vmatpush2.bf16.msra.mxu0 0
    %1511 = vmatprep.subr.bf16.mxu0 0
    %1512 = vmatpush2.bf16.msra.mxu0 0
    %1513 = vmatprep.subr.bf16.mxu0 0
    %1514 = vmatpush2.bf16.msra.mxu0 0
    %1515 = vmatprep.subr.bf16.mxu0 0
    %1516 = vmatpush2.bf16.msra.mxu0 0
    %1517 = vmatprep.subr.bf16.mxu0 0
    %1518 = vmatpush2.bf16.msra.mxu0 0
    %1519 = vmatprep.mubr.bf16.mxu0 0
    %1520 = vmatmul.mubr.bf16.gmra.mxu0 %v1482
    %v1521 = vpop.f32.mrf.mxu0
    %v1522 = vadd.f32 0.0, %v1521
    %v1523 = vpop.f32.mrf.mxu0
    %v1524 = vpop.f32.mrf.mxu0
    %v1525 = vadd.f32 0.0, %v1524
    %v1526 = vpop.f32.mrf.mxu0
    %1527 = vmatprep.mubr.bf16.mxu0 0
    %1528 = vmatmul.mubr.bf16.gmra.mxu0 %v1485
    %v1529 = vpop.f32.mrf.mxu0
    %v1530 = vadd.f32 0.0, %v1529
    %v1531 = vpop.f32.mrf.mxu0
    %v1532 = vpop.f32.mrf.mxu0
    %v1533 = vadd.f32 0.0, %v1532
    %v1534 = vpop.f32.mrf.mxu0
    %1535 = vdwg.mxu0
    %v1536 = vld [vmem:[%s2 + $0x98] sm:$0xf]
    %v1537 = vld [vmem:[%s2 + $0x9c] sm:$0xf]
    %v1538 = vld [vmem:[%s2 + $0xa0] sm:$0xf]
    %v1539 = vld [vmem:[%s2 + $0xa4] sm:$0xf]
    %v1544 = vunpack.c.l.b16 %v1536
    %v1545 = vunpack.c.l.b16 %v1537
    %v1546 = vunpack.c.l.b16 %v1538
    %v1547 = vunpack.c.l.b16 %v1539
    %v1548 = vpack.c.b16 %v1545, %v1544
    %v1549 = vpack.c.b16 %v1547, %v1546
    %1552 = vmatprep.subr.bf16.mxu0 0
    %1553 = vmatpush1.bf16.msra.mxu0 0
    %1554 = vmatprep.subr.bf16.mxu0 0
    %1555 = vmatpush1.bf16.msra.mxu0 0
    %1556 = vmatprep.subr.bf16.mxu0 0
    %1557 = vmatpush1.bf16.msra.mxu0 0
    %1558 = vmatprep.subr.bf16.mxu0 0
    %1559 = vmatpush1.bf16.msra.mxu0 0
    %1560 = vmatprep.subr.bf16.mxu0 0
    %1561 = vmatpush1.bf16.msra.mxu0 0
    %1562 = vmatprep.subr.bf16.mxu0 0
    %1563 = vmatpush1.bf16.msra.mxu0 0
    %1564 = vmatprep.subr.bf16.mxu0 0
    %1565 = vmatpush1.bf16.msra.mxu0 %v1549
    %1566 = vmatprep.subr.bf16.mxu0 0
    %1567 = vmatpush1.bf16.msra.mxu0 %v1548
    %1568 = vmatprep.subr.bf16.mxu0 0
    %1569 = vmatpush2.bf16.msra.mxu0 0
    %1570 = vmatprep.subr.bf16.mxu0 0
    %1571 = vmatpush2.bf16.msra.mxu0 0
    %1572 = vmatprep.subr.bf16.mxu0 0
    %1573 = vmatpush2.bf16.msra.mxu0 0
    %1574 = vmatprep.subr.bf16.mxu0 0
    %1575 = vmatpush2.bf16.msra.mxu0 0
    %1576 = vmatprep.subr.bf16.mxu0 0
    %1577 = vmatpush2.bf16.msra.mxu0 0
    %1578 = vmatprep.subr.bf16.mxu0 0
    %1579 = vmatpush2.bf16.msra.mxu0 0
    %1580 = vmatprep.subr.bf16.mxu0 0
    %1581 = vmatpush2.bf16.msra.mxu0 0
    %1582 = vmatprep.subr.bf16.mxu0 0
    %1583 = vmatpush2.bf16.msra.mxu0 0
    %1584 = vmatprep.mubr.bf16.mxu0 0
    %1585 = vmatmul.mubr.bf16.gmra.mxu0 %v1482
    %v1586 = vpop.f32.mrf.mxu0
    %v1587 = vadd.f32 0.0, %v1586
    %v1588 = vpop.f32.mrf.mxu0
    %v1589 = vpop.f32.mrf.mxu0
    %v1590 = vadd.f32 0.0, %v1589
    %v1591 = vpop.f32.mrf.mxu0
    %1592 = vmatprep.mubr.bf16.mxu0 0
    %1593 = vmatmul.mubr.bf16.gmra.mxu0 %v1485
    %v1594 = vpop.f32.mrf.mxu0
    %v1595 = vadd.f32 0.0, %v1594
    %v1596 = vpop.f32.mrf.mxu0
    %v1597 = vpop.f32.mrf.mxu0
    %v1598 = vadd.f32 0.0, %v1597
    %v1599 = vpop.f32.mrf.mxu0
    %1600 = vdwg.mxu0
    %v1601 = vld [vmem:[%s2 + $0xa8] sm:$0xf]
    %v1602 = vld [vmem:[%s2 + $0xac] sm:$0xf]
    %v1603 = vld [vmem:[%s2 + $0xb0] sm:$0xf]
    %v1604 = vld [vmem:[%s2 + $0xb4] sm:$0xf]
    %v1609 = vunpack.c.l.b16 %v1601
    %v1610 = vunpack.c.l.b16 %v1602
    %v1611 = vunpack.c.l.b16 %v1603
    %v1612 = vunpack.c.l.b16 %v1604
    %v1613 = vpack.c.b16 %v1610, %v1609
    %v1614 = vpack.c.b16 %v1612, %v1611
    %1617 = vmatprep.subr.bf16.mxu0 0
    %1618 = vmatpush1.bf16.msra.mxu0 0
    %1619 = vmatprep.subr.bf16.mxu0 0
    %1620 = vmatpush1.bf16.msra.mxu0 0
    %1621 = vmatprep.subr.bf16.mxu0 0
    %1622 = vmatpush1.bf16.msra.mxu0 0
    %1623 = vmatprep.subr.bf16.mxu0 0
    %1624 = vmatpush1.bf16.msra.mxu0 0
    %1625 = vmatprep.subr.bf16.mxu0 0
    %1626 = vmatpush1.bf16.msra.mxu0 0
    %1627 = vmatprep.subr.bf16.mxu0 0
    %1628 = vmatpush1.bf16.msra.mxu0 0
    %1629 = vmatprep.subr.bf16.mxu0 0
    %1630 = vmatpush1.bf16.msra.mxu0 %v1614
    %1631 = vmatprep.subr.bf16.mxu0 0
    %1632 = vmatpush1.bf16.msra.mxu0 %v1613
    %1633 = vmatprep.subr.bf16.mxu0 0
    %1634 = vmatpush2.bf16.msra.mxu0 0
    %1635 = vmatprep.subr.bf16.mxu0 0
    %1636 = vmatpush2.bf16.msra.mxu0 0
    %1637 = vmatprep.subr.bf16.mxu0 0
    %1638 = vmatpush2.bf16.msra.mxu0 0
    %1639 = vmatprep.subr.bf16.mxu0 0
    %1640 = vmatpush2.bf16.msra.mxu0 0
    %1641 = vmatprep.subr.bf16.mxu0 0
    %1642 = vmatpush2.bf16.msra.mxu0 0
    %1643 = vmatprep.subr.bf16.mxu0 0
    %1644 = vmatpush2.bf16.msra.mxu0 0
    %1645 = vmatprep.subr.bf16.mxu0 0
    %1646 = vmatpush2.bf16.msra.mxu0 0
    %1647 = vmatprep.subr.bf16.mxu0 0
    %1648 = vmatpush2.bf16.msra.mxu0 0
    %1649 = vmatprep.mubr.bf16.mxu0 0
    %1650 = vmatmul.mubr.bf16.gmra.mxu0 %v1482
    %v1651 = vpop.f32.mrf.mxu0
    %v1652 = vadd.f32 0.0, %v1651
    %v1653 = vpop.f32.mrf.mxu0
    %v1654 = vpop.f32.mrf.mxu0
    %v1655 = vadd.f32 0.0, %v1654
    %v1656 = vpop.f32.mrf.mxu0
    %1657 = vmatprep.mubr.bf16.mxu0 0
    %1658 = vmatmul.mubr.bf16.gmra.mxu0 %v1485
    %v1659 = vpop.f32.mrf.mxu0
    %v1660 = vadd.f32 0.0, %v1659
    %v1661 = vpop.f32.mrf.mxu0
    %v1662 = vpop.f32.mrf.mxu0
    %v1663 = vadd.f32 0.0, %v1662
    %v1664 = vpop.f32.mrf.mxu0
    %1665 = vdwg.mxu0
    %v1666 = vpack.c.bf16 %v1525, %v1522
    %v1667 = vpack.c.bf16 %v1533, %v1530
    %v1668 = vpack.c.bf16 %v1590, %v1587
    %v1669 = vpack.c.bf16 %v1598, %v1595
    %v1670 = vpack.c.bf16 %v1655, %v1652
    %v1671 = vpack.c.bf16 %v1663, %v1660
    %vm1672 = vcmask 64512
    %v1674 = vsel %vm1672, %v1666, 0
    %v1677 = vsel %vm1672, %v1668, 0
    %1679 = vmatprep.subr.bf16.mxu0 0
    %1680 = vmatpush1.bf16.xpose.msra.mxu0 0
    %1681 = vmatprep.subr.bf16.mxu0 0
    %1682 = vmatpush1.bf16.xpose.msra.mxu0 0
    %1683 = vmatprep.subr.bf16.mxu0 0
    %1684 = vmatpush1.bf16.xpose.msra.mxu0 0
    %1685 = vmatprep.subr.bf16.mxu0 0
    %1686 = vmatpush1.bf16.xpose.msra.mxu0 0
    %1687 = vmatprep.subr.bf16.mxu0 0
    %1688 = vmatpush1.bf16.xpose.msra.mxu0 0
    %1689 = vmatprep.subr.bf16.mxu0 0
    %1690 = vmatpush1.bf16.xpose.msra.mxu0 0
    %1691 = vmatprep.subr.bf16.mxu0 0
    %1692 = vmatpush1.bf16.xpose.msra.mxu0 0
    %1693 = vmatprep.subr.bf16.mxu0 0
    %1694 = vmatpush1.bf16.xpose.msra.mxu0 %v1677
    %1695 = vmatprep.subr.bf16.mxu0 0
    %1696 = vmatpush2.bf16.xpose.msra.mxu0 0
    %1697 = vmatprep.subr.bf16.mxu0 0
    %1698 = vmatpush2.bf16.xpose.msra.mxu0 0
    %1699 = vmatprep.subr.bf16.mxu0 0
    %1700 = vmatpush2.bf16.xpose.msra.mxu0 0
    %1701 = vmatprep.subr.bf16.mxu0 0
    %1702 = vmatpush2.bf16.xpose.msra.mxu0 0
    %1703 = vmatprep.subr.bf16.mxu0 0
    %1704 = vmatpush2.bf16.xpose.msra.mxu0 0
    %1705 = vmatprep.subr.bf16.mxu0 0
    %1706 = vmatpush2.bf16.xpose.msra.mxu0 0
    %1707 = vmatprep.subr.bf16.mxu0 0
    %1708 = vmatpush2.bf16.xpose.msra.mxu0 0
    %1709 = vmatprep.subr.bf16.mxu0 0
    %1710 = vmatpush2.bf16.xpose.msra.mxu0 0
    %1711 = vmatprep.mubr.bf16.mxu0 0
    %1712 = vmatmul.mubr.bf16.gmra.mxu0 %v1674
    %v1713 = vpop.f32.mrf.mxu0
    %v1714 = vadd.f32 0.0, %v1713
    %v1715 = vpop.f32.mrf.mxu0
    %v1716 = vpop.f32.mrf.mxu0
    %v1717 = vadd.f32 0.0, %v1716
    %v1718 = vpop.f32.mrf.mxu0
    %1719 = vdwg.mxu0
    %v1721 = vsel %vm1672, %v1667, 0
    %v1724 = vsel %vm1672, %v1669, 0
    %1726 = vmatprep.subr.bf16.mxu0 0
    %1727 = vmatpush1.bf16.xpose.msra.mxu0 0
    %1728 = vmatprep.subr.bf16.mxu0 0
    %1729 = vmatpush1.bf16.xpose.msra.mxu0 0
    %1730 = vmatprep.subr.bf16.mxu0 0
    %1731 = vmatpush1.bf16.xpose.msra.mxu0 0
    %1732 = vmatprep.subr.bf16.mxu0 0
    %1733 = vmatpush1.bf16.xpose.msra.mxu0 0
    %1734 = vmatprep.subr.bf16.mxu0 0
    %1735 = vmatpush1.bf16.xpose.msra.mxu0 0
    %1736 = vmatprep.subr.bf16.mxu0 0
    %1737 = vmatpush1.bf16.xpose.msra.mxu0 0
    %1738 = vmatprep.subr.bf16.mxu0 0
    %1739 = vmatpush1.bf16.xpose.msra.mxu0 0
    %1740 = vmatprep.subr.bf16.mxu0 0
    %1741 = vmatpush1.bf16.xpose.msra.mxu0 %v1724
    %1742 = vmatprep.subr.bf16.mxu0 0
    %1743 = vmatpush2.bf16.xpose.msra.mxu0 0
    %1744 = vmatprep.subr.bf16.mxu0 0
    %1745 = vmatpush2.bf16.xpose.msra.mxu0 0
    %1746 = vmatprep.subr.bf16.mxu0 0
    %1747 = vmatpush2.bf16.xpose.msra.mxu0 0
    %1748 = vmatprep.subr.bf16.mxu0 0
    %1749 = vmatpush2.bf16.xpose.msra.mxu0 0
    %1750 = vmatprep.subr.bf16.mxu0 0
    %1751 = vmatpush2.bf16.xpose.msra.mxu0 0
    %1752 = vmatprep.subr.bf16.mxu0 0
    %1753 = vmatpush2.bf16.xpose.msra.mxu0 0
    %1754 = vmatprep.subr.bf16.mxu0 0
    %1755 = vmatpush2.bf16.xpose.msra.mxu0 0
    %1756 = vmatprep.subr.bf16.mxu0 0
    %1757 = vmatpush2.bf16.xpose.msra.mxu0 0
    %1758 = vmatprep.mubr.bf16.mxu0 0
    %1759 = vmatmul.mubr.bf16.gmra.mxu0 %v1721
    %v1760 = vpop.f32.mrf.mxu0
    %v1761 = vadd.f32 0.0, %v1760
    %v1762 = vpop.f32.mrf.mxu0
    %v1763 = vpop.f32.mrf.mxu0
    %v1764 = vadd.f32 0.0, %v1763
    %v1765 = vpop.f32.mrf.mxu0
    %1766 = vdwg.mxu0
    %v1767 = vmul.f32 %v1714, 0.35355338
    %v1768 = vmul.f32 %v1717, 0.35355338
    %v1769 = vmul.f32 %v1761, 0.35355338
    %v1770 = vmul.f32 %v1764, 0.35355338
    %v1771 = vsel %vm701, %v1767, -inf
    %1772 = vmax.xlane.f32.xlu0 %v1771
    %v1773 = vpop.xlane.xlu0 %1772
    %v1774 = vsel %vm701, %v1768, -inf
    %1775 = vmax.xlane.f32.xlu0 %v1774
    %v1776 = vpop.xlane.xlu0 %1775
    %v1777 = vsel %vm701, %v1769, -inf
    %1778 = vmax.xlane.f32.xlu0 %v1777
    %v1779 = vpop.xlane.xlu0 %1778
    %v1780 = vsel %vm701, %v1770, -inf
    %1781 = vmax.xlane.f32.xlu0 %v1780
    %v1782 = vpop.xlane.xlu0 %1781
    %v1783 = vsub.f32 %v1767, %v1773
    %v1784 = vsub.f32 %v1768, %v1776
    %v1785 = vsub.f32 %v1769, %v1779
    %v1786 = vsub.f32 %v1770, %v1782
    %v1787 = vmul.f32 %v1783, 1.442695
    %v1788 = vpow.pop %v1787
    %v1789 = vmul.f32 %v1784, 1.442695
    %v1790 = vpow.pop %v1789
    %v1791 = vmul.f32 %v1785, 1.442695
    %v1792 = vpow.pop %v1791
    %v1793 = vmul.f32 %v1786, 1.442695
    %v1794 = vpow.pop %v1793
    %v1795 = vsel %vm701, %v1788, 0.0
    %1796 = vadd.xlane.f32.xlu0 %v1795
    %v1797 = vpop.xlane.xlu0 %1796
    %v1798 = vsel %vm701, %v1790, 0.0
    %1799 = vadd.xlane.f32.xlu0 %v1798
    %v1800 = vpop.xlane.xlu0 %1799
    %v1801 = vsel %vm701, %v1792, 0.0
    %1802 = vadd.xlane.f32.xlu0 %v1801
    %v1803 = vpop.xlane.xlu0 %1802
    %v1804 = vsel %vm701, %v1794, 0.0
    %1805 = vadd.xlane.f32.xlu0 %v1804
    %v1806 = vpop.xlane.xlu0 %1805
    %v1807 = vrcp.pop %v1797
    %v1808 = vrcp.pop %v1800
    %v1809 = vrcp.pop %v1803
    %v1810 = vrcp.pop %v1806
    %v1811 = vmul.f32 %v1788, %v1807
    %v1812 = vmul.f32 %v1790, %v1808
    %v1813 = vmul.f32 %v1792, %v1809
    %v1814 = vmul.f32 %v1794, %v1810
    %v1815 = vpack.c.bf16 %v1812, %v1811
    %v1816 = vpack.c.bf16 %v1814, %v1813
    %v1818 = vsel %vm701, %v1815, 0
    %1820 = vmatprep.subr.bf16.mxu0 0
    %1821 = vmatpush1.bf16.msra.mxu0 0
    %1822 = vmatprep.subr.bf16.mxu0 0
    %1823 = vmatpush1.bf16.msra.mxu0 0
    %1824 = vmatprep.subr.bf16.mxu0 0
    %1825 = vmatpush1.bf16.msra.mxu0 0
    %1826 = vmatprep.subr.bf16.mxu0 0
    %1827 = vmatpush1.bf16.msra.mxu0 0
    %1828 = vmatprep.subr.bf16.mxu0 0
    %1829 = vmatpush1.bf16.msra.mxu0 0
    %1830 = vmatprep.subr.bf16.mxu0 0
    %1831 = vmatpush1.bf16.msra.mxu0 0
    %1832 = vmatprep.subr.bf16.mxu0 0
    %1833 = vmatpush1.bf16.msra.mxu0 0
    %1834 = vmatprep.subr.bf16.mxu0 0
    %1835 = vmatpush1.bf16.msra.mxu0 %v1670
    %1836 = vmatprep.subr.bf16.mxu0 0
    %1837 = vmatpush2.bf16.msra.mxu0 0
    %1838 = vmatprep.subr.bf16.mxu0 0
    %1839 = vmatpush2.bf16.msra.mxu0 0
    %1840 = vmatprep.subr.bf16.mxu0 0
    %1841 = vmatpush2.bf16.msra.mxu0 0
    %1842 = vmatprep.subr.bf16.mxu0 0
    %1843 = vmatpush2.bf16.msra.mxu0 0
    %1844 = vmatprep.subr.bf16.mxu0 0
    %1845 = vmatpush2.bf16.msra.mxu0 0
    %1846 = vmatprep.subr.bf16.mxu0 0
    %1847 = vmatpush2.bf16.msra.mxu0 0
    %1848 = vmatprep.subr.bf16.mxu0 0
    %1849 = vmatpush2.bf16.msra.mxu0 0
    %1850 = vmatprep.subr.bf16.mxu0 0
    %1851 = vmatpush2.bf16.msra.mxu0 0
    %1852 = vmatprep.mubr.bf16.mxu0 0
    %1853 = vmatmul.mubr.bf16.gmra.mxu0 %v1818
    %v1854 = vpop.f32.mrf.mxu0
    %v1855 = vadd.f32 0.0, %v1854
    %v1856 = vpop.f32.mrf.mxu0
    %v1857 = vpop.f32.mrf.mxu0
    %v1858 = vadd.f32 0.0, %v1857
    %v1859 = vpop.f32.mrf.mxu0
    %1860 = vdwg.mxu0
    %v1862 = vsel %vm701, %v1816, 0
    %1864 = vmatprep.subr.bf16.mxu0 0
    %1865 = vmatpush1.bf16.msra.mxu0 0
    %1866 = vmatprep.subr.bf16.mxu0 0
    %1867 = vmatpush1.bf16.msra.mxu0 0
    %1868 = vmatprep.subr.bf16.mxu0 0
    %1869 = vmatpush1.bf16.msra.mxu0 0
    %1870 = vmatprep.subr.bf16.mxu0 0
    %1871 = vmatpush1.bf16.msra.mxu0 0
    %1872 = vmatprep.subr.bf16.mxu0 0
    %1873 = vmatpush1.bf16.msra.mxu0 0
    %1874 = vmatprep.subr.bf16.mxu0 0
    %1875 = vmatpush1.bf16.msra.mxu0 0
    %1876 = vmatprep.subr.bf16.mxu0 0
    %1877 = vmatpush1.bf16.msra.mxu0 0
    %1878 = vmatprep.subr.bf16.mxu0 0
    %1879 = vmatpush1.bf16.msra.mxu0 %v1671
    %1880 = vmatprep.subr.bf16.mxu0 0
    %1881 = vmatpush2.bf16.msra.mxu0 0
    %1882 = vmatprep.subr.bf16.mxu0 0
    %1883 = vmatpush2.bf16.msra.mxu0 0
    %1884 = vmatprep.subr.bf16.mxu0 0
    %1885 = vmatpush2.bf16.msra.mxu0 0
    %1886 = vmatprep.subr.bf16.mxu0 0
    %1887 = vmatpush2.bf16.msra.mxu0 0
    %1888 = vmatprep.subr.bf16.mxu0 0
    %1889 = vmatpush2.bf16.msra.mxu0 0
    %1890 = vmatprep.subr.bf16.mxu0 0
    %1891 = vmatpush2.bf16.msra.mxu0 0
    %1892 = vmatprep.subr.bf16.mxu0 0
    %1893 = vmatpush2.bf16.msra.mxu0 0
    %1894 = vmatprep.subr.bf16.mxu0 0
    %1895 = vmatpush2.bf16.msra.mxu0 0
    %1896 = vmatprep.mubr.bf16.mxu0 0
    %1897 = vmatmul.mubr.bf16.gmra.mxu0 %v1862
    %v1898 = vpop.f32.mrf.mxu0
    %v1899 = vadd.f32 0.0, %v1898
    %v1900 = vpop.f32.mrf.mxu0
    %v1901 = vpop.f32.mrf.mxu0
    %v1902 = vadd.f32 0.0, %v1901
    %v1903 = vpop.f32.mrf.mxu0
    %1904 = vdwg.mxu0
    %1906 = vrot.lane.b32.xlu0 %v1666, 120
    %v1907 = vpop.permute.xlu0 %1906
    %1909 = vrot.lane.b32.xlu0 %v1668, 120
    %v1910 = vpop.permute.xlu0 %1909
    %v1912 = vsel %vm1672, %v1907, 0
    %v1915 = vsel %vm1672, %v1910, 0
    %1917 = vmatprep.subr.bf16.mxu0 0
    %1918 = vmatpush1.bf16.xpose.msra.mxu0 0
    %1919 = vmatprep.subr.bf16.mxu0 0
    %1920 = vmatpush1.bf16.xpose.msra.mxu0 0
    %1921 = vmatprep.subr.bf16.mxu0 0
    %1922 = vmatpush1.bf16.xpose.msra.mxu0 0
    %1923 = vmatprep.subr.bf16.mxu0 0
    %1924 = vmatpush1.bf16.xpose.msra.mxu0 0
    %1925 = vmatprep.subr.bf16.mxu0 0
    %1926 = vmatpush1.bf16.xpose.msra.mxu0 0
    %1927 = vmatprep.subr.bf16.mxu0 0
    %1928 = vmatpush1.bf16.xpose.msra.mxu0 0
    %1929 = vmatprep.subr.bf16.mxu0 0
    %1930 = vmatpush1.bf16.xpose.msra.mxu0 0
    %1931 = vmatprep.subr.bf16.mxu0 0
    %1932 = vmatpush1.bf16.xpose.msra.mxu0 %v1915
    %1933 = vmatprep.subr.bf16.mxu0 0
    %1934 = vmatpush2.bf16.xpose.msra.mxu0 0
    %1935 = vmatprep.subr.bf16.mxu0 0
    %1936 = vmatpush2.bf16.xpose.msra.mxu0 0
    %1937 = vmatprep.subr.bf16.mxu0 0
    %1938 = vmatpush2.bf16.xpose.msra.mxu0 0
    %1939 = vmatprep.subr.bf16.mxu0 0
    %1940 = vmatpush2.bf16.xpose.msra.mxu0 0
    %1941 = vmatprep.subr.bf16.mxu0 0
    %1942 = vmatpush2.bf16.xpose.msra.mxu0 0
    %1943 = vmatprep.subr.bf16.mxu0 0
    %1944 = vmatpush2.bf16.xpose.msra.mxu0 0
    %1945 = vmatprep.subr.bf16.mxu0 0
    %1946 = vmatpush2.bf16.xpose.msra.mxu0 0
    %1947 = vmatprep.subr.bf16.mxu0 0
    %1948 = vmatpush2.bf16.xpose.msra.mxu0 0
    %1949 = vmatprep.mubr.bf16.mxu0 0
    %1950 = vmatmul.mubr.bf16.gmra.mxu0 %v1912
    %v1951 = vpop.f32.mrf.mxu0
    %v1952 = vadd.f32 0.0, %v1951
    %v1953 = vpop.f32.mrf.mxu0
    %v1954 = vpop.f32.mrf.mxu0
    %v1955 = vadd.f32 0.0, %v1954
    %v1956 = vpop.f32.mrf.mxu0
    %1957 = vdwg.mxu0
    %1959 = vrot.lane.b32.xlu0 %v1667, 120
    %v1960 = vpop.permute.xlu0 %1959
    %1962 = vrot.lane.b32.xlu0 %v1669, 120
    %v1963 = vpop.permute.xlu0 %1962
    %v1965 = vsel %vm1672, %v1960, 0
    %v1968 = vsel %vm1672, %v1963, 0
    %1970 = vmatprep.subr.bf16.mxu0 0
    %1971 = vmatpush1.bf16.xpose.msra.mxu0 0
    %1972 = vmatprep.subr.bf16.mxu0 0
    %1973 = vmatpush1.bf16.xpose.msra.mxu0 0
    %1974 = vmatprep.subr.bf16.mxu0 0
    %1975 = vmatpush1.bf16.xpose.msra.mxu0 0
    %1976 = vmatprep.subr.bf16.mxu0 0
    %1977 = vmatpush1.bf16.xpose.msra.mxu0 0
    %1978 = vmatprep.subr.bf16.mxu0 0
    %1979 = vmatpush1.bf16.xpose.msra.mxu0 0
    %1980 = vmatprep.subr.bf16.mxu0 0
    %1981 = vmatpush1.bf16.xpose.msra.mxu0 0
    %1982 = vmatprep.subr.bf16.mxu0 0
    %1983 = vmatpush1.bf16.xpose.msra.mxu0 0
    %1984 = vmatprep.subr.bf16.mxu0 0
    %1985 = vmatpush1.bf16.xpose.msra.mxu0 %v1968
    %1986 = vmatprep.subr.bf16.mxu0 0
    %1987 = vmatpush2.bf16.xpose.msra.mxu0 0
    %1988 = vmatprep.subr.bf16.mxu0 0
    %1989 = vmatpush2.bf16.xpose.msra.mxu0 0
    %1990 = vmatprep.subr.bf16.mxu0 0
    %1991 = vmatpush2.bf16.xpose.msra.mxu0 0
    %1992 = vmatprep.subr.bf16.mxu0 0
    %1993 = vmatpush2.bf16.xpose.msra.mxu0 0
    %1994 = vmatprep.subr.bf16.mxu0 0
    %1995 = vmatpush2.bf16.xpose.msra.mxu0 0
    %1996 = vmatprep.subr.bf16.mxu0 0
    %1997 = vmatpush2.bf16.xpose.msra.mxu0 0
    %1998 = vmatprep.subr.bf16.mxu0 0
    %1999 = vmatpush2.bf16.xpose.msra.mxu0 0
    %2000 = vmatprep.subr.bf16.mxu0 0
    %2001 = vmatpush2.bf16.xpose.msra.mxu0 0
    %2002 = vmatprep.mubr.bf16.mxu0 0
    %2003 = vmatmul.mubr.bf16.gmra.mxu0 %v1965
    %v2004 = vpop.f32.mrf.mxu0
    %v2005 = vadd.f32 0.0, %v2004
    %v2006 = vpop.f32.mrf.mxu0
    %v2007 = vpop.f32.mrf.mxu0
    %v2008 = vadd.f32 0.0, %v2007
    %v2009 = vpop.f32.mrf.mxu0
    %2010 = vdwg.mxu0
    %v2011 = vmul.f32 %v1952, 0.35355338
    %v2012 = vmul.f32 %v1955, 0.35355338
    %v2013 = vmul.f32 %v2005, 0.35355338
    %v2014 = vmul.f32 %v2008, 0.35355338
    %v2015 = vsel %vm701, %v2011, -inf
    %2016 = vmax.xlane.f32.xlu0 %v2015
    %v2017 = vpop.xlane.xlu0 %2016
    %v2018 = vsel %vm701, %v2012, -inf
    %2019 = vmax.xlane.f32.xlu0 %v2018
    %v2020 = vpop.xlane.xlu0 %2019
    %v2021 = vsel %vm701, %v2013, -inf
    %2022 = vmax.xlane.f32.xlu0 %v2021
    %v2023 = vpop.xlane.xlu0 %2022
    %v2024 = vsel %vm701, %v2014, -inf
    %2025 = vmax.xlane.f32.xlu0 %v2024
    %v2026 = vpop.xlane.xlu0 %2025
    %v2027 = vsub.f32 %v2011, %v2017
    %v2028 = vsub.f32 %v2012, %v2020
    %v2029 = vsub.f32 %v2013, %v2023
    %v2030 = vsub.f32 %v2014, %v2026
    %v2031 = vmul.f32 %v2027, 1.442695
    %v2032 = vpow.pop %v2031
    %v2033 = vmul.f32 %v2028, 1.442695
    %v2034 = vpow.pop %v2033
    %v2035 = vmul.f32 %v2029, 1.442695
    %v2036 = vpow.pop %v2035
    %v2037 = vmul.f32 %v2030, 1.442695
    %v2038 = vpow.pop %v2037
    %v2039 = vsel %vm701, %v2032, 0.0
    %2040 = vadd.xlane.f32.xlu0 %v2039
    %v2041 = vpop.xlane.xlu0 %2040
    %v2042 = vsel %vm701, %v2034, 0.0
    %2043 = vadd.xlane.f32.xlu0 %v2042
    %v2044 = vpop.xlane.xlu0 %2043
    %v2045 = vsel %vm701, %v2036, 0.0
    %2046 = vadd.xlane.f32.xlu0 %v2045
    %v2047 = vpop.xlane.xlu0 %2046
    %v2048 = vsel %vm701, %v2038, 0.0
    %2049 = vadd.xlane.f32.xlu0 %v2048
    %v2050 = vpop.xlane.xlu0 %2049
    %v2051 = vrcp.pop %v2041
    %v2052 = vrcp.pop %v2044
    %v2053 = vrcp.pop %v2047
    %v2054 = vrcp.pop %v2050
    %v2055 = vmul.f32 %v2032, %v2051
    %v2056 = vmul.f32 %v2034, %v2052
    %v2057 = vmul.f32 %v2036, %v2053
    %v2058 = vmul.f32 %v2038, %v2054
    %v2059 = vpack.c.bf16 %v2056, %v2055
    %v2060 = vpack.c.bf16 %v2058, %v2057
    %2062 = vrot.lane.b32.xlu0 %v1670, 120
    %v2063 = vpop.permute.xlu0 %2062
    %v2066 = vsel %vm701, %v2059, 0
    %2068 = vmatprep.subr.bf16.mxu0 0
    %2069 = vmatpush1.bf16.msra.mxu0 0
    %2070 = vmatprep.subr.bf16.mxu0 0
    %2071 = vmatpush1.bf16.msra.mxu0 0
    %2072 = vmatprep.subr.bf16.mxu0 0
    %2073 = vmatpush1.bf16.msra.mxu0 0
    %2074 = vmatprep.subr.bf16.mxu0 0
    %2075 = vmatpush1.bf16.msra.mxu0 0
    %2076 = vmatprep.subr.bf16.mxu0 0
    %2077 = vmatpush1.bf16.msra.mxu0 0
    %2078 = vmatprep.subr.bf16.mxu0 0
    %2079 = vmatpush1.bf16.msra.mxu0 0
    %2080 = vmatprep.subr.bf16.mxu0 0
    %2081 = vmatpush1.bf16.msra.mxu0 0
    %2082 = vmatprep.subr.bf16.mxu0 0
    %2083 = vmatpush1.bf16.msra.mxu0 %v2063
    %2084 = vmatprep.subr.bf16.mxu0 0
    %2085 = vmatpush2.bf16.msra.mxu0 0
    %2086 = vmatprep.subr.bf16.mxu0 0
    %2087 = vmatpush2.bf16.msra.mxu0 0
    %2088 = vmatprep.subr.bf16.mxu0 0
    %2089 = vmatpush2.bf16.msra.mxu0 0
    %2090 = vmatprep.subr.bf16.mxu0 0
    %2091 = vmatpush2.bf16.msra.mxu0 0
    %2092 = vmatprep.subr.bf16.mxu0 0
    %2093 = vmatpush2.bf16.msra.mxu0 0
    %2094 = vmatprep.subr.bf16.mxu0 0
    %2095 = vmatpush2.bf16.msra.mxu0 0
    %2096 = vmatprep.subr.bf16.mxu0 0
    %2097 = vmatpush2.bf16.msra.mxu0 0
    %2098 = vmatprep.subr.bf16.mxu0 0
    %2099 = vmatpush2.bf16.msra.mxu0 0
    %2100 = vmatprep.mubr.bf16.mxu0 0
    %2101 = vmatmul.mubr.bf16.gmra.mxu0 %v2066
    %v2102 = vpop.f32.mrf.mxu0
    %v2103 = vadd.f32 0.0, %v2102
    %v2104 = vpop.f32.mrf.mxu0
    %v2105 = vpop.f32.mrf.mxu0
    %v2106 = vadd.f32 0.0, %v2105
    %v2107 = vpop.f32.mrf.mxu0
    %2108 = vdwg.mxu0
    %2110 = vrot.lane.b32.xlu0 %v1671, 120
    %v2111 = vpop.permute.xlu0 %2110
    %v2114 = vsel %vm701, %v2060, 0
    %2116 = vmatprep.subr.bf16.mxu0 0
    %2117 = vmatpush1.bf16.msra.mxu0 0
    %2118 = vmatprep.subr.bf16.mxu0 0
    %2119 = vmatpush1.bf16.msra.mxu0 0
    %2120 = vmatprep.subr.bf16.mxu0 0
    %2121 = vmatpush1.bf16.msra.mxu0 0
    %2122 = vmatprep.subr.bf16.mxu0 0
    %2123 = vmatpush1.bf16.msra.mxu0 0
    %2124 = vmatprep.subr.bf16.mxu0 0
    %2125 = vmatpush1.bf16.msra.mxu0 0
    %2126 = vmatprep.subr.bf16.mxu0 0
    %2127 = vmatpush1.bf16.msra.mxu0 0
    %2128 = vmatprep.subr.bf16.mxu0 0
    %2129 = vmatpush1.bf16.msra.mxu0 0
    %2130 = vmatprep.subr.bf16.mxu0 0
    %2131 = vmatpush1.bf16.msra.mxu0 %v2111
    %2132 = vmatprep.subr.bf16.mxu0 0
    %2133 = vmatpush2.bf16.msra.mxu0 0
    %2134 = vmatprep.subr.bf16.mxu0 0
    %2135 = vmatpush2.bf16.msra.mxu0 0
    %2136 = vmatprep.subr.bf16.mxu0 0
    %2137 = vmatpush2.bf16.msra.mxu0 0
    %2138 = vmatprep.subr.bf16.mxu0 0
    %2139 = vmatpush2.bf16.msra.mxu0 0
    %2140 = vmatprep.subr.bf16.mxu0 0
    %2141 = vmatpush2.bf16.msra.mxu0 0
    %2142 = vmatprep.subr.bf16.mxu0 0
    %2143 = vmatpush2.bf16.msra.mxu0 0
    %2144 = vmatprep.subr.bf16.mxu0 0
    %2145 = vmatpush2.bf16.msra.mxu0 0
    %2146 = vmatprep.subr.bf16.mxu0 0
    %2147 = vmatpush2.bf16.msra.mxu0 0
    %2148 = vmatprep.mubr.bf16.mxu0 0
    %2149 = vmatmul.mubr.bf16.gmra.mxu0 %v2114
    %v2150 = vpop.f32.mrf.mxu0
    %v2151 = vadd.f32 0.0, %v2150
    %v2152 = vpop.f32.mrf.mxu0
    %v2153 = vpop.f32.mrf.mxu0
    %v2154 = vadd.f32 0.0, %v2153
    %v2155 = vpop.f32.mrf.mxu0
    %2156 = vdwg.mxu0
    %2157 = vrot.lane.b32.xlu0 %v1666, 112
    %v2158 = vpop.permute.xlu0 %2157
    %2159 = vrot.lane.b32.xlu0 %v1668, 112
    %v2160 = vpop.permute.xlu0 %2159
    %v2162 = vsel %vm1672, %v2158, 0
    %v2165 = vsel %vm1672, %v2160, 0
    %2167 = vmatprep.subr.bf16.mxu0 0
    %2168 = vmatpush1.bf16.xpose.msra.mxu0 0
    %2169 = vmatprep.subr.bf16.mxu0 0
    %2170 = vmatpush1.bf16.xpose.msra.mxu0 0
    %2171 = vmatprep.subr.bf16.mxu0 0
    %2172 = vmatpush1.bf16.xpose.msra.mxu0 0
    %2173 = vmatprep.subr.bf16.mxu0 0
    %2174 = vmatpush1.bf16.xpose.msra.mxu0 0
    %2175 = vmatprep.subr.bf16.mxu0 0
    %2176 = vmatpush1.bf16.xpose.msra.mxu0 0
    %2177 = vmatprep.subr.bf16.mxu0 0
    %2178 = vmatpush1.bf16.xpose.msra.mxu0 0
    %2179 = vmatprep.subr.bf16.mxu0 0
    %2180 = vmatpush1.bf16.xpose.msra.mxu0 0
    %2181 = vmatprep.subr.bf16.mxu0 0
    %2182 = vmatpush1.bf16.xpose.msra.mxu0 %v2165
    %2183 = vmatprep.subr.bf16.mxu0 0
    %2184 = vmatpush2.bf16.xpose.msra.mxu0 0
    %2185 = vmatprep.subr.bf16.mxu0 0
    %2186 = vmatpush2.bf16.xpose.msra.mxu0 0
    %2187 = vmatprep.subr.bf16.mxu0 0
    %2188 = vmatpush2.bf16.xpose.msra.mxu0 0
    %2189 = vmatprep.subr.bf16.mxu0 0
    %2190 = vmatpush2.bf16.xpose.msra.mxu0 0
    %2191 = vmatprep.subr.bf16.mxu0 0
    %2192 = vmatpush2.bf16.xpose.msra.mxu0 0
    %2193 = vmatprep.subr.bf16.mxu0 0
    %2194 = vmatpush2.bf16.xpose.msra.mxu0 0
    %2195 = vmatprep.subr.bf16.mxu0 0
    %2196 = vmatpush2.bf16.xpose.msra.mxu0 0
    %2197 = vmatprep.subr.bf16.mxu0 0
    %2198 = vmatpush2.bf16.xpose.msra.mxu0 0
    %2199 = vmatprep.mubr.bf16.mxu0 0
    %2200 = vmatmul.mubr.bf16.gmra.mxu0 %v2162
    %v2201 = vpop.f32.mrf.mxu0
    %v2202 = vadd.f32 0.0, %v2201
    %v2203 = vpop.f32.mrf.mxu0
    %v2204 = vpop.f32.mrf.mxu0
    %v2205 = vadd.f32 0.0, %v2204
    %v2206 = vpop.f32.mrf.mxu0
    %2207 = vdwg.mxu0
    %2208 = vrot.lane.b32.xlu0 %v1667, 112
    %v2209 = vpop.permute.xlu0 %2208
    %2210 = vrot.lane.b32.xlu0 %v1669, 112
    %v2211 = vpop.permute.xlu0 %2210
    %v2213 = vsel %vm1672, %v2209, 0
    %v2216 = vsel %vm1672, %v2211, 0
    %2218 = vmatprep.subr.bf16.mxu0 0
    %2219 = vmatpush1.bf16.xpose.msra.mxu0 0
    %2220 = vmatprep.subr.bf16.mxu0 0
    %2221 = vmatpush1.bf16.xpose.msra.mxu0 0
    %2222 = vmatprep.subr.bf16.mxu0 0
    %2223 = vmatpush1.bf16.xpose.msra.mxu0 0
    %2224 = vmatprep.subr.bf16.mxu0 0
    %2225 = vmatpush1.bf16.xpose.msra.mxu0 0
    %2226 = vmatprep.subr.bf16.mxu0 0
    %2227 = vmatpush1.bf16.xpose.msra.mxu0 0
    %2228 = vmatprep.subr.bf16.mxu0 0
    %2229 = vmatpush1.bf16.xpose.msra.mxu0 0
    %2230 = vmatprep.subr.bf16.mxu0 0
    %2231 = vmatpush1.bf16.xpose.msra.mxu0 0
    %2232 = vmatprep.subr.bf16.mxu0 0
    %2233 = vmatpush1.bf16.xpose.msra.mxu0 %v2216
    %2234 = vmatprep.subr.bf16.mxu0 0
    %2235 = vmatpush2.bf16.xpose.msra.mxu0 0
    %2236 = vmatprep.subr.bf16.mxu0 0
    %2237 = vmatpush2.bf16.xpose.msra.mxu0 0
    %2238 = vmatprep.subr.bf16.mxu0 0
    %2239 = vmatpush2.bf16.xpose.msra.mxu0 0
    %2240 = vmatprep.subr.bf16.mxu0 0
    %2241 = vmatpush2.bf16.xpose.msra.mxu0 0
    %2242 = vmatprep.subr.bf16.mxu0 0
    %2243 = vmatpush2.bf16.xpose.msra.mxu0 0
    %2244 = vmatprep.subr.bf16.mxu0 0
    %2245 = vmatpush2.bf16.xpose.msra.mxu0 0
    %2246 = vmatprep.subr.bf16.mxu0 0
    %2247 = vmatpush2.bf16.xpose.msra.mxu0 0
    %2248 = vmatprep.subr.bf16.mxu0 0
    %2249 = vmatpush2.bf16.xpose.msra.mxu0 0
    %2250 = vmatprep.mubr.bf16.mxu0 0
    %2251 = vmatmul.mubr.bf16.gmra.mxu0 %v2213
    %v2252 = vpop.f32.mrf.mxu0
    %v2253 = vadd.f32 0.0, %v2252
    %v2254 = vpop.f32.mrf.mxu0
    %v2255 = vpop.f32.mrf.mxu0
    %v2256 = vadd.f32 0.0, %v2255
    %v2257 = vpop.f32.mrf.mxu0
    %2258 = vdwg.mxu0
    %v2259 = vmul.f32 %v2202, 0.35355338
    %v2260 = vmul.f32 %v2205, 0.35355338
    %v2261 = vmul.f32 %v2253, 0.35355338
    %v2262 = vmul.f32 %v2256, 0.35355338
    %v2263 = vsel %vm701, %v2259, -inf
    %2264 = vmax.xlane.f32.xlu0 %v2263
    %v2265 = vpop.xlane.xlu0 %2264
    %v2266 = vsel %vm701, %v2260, -inf
    %2267 = vmax.xlane.f32.xlu0 %v2266
    %v2268 = vpop.xlane.xlu0 %2267
    %v2269 = vsel %vm701, %v2261, -inf
    %2270 = vmax.xlane.f32.xlu0 %v2269
    %v2271 = vpop.xlane.xlu0 %2270
    %v2272 = vsel %vm701, %v2262, -inf
    %2273 = vmax.xlane.f32.xlu0 %v2272
    %v2274 = vpop.xlane.xlu0 %2273
    %v2275 = vsub.f32 %v2259, %v2265
    %v2276 = vsub.f32 %v2260, %v2268
    %v2277 = vsub.f32 %v2261, %v2271
    %v2278 = vsub.f32 %v2262, %v2274
    %v2279 = vmul.f32 %v2275, 1.442695
    %v2280 = vpow.pop %v2279
    %v2281 = vmul.f32 %v2276, 1.442695
    %v2282 = vpow.pop %v2281
    %v2283 = vmul.f32 %v2277, 1.442695
    %v2284 = vpow.pop %v2283
    %v2285 = vmul.f32 %v2278, 1.442695
    %v2286 = vpow.pop %v2285
    %v2287 = vsel %vm701, %v2280, 0.0
    %2288 = vadd.xlane.f32.xlu0 %v2287
    %v2289 = vpop.xlane.xlu0 %2288
    %v2290 = vsel %vm701, %v2282, 0.0
    %2291 = vadd.xlane.f32.xlu0 %v2290
    %v2292 = vpop.xlane.xlu0 %2291
    %v2293 = vsel %vm701, %v2284, 0.0
    %2294 = vadd.xlane.f32.xlu0 %v2293
    %v2295 = vpop.xlane.xlu0 %2294
    %v2296 = vsel %vm701, %v2286, 0.0
    %2297 = vadd.xlane.f32.xlu0 %v2296
    %v2298 = vpop.xlane.xlu0 %2297
    %v2299 = vrcp.pop %v2289
    %v2300 = vrcp.pop %v2292
    %v2301 = vrcp.pop %v2295
    %v2302 = vrcp.pop %v2298
    %v2303 = vmul.f32 %v2280, %v2299
    %v2304 = vmul.f32 %v2282, %v2300
    %v2305 = vmul.f32 %v2284, %v2301
    %v2306 = vmul.f32 %v2286, %v2302
    %v2307 = vpack.c.bf16 %v2304, %v2303
    %v2308 = vpack.c.bf16 %v2306, %v2305
    %2309 = vrot.lane.b32.xlu0 %v1670, 112
    %v2310 = vpop.permute.xlu0 %2309
    %v2313 = vsel %vm701, %v2307, 0
    %2315 = vmatprep.subr.bf16.mxu0 0
    %2316 = vmatpush1.bf16.msra.mxu0 0
    %2317 = vmatprep.subr.bf16.mxu0 0
    %2318 = vmatpush1.bf16.msra.mxu0 0
    %2319 = vmatprep.subr.bf16.mxu0 0
    %2320 = vmatpush1.bf16.msra.mxu0 0
    %2321 = vmatprep.subr.bf16.mxu0 0
    %2322 = vmatpush1.bf16.msra.mxu0 0
    %2323 = vmatprep.subr.bf16.mxu0 0
    %2324 = vmatpush1.bf16.msra.mxu0 0
    %2325 = vmatprep.subr.bf16.mxu0 0
    %2326 = vmatpush1.bf16.msra.mxu0 0
    %2327 = vmatprep.subr.bf16.mxu0 0
    %2328 = vmatpush1.bf16.msra.mxu0 0
    %2329 = vmatprep.subr.bf16.mxu0 0
    %2330 = vmatpush1.bf16.msra.mxu0 %v2310
    %2331 = vmatprep.subr.bf16.mxu0 0
    %2332 = vmatpush2.bf16.msra.mxu0 0
    %2333 = vmatprep.subr.bf16.mxu0 0
    %2334 = vmatpush2.bf16.msra.mxu0 0
    %2335 = vmatprep.subr.bf16.mxu0 0
    %2336 = vmatpush2.bf16.msra.mxu0 0
    %2337 = vmatprep.subr.bf16.mxu0 0
    %2338 = vmatpush2.bf16.msra.mxu0 0
    %2339 = vmatprep.subr.bf16.mxu0 0
    %2340 = vmatpush2.bf16.msra.mxu0 0
    %2341 = vmatprep.subr.bf16.mxu0 0
    %2342 = vmatpush2.bf16.msra.mxu0 0
    %2343 = vmatprep.subr.bf16.mxu0 0
    %2344 = vmatpush2.bf16.msra.mxu0 0
    %2345 = vmatprep.subr.bf16.mxu0 0
    %2346 = vmatpush2.bf16.msra.mxu0 0
    %2347 = vmatprep.mubr.bf16.mxu0 0
    %2348 = vmatmul.mubr.bf16.gmra.mxu0 %v2313
    %v2349 = vpop.f32.mrf.mxu0
    %v2350 = vadd.f32 0.0, %v2349
    %v2351 = vpop.f32.mrf.mxu0
    %v2352 = vpop.f32.mrf.mxu0
    %v2353 = vadd.f32 0.0, %v2352
    %v2354 = vpop.f32.mrf.mxu0
    %2355 = vdwg.mxu0
    %2356 = vrot.lane.b32.xlu0 %v1671, 112
    %v2357 = vpop.permute.xlu0 %2356
    %v2360 = vsel %vm701, %v2308, 0
    %2362 = vmatprep.subr.bf16.mxu0 0
    %2363 = vmatpush1.bf16.msra.mxu0 0
    %2364 = vmatprep.subr.bf16.mxu0 0
    %2365 = vmatpush1.bf16.msra.mxu0 0
    %2366 = vmatprep.subr.bf16.mxu0 0
    %2367 = vmatpush1.bf16.msra.mxu0 0
    %2368 = vmatprep.subr.bf16.mxu0 0
    %2369 = vmatpush1.bf16.msra.mxu0 0
    %2370 = vmatprep.subr.bf16.mxu0 0
    %2371 = vmatpush1.bf16.msra.mxu0 0
    %2372 = vmatprep.subr.bf16.mxu0 0
    %2373 = vmatpush1.bf16.msra.mxu0 0
    %2374 = vmatprep.subr.bf16.mxu0 0
    %2375 = vmatpush1.bf16.msra.mxu0 0
    %2376 = vmatprep.subr.bf16.mxu0 0
    %2377 = vmatpush1.bf16.msra.mxu0 %v2357
    %2378 = vmatprep.subr.bf16.mxu0 0
    %2379 = vmatpush2.bf16.msra.mxu0 0
    %2380 = vmatprep.subr.bf16.mxu0 0
    %2381 = vmatpush2.bf16.msra.mxu0 0
    %2382 = vmatprep.subr.bf16.mxu0 0
    %2383 = vmatpush2.bf16.msra.mxu0 0
    %2384 = vmatprep.subr.bf16.mxu0 0
    %2385 = vmatpush2.bf16.msra.mxu0 0
    %2386 = vmatprep.subr.bf16.mxu0 0
    %2387 = vmatpush2.bf16.msra.mxu0 0
    %2388 = vmatprep.subr.bf16.mxu0 0
    %2389 = vmatpush2.bf16.msra.mxu0 0
    %2390 = vmatprep.subr.bf16.mxu0 0
    %2391 = vmatpush2.bf16.msra.mxu0 0
    %2392 = vmatprep.subr.bf16.mxu0 0
    %2393 = vmatpush2.bf16.msra.mxu0 0
    %2394 = vmatprep.mubr.bf16.mxu0 0
    %2395 = vmatmul.mubr.bf16.gmra.mxu0 %v2360
    %v2396 = vpop.f32.mrf.mxu0
    %v2397 = vadd.f32 0.0, %v2396
    %v2398 = vpop.f32.mrf.mxu0
    %v2399 = vpop.f32.mrf.mxu0
    %v2400 = vadd.f32 0.0, %v2399
    %v2401 = vpop.f32.mrf.mxu0
    %2402 = vdwg.mxu0
    %2403 = vrot.lane.b32.xlu0 %v1666, 104
    %v2404 = vpop.permute.xlu0 %2403
    %2405 = vrot.lane.b32.xlu0 %v1668, 104
    %v2406 = vpop.permute.xlu0 %2405
    %v2408 = vsel %vm1672, %v2404, 0
    %v2411 = vsel %vm1672, %v2406, 0
    %2413 = vmatprep.subr.bf16.mxu0 0
    %2414 = vmatpush1.bf16.xpose.msra.mxu0 0
    %2415 = vmatprep.subr.bf16.mxu0 0
    %2416 = vmatpush1.bf16.xpose.msra.mxu0 0
    %2417 = vmatprep.subr.bf16.mxu0 0
    %2418 = vmatpush1.bf16.xpose.msra.mxu0 0
    %2419 = vmatprep.subr.bf16.mxu0 0
    %2420 = vmatpush1.bf16.xpose.msra.mxu0 0
    %2421 = vmatprep.subr.bf16.mxu0 0
    %2422 = vmatpush1.bf16.xpose.msra.mxu0 0
    %2423 = vmatprep.subr.bf16.mxu0 0
    %2424 = vmatpush1.bf16.xpose.msra.mxu0 0
    %2425 = vmatprep.subr.bf16.mxu0 0
    %2426 = vmatpush1.bf16.xpose.msra.mxu0 0
    %2427 = vmatprep.subr.bf16.mxu0 0
    %2428 = vmatpush1.bf16.xpose.msra.mxu0 %v2411
    %2429 = vmatprep.subr.bf16.mxu0 0
    %2430 = vmatpush2.bf16.xpose.msra.mxu0 0
    %2431 = vmatprep.subr.bf16.mxu0 0
    %2432 = vmatpush2.bf16.xpose.msra.mxu0 0
    %2433 = vmatprep.subr.bf16.mxu0 0
    %2434 = vmatpush2.bf16.xpose.msra.mxu0 0
    %2435 = vmatprep.subr.bf16.mxu0 0
    %2436 = vmatpush2.bf16.xpose.msra.mxu0 0
    %2437 = vmatprep.subr.bf16.mxu0 0
    %2438 = vmatpush2.bf16.xpose.msra.mxu0 0
    %2439 = vmatprep.subr.bf16.mxu0 0
    %2440 = vmatpush2.bf16.xpose.msra.mxu0 0
    %2441 = vmatprep.subr.bf16.mxu0 0
    %2442 = vmatpush2.bf16.xpose.msra.mxu0 0
    %2443 = vmatprep.subr.bf16.mxu0 0
    %2444 = vmatpush2.bf16.xpose.msra.mxu0 0
    %2445 = vmatprep.mubr.bf16.mxu0 0
    %2446 = vmatmul.mubr.bf16.gmra.mxu0 %v2408
    %v2447 = vpop.f32.mrf.mxu0
    %v2448 = vadd.f32 0.0, %v2447
    %v2449 = vpop.f32.mrf.mxu0
    %v2450 = vpop.f32.mrf.mxu0
    %v2451 = vadd.f32 0.0, %v2450
    %v2452 = vpop.f32.mrf.mxu0
    %2453 = vdwg.mxu0
    %2454 = vrot.lane.b32.xlu0 %v1667, 104
    %v2455 = vpop.permute.xlu0 %2454
    %2456 = vrot.lane.b32.xlu0 %v1669, 104
    %v2457 = vpop.permute.xlu0 %2456
    %v2459 = vsel %vm1672, %v2455, 0
    %v2462 = vsel %vm1672, %v2457, 0
    %2464 = vmatprep.subr.bf16.mxu0 0
    %2465 = vmatpush1.bf16.xpose.msra.mxu0 0
    %2466 = vmatprep.subr.bf16.mxu0 0
    %2467 = vmatpush1.bf16.xpose.msra.mxu0 0
    %2468 = vmatprep.subr.bf16.mxu0 0
    %2469 = vmatpush1.bf16.xpose.msra.mxu0 0
    %2470 = vmatprep.subr.bf16.mxu0 0
    %2471 = vmatpush1.bf16.xpose.msra.mxu0 0
    %2472 = vmatprep.subr.bf16.mxu0 0
    %2473 = vmatpush1.bf16.xpose.msra.mxu0 0
    %2474 = vmatprep.subr.bf16.mxu0 0
    %2475 = vmatpush1.bf16.xpose.msra.mxu0 0
    %2476 = vmatprep.subr.bf16.mxu0 0
    %2477 = vmatpush1.bf16.xpose.msra.mxu0 0
    %2478 = vmatprep.subr.bf16.mxu0 0
    %2479 = vmatpush1.bf16.xpose.msra.mxu0 %v2462
    %2480 = vmatprep.subr.bf16.mxu0 0
    %2481 = vmatpush2.bf16.xpose.msra.mxu0 0
    %2482 = vmatprep.subr.bf16.mxu0 0
    %2483 = vmatpush2.bf16.xpose.msra.mxu0 0
    %2484 = vmatprep.subr.bf16.mxu0 0
    %2485 = vmatpush2.bf16.xpose.msra.mxu0 0
    %2486 = vmatprep.subr.bf16.mxu0 0
    %2487 = vmatpush2.bf16.xpose.msra.mxu0 0
    %2488 = vmatprep.subr.bf16.mxu0 0
    %2489 = vmatpush2.bf16.xpose.msra.mxu0 0
    %2490 = vmatprep.subr.bf16.mxu0 0
    %2491 = vmatpush2.bf16.xpose.msra.mxu0 0
    %2492 = vmatprep.subr.bf16.mxu0 0
    %2493 = vmatpush2.bf16.xpose.msra.mxu0 0
    %2494 = vmatprep.subr.bf16.mxu0 0
    %2495 = vmatpush2.bf16.xpose.msra.mxu0 0
    %2496 = vmatprep.mubr.bf16.mxu0 0
    %2497 = vmatmul.mubr.bf16.gmra.mxu0 %v2459
    %v2498 = vpop.f32.mrf.mxu0
    %v2499 = vadd.f32 0.0, %v2498
    %v2500 = vpop.f32.mrf.mxu0
    %v2501 = vpop.f32.mrf.mxu0
    %v2502 = vadd.f32 0.0, %v2501
    %v2503 = vpop.f32.mrf.mxu0
    %2504 = vdwg.mxu0
    %v2505 = vmul.f32 %v2448, 0.35355338
    %v2506 = vmul.f32 %v2451, 0.35355338
    %v2507 = vmul.f32 %v2499, 0.35355338
    %v2508 = vmul.f32 %v2502, 0.35355338
    %v2509 = vsel %vm701, %v2505, -inf
    %2510 = vmax.xlane.f32.xlu0 %v2509
    %v2511 = vpop.xlane.xlu0 %2510
    %v2512 = vsel %vm701, %v2506, -inf
    %2513 = vmax.xlane.f32.xlu0 %v2512
    %v2514 = vpop.xlane.xlu0 %2513
    %v2515 = vsel %vm701, %v2507, -inf
    %2516 = vmax.xlane.f32.xlu0 %v2515
    %v2517 = vpop.xlane.xlu0 %2516
    %v2518 = vsel %vm701, %v2508, -inf
    %2519 = vmax.xlane.f32.xlu0 %v2518
    %v2520 = vpop.xlane.xlu0 %2519
    %v2521 = vsub.f32 %v2505, %v2511
    %v2522 = vsub.f32 %v2506, %v2514
    %v2523 = vsub.f32 %v2507, %v2517
    %v2524 = vsub.f32 %v2508, %v2520
    %v2525 = vmul.f32 %v2521, 1.442695
    %v2526 = vpow.pop %v2525
    %v2527 = vmul.f32 %v2522, 1.442695
    %v2528 = vpow.pop %v2527
    %v2529 = vmul.f32 %v2523, 1.442695
    %v2530 = vpow.pop %v2529
    %v2531 = vmul.f32 %v2524, 1.442695
    %v2532 = vpow.pop %v2531
    %v2533 = vsel %vm701, %v2526, 0.0
    %2534 = vadd.xlane.f32.xlu0 %v2533
    %v2535 = vpop.xlane.xlu0 %2534
    %v2536 = vsel %vm701, %v2528, 0.0
    %2537 = vadd.xlane.f32.xlu0 %v2536
    %v2538 = vpop.xlane.xlu0 %2537
    %v2539 = vsel %vm701, %v2530, 0.0
    %2540 = vadd.xlane.f32.xlu0 %v2539
    %v2541 = vpop.xlane.xlu0 %2540
    %v2542 = vsel %vm701, %v2532, 0.0
    %2543 = vadd.xlane.f32.xlu0 %v2542
    %v2544 = vpop.xlane.xlu0 %2543
    %v2545 = vrcp.pop %v2535
    %v2546 = vrcp.pop %v2538
    %v2547 = vrcp.pop %v2541
    %v2548 = vrcp.pop %v2544
    %v2549 = vmul.f32 %v2526, %v2545
    %v2550 = vmul.f32 %v2528, %v2546
    %v2551 = vmul.f32 %v2530, %v2547
    %v2552 = vmul.f32 %v2532, %v2548
    %v2553 = vpack.c.bf16 %v2550, %v2549
    %v2554 = vpack.c.bf16 %v2552, %v2551
    %2555 = vrot.lane.b32.xlu0 %v1670, 104
    %v2556 = vpop.permute.xlu0 %2555
    %v2559 = vsel %vm701, %v2553, 0
    %2561 = vmatprep.subr.bf16.mxu0 0
    %2562 = vmatpush1.bf16.msra.mxu0 0
    %2563 = vmatprep.subr.bf16.mxu0 0
    %2564 = vmatpush1.bf16.msra.mxu0 0
    %2565 = vmatprep.subr.bf16.mxu0 0
    %2566 = vmatpush1.bf16.msra.mxu0 0
    %2567 = vmatprep.subr.bf16.mxu0 0
    %2568 = vmatpush1.bf16.msra.mxu0 0
    %2569 = vmatprep.subr.bf16.mxu0 0
    %2570 = vmatpush1.bf16.msra.mxu0 0
    %2571 = vmatprep.subr.bf16.mxu0 0
    %2572 = vmatpush1.bf16.msra.mxu0 0
    %2573 = vmatprep.subr.bf16.mxu0 0
    %2574 = vmatpush1.bf16.msra.mxu0 0
    %2575 = vmatprep.subr.bf16.mxu0 0
    %2576 = vmatpush1.bf16.msra.mxu0 %v2556
    %2577 = vmatprep.subr.bf16.mxu0 0
    %2578 = vmatpush2.bf16.msra.mxu0 0
    %2579 = vmatprep.subr.bf16.mxu0 0
    %2580 = vmatpush2.bf16.msra.mxu0 0
    %2581 = vmatprep.subr.bf16.mxu0 0
    %2582 = vmatpush2.bf16.msra.mxu0 0
    %2583 = vmatprep.subr.bf16.mxu0 0
    %2584 = vmatpush2.bf16.msra.mxu0 0
    %2585 = vmatprep.subr.bf16.mxu0 0
    %2586 = vmatpush2.bf16.msra.mxu0 0
    %2587 = vmatprep.subr.bf16.mxu0 0
    %2588 = vmatpush2.bf16.msra.mxu0 0
    %2589 = vmatprep.subr.bf16.mxu0 0
    %2590 = vmatpush2.bf16.msra.mxu0 0
    %2591 = vmatprep.subr.bf16.mxu0 0
    %2592 = vmatpush2.bf16.msra.mxu0 0
    %2593 = vmatprep.mubr.bf16.mxu0 0
    %2594 = vmatmul.mubr.bf16.gmra.mxu0 %v2559
    %v2595 = vpop.f32.mrf.mxu0
    %v2596 = vadd.f32 0.0, %v2595
    %v2597 = vpop.f32.mrf.mxu0
    %v2598 = vpop.f32.mrf.mxu0
    %v2599 = vadd.f32 0.0, %v2598
    %v2600 = vpop.f32.mrf.mxu0
    %2601 = vdwg.mxu0
    %2602 = vrot.lane.b32.xlu0 %v1671, 104
    %v2603 = vpop.permute.xlu0 %2602
    %v2606 = vsel %vm701, %v2554, 0
    %2608 = vmatprep.subr.bf16.mxu0 0
    %2609 = vmatpush1.bf16.msra.mxu0 0
    %2610 = vmatprep.subr.bf16.mxu0 0
    %2611 = vmatpush1.bf16.msra.mxu0 0
    %2612 = vmatprep.subr.bf16.mxu0 0
    %2613 = vmatpush1.bf16.msra.mxu0 0
    %2614 = vmatprep.subr.bf16.mxu0 0
    %2615 = vmatpush1.bf16.msra.mxu0 0
    %2616 = vmatprep.subr.bf16.mxu0 0
    %2617 = vmatpush1.bf16.msra.mxu0 0
    %2618 = vmatprep.subr.bf16.mxu0 0
    %2619 = vmatpush1.bf16.msra.mxu0 0
    %2620 = vmatprep.subr.bf16.mxu0 0
    %2621 = vmatpush1.bf16.msra.mxu0 0
    %2622 = vmatprep.subr.bf16.mxu0 0
    %2623 = vmatpush1.bf16.msra.mxu0 %v2603
    %2624 = vmatprep.subr.bf16.mxu0 0
    %2625 = vmatpush2.bf16.msra.mxu0 0
    %2626 = vmatprep.subr.bf16.mxu0 0
    %2627 = vmatpush2.bf16.msra.mxu0 0
    %2628 = vmatprep.subr.bf16.mxu0 0
    %2629 = vmatpush2.bf16.msra.mxu0 0
    %2630 = vmatprep.subr.bf16.mxu0 0
    %2631 = vmatpush2.bf16.msra.mxu0 0
    %2632 = vmatprep.subr.bf16.mxu0 0
    %2633 = vmatpush2.bf16.msra.mxu0 0
    %2634 = vmatprep.subr.bf16.mxu0 0
    %2635 = vmatpush2.bf16.msra.mxu0 0
    %2636 = vmatprep.subr.bf16.mxu0 0
    %2637 = vmatpush2.bf16.msra.mxu0 0
    %2638 = vmatprep.subr.bf16.mxu0 0
    %2639 = vmatpush2.bf16.msra.mxu0 0
    %2640 = vmatprep.mubr.bf16.mxu0 0
    %2641 = vmatmul.mubr.bf16.gmra.mxu0 %v2606
    %v2642 = vpop.f32.mrf.mxu0
    %v2643 = vadd.f32 0.0, %v2642
    %v2644 = vpop.f32.mrf.mxu0
    %v2645 = vpop.f32.mrf.mxu0
    %v2646 = vadd.f32 0.0, %v2645
    %v2647 = vpop.f32.mrf.mxu0
    %2648 = vdwg.mxu0
    %2653 = vrot.lane.b32.xlu0 %v2103, 8
    %v2654 = vpop.permute.xlu0 %2653
    %2655 = vrot.lane.b32.xlu0 %v2106, 8
    %v2656 = vpop.permute.xlu0 %2655
    %2657 = vrot.lane.b32.xlu0 %v2151, 8
    %v2658 = vpop.permute.xlu0 %2657
    %2659 = vrot.lane.b32.xlu0 %v2154, 8
    %v2660 = vpop.permute.xlu0 %2659
    %2669 = vrot.lane.b32.xlu0 %v2350, 16
    %v2670 = vpop.permute.xlu0 %2669
    %2671 = vrot.lane.b32.xlu0 %v2353, 16
    %v2672 = vpop.permute.xlu0 %2671
    %2673 = vrot.lane.b32.xlu0 %v2397, 16
    %v2674 = vpop.permute.xlu0 %2673
    %2675 = vrot.lane.b32.xlu0 %v2400, 16
    %v2676 = vpop.permute.xlu0 %2675
    %2685 = vrot.lane.b32.xlu0 %v2596, 24
    %v2686 = vpop.permute.xlu0 %2685
    %2687 = vrot.lane.b32.xlu0 %v2599, 24
    %v2688 = vpop.permute.xlu0 %2687
    %2689 = vrot.lane.b32.xlu0 %v2643, 24
    %v2690 = vpop.permute.xlu0 %2689
    %2691 = vrot.lane.b32.xlu0 %v2646, 24
    %v2692 = vpop.permute.xlu0 %2691
    %v2697 = vsel %vm1672, %v1855, %v2654
    %v2698 = vsel %vm1672, %v1858, %v2656
    %v2699 = vsel %vm1672, %v1899, %v2658
    %v2700 = vsel %vm1672, %v1902, %v2660
    %v2701 = vsel %vm701, %v2697, %v2670
    %v2702 = vsel %vm701, %v2698, %v2672
    %v2703 = vsel %vm701, %v2699, %v2674
    %v2704 = vsel %vm701, %v2700, %v2676
    %vm2705 = vcmask 195584
    %v2706 = vsel %vm2705, %v2701, %v2686
    %v2707 = vsel %vm2705, %v2702, %v2688
    %v2708 = vsel %vm2705, %v2703, %v2690
    %v2709 = vsel %vm2705, %v2704, %v2692
    %v2710 = vpack.c.bf16 %v2707, %v2706
    %v2711 = vpack.c.bf16 %v2709, %v2708
    %v2712 = vld [vmem:[%s2 + $0xb8] sm:$0xf]
    %v2713 = vld [vmem:[%s2 + $0xbc] sm:$0xf]
    %v2714 = vld [vmem:[%s2 + $0xc0] sm:$0xf]
    %v2715 = vld [vmem:[%s2 + $0xc4] sm:$0xf]
    %v2716 = vld [vmem:[%s3 + $0x60] sm:$0x1]
    %v2717 = vlaneseq
    %v2718 = vshrl.u32 %v2717, 7
    %v2719 = vsub.s32 0, %v2718
    %v2720 = vrot.slane %v2716, %v2719
    %v2725 = vunpack.c.l.b16 %v2712
    %v2726 = vunpack.c.l.b16 %v2713
    %v2727 = vunpack.c.l.b16 %v2714
    %v2728 = vunpack.c.l.b16 %v2715
    %v2729 = vpack.c.b16 %v2726, %v2725
    %v2730 = vpack.c.b16 %v2728, %v2727
    %v2734 = vsel %vm41, %v2710, 0
    %v2737 = vsel %vm41, %v2711, 0
    %2739 = vmatprep.subr.bf16.mxu0 0
    %2740 = vmatpush1.bf16.msra.mxu0 0
    %2741 = vmatprep.subr.bf16.mxu0 0
    %2742 = vmatpush1.bf16.msra.mxu0 0
    %2743 = vmatprep.subr.bf16.mxu0 0
    %2744 = vmatpush1.bf16.msra.mxu0 0
    %2745 = vmatprep.subr.bf16.mxu0 0
    %2746 = vmatpush1.bf16.msra.mxu0 0
    %2747 = vmatprep.subr.bf16.mxu0 0
    %2748 = vmatpush1.bf16.msra.mxu0 0
    %2749 = vmatprep.subr.bf16.mxu0 0
    %2750 = vmatpush1.bf16.msra.mxu0 0
    %2751 = vmatprep.subr.bf16.mxu0 0
    %2752 = vmatpush1.bf16.msra.mxu0 %v2730
    %2753 = vmatprep.subr.bf16.mxu0 0
    %2754 = vmatpush1.bf16.msra.mxu0 %v2729
    %2755 = vmatprep.subr.bf16.mxu0 0
    %2756 = vmatpush2.bf16.msra.mxu0 0
    %2757 = vmatprep.subr.bf16.mxu0 0
    %2758 = vmatpush2.bf16.msra.mxu0 0
    %2759 = vmatprep.subr.bf16.mxu0 0
    %2760 = vmatpush2.bf16.msra.mxu0 0
    %2761 = vmatprep.subr.bf16.mxu0 0
    %2762 = vmatpush2.bf16.msra.mxu0 0
    %2763 = vmatprep.subr.bf16.mxu0 0
    %2764 = vmatpush2.bf16.msra.mxu0 0
    %2765 = vmatprep.subr.bf16.mxu0 0
    %2766 = vmatpush2.bf16.msra.mxu0 0
    %2767 = vmatprep.subr.bf16.mxu0 0
    %2768 = vmatpush2.bf16.msra.mxu0 0
    %2769 = vmatprep.subr.bf16.mxu0 0
    %2770 = vmatpush2.bf16.msra.mxu0 0
    %2771 = vmatprep.mubr.bf16.mxu0 0
    %2772 = vmatmul.mubr.bf16.gmra.mxu0 %v2734
    %v2773 = vpop.f32.mrf.mxu0
    %v2774 = vadd.f32 %v2720, %v2773
    %v2775 = vpop.f32.mrf.mxu0
    %v2776 = vpop.f32.mrf.mxu0
    %v2777 = vadd.f32 %v2720, %v2776
    %v2778 = vpop.f32.mrf.mxu0
    %2779 = vmatprep.mubr.bf16.mxu0 0
    %2780 = vmatmul.mubr.bf16.gmra.mxu0 %v2737
    %v2781 = vpop.f32.mrf.mxu0
    %v2782 = vadd.f32 %v2720, %v2781
    %v2783 = vpop.f32.mrf.mxu0
    %v2784 = vpop.f32.mrf.mxu0
    %v2785 = vadd.f32 %v2720, %v2784
    %v2786 = vpop.f32.mrf.mxu0
    %2787 = vdwg.mxu0
    %v2788 = vadd.f32 %v1389, %v2774
    %v2789 = vadd.f32 %v1390, %v2777
    %v2790 = vadd.f32 %v1391, %v2782
    %v2791 = vadd.f32 %v1392, %v2785
    %v2792 = vld [vmem:[%s3 + $0x68] sm:$0x1]
    %v2793 = vld [vmem:[%s3 + $0x70] sm:$0x1]
    %v2794 = vsel %vm41, %v2788, 0.0
    %2795 = vadd.xlane.f32.xlu0 %v2794
    %v2796 = vpop.xlane.xlu0 %2795
    %v2797 = vsel %vm41, %v2789, 0.0
    %2798 = vadd.xlane.f32.xlu0 %v2797
    %v2799 = vpop.xlane.xlu0 %2798
    %v2800 = vsel %vm41, %v2790, 0.0
    %2801 = vadd.xlane.f32.xlu0 %v2800
    %v2802 = vpop.xlane.xlu0 %2801
    %v2803 = vsel %vm41, %v2791, 0.0
    %2804 = vadd.xlane.f32.xlu0 %v2803
    %v2805 = vpop.xlane.xlu0 %2804
    %v2806 = vmul.f32 %v2796, %v54
    %v2807 = vmul.f32 %v2799, %v54
    %v2808 = vmul.f32 %v2802, %v54
    %v2809 = vmul.f32 %v2805, %v54
    %v2810 = vsub.f32 %v2788, %v2806
    %v2811 = vsub.f32 %v2789, %v2807
    %v2812 = vsub.f32 %v2790, %v2808
    %v2813 = vsub.f32 %v2791, %v2809
    %v2814 = vmul.f32 %v2810, %v2810
    %v2815 = vmul.f32 %v2811, %v2811
    %v2816 = vmul.f32 %v2812, %v2812
    %v2817 = vmul.f32 %v2813, %v2813
    %v2818 = vsel %vm41, %v2814, 0.0
    %2819 = vadd.xlane.f32.xlu0 %v2818
    %v2820 = vpop.xlane.xlu0 %2819
    %v2821 = vsel %vm41, %v2815, 0.0
    %2822 = vadd.xlane.f32.xlu0 %v2821
    %v2823 = vpop.xlane.xlu0 %2822
    %v2824 = vsel %vm41, %v2816, 0.0
    %2825 = vadd.xlane.f32.xlu0 %v2824
    %v2826 = vpop.xlane.xlu0 %2825
    %v2827 = vsel %vm41, %v2817, 0.0
    %2828 = vadd.xlane.f32.xlu0 %v2827
    %v2829 = vpop.xlane.xlu0 %2828
    %v2830 = vmul.f32 %v2820, %v54
    %v2831 = vmul.f32 %v2823, %v54
    %v2832 = vmul.f32 %v2826, %v54
    %v2833 = vmul.f32 %v2829, %v54
    %v2834 = vadd.f32 %v2830, 1e-05
    %v2835 = vadd.f32 %v2831, 1e-05
    %v2836 = vadd.f32 %v2832, 1e-05
    %v2837 = vadd.f32 %v2833, 1e-05
    %v2838 = vrsqrt.pop %v2834
    %v2839 = vrsqrt.pop %v2835
    %v2840 = vrsqrt.pop %v2836
    %v2841 = vrsqrt.pop %v2837
    %v2842 = vmul.f32 %v2810, %v2838
    %v2843 = vmul.f32 %v2811, %v2839
    %v2844 = vmul.f32 %v2812, %v2840
    %v2845 = vmul.f32 %v2813, %v2841
    %v2846 = vlaneseq
    %v2847 = vshrl.u32 %v2846, 7
    %v2848 = vsub.s32 0, %v2847
    %v2849 = vrot.slane %v2792, %v2848
    %v2850 = vmul.f32 %v2842, %v2849
    %v2851 = vmul.f32 %v2843, %v2849
    %v2852 = vmul.f32 %v2844, %v2849
    %v2853 = vmul.f32 %v2845, %v2849
    %v2854 = vlaneseq
    %v2855 = vshrl.u32 %v2854, 7
    %v2856 = vsub.s32 0, %v2855
    %v2857 = vrot.slane %v2793, %v2856
    %v2858 = vadd.f32 %v2850, %v2857
    %v2859 = vadd.f32 %v2851, %v2857
    %v2860 = vadd.f32 %v2852, %v2857
    %v2861 = vadd.f32 %v2853, %v2857
    %v2862 = vpack.c.bf16 %v2859, %v2858
    %v2863 = vpack.c.bf16 %v2861, %v2860
    %v2864 = vld [vmem:[%s2 + $0xc8] sm:$0xf]
    %v2865 = vld [vmem:[%s2 + $0xcc] sm:$0xf]
    %v2866 = vld [vmem:[%s2 + $0xd0] sm:$0xf]
    %v2867 = vld [vmem:[%s2 + $0xd4] sm:$0xf]
    %v2868 = vld [vmem:[%s3 + $0x78] sm:$0x1]
    %v2869 = vlaneseq
    %v2870 = vshrl.u32 %v2869, 7
    %v2871 = vsub.s32 0, %v2870
    %v2872 = vrot.slane %v2868, %v2871
    %v2877 = vunpack.c.l.b16 %v2864
    %v2878 = vunpack.c.l.b16 %v2865
    %v2879 = vunpack.c.l.b16 %v2866
    %v2880 = vunpack.c.l.b16 %v2867
    %v2881 = vpack.c.b16 %v2878, %v2877
    %v2882 = vpack.c.b16 %v2880, %v2879
    %v2886 = vsel %vm41, %v2862, 0
    %v2889 = vsel %vm41, %v2863, 0
    %2891 = vmatprep.subr.bf16.mxu0 0
    %2892 = vmatpush1.bf16.msra.mxu0 0
    %2893 = vmatprep.subr.bf16.mxu0 0
    %2894 = vmatpush1.bf16.msra.mxu0 0
    %2895 = vmatprep.subr.bf16.mxu0 0
    %2896 = vmatpush1.bf16.msra.mxu0 0
    %2897 = vmatprep.subr.bf16.mxu0 0
    %2898 = vmatpush1.bf16.msra.mxu0 0
    %2899 = vmatprep.subr.bf16.mxu0 0
    %2900 = vmatpush1.bf16.msra.mxu0 0
    %2901 = vmatprep.subr.bf16.mxu0 0
    %2902 = vmatpush1.bf16.msra.mxu0 0
    %2903 = vmatprep.subr.bf16.mxu0 0
    %2904 = vmatpush1.bf16.msra.mxu0 %v2882
    %2905 = vmatprep.subr.bf16.mxu0 0
    %2906 = vmatpush1.bf16.msra.mxu0 %v2881
    %2907 = vmatprep.subr.bf16.mxu0 0
    %2908 = vmatpush2.bf16.msra.mxu0 0
    %2909 = vmatprep.subr.bf16.mxu0 0
    %2910 = vmatpush2.bf16.msra.mxu0 0
    %2911 = vmatprep.subr.bf16.mxu0 0
    %2912 = vmatpush2.bf16.msra.mxu0 0
    %2913 = vmatprep.subr.bf16.mxu0 0
    %2914 = vmatpush2.bf16.msra.mxu0 0
    %2915 = vmatprep.subr.bf16.mxu0 0
    %2916 = vmatpush2.bf16.msra.mxu0 0
    %2917 = vmatprep.subr.bf16.mxu0 0
    %2918 = vmatpush2.bf16.msra.mxu0 0
    %2919 = vmatprep.subr.bf16.mxu0 0
    %2920 = vmatpush2.bf16.msra.mxu0 0
    %2921 = vmatprep.subr.bf16.mxu0 0
    %2922 = vmatpush2.bf16.msra.mxu0 0
    %2923 = vmatprep.mubr.bf16.mxu0 0
    %2924 = vmatmul.mubr.bf16.gmra.mxu0 %v2886
    %v2925 = vpop.f32.mrf.mxu0
    %v2926 = vadd.f32 %v2872, %v2925
    %v2927 = vpop.f32.mrf.mxu0
    %v2928 = vpop.f32.mrf.mxu0
    %v2929 = vadd.f32 %v2872, %v2928
    %v2930 = vpop.f32.mrf.mxu0
    %2931 = vmatprep.mubr.bf16.mxu0 0
    %2932 = vmatmul.mubr.bf16.gmra.mxu0 %v2889
    %v2933 = vpop.f32.mrf.mxu0
    %v2934 = vadd.f32 %v2872, %v2933
    %v2935 = vpop.f32.mrf.mxu0
    %v2936 = vpop.f32.mrf.mxu0
    %v2937 = vadd.f32 %v2872, %v2936
    %v2938 = vpop.f32.mrf.mxu0
    %2939 = vdwg.mxu0
    %v2940 = vld [vmem:[%s2 + $0xd8] sm:$0xf]
    %v2941 = vld [vmem:[%s2 + $0xdc] sm:$0xf]
    %v2942 = vld [vmem:[%s2 + $0xe0] sm:$0xf]
    %v2943 = vld [vmem:[%s2 + $0xe4] sm:$0xf]
    %v2944 = vld [vmem:[%s3 + $0x80] sm:$0x1]
    %v2945 = vlaneseq
    %v2946 = vshrl.u32 %v2945, 7
    %v2947 = vsub.s32 0, %v2946
    %v2948 = vrot.slane %v2944, %v2947
    %v2953 = vunpack.c.l.b16 %v2940
    %v2954 = vunpack.c.l.b16 %v2941
    %v2955 = vunpack.c.l.b16 %v2942
    %v2956 = vunpack.c.l.b16 %v2943
    %v2957 = vpack.c.b16 %v2954, %v2953
    %v2958 = vpack.c.b16 %v2956, %v2955
    %2961 = vmatprep.subr.bf16.mxu0 0
    %2962 = vmatpush1.bf16.msra.mxu0 0
    %2963 = vmatprep.subr.bf16.mxu0 0
    %2964 = vmatpush1.bf16.msra.mxu0 0
    %2965 = vmatprep.subr.bf16.mxu0 0
    %2966 = vmatpush1.bf16.msra.mxu0 0
    %2967 = vmatprep.subr.bf16.mxu0 0
    %2968 = vmatpush1.bf16.msra.mxu0 0
    %2969 = vmatprep.subr.bf16.mxu0 0
    %2970 = vmatpush1.bf16.msra.mxu0 0
    %2971 = vmatprep.subr.bf16.mxu0 0
    %2972 = vmatpush1.bf16.msra.mxu0 0
    %2973 = vmatprep.subr.bf16.mxu0 0
    %2974 = vmatpush1.bf16.msra.mxu0 %v2958
    %2975 = vmatprep.subr.bf16.mxu0 0
    %2976 = vmatpush1.bf16.msra.mxu0 %v2957
    %2977 = vmatprep.subr.bf16.mxu0 0
    %2978 = vmatpush2.bf16.msra.mxu0 0
    %2979 = vmatprep.subr.bf16.mxu0 0
    %2980 = vmatpush2.bf16.msra.mxu0 0
    %2981 = vmatprep.subr.bf16.mxu0 0
    %2982 = vmatpush2.bf16.msra.mxu0 0
    %2983 = vmatprep.subr.bf16.mxu0 0
    %2984 = vmatpush2.bf16.msra.mxu0 0
    %2985 = vmatprep.subr.bf16.mxu0 0
    %2986 = vmatpush2.bf16.msra.mxu0 0
    %2987 = vmatprep.subr.bf16.mxu0 0
    %2988 = vmatpush2.bf16.msra.mxu0 0
    %2989 = vmatprep.subr.bf16.mxu0 0
    %2990 = vmatpush2.bf16.msra.mxu0 0
    %2991 = vmatprep.subr.bf16.mxu0 0
    %2992 = vmatpush2.bf16.msra.mxu0 0
    %2993 = vmatprep.mubr.bf16.mxu0 0
    %2994 = vmatmul.mubr.bf16.gmra.mxu0 %v2886
    %v2995 = vpop.f32.mrf.mxu0
    %v2996 = vadd.f32 %v2948, %v2995
    %v2997 = vpop.f32.mrf.mxu0
    %v2998 = vpop.f32.mrf.mxu0
    %v2999 = vadd.f32 %v2948, %v2998
    %v3000 = vpop.f32.mrf.mxu0
    %3001 = vmatprep.mubr.bf16.mxu0 0
    %3002 = vmatmul.mubr.bf16.gmra.mxu0 %v2889
    %v3003 = vpop.f32.mrf.mxu0
    %v3004 = vadd.f32 %v2948, %v3003
    %v3005 = vpop.f32.mrf.mxu0
    %v3006 = vpop.f32.mrf.mxu0
    %v3007 = vadd.f32 %v2948, %v3006
    %v3008 = vpop.f32.mrf.mxu0
    %3009 = vdwg.mxu0
    %v3010 = vmul.f32 %v2996, 0.5
    %v3011 = vmul.f32 %v2999, 0.5
    %v3012 = vmul.f32 %v3004, 0.5
    %v3013 = vmul.f32 %v3007, 0.5
    %v3014 = vmul.f32 %v2996, 0.70710677
    %v3015 = vmul.f32 %v2999, 0.70710677
    %v3016 = vmul.f32 %v3004, 0.70710677
    %v3017 = vmul.f32 %v3007, 0.70710677
    %v3018 = verf.f32.pop %v3014
    %v3019 = verf.f32.pop %v3015
    %v3020 = verf.f32.pop %v3016
    %v3021 = verf.f32.pop %v3017
    %v3022 = vadd.f32 %v3018, 1.0
    %v3023 = vadd.f32 %v3019, 1.0
    %v3024 = vadd.f32 %v3020, 1.0
    %v3025 = vadd.f32 %v3021, 1.0
    %v3026 = vmul.f32 %v3010, %v3022
    %v3027 = vmul.f32 %v3011, %v3023
    %v3028 = vmul.f32 %v3012, %v3024
    %v3029 = vmul.f32 %v3013, %v3025
    %v3030 = vmul.f32 %v2926, %v3026
    %v3031 = vmul.f32 %v2929, %v3027
    %v3032 = vmul.f32 %v2934, %v3028
    %v3033 = vmul.f32 %v2937, %v3029
    %v3034 = vpack.c.bf16 %v3031, %v3030
    %v3035 = vpack.c.bf16 %v3033, %v3032
    %v3036 = vld [vmem:[%s2 + $0xe8] sm:$0xf]
    %v3037 = vld [vmem:[%s2 + $0xec] sm:$0xf]
    %v3038 = vld [vmem:[%s2 + $0xf0] sm:$0xf]
    %v3039 = vld [vmem:[%s2 + $0xf4] sm:$0xf]
    %v3040 = vld [vmem:[%s2 + $0xf8] sm:$0xf]
    %v3041 = vld [vmem:[%s2 + $0xfc] sm:$0xf]
    %v3042 = vld [vmem:[%s2 + $0x100] sm:$0xf]
    %v3043 = vld [vmem:[%s2 + $0x104] sm:$0xf]
    %v3044 = vld [vmem:[%s2 + $0x108] sm:$0xf]
    %v3045 = vld [vmem:[%s2 + $0x10c] sm:$0xf]
    %v3046 = vld [vmem:[%s2 + $0x110] sm:$0xf]
    %v3047 = vld [vmem:[%s2 + $0x114] sm:$0xf]
    %v3048 = vld [vmem:[%s2 + $0x118] sm:$0xf]
    %v3049 = vld [vmem:[%s2 + $0x11c] sm:$0xf]
    %v3050 = vld [vmem:[%s2 + $0x120] sm:$0xf]
    %v3051 = vld [vmem:[%s2 + $0x124] sm:$0xf]
    %v3052 = vld [vmem:[%s3 + $0x88] sm:$0x1]
    %v3053 = vlaneseq
    %v3054 = vshrl.u32 %v3053, 7
    %v3055 = vsub.s32 0, %v3054
    %v3056 = vrot.slane %v3052, %v3055
    %v3073 = vunpack.c.l.b16 %v3036
    %v3074 = vunpack.c.l.b16 %v3037
    %v3075 = vunpack.c.l.b16 %v3038
    %v3076 = vunpack.c.l.b16 %v3039
    %v3077 = vunpack.c.l.b16 %v3040
    %v3078 = vunpack.c.l.b16 %v3041
    %v3079 = vunpack.c.l.b16 %v3042
    %v3080 = vunpack.c.l.b16 %v3043
    %v3081 = vunpack.c.l.b16 %v3044
    %v3082 = vunpack.c.l.b16 %v3045
    %v3083 = vunpack.c.l.b16 %v3046
    %v3084 = vunpack.c.l.b16 %v3047
    %v3085 = vunpack.c.l.b16 %v3048
    %v3086 = vunpack.c.l.b16 %v3049
    %v3087 = vunpack.c.l.b16 %v3050
    %v3088 = vunpack.c.l.b16 %v3051
    %v3089 = vpack.c.b16 %v3074, %v3073
    %v3090 = vpack.c.b16 %v3076, %v3075
    %v3091 = vpack.c.b16 %v3078, %v3077
    %v3092 = vpack.c.b16 %v3080, %v3079
    %v3093 = vpack.c.b16 %v3082, %v3081
    %v3094 = vpack.c.b16 %v3084, %v3083
    %v3095 = vpack.c.b16 %v3086, %v3085
    %v3096 = vpack.c.b16 %v3088, %v3087
    %3105 = vmatprep.subr.bf16.mxu0 0
    %3106 = vmatpush1.bf16.msra.mxu0 %v3096
    %3107 = vmatprep.subr.bf16.mxu0 0
    %3108 = vmatpush1.bf16.msra.mxu0 %v3095
    %3109 = vmatprep.subr.bf16.mxu0 0
    %3110 = vmatpush1.bf16.msra.mxu0 %v3094
    %3111 = vmatprep.subr.bf16.mxu0 0
    %3112 = vmatpush1.bf16.msra.mxu0 %v3093
    %3113 = vmatprep.subr.bf16.mxu0 0
    %3114 = vmatpush1.bf16.msra.mxu0 %v3092
    %3115 = vmatprep.subr.bf16.mxu0 0
    %3116 = vmatpush1.bf16.msra.mxu0 %v3091
    %3117 = vmatprep.subr.bf16.mxu0 0
    %3118 = vmatpush1.bf16.msra.mxu0 %v3090
    %3119 = vmatprep.subr.bf16.mxu0 0
    %3120 = vmatpush1.bf16.msra.mxu0 %v3089
    %3121 = vmatprep.subr.bf16.mxu0 0
    %3122 = vmatpush2.bf16.msra.mxu0 0
    %3123 = vmatprep.subr.bf16.mxu0 0
    %3124 = vmatpush2.bf16.msra.mxu0 0
    %3125 = vmatprep.subr.bf16.mxu0 0
    %3126 = vmatpush2.bf16.msra.mxu0 0
    %3127 = vmatprep.subr.bf16.mxu0 0
    %3128 = vmatpush2.bf16.msra.mxu0 0
    %3129 = vmatprep.subr.bf16.mxu0 0
    %3130 = vmatpush2.bf16.msra.mxu0 0
    %3131 = vmatprep.subr.bf16.mxu0 0
    %3132 = vmatpush2.bf16.msra.mxu0 0
    %3133 = vmatprep.subr.bf16.mxu0 0
    %3134 = vmatpush2.bf16.msra.mxu0 0
    %3135 = vmatprep.subr.bf16.mxu0 0
    %3136 = vmatpush2.bf16.msra.mxu0 0
    %3137 = vmatprep.mubr.bf16.mxu0 0
    %3138 = vmatmul.mubr.bf16.gmra.mxu0 %v3034
    %v3139 = vpop.f32.mrf.mxu0
    %v3140 = vadd.f32 %v3056, %v3139
    %v3141 = vpop.f32.mrf.mxu0
    %v3142 = vpop.f32.mrf.mxu0
    %v3143 = vadd.f32 %v3056, %v3142
    %v3144 = vpop.f32.mrf.mxu0
    %3145 = vmatprep.mubr.bf16.mxu0 0
    %3146 = vmatmul.mubr.bf16.gmra.mxu0 %v3035
    %v3147 = vpop.f32.mrf.mxu0
    %v3148 = vadd.f32 %v3056, %v3147
    %v3149 = vpop.f32.mrf.mxu0
    %v3150 = vpop.f32.mrf.mxu0
    %v3151 = vadd.f32 %v3056, %v3150
    %v3152 = vpop.f32.mrf.mxu0
    %3153 = vdwg.mxu0
    %v3154 = vadd.f32 %v2788, %v3140
    %v3155 = vadd.f32 %v2789, %v3143
    %v3156 = vadd.f32 %v2790, %v3148
    %v3157 = vadd.f32 %v2791, %v3151
    %v3158 = vld [vmem:[%s3 + $0x90] sm:$0x1]
    %v3159 = vld [vmem:[%s3 + $0x98] sm:$0x1]
    %v3160 = vsel %vm41, %v3154, 0.0
    %3161 = vadd.xlane.f32.xlu0 %v3160
    %v3162 = vpop.xlane.xlu0 %3161
    %v3163 = vsel %vm41, %v3155, 0.0
    %3164 = vadd.xlane.f32.xlu0 %v3163
    %v3165 = vpop.xlane.xlu0 %3164
    %v3166 = vsel %vm41, %v3156, 0.0
    %3167 = vadd.xlane.f32.xlu0 %v3166
    %v3168 = vpop.xlane.xlu0 %3167
    %v3169 = vsel %vm41, %v3157, 0.0
    %3170 = vadd.xlane.f32.xlu0 %v3169
    %v3171 = vpop.xlane.xlu0 %3170
    %v3172 = vmul.f32 %v3162, %v54
    %v3173 = vmul.f32 %v3165, %v54
    %v3174 = vmul.f32 %v3168, %v54
    %v3175 = vmul.f32 %v3171, %v54
    %v3176 = vsub.f32 %v3154, %v3172
    %v3177 = vsub.f32 %v3155, %v3173
    %v3178 = vsub.f32 %v3156, %v3174
    %v3179 = vsub.f32 %v3157, %v3175
    %v3180 = vmul.f32 %v3176, %v3176
    %v3181 = vmul.f32 %v3177, %v3177
    %v3182 = vmul.f32 %v3178, %v3178
    %v3183 = vmul.f32 %v3179, %v3179
    %v3184 = vsel %vm41, %v3180, 0.0
    %3185 = vadd.xlane.f32.xlu0 %v3184
    %v3186 = vpop.xlane.xlu0 %3185
    %v3187 = vsel %vm41, %v3181, 0.0
    %3188 = vadd.xlane.f32.xlu0 %v3187
    %v3189 = vpop.xlane.xlu0 %3188
    %v3190 = vsel %vm41, %v3182, 0.0
    %3191 = vadd.xlane.f32.xlu0 %v3190
    %v3192 = vpop.xlane.xlu0 %3191
    %v3193 = vsel %vm41, %v3183, 0.0
    %3194 = vadd.xlane.f32.xlu0 %v3193
    %v3195 = vpop.xlane.xlu0 %3194
    %v3196 = vmul.f32 %v3186, %v54
    %v3197 = vmul.f32 %v3189, %v54
    %v3198 = vmul.f32 %v3192, %v54
    %v3199 = vmul.f32 %v3195, %v54
    %v3200 = vadd.f32 %v3196, 1e-05
    %v3201 = vadd.f32 %v3197, 1e-05
    %v3202 = vadd.f32 %v3198, 1e-05
    %v3203 = vadd.f32 %v3199, 1e-05
    %v3204 = vrsqrt.pop %v3200
    %v3205 = vrsqrt.pop %v3201
    %v3206 = vrsqrt.pop %v3202
    %v3207 = vrsqrt.pop %v3203
    %v3208 = vmul.f32 %v3176, %v3204
    %v3209 = vmul.f32 %v3177, %v3205
    %v3210 = vmul.f32 %v3178, %v3206
    %v3211 = vmul.f32 %v3179, %v3207
    %v3212 = vlaneseq
    %v3213 = vshrl.u32 %v3212, 7
    %v3214 = vsub.s32 0, %v3213
    %v3215 = vrot.slane %v3158, %v3214
    %v3216 = vmul.f32 %v3208, %v3215
    %v3217 = vmul.f32 %v3209, %v3215
    %v3218 = vmul.f32 %v3210, %v3215
    %v3219 = vmul.f32 %v3211, %v3215
    %v3220 = vlaneseq
    %v3221 = vshrl.u32 %v3220, 7
    %v3222 = vsub.s32 0, %v3221
    %v3223 = vrot.slane %v3159, %v3222
    %v3224 = vadd.f32 %v3216, %v3223
    %v3225 = vadd.f32 %v3217, %v3223
    %v3226 = vadd.f32 %v3218, %v3223
    %v3227 = vadd.f32 %v3219, %v3223
    %v3228 = vld [vmem:[%s3 + $0xa0] sm:$0x1]
    %v3229 = vld [vmem:[%s3 + $0xa8] sm:$0x1]
    %v3230 = vlaneseq
    %v3231 = vshrl.u32 %v3230, 7
    %v3232 = vsub.s32 0, %v3231
    %v3233 = vrot.slane %v3228, %v3232
    %v3234 = vmul.f32 %v307, %v3233
    %v3235 = vmul.f32 %v308, %v3233
    %v3236 = vmul.f32 %v309, %v3233
    %v3237 = vmul.f32 %v310, %v3233
    %v3238 = vmul.f32 %v311, %v3233
    %v3239 = vmul.f32 %v312, %v3233
    %v3240 = vmul.f32 %v313, %v3233
    %v3241 = vmul.f32 %v314, %v3233
    %v3242 = vmul.f32 %v315, %v3233
    %v3243 = vmul.f32 %v316, %v3233
    %v3244 = vmul.f32 %v317, %v3233
    %v3245 = vmul.f32 %v318, %v3233
    %v3246 = vmul.f32 %v319, %v3233
    %v3247 = vmul.f32 %v320, %v3233
    %v3248 = vmul.f32 %v321, %v3233
    %v3249 = vmul.f32 %v322, %v3233
    %v3250 = vlaneseq
    %v3251 = vshrl.u32 %v3250, 7
    %v3252 = vsub.s32 0, %v3251
    %v3253 = vrot.slane %v3229, %v3252
    %v3254 = vadd.f32 %v3234, %v3253
    %v3255 = vadd.f32 %v3235, %v3253
    %v3256 = vadd.f32 %v3236, %v3253
    %v3257 = vadd.f32 %v3237, %v3253
    %v3258 = vadd.f32 %v3238, %v3253
    %v3259 = vadd.f32 %v3239, %v3253
    %v3260 = vadd.f32 %v3240, %v3253
    %v3261 = vadd.f32 %v3241, %v3253
    %v3262 = vadd.f32 %v3242, %v3253
    %v3263 = vadd.f32 %v3243, %v3253
    %v3264 = vadd.f32 %v3244, %v3253
    %v3265 = vadd.f32 %v3245, %v3253
    %v3266 = vadd.f32 %v3246, %v3253
    %v3267 = vadd.f32 %v3247, %v3253
    %v3268 = vadd.f32 %v3248, %v3253
    %v3269 = vadd.f32 %v3249, %v3253
    %v3270 = vpack.c.bf16 %v3225, %v3224
    %v3271 = vpack.c.bf16 %v3227, %v3226
    %v3272 = vld [vmem:[%s2 + $0x128] sm:$0xf]
    %v3273 = vld [vmem:[%s2 + $0x12c] sm:$0xf]
    %v3274 = vld [vmem:[%s2 + $0x130] sm:$0xf]
    %v3275 = vld [vmem:[%s2 + $0x134] sm:$0xf]
    %v3280 = vunpack.c.l.b16 %v3272
    %v3281 = vunpack.c.l.b16 %v3273
    %v3282 = vunpack.c.l.b16 %v3274
    %v3283 = vunpack.c.l.b16 %v3275
    %v3284 = vpack.c.b16 %v3281, %v3280
    %v3285 = vpack.c.b16 %v3283, %v3282
    %v3289 = vsel %vm41, %v3270, 0
    %v3292 = vsel %vm41, %v3271, 0
    %3294 = vmatprep.subr.bf16.mxu0 0
    %3295 = vmatpush1.bf16.msra.mxu0 0
    %3296 = vmatprep.subr.bf16.mxu0 0
    %3297 = vmatpush1.bf16.msra.mxu0 0
    %3298 = vmatprep.subr.bf16.mxu0 0
    %3299 = vmatpush1.bf16.msra.mxu0 0
    %3300 = vmatprep.subr.bf16.mxu0 0
    %3301 = vmatpush1.bf16.msra.mxu0 0
    %3302 = vmatprep.subr.bf16.mxu0 0
    %3303 = vmatpush1.bf16.msra.mxu0 0
    %3304 = vmatprep.subr.bf16.mxu0 0
    %3305 = vmatpush1.bf16.msra.mxu0 0
    %3306 = vmatprep.subr.bf16.mxu0 0
    %3307 = vmatpush1.bf16.msra.mxu0 %v3285
    %3308 = vmatprep.subr.bf16.mxu0 0
    %3309 = vmatpush1.bf16.msra.mxu0 %v3284
    %3310 = vmatprep.subr.bf16.mxu0 0
    %3311 = vmatpush2.bf16.msra.mxu0 0
    %3312 = vmatprep.subr.bf16.mxu0 0
    %3313 = vmatpush2.bf16.msra.mxu0 0
    %3314 = vmatprep.subr.bf16.mxu0 0
    %3315 = vmatpush2.bf16.msra.mxu0 0
    %3316 = vmatprep.subr.bf16.mxu0 0
    %3317 = vmatpush2.bf16.msra.mxu0 0
    %3318 = vmatprep.subr.bf16.mxu0 0
    %3319 = vmatpush2.bf16.msra.mxu0 0
    %3320 = vmatprep.subr.bf16.mxu0 0
    %3321 = vmatpush2.bf16.msra.mxu0 0
    %3322 = vmatprep.subr.bf16.mxu0 0
    %3323 = vmatpush2.bf16.msra.mxu0 0
    %3324 = vmatprep.subr.bf16.mxu0 0
    %3325 = vmatpush2.bf16.msra.mxu0 0
    %3326 = vmatprep.mubr.bf16.mxu0 0
    %3327 = vmatmul.mubr.bf16.gmra.mxu0 %v3289
    %v3328 = vpop.f32.mrf.mxu0
    %v3329 = vadd.f32 0.0, %v3328
    %v3330 = vpop.f32.mrf.mxu0
    %v3331 = vpop.f32.mrf.mxu0
    %v3332 = vadd.f32 0.0, %v3331
    %v3333 = vpop.f32.mrf.mxu0
    %3334 = vmatprep.mubr.bf16.mxu0 0
    %3335 = vmatmul.mubr.bf16.gmra.mxu0 %v3292
    %v3336 = vpop.f32.mrf.mxu0
    %v3337 = vadd.f32 0.0, %v3336
    %v3338 = vpop.f32.mrf.mxu0
    %v3339 = vpop.f32.mrf.mxu0
    %v3340 = vadd.f32 0.0, %v3339
    %v3341 = vpop.f32.mrf.mxu0
    %3342 = vdwg.mxu0
    %v3343 = vpack.c.bf16 %v3255, %v3254
    %v3344 = vpack.c.bf16 %v3257, %v3256
    %v3345 = vpack.c.bf16 %v3259, %v3258
    %v3346 = vpack.c.bf16 %v3261, %v3260
    %v3347 = vpack.c.bf16 %v3263, %v3262
    %v3348 = vpack.c.bf16 %v3265, %v3264
    %v3349 = vpack.c.bf16 %v3267, %v3266
    %v3350 = vpack.c.bf16 %v3269, %v3268
    %v3351 = vld [vmem:[%s2 + $0x138] sm:$0xf]
    %v3352 = vld [vmem:[%s2 + $0x13c] sm:$0x7]
    %v3355 = vunpack.c.l.b16 %v3351
    %v3356 = vunpack.c.l.b16 %v3352
    %v3357 = vpack.c.b16 %v3356, %v3355
    %v3359 = vsel %vm113, %v3343, 0
    %v3362 = vsel %vm113, %v3344, 0
    %v3365 = vsel %vm113, %v3345, 0
    %v3368 = vsel %vm113, %v3346, 0
    %v3371 = vsel %vm113, %v3347, 0
    %v3374 = vsel %vm113, %v3348, 0
    %v3377 = vsel %vm113, %v3349, 0
    %v3380 = vsel %vm113, %v3350, 0
    %v3383 = vsel %vm475, %v3357, 0
    %3385 = vmatprep.subr.bf16.mxu0 0
    %3386 = vmatpush1.bf16.msra.mxu0 0
    %3387 = vmatprep.subr.bf16.mxu0 0
    %3388 = vmatpush1.bf16.msra.mxu0 0
    %3389 = vmatprep.subr.bf16.mxu0 0
    %3390 = vmatpush1.bf16.msra.mxu0 0
    %3391 = vmatprep.subr.bf16.mxu0 0
    %3392 = vmatpush1.bf16.msra.mxu0 0
    %3393 = vmatprep.subr.bf16.mxu0 0
    %3394 = vmatpush1.bf16.msra.mxu0 0
    %3395 = vmatprep.subr.bf16.mxu0 0
    %3396 = vmatpush1.bf16.msra.mxu0 0
    %3397 = vmatprep.subr.bf16.mxu0 0
    %3398 = vmatpush1.bf16.msra.mxu0 0
    %3399 = vmatprep.subr.bf16.mxu0 0
    %3400 = vmatpush1.bf16.msra.mxu0 %v3383
    %3401 = vmatprep.subr.bf16.mxu0 0
    %3402 = vmatpush2.bf16.msra.mxu0 0
    %3403 = vmatprep.subr.bf16.mxu0 0
    %3404 = vmatpush2.bf16.msra.mxu0 0
    %3405 = vmatprep.subr.bf16.mxu0 0
    %3406 = vmatpush2.bf16.msra.mxu0 0
    %3407 = vmatprep.subr.bf16.mxu0 0
    %3408 = vmatpush2.bf16.msra.mxu0 0
    %3409 = vmatprep.subr.bf16.mxu0 0
    %3410 = vmatpush2.bf16.msra.mxu0 0
    %3411 = vmatprep.subr.bf16.mxu0 0
    %3412 = vmatpush2.bf16.msra.mxu0 0
    %3413 = vmatprep.subr.bf16.mxu0 0
    %3414 = vmatpush2.bf16.msra.mxu0 0
    %3415 = vmatprep.subr.bf16.mxu0 0
    %3416 = vmatpush2.bf16.msra.mxu0 0
    %3417 = vmatprep.mubr.bf16.mxu0 0
    %3418 = vmatmul.mubr.bf16.gmra.mxu0 %v3359
    %v3419 = vpop.f32.mrf.mxu0
    %v3420 = vadd.f32 0.0, %v3419
    %v3421 = vpop.f32.mrf.mxu0
    %v3422 = vpop.f32.mrf.mxu0
    %v3423 = vadd.f32 0.0, %v3422
    %v3424 = vpop.f32.mrf.mxu0
    %3425 = vmatprep.mubr.bf16.mxu0 0
    %3426 = vmatmul.mubr.bf16.gmra.mxu0 %v3362
    %v3427 = vpop.f32.mrf.mxu0
    %v3428 = vadd.f32 0.0, %v3427
    %v3429 = vpop.f32.mrf.mxu0
    %v3430 = vpop.f32.mrf.mxu0
    %v3431 = vadd.f32 0.0, %v3430
    %v3432 = vpop.f32.mrf.mxu0
    %3433 = vmatprep.mubr.bf16.mxu0 0
    %3434 = vmatmul.mubr.bf16.gmra.mxu0 %v3365
    %v3435 = vpop.f32.mrf.mxu0
    %v3436 = vadd.f32 0.0, %v3435
    %v3437 = vpop.f32.mrf.mxu0
    %v3438 = vpop.f32.mrf.mxu0
    %v3439 = vadd.f32 0.0, %v3438
    %v3440 = vpop.f32.mrf.mxu0
    %3441 = vmatprep.mubr.bf16.mxu0 0
    %3442 = vmatmul.mubr.bf16.gmra.mxu0 %v3368
    %v3443 = vpop.f32.mrf.mxu0
    %v3444 = vadd.f32 0.0, %v3443
    %v3445 = vpop.f32.mrf.mxu0
    %v3446 = vpop.f32.mrf.mxu0
    %v3447 = vadd.f32 0.0, %v3446
    %v3448 = vpop.f32.mrf.mxu0
    %3449 = vmatprep.mubr.bf16.mxu0 0
    %3450 = vmatmul.mubr.bf16.gmra.mxu0 %v3371
    %v3451 = vpop.f32.mrf.mxu0
    %v3452 = vadd.f32 0.0, %v3451
    %v3453 = vpop.f32.mrf.mxu0
    %v3454 = vpop.f32.mrf.mxu0
    %v3455 = vadd.f32 0.0, %v3454
    %v3456 = vpop.f32.mrf.mxu0
    %3457 = vmatprep.mubr.bf16.mxu0 0
    %3458 = vmatmul.mubr.bf16.gmra.mxu0 %v3374
    %v3459 = vpop.f32.mrf.mxu0
    %v3460 = vadd.f32 0.0, %v3459
    %v3461 = vpop.f32.mrf.mxu0
    %v3462 = vpop.f32.mrf.mxu0
    %v3463 = vadd.f32 0.0, %v3462
    %v3464 = vpop.f32.mrf.mxu0
    %3465 = vmatprep.mubr.bf16.mxu0 0
    %3466 = vmatmul.mubr.bf16.gmra.mxu0 %v3377
    %v3467 = vpop.f32.mrf.mxu0
    %v3468 = vadd.f32 0.0, %v3467
    %v3469 = vpop.f32.mrf.mxu0
    %v3470 = vpop.f32.mrf.mxu0
    %v3471 = vadd.f32 0.0, %v3470
    %v3472 = vpop.f32.mrf.mxu0
    %3473 = vmatprep.mubr.bf16.mxu0 0
    %3474 = vmatmul.mubr.bf16.gmra.mxu0 %v3380
    %v3475 = vpop.f32.mrf.mxu0
    %v3476 = vadd.f32 0.0, %v3475
    %v3477 = vpop.f32.mrf.mxu0
    %v3478 = vpop.f32.mrf.mxu0
    %v3479 = vadd.f32 0.0, %v3478
    %v3480 = vpop.f32.mrf.mxu0
    %3481 = vdwg.mxu0
    %v3482 = vld [vmem:[%s2 + $0x140] sm:$0xf]
    %v3483 = vld [vmem:[%s2 + $0x144] sm:$0x7]
    %v3486 = vunpack.c.l.b16 %v3482
    %v3487 = vunpack.c.l.b16 %v3483
    %v3488 = vpack.c.b16 %v3487, %v3486
    %v3490 = vsel %vm475, %v3488, 0
    %3492 = vmatprep.subr.bf16.mxu0 0
    %3493 = vmatpush1.bf16.msra.mxu0 0
    %3494 = vmatprep.subr.bf16.mxu0 0
    %3495 = vmatpush1.bf16.msra.mxu0 0
    %3496 = vmatprep.subr.bf16.mxu0 0
    %3497 = vmatpush1.bf16.msra.mxu0 0
    %3498 = vmatprep.subr.bf16.mxu0 0
    %3499 = vmatpush1.bf16.msra.mxu0 0
    %3500 = vmatprep.subr.bf16.mxu0 0
    %3501 = vmatpush1.bf16.msra.mxu0 0
    %3502 = vmatprep.subr.bf16.mxu0 0
    %3503 = vmatpush1.bf16.msra.mxu0 0
    %3504 = vmatprep.subr.bf16.mxu0 0
    %3505 = vmatpush1.bf16.msra.mxu0 0
    %3506 = vmatprep.subr.bf16.mxu0 0
    %3507 = vmatpush1.bf16.msra.mxu0 %v3490
    %3508 = vmatprep.subr.bf16.mxu0 0
    %3509 = vmatpush2.bf16.msra.mxu0 0
    %3510 = vmatprep.subr.bf16.mxu0 0
    %3511 = vmatpush2.bf16.msra.mxu0 0
    %3512 = vmatprep.subr.bf16.mxu0 0
    %3513 = vmatpush2.bf16.msra.mxu0 0
    %3514 = vmatprep.subr.bf16.mxu0 0
    %3515 = vmatpush2.bf16.msra.mxu0 0
    %3516 = vmatprep.subr.bf16.mxu0 0
    %3517 = vmatpush2.bf16.msra.mxu0 0
    %3518 = vmatprep.subr.bf16.mxu0 0
    %3519 = vmatpush2.bf16.msra.mxu0 0
    %3520 = vmatprep.subr.bf16.mxu0 0
    %3521 = vmatpush2.bf16.msra.mxu0 0
    %3522 = vmatprep.subr.bf16.mxu0 0
    %3523 = vmatpush2.bf16.msra.mxu0 0
    %3524 = vmatprep.mubr.bf16.mxu0 0
    %3525 = vmatmul.mubr.bf16.gmra.mxu0 %v3359
    %v3526 = vpop.f32.mrf.mxu0
    %v3527 = vadd.f32 0.0, %v3526
    %v3528 = vpop.f32.mrf.mxu0
    %v3529 = vpop.f32.mrf.mxu0
    %v3530 = vadd.f32 0.0, %v3529
    %v3531 = vpop.f32.mrf.mxu0
    %3532 = vmatprep.mubr.bf16.mxu0 0
    %3533 = vmatmul.mubr.bf16.gmra.mxu0 %v3362
    %v3534 = vpop.f32.mrf.mxu0
    %v3535 = vadd.f32 0.0, %v3534
    %v3536 = vpop.f32.mrf.mxu0
    %v3537 = vpop.f32.mrf.mxu0
    %v3538 = vadd.f32 0.0, %v3537
    %v3539 = vpop.f32.mrf.mxu0
    %3540 = vmatprep.mubr.bf16.mxu0 0
    %3541 = vmatmul.mubr.bf16.gmra.mxu0 %v3365
    %v3542 = vpop.f32.mrf.mxu0
    %v3543 = vadd.f32 0.0, %v3542
    %v3544 = vpop.f32.mrf.mxu0
    %v3545 = vpop.f32.mrf.mxu0
    %v3546 = vadd.f32 0.0, %v3545
    %v3547 = vpop.f32.mrf.mxu0
    %3548 = vmatprep.mubr.bf16.mxu0 0
    %3549 = vmatmul.mubr.bf16.gmra.mxu0 %v3368
    %v3550 = vpop.f32.mrf.mxu0
    %v3551 = vadd.f32 0.0, %v3550
    %v3552 = vpop.f32.mrf.mxu0
    %v3553 = vpop.f32.mrf.mxu0
    %v3554 = vadd.f32 0.0, %v3553
    %v3555 = vpop.f32.mrf.mxu0
    %3556 = vmatprep.mubr.bf16.mxu0 0
    %3557 = vmatmul.mubr.bf16.gmra.mxu0 %v3371
    %v3558 = vpop.f32.mrf.mxu0
    %v3559 = vadd.f32 0.0, %v3558
    %v3560 = vpop.f32.mrf.mxu0
    %v3561 = vpop.f32.mrf.mxu0
    %v3562 = vadd.f32 0.0, %v3561
    %v3563 = vpop.f32.mrf.mxu0
    %3564 = vmatprep.mubr.bf16.mxu0 0
    %3565 = vmatmul.mubr.bf16.gmra.mxu0 %v3374
    %v3566 = vpop.f32.mrf.mxu0
    %v3567 = vadd.f32 0.0, %v3566
    %v3568 = vpop.f32.mrf.mxu0
    %v3569 = vpop.f32.mrf.mxu0
    %v3570 = vadd.f32 0.0, %v3569
    %v3571 = vpop.f32.mrf.mxu0
    %3572 = vmatprep.mubr.bf16.mxu0 0
    %3573 = vmatmul.mubr.bf16.gmra.mxu0 %v3377
    %v3574 = vpop.f32.mrf.mxu0
    %v3575 = vadd.f32 0.0, %v3574
    %v3576 = vpop.f32.mrf.mxu0
    %v3577 = vpop.f32.mrf.mxu0
    %v3578 = vadd.f32 0.0, %v3577
    %v3579 = vpop.f32.mrf.mxu0
    %3580 = vmatprep.mubr.bf16.mxu0 0
    %3581 = vmatmul.mubr.bf16.gmra.mxu0 %v3380
    %v3582 = vpop.f32.mrf.mxu0
    %v3583 = vadd.f32 0.0, %v3582
    %v3584 = vpop.f32.mrf.mxu0
    %v3585 = vpop.f32.mrf.mxu0
    %v3586 = vadd.f32 0.0, %v3585
    %v3587 = vpop.f32.mrf.mxu0
    %3588 = vdwg.mxu0
    %v3589 = vpack.c.bf16 %v3332, %v3329
    %v3590 = vpack.c.bf16 %v3340, %v3337
    %v3591 = vpack.c.bf16 %v3423, %v3420
    %v3592 = vpack.c.bf16 %v3431, %v3428
    %v3593 = vpack.c.bf16 %v3439, %v3436
    %v3594 = vpack.c.bf16 %v3447, %v3444
    %v3595 = vpack.c.bf16 %v3455, %v3452
    %v3596 = vpack.c.bf16 %v3463, %v3460
    %v3597 = vpack.c.bf16 %v3471, %v3468
    %v3598 = vpack.c.bf16 %v3479, %v3476
    %v3599 = vpack.c.bf16 %v3530, %v3527
    %v3600 = vpack.c.bf16 %v3538, %v3535
    %v3601 = vpack.c.bf16 %v3546, %v3543
    %v3602 = vpack.c.bf16 %v3554, %v3551
    %v3603 = vpack.c.bf16 %v3562, %v3559
    %v3604 = vpack.c.bf16 %v3570, %v3567
    %v3605 = vpack.c.bf16 %v3578, %v3575
    %v3606 = vpack.c.bf16 %v3586, %v3583
    %v3608 = vsel %vm701, %v3589, 0
    %v3611 = vsel %vm701, %v3591, 0
    %v3614 = vsel %vm701, %v3592, 0
    %v3617 = vsel %vm701, %v3593, 0
    %v3620 = vsel %vm701, %v3594, 0
    %3622 = vmatprep.subr.bf16.mxu0 0
    %3623 = vmatpush1.bf16.xpose.msra.mxu0 0
    %3624 = vmatprep.subr.bf16.mxu0 0
    %3625 = vmatpush1.bf16.xpose.msra.mxu0 0
    %3626 = vmatprep.subr.bf16.mxu0 0
    %3627 = vmatpush1.bf16.xpose.msra.mxu0 0
    %3628 = vmatprep.subr.bf16.mxu0 0
    %3629 = vmatpush1.bf16.xpose.msra.mxu0 0
    %3630 = vmatprep.subr.bf16.mxu0 0
    %3631 = vmatpush1.bf16.xpose.msra.mxu0 %v3620
    %3632 = vmatprep.subr.bf16.mxu0 0
    %3633 = vmatpush1.bf16.xpose.msra.mxu0 %v3617
    %3634 = vmatprep.subr.bf16.mxu0 0
    %3635 = vmatpush1.bf16.xpose.msra.mxu0 %v3614
    %3636 = vmatprep.subr.bf16.mxu0 0
    %3637 = vmatpush1.bf16.xpose.msra.mxu0 %v3611
    %3638 = vmatprep.subr.bf16.mxu0 0
    %3639 = vmatpush2.bf16.xpose.msra.mxu0 0
    %3640 = vmatprep.subr.bf16.mxu0 0
    %3641 = vmatpush2.bf16.xpose.msra.mxu0 0
    %3642 = vmatprep.subr.bf16.mxu0 0
    %3643 = vmatpush2.bf16.xpose.msra.mxu0 0
    %3644 = vmatprep.subr.bf16.mxu0 0
    %3645 = vmatpush2.bf16.xpose.msra.mxu0 0
    %3646 = vmatprep.subr.bf16.mxu0 0
    %3647 = vmatpush2.bf16.xpose.msra.mxu0 0
    %3648 = vmatprep.subr.bf16.mxu0 0
    %3649 = vmatpush2.bf16.xpose.msra.mxu0 0
    %3650 = vmatprep.subr.bf16.mxu0 0
    %3651 = vmatpush2.bf16.xpose.msra.mxu0 0
    %3652 = vmatprep.subr.bf16.mxu0 0
    %3653 = vmatpush2.bf16.xpose.msra.mxu0 0
    %3654 = vmatprep.mubr.bf16.mxu0 0
    %3655 = vmatmul.mubr.bf16.gmra.mxu0 %v3608
    %v3656 = vpop.f32.mrf.mxu0
    %v3657 = vadd.f32 0.0, %v3656
    %v3658 = vpop.f32.mrf.mxu0
    %v3659 = vpop.f32.mrf.mxu0
    %v3660 = vadd.f32 0.0, %v3659
    %v3661 = vpop.f32.mrf.mxu0
    %3662 = vdwg.mxu0
    %v3664 = vsel %vm701, %v3590, 0
    %v3667 = vsel %vm701, %v3595, 0
    %v3670 = vsel %vm701, %v3596, 0
    %v3673 = vsel %vm701, %v3597, 0
    %v3676 = vsel %vm701, %v3598, 0
    %3678 = vmatprep.subr.bf16.mxu0 0
    %3679 = vmatpush1.bf16.xpose.msra.mxu0 0
    %3680 = vmatprep.subr.bf16.mxu0 0
    %3681 = vmatpush1.bf16.xpose.msra.mxu0 0
    %3682 = vmatprep.subr.bf16.mxu0 0
    %3683 = vmatpush1.bf16.xpose.msra.mxu0 0
    %3684 = vmatprep.subr.bf16.mxu0 0
    %3685 = vmatpush1.bf16.xpose.msra.mxu0 0
    %3686 = vmatprep.subr.bf16.mxu0 0
    %3687 = vmatpush1.bf16.xpose.msra.mxu0 %v3676
    %3688 = vmatprep.subr.bf16.mxu0 0
    %3689 = vmatpush1.bf16.xpose.msra.mxu0 %v3673
    %3690 = vmatprep.subr.bf16.mxu0 0
    %3691 = vmatpush1.bf16.xpose.msra.mxu0 %v3670
    %3692 = vmatprep.subr.bf16.mxu0 0
    %3693 = vmatpush1.bf16.xpose.msra.mxu0 %v3667
    %3694 = vmatprep.subr.bf16.mxu0 0
    %3695 = vmatpush2.bf16.xpose.msra.mxu0 0
    %3696 = vmatprep.subr.bf16.mxu0 0
    %3697 = vmatpush2.bf16.xpose.msra.mxu0 0
    %3698 = vmatprep.subr.bf16.mxu0 0
    %3699 = vmatpush2.bf16.xpose.msra.mxu0 0
    %3700 = vmatprep.subr.bf16.mxu0 0
    %3701 = vmatpush2.bf16.xpose.msra.mxu0 0
    %3702 = vmatprep.subr.bf16.mxu0 0
    %3703 = vmatpush2.bf16.xpose.msra.mxu0 0
    %3704 = vmatprep.subr.bf16.mxu0 0
    %3705 = vmatpush2.bf16.xpose.msra.mxu0 0
    %3706 = vmatprep.subr.bf16.mxu0 0
    %3707 = vmatpush2.bf16.xpose.msra.mxu0 0
    %3708 = vmatprep.subr.bf16.mxu0 0
    %3709 = vmatpush2.bf16.xpose.msra.mxu0 0
    %3710 = vmatprep.mubr.bf16.mxu0 0
    %3711 = vmatmul.mubr.bf16.gmra.mxu0 %v3664
    %v3712 = vpop.f32.mrf.mxu0
    %v3713 = vadd.f32 0.0, %v3712
    %v3714 = vpop.f32.mrf.mxu0
    %v3715 = vpop.f32.mrf.mxu0
    %v3716 = vadd.f32 0.0, %v3715
    %v3717 = vpop.f32.mrf.mxu0
    %3718 = vdwg.mxu0
    %v3719 = vmul.f32 %v3657, 0.25
    %v3720 = vmul.f32 %v3660, 0.25
    %v3721 = vmul.f32 %v3713, 0.25
    %v3722 = vmul.f32 %v3716, 0.25
    %v3723 = vsel %vm818, %v3719, -inf
    %3724 = vmax.xlane.f32.xlu0 %v3723
    %v3725 = vpop.xlane.xlu0 %3724
    %v3726 = vsel %vm818, %v3720, -inf
    %3727 = vmax.xlane.f32.xlu0 %v3726
    %v3728 = vpop.xlane.xlu0 %3727
    %v3729 = vsel %vm818, %v3721, -inf
    %3730 = vmax.xlane.f32.xlu0 %v3729
    %v3731 = vpop.xlane.xlu0 %3730
    %v3732 = vsel %vm818, %v3722, -inf
    %3733 = vmax.xlane.f32.xlu0 %v3732
    %v3734 = vpop.xlane.xlu0 %3733
    %v3735 = vsub.f32 %v3719, %v3725
    %v3736 = vsub.f32 %v3720, %v3728
    %v3737 = vsub.f32 %v3721, %v3731
    %v3738 = vsub.f32 %v3722, %v3734
    %v3739 = vmul.f32 %v3735, 1.442695
    %v3740 = vpow.pop %v3739
    %v3741 = vmul.f32 %v3736, 1.442695
    %v3742 = vpow.pop %v3741
    %v3743 = vmul.f32 %v3737, 1.442695
    %v3744 = vpow.pop %v3743
    %v3745 = vmul.f32 %v3738, 1.442695
    %v3746 = vpow.pop %v3745
    %v3747 = vsel %vm818, %v3740, 0.0
    %3748 = vadd.xlane.f32.xlu0 %v3747
    %v3749 = vpop.xlane.xlu0 %3748
    %v3750 = vsel %vm818, %v3742, 0.0
    %3751 = vadd.xlane.f32.xlu0 %v3750
    %v3752 = vpop.xlane.xlu0 %3751
    %v3753 = vsel %vm818, %v3744, 0.0
    %3754 = vadd.xlane.f32.xlu0 %v3753
    %v3755 = vpop.xlane.xlu0 %3754
    %v3756 = vsel %vm818, %v3746, 0.0
    %3757 = vadd.xlane.f32.xlu0 %v3756
    %v3758 = vpop.xlane.xlu0 %3757
    %v3759 = vrcp.pop %v3749
    %v3760 = vrcp.pop %v3752
    %v3761 = vrcp.pop %v3755
    %v3762 = vrcp.pop %v3758
    %v3763 = vmul.f32 %v3740, %v3759
    %v3764 = vmul.f32 %v3742, %v3760
    %v3765 = vmul.f32 %v3744, %v3761
    %v3766 = vmul.f32 %v3746, %v3762
    %v3767 = vpack.c.bf16 %v3764, %v3763
    %v3768 = vpack.c.bf16 %v3766, %v3765
    %v3770 = vsel %vm818, %v3767, 0
    %3772 = vmatprep.subr.bf16.mxu0 0
    %3773 = vmatpush1.bf16.msra.mxu0 0
    %3774 = vmatprep.subr.bf16.mxu0 0
    %3775 = vmatpush1.bf16.msra.mxu0 0
    %3776 = vmatprep.subr.bf16.mxu0 0
    %3777 = vmatpush1.bf16.msra.mxu0 0
    %3778 = vmatprep.subr.bf16.mxu0 0
    %3779 = vmatpush1.bf16.msra.mxu0 0
    %3780 = vmatprep.subr.bf16.mxu0 0
    %3781 = vmatpush1.bf16.msra.mxu0 %v3602
    %3782 = vmatprep.subr.bf16.mxu0 0
    %3783 = vmatpush1.bf16.msra.mxu0 %v3601
    %3784 = vmatprep.subr.bf16.mxu0 0
    %3785 = vmatpush1.bf16.msra.mxu0 %v3600
    %3786 = vmatprep.subr.bf16.mxu0 0
    %3787 = vmatpush1.bf16.msra.mxu0 %v3599
    %3788 = vmatprep.subr.bf16.mxu0 0
    %3789 = vmatpush2.bf16.msra.mxu0 0
    %3790 = vmatprep.subr.bf16.mxu0 0
    %3791 = vmatpush2.bf16.msra.mxu0 0
    %3792 = vmatprep.subr.bf16.mxu0 0
    %3793 = vmatpush2.bf16.msra.mxu0 0
    %3794 = vmatprep.subr.bf16.mxu0 0
    %3795 = vmatpush2.bf16.msra.mxu0 0
    %3796 = vmatprep.subr.bf16.mxu0 0
    %3797 = vmatpush2.bf16.msra.mxu0 0
    %3798 = vmatprep.subr.bf16.mxu0 0
    %3799 = vmatpush2.bf16.msra.mxu0 0
    %3800 = vmatprep.subr.bf16.mxu0 0
    %3801 = vmatpush2.bf16.msra.mxu0 0
    %3802 = vmatprep.subr.bf16.mxu0 0
    %3803 = vmatpush2.bf16.msra.mxu0 0
    %3804 = vmatprep.mubr.bf16.mxu0 0
    %3805 = vmatmul.mubr.bf16.gmra.mxu0 %v3770
    %v3806 = vpop.f32.mrf.mxu0
    %v3807 = vadd.f32 0.0, %v3806
    %v3808 = vpop.f32.mrf.mxu0
    %v3809 = vpop.f32.mrf.mxu0
    %v3810 = vadd.f32 0.0, %v3809
    %v3811 = vpop.f32.mrf.mxu0
    %3812 = vdwg.mxu0
    %v3814 = vsel %vm818, %v3768, 0
    %3816 = vmatprep.subr.bf16.mxu0 0
    %3817 = vmatpush1.bf16.msra.mxu0 0
    %3818 = vmatprep.subr.bf16.mxu0 0
    %3819 = vmatpush1.bf16.msra.mxu0 0
    %3820 = vmatprep.subr.bf16.mxu0 0
    %3821 = vmatpush1.bf16.msra.mxu0 0
    %3822 = vmatprep.subr.bf16.mxu0 0
    %3823 = vmatpush1.bf16.msra.mxu0 0
    %3824 = vmatprep.subr.bf16.mxu0 0
    %3825 = vmatpush1.bf16.msra.mxu0 %v3606
    %3826 = vmatprep.subr.bf16.mxu0 0
    %3827 = vmatpush1.bf16.msra.mxu0 %v3605
    %3828 = vmatprep.subr.bf16.mxu0 0
    %3829 = vmatpush1.bf16.msra.mxu0 %v3604
    %3830 = vmatprep.subr.bf16.mxu0 0
    %3831 = vmatpush1.bf16.msra.mxu0 %v3603
    %3832 = vmatprep.subr.bf16.mxu0 0
    %3833 = vmatpush2.bf16.msra.mxu0 0
    %3834 = vmatprep.subr.bf16.mxu0 0
    %3835 = vmatpush2.bf16.msra.mxu0 0
    %3836 = vmatprep.subr.bf16.mxu0 0
    %3837 = vmatpush2.bf16.msra.mxu0 0
    %3838 = vmatprep.subr.bf16.mxu0 0
    %3839 = vmatpush2.bf16.msra.mxu0 0
    %3840 = vmatprep.subr.bf16.mxu0 0
    %3841 = vmatpush2.bf16.msra.mxu0 0
    %3842 = vmatprep.subr.bf16.mxu0 0
    %3843 = vmatpush2.bf16.msra.mxu0 0
    %3844 = vmatprep.subr.bf16.mxu0 0
    %3845 = vmatpush2.bf16.msra.mxu0 0
    %3846 = vmatprep.subr.bf16.mxu0 0
    %3847 = vmatpush2.bf16.msra.mxu0 0
    %3848 = vmatprep.mubr.bf16.mxu0 0
    %3849 = vmatmul.mubr.bf16.gmra.mxu0 %v3814
    %v3850 = vpop.f32.mrf.mxu0
    %v3851 = vadd.f32 0.0, %v3850
    %v3852 = vpop.f32.mrf.mxu0
    %v3853 = vpop.f32.mrf.mxu0
    %v3854 = vadd.f32 0.0, %v3853
    %v3855 = vpop.f32.mrf.mxu0
    %3856 = vdwg.mxu0
    %v3857 = vpack.c.bf16 %v3810, %v3807
    %v3858 = vpack.c.bf16 %v3854, %v3851
    %v3859 = vld [vmem:[%s2 + $0x148] sm:$0xf]
    %v3860 = vld [vmem:[%s2 + $0x14c] sm:$0xf]
    %v3861 = vld [vmem:[%s3 + $0xb0] sm:$0x1]
    %v3862 = vlaneseq
    %v3863 = vshrl.u32 %v3862, 7
    %v3864 = vsub.s32 0, %v3863
    %v3865 = vrot.slane %v3861, %v3864
    %v3868 = vunpack.c.l.b16 %v3859
    %v3869 = vunpack.c.l.b16 %v3860
    %v3870 = vpack.c.b16 %v3869, %v3868
    %v3873 = vsel %vm701, %v3857, 0
    %v3876 = vsel %vm701, %v3858, 0
    %3878 = vmatprep.subr.bf16.mxu0 0
    %3879 = vmatpush1.bf16.msra.mxu0 0
    %3880 = vmatprep.subr.bf16.mxu0 0
    %3881 = vmatpush1.bf16.msra.mxu0 0
    %3882 = vmatprep.subr.bf16.mxu0 0
    %3883 = vmatpush1.bf16.msra.mxu0 0
    %3884 = vmatprep.subr.bf16.mxu0 0
    %3885 = vmatpush1.bf16.msra.mxu0 0
    %3886 = vmatprep.subr.bf16.mxu0 0
    %3887 = vmatpush1.bf16.msra.mxu0 0
    %3888 = vmatprep.subr.bf16.mxu0 0
    %3889 = vmatpush1.bf16.msra.mxu0 0
    %3890 = vmatprep.subr.bf16.mxu0 0
    %3891 = vmatpush1.bf16.msra.mxu0 0
    %3892 = vmatprep.subr.bf16.mxu0 0
    %3893 = vmatpush1.bf16.msra.mxu0 %v3870
    %3894 = vmatprep.subr.bf16.mxu0 0
    %3895 = vmatpush2.bf16.msra.mxu0 0
    %3896 = vmatprep.subr.bf16.mxu0 0
    %3897 = vmatpush2.bf16.msra.mxu0 0
    %3898 = vmatprep.subr.bf16.mxu0 0
    %3899 = vmatpush2.bf16.msra.mxu0 0
    %3900 = vmatprep.subr.bf16.mxu0 0
    %3901 = vmatpush2.bf16.msra.mxu0 0
    %3902 = vmatprep.subr.bf16.mxu0 0
    %3903 = vmatpush2.bf16.msra.mxu0 0
    %3904 = vmatprep.subr.bf16.mxu0 0
    %3905 = vmatpush2.bf16.msra.mxu0 0
    %3906 = vmatprep.subr.bf16.mxu0 0
    %3907 = vmatpush2.bf16.msra.mxu0 0
    %3908 = vmatprep.subr.bf16.mxu0 0
    %3909 = vmatpush2.bf16.msra.mxu0 0
    %3910 = vmatprep.mubr.bf16.mxu0 0
    %3911 = vmatmul.mubr.bf16.gmra.mxu0 %v3873
    %v3912 = vpop.f32.mrf.mxu0
    %v3913 = vadd.f32 %v3865, %v3912
    %v3914 = vpop.f32.mrf.mxu0
    %v3915 = vpop.f32.mrf.mxu0
    %v3916 = vadd.f32 %v3865, %v3915
    %v3917 = vpop.f32.mrf.mxu0
    %3918 = vmatprep.mubr.bf16.mxu0 0
    %3919 = vmatmul.mubr.bf16.gmra.mxu0 %v3876
    %v3920 = vpop.f32.mrf.mxu0
    %v3921 = vadd.f32 %v3865, %v3920
    %v3922 = vpop.f32.mrf.mxu0
    %v3923 = vpop.f32.mrf.mxu0
    %v3924 = vadd.f32 %v3865, %v3923
    %v3925 = vpop.f32.mrf.mxu0
    %3926 = vdwg.mxu0
    %v3927 = vadd.f32 %v3154, %v3913
    %v3928 = vadd.f32 %v3155, %v3916
    %v3929 = vadd.f32 %v3156, %v3921
    %v3930 = vadd.f32 %v3157, %v3924
    %v3931 = vld [vmem:[%s3 + $0xb8] sm:$0x1]
    %v3932 = vld [vmem:[%s3 + $0xc0] sm:$0x1]
    %v3933 = vsel %vm41, %v3927, 0.0
    %3934 = vadd.xlane.f32.xlu0 %v3933
    %v3935 = vpop.xlane.xlu0 %3934
    %v3936 = vsel %vm41, %v3928, 0.0
    %3937 = vadd.xlane.f32.xlu0 %v3936
    %v3938 = vpop.xlane.xlu0 %3937
    %v3939 = vsel %vm41, %v3929, 0.0
    %3940 = vadd.xlane.f32.xlu0 %v3939
    %v3941 = vpop.xlane.xlu0 %3940
    %v3942 = vsel %vm41, %v3930, 0.0
    %3943 = vadd.xlane.f32.xlu0 %v3942
    %v3944 = vpop.xlane.xlu0 %3943
    %v3945 = vmul.f32 %v3935, %v54
    %v3946 = vmul.f32 %v3938, %v54
    %v3947 = vmul.f32 %v3941, %v54
    %v3948 = vmul.f32 %v3944, %v54
    %v3949 = vsub.f32 %v3927, %v3945
    %v3950 = vsub.f32 %v3928, %v3946
    %v3951 = vsub.f32 %v3929, %v3947
    %v3952 = vsub.f32 %v3930, %v3948
    %v3953 = vmul.f32 %v3949, %v3949
    %v3954 = vmul.f32 %v3950, %v3950
    %v3955 = vmul.f32 %v3951, %v3951
    %v3956 = vmul.f32 %v3952, %v3952
    %v3957 = vsel %vm41, %v3953, 0.0
    %3958 = vadd.xlane.f32.xlu0 %v3957
    %v3959 = vpop.xlane.xlu0 %3958
    %v3960 = vsel %vm41, %v3954, 0.0
    %3961 = vadd.xlane.f32.xlu0 %v3960
    %v3962 = vpop.xlane.xlu0 %3961
    %v3963 = vsel %vm41, %v3955, 0.0
    %3964 = vadd.xlane.f32.xlu0 %v3963
    %v3965 = vpop.xlane.xlu0 %3964
    %v3966 = vsel %vm41, %v3956, 0.0
    %3967 = vadd.xlane.f32.xlu0 %v3966
    %v3968 = vpop.xlane.xlu0 %3967
    %v3969 = vmul.f32 %v3959, %v54
    %v3970 = vmul.f32 %v3962, %v54
    %v3971 = vmul.f32 %v3965, %v54
    %v3972 = vmul.f32 %v3968, %v54
    %v3973 = vadd.f32 %v3969, 1e-05
    %v3974 = vadd.f32 %v3970, 1e-05
    %v3975 = vadd.f32 %v3971, 1e-05
    %v3976 = vadd.f32 %v3972, 1e-05
    %v3977 = vrsqrt.pop %v3973
    %v3978 = vrsqrt.pop %v3974
    %v3979 = vrsqrt.pop %v3975
    %v3980 = vrsqrt.pop %v3976
    %v3981 = vmul.f32 %v3949, %v3977
    %v3982 = vmul.f32 %v3950, %v3978
    %v3983 = vmul.f32 %v3951, %v3979
    %v3984 = vmul.f32 %v3952, %v3980
    %v3985 = vlaneseq
    %v3986 = vshrl.u32 %v3985, 7
    %v3987 = vsub.s32 0, %v3986
    %v3988 = vrot.slane %v3931, %v3987
    %v3989 = vmul.f32 %v3981, %v3988
    %v3990 = vmul.f32 %v3982, %v3988
    %v3991 = vmul.f32 %v3983, %v3988
    %v3992 = vmul.f32 %v3984, %v3988
    %v3993 = vlaneseq
    %v3994 = vshrl.u32 %v3993, 7
    %v3995 = vsub.s32 0, %v3994
    %v3996 = vrot.slane %v3932, %v3995
    %v3997 = vadd.f32 %v3989, %v3996
    %v3998 = vadd.f32 %v3990, %v3996
    %v3999 = vadd.f32 %v3991, %v3996
    %v4000 = vadd.f32 %v3992, %v3996
    %v4001 = vpack.c.bf16 %v3998, %v3997
    %v4002 = vpack.c.bf16 %v4000, %v3999
    %v4003 = vld [vmem:[%s2 + $0x150] sm:$0xf]
    %v4004 = vld [vmem:[%s2 + $0x154] sm:$0xf]
    %v4005 = vld [vmem:[%s2 + $0x158] sm:$0xf]
    %v4006 = vld [vmem:[%s2 + $0x15c] sm:$0xf]
    %v4007 = vld [vmem:[%s3 + $0xc8] sm:$0x1]
    %v4008 = vlaneseq
    %v4009 = vshrl.u32 %v4008, 7
    %v4010 = vsub.s32 0, %v4009
    %v4011 = vrot.slane %v4007, %v4010
    %v4016 = vunpack.c.l.b16 %v4003
    %v4017 = vunpack.c.l.b16 %v4004
    %v4018 = vunpack.c.l.b16 %v4005
    %v4019 = vunpack.c.l.b16 %v4006
    %v4020 = vpack.c.b16 %v4017, %v4016
    %v4021 = vpack.c.b16 %v4019, %v4018
    %v4025 = vsel %vm41, %v4001, 0
    %v4028 = vsel %vm41, %v4002, 0
    %4030 = vmatprep.subr.bf16.mxu0 0
    %4031 = vmatpush1.bf16.msra.mxu0 0
    %4032 = vmatprep.subr.bf16.mxu0 0
    %4033 = vmatpush1.bf16.msra.mxu0 0
    %4034 = vmatprep.subr.bf16.mxu0 0
    %4035 = vmatpush1.bf16.msra.mxu0 0
    %4036 = vmatprep.subr.bf16.mxu0 0
    %4037 = vmatpush1.bf16.msra.mxu0 0
    %4038 = vmatprep.subr.bf16.mxu0 0
    %4039 = vmatpush1.bf16.msra.mxu0 0
    %4040 = vmatprep.subr.bf16.mxu0 0
    %4041 = vmatpush1.bf16.msra.mxu0 0
    %4042 = vmatprep.subr.bf16.mxu0 0
    %4043 = vmatpush1.bf16.msra.mxu0 %v4021
    %4044 = vmatprep.subr.bf16.mxu0 0
    %4045 = vmatpush1.bf16.msra.mxu0 %v4020
    %4046 = vmatprep.subr.bf16.mxu0 0
    %4047 = vmatpush2.bf16.msra.mxu0 0
    %4048 = vmatprep.subr.bf16.mxu0 0
    %4049 = vmatpush2.bf16.msra.mxu0 0
    %4050 = vmatprep.subr.bf16.mxu0 0
    %4051 = vmatpush2.bf16.msra.mxu0 0
    %4052 = vmatprep.subr.bf16.mxu0 0
    %4053 = vmatpush2.bf16.msra.mxu0 0
    %4054 = vmatprep.subr.bf16.mxu0 0
    %4055 = vmatpush2.bf16.msra.mxu0 0
    %4056 = vmatprep.subr.bf16.mxu0 0
    %4057 = vmatpush2.bf16.msra.mxu0 0
    %4058 = vmatprep.subr.bf16.mxu0 0
    %4059 = vmatpush2.bf16.msra.mxu0 0
    %4060 = vmatprep.subr.bf16.mxu0 0
    %4061 = vmatpush2.bf16.msra.mxu0 0
    %4062 = vmatprep.mubr.bf16.mxu0 0
    %4063 = vmatmul.mubr.bf16.gmra.mxu0 %v4025
    %v4064 = vpop.f32.mrf.mxu0
    %v4065 = vadd.f32 %v4011, %v4064
    %v4066 = vpop.f32.mrf.mxu0
    %v4067 = vpop.f32.mrf.mxu0
    %v4068 = vadd.f32 %v4011, %v4067
    %v4069 = vpop.f32.mrf.mxu0
    %4070 = vmatprep.mubr.bf16.mxu0 0
    %4071 = vmatmul.mubr.bf16.gmra.mxu0 %v4028
    %v4072 = vpop.f32.mrf.mxu0
    %v4073 = vadd.f32 %v4011, %v4072
    %v4074 = vpop.f32.mrf.mxu0
    %v4075 = vpop.f32.mrf.mxu0
    %v4076 = vadd.f32 %v4011, %v4075
    %v4077 = vpop.f32.mrf.mxu0
    %4078 = vdwg.mxu0
    %v4079 = vld [vmem:[%s2 + $0x160] sm:$0xf]
    %v4080 = vld [vmem:[%s2 + $0x164] sm:$0xf]
    %v4081 = vld [vmem:[%s2 + $0x168] sm:$0xf]
    %v4082 = vld [vmem:[%s2 + $0x16c] sm:$0xf]
    %v4083 = vld [vmem:[%s3 + $0xd0] sm:$0x1]
    %v4084 = vlaneseq
    %v4085 = vshrl.u32 %v4084, 7
    %v4086 = vsub.s32 0, %v4085
    %v4087 = vrot.slane %v4083, %v4086
    %v4092 = vunpack.c.l.b16 %v4079
    %v4093 = vunpack.c.l.b16 %v4080
    %v4094 = vunpack.c.l.b16 %v4081
    %v4095 = vunpack.c.l.b16 %v4082
    %v4096 = vpack.c.b16 %v4093, %v4092
    %v4097 = vpack.c.b16 %v4095, %v4094
    %4100 = vmatprep.subr.bf16.mxu0 0
    %4101 = vmatpush1.bf16.msra.mxu0 0
    %4102 = vmatprep.subr.bf16.mxu0 0
    %4103 = vmatpush1.bf16.msra.mxu0 0
    %4104 = vmatprep.subr.bf16.mxu0 0
    %4105 = vmatpush1.bf16.msra.mxu0 0
    %4106 = vmatprep.subr.bf16.mxu0 0
    %4107 = vmatpush1.bf16.msra.mxu0 0
    %4108 = vmatprep.subr.bf16.mxu0 0
    %4109 = vmatpush1.bf16.msra.mxu0 0
    %4110 = vmatprep.subr.bf16.mxu0 0
    %4111 = vmatpush1.bf16.msra.mxu0 0
    %4112 = vmatprep.subr.bf16.mxu0 0
    %4113 = vmatpush1.bf16.msra.mxu0 %v4097
    %4114 = vmatprep.subr.bf16.mxu0 0
    %4115 = vmatpush1.bf16.msra.mxu0 %v4096
    %4116 = vmatprep.subr.bf16.mxu0 0
    %4117 = vmatpush2.bf16.msra.mxu0 0
    %4118 = vmatprep.subr.bf16.mxu0 0
    %4119 = vmatpush2.bf16.msra.mxu0 0
    %4120 = vmatprep.subr.bf16.mxu0 0
    %4121 = vmatpush2.bf16.msra.mxu0 0
    %4122 = vmatprep.subr.bf16.mxu0 0
    %4123 = vmatpush2.bf16.msra.mxu0 0
    %4124 = vmatprep.subr.bf16.mxu0 0
    %4125 = vmatpush2.bf16.msra.mxu0 0
    %4126 = vmatprep.subr.bf16.mxu0 0
    %4127 = vmatpush2.bf16.msra.mxu0 0
    %4128 = vmatprep.subr.bf16.mxu0 0
    %4129 = vmatpush2.bf16.msra.mxu0 0
    %4130 = vmatprep.subr.bf16.mxu0 0
    %4131 = vmatpush2.bf16.msra.mxu0 0
    %4132 = vmatprep.mubr.bf16.mxu0 0
    %4133 = vmatmul.mubr.bf16.gmra.mxu0 %v4025
    %v4134 = vpop.f32.mrf.mxu0
    %v4135 = vadd.f32 %v4087, %v4134
    %v4136 = vpop.f32.mrf.mxu0
    %v4137 = vpop.f32.mrf.mxu0
    %v4138 = vadd.f32 %v4087, %v4137
    %v4139 = vpop.f32.mrf.mxu0
    %4140 = vmatprep.mubr.bf16.mxu0 0
    %4141 = vmatmul.mubr.bf16.gmra.mxu0 %v4028
    %v4142 = vpop.f32.mrf.mxu0
    %v4143 = vadd.f32 %v4087, %v4142
    %v4144 = vpop.f32.mrf.mxu0
    %v4145 = vpop.f32.mrf.mxu0
    %v4146 = vadd.f32 %v4087, %v4145
    %v4147 = vpop.f32.mrf.mxu0
    %4148 = vdwg.mxu0
    %v4149 = vmul.f32 %v4135, 0.5
    %v4150 = vmul.f32 %v4138, 0.5
    %v4151 = vmul.f32 %v4143, 0.5
    %v4152 = vmul.f32 %v4146, 0.5
    %v4153 = vmul.f32 %v4135, 0.70710677
    %v4154 = vmul.f32 %v4138, 0.70710677
    %v4155 = vmul.f32 %v4143, 0.70710677
    %v4156 = vmul.f32 %v4146, 0.70710677
    %v4157 = verf.f32.pop %v4153
    %v4158 = verf.f32.pop %v4154
    %v4159 = verf.f32.pop %v4155
    %v4160 = verf.f32.pop %v4156
    %v4161 = vadd.f32 %v4157, 1.0
    %v4162 = vadd.f32 %v4158, 1.0
    %v4163 = vadd.f32 %v4159, 1.0
    %v4164 = vadd.f32 %v4160, 1.0
    %v4165 = vmul.f32 %v4149, %v4161
    %v4166 = vmul.f32 %v4150, %v4162
    %v4167 = vmul.f32 %v4151, %v4163
    %v4168 = vmul.f32 %v4152, %v4164
    %v4169 = vmul.f32 %v4065, %v4165
    %v4170 = vmul.f32 %v4068, %v4166
    %v4171 = vmul.f32 %v4073, %v4167
    %v4172 = vmul.f32 %v4076, %v4168
    %v4173 = vpack.c.bf16 %v4170, %v4169
    %v4174 = vpack.c.bf16 %v4172, %v4171
    %v4175 = vld [vmem:[%s2 + $0x170] sm:$0xf]
    %v4176 = vld [vmem:[%s2 + $0x174] sm:$0xf]
    %v4177 = vld [vmem:[%s2 + $0x178] sm:$0xf]
    %v4178 = vld [vmem:[%s2 + $0x17c] sm:$0xf]
    %v4179 = vld [vmem:[%s2 + $0x180] sm:$0xf]
    %v4180 = vld [vmem:[%s2 + $0x184] sm:$0xf]
    %v4181 = vld [vmem:[%s2 + $0x188] sm:$0xf]
    %v4182 = vld [vmem:[%s2 + $0x18c] sm:$0xf]
    %v4183 = vld [vmem:[%s2 + $0x190] sm:$0xf]
    %v4184 = vld [vmem:[%s2 + $0x194] sm:$0xf]
    %v4185 = vld [vmem:[%s2 + $0x198] sm:$0xf]
    %v4186 = vld [vmem:[%s2 + $0x19c] sm:$0xf]
    %v4187 = vld [vmem:[%s2 + $0x1a0] sm:$0xf]
    %v4188 = vld [vmem:[%s2 + $0x1a4] sm:$0xf]
    %v4189 = vld [vmem:[%s2 + $0x1a8] sm:$0xf]
    %v4190 = vld [vmem:[%s2 + $0x1ac] sm:$0xf]
    %v4191 = vld [vmem:[%s3 + $0xd8] sm:$0x1]
    %v4192 = vlaneseq
    %v4193 = vshrl.u32 %v4192, 7
    %v4194 = vsub.s32 0, %v4193
    %v4195 = vrot.slane %v4191, %v4194
    %v4212 = vunpack.c.l.b16 %v4175
    %v4213 = vunpack.c.l.b16 %v4176
    %v4214 = vunpack.c.l.b16 %v4177
    %v4215 = vunpack.c.l.b16 %v4178
    %v4216 = vunpack.c.l.b16 %v4179
    %v4217 = vunpack.c.l.b16 %v4180
    %v4218 = vunpack.c.l.b16 %v4181
    %v4219 = vunpack.c.l.b16 %v4182
    %v4220 = vunpack.c.l.b16 %v4183
    %v4221 = vunpack.c.l.b16 %v4184
    %v4222 = vunpack.c.l.b16 %v4185
    %v4223 = vunpack.c.l.b16 %v4186
    %v4224 = vunpack.c.l.b16 %v4187
    %v4225 = vunpack.c.l.b16 %v4188
    %v4226 = vunpack.c.l.b16 %v4189
    %v4227 = vunpack.c.l.b16 %v4190
    %v4228 = vpack.c.b16 %v4213, %v4212
    %v4229 = vpack.c.b16 %v4215, %v4214
    %v4230 = vpack.c.b16 %v4217, %v4216
    %v4231 = vpack.c.b16 %v4219, %v4218
    %v4232 = vpack.c.b16 %v4221, %v4220
    %v4233 = vpack.c.b16 %v4223, %v4222
    %v4234 = vpack.c.b16 %v4225, %v4224
    %v4235 = vpack.c.b16 %v4227, %v4226
    %4244 = vmatprep.subr.bf16.mxu0 0
    %4245 = vmatpush1.bf16.msra.mxu0 %v4235
    %4246 = vmatprep.subr.bf16.mxu0 0
    %4247 = vmatpush1.bf16.msra.mxu0 %v4234
    %4248 = vmatprep.subr.bf16.mxu0 0
    %4249 = vmatpush1.bf16.msra.mxu0 %v4233
    %4250 = vmatprep.subr.bf16.mxu0 0
    %4251 = vmatpush1.bf16.msra.mxu0 %v4232
    %4252 = vmatprep.subr.bf16.mxu0 0
    %4253 = vmatpush1.bf16.msra.mxu0 %v4231
    %4254 = vmatprep.subr.bf16.mxu0 0
    %4255 = vmatpush1.bf16.msra.mxu0 %v4230
    %4256 = vmatprep.subr.bf16.mxu0 0
    %4257 = vmatpush1.bf16.msra.mxu0 %v4229
    %4258 = vmatprep.subr.bf16.mxu0 0
    %4259 = vmatpush1.bf16.msra.mxu0 %v4228
    %4260 = vmatprep.subr.bf16.mxu0 0
    %4261 = vmatpush2.bf16.msra.mxu0 0
    %4262 = vmatprep.subr.bf16.mxu0 0
    %4263 = vmatpush2.bf16.msra.mxu0 0
    %4264 = vmatprep.subr.bf16.mxu0 0
    %4265 = vmatpush2.bf16.msra.mxu0 0
    %4266 = vmatprep.subr.bf16.mxu0 0
    %4267 = vmatpush2.bf16.msra.mxu0 0
    %4268 = vmatprep.subr.bf16.mxu0 0
    %4269 = vmatpush2.bf16.msra.mxu0 0
    %4270 = vmatprep.subr.bf16.mxu0 0
    %4271 = vmatpush2.bf16.msra.mxu0 0
    %4272 = vmatprep.subr.bf16.mxu0 0
    %4273 = vmatpush2.bf16.msra.mxu0 0
    %4274 = vmatprep.subr.bf16.mxu0 0
    %4275 = vmatpush2.bf16.msra.mxu0 0
    %4276 = vmatprep.mubr.bf16.mxu0 0
    %4277 = vmatmul.mubr.bf16.gmra.mxu0 %v4173
    %v4278 = vpop.f32.mrf.mxu0
    %v4279 = vadd.f32 %v4195, %v4278
    %v4280 = vpop.f32.mrf.mxu0
    %v4281 = vpop.f32.mrf.mxu0
    %v4282 = vadd.f32 %v4195, %v4281
    %v4283 = vpop.f32.mrf.mxu0
    %4284 = vmatprep.mubr.bf16.mxu0 0
    %4285 = vmatmul.mubr.bf16.gmra.mxu0 %v4174
    %v4286 = vpop.f32.mrf.mxu0
    %v4287 = vadd.f32 %v4195, %v4286
    %v4288 = vpop.f32.mrf.mxu0
    %v4289 = vpop.f32.mrf.mxu0
    %v4290 = vadd.f32 %v4195, %v4289
    %v4291 = vpop.f32.mrf.mxu0
    %4292 = vdwg.mxu0
    %v4293 = vadd.f32 %v3927, %v4279
    %v4294 = vadd.f32 %v3928, %v4282
    %v4295 = vadd.f32 %v3929, %v4287
    %v4296 = vadd.f32 %v3930, %v4290
    %v4297 = vld [vmem:[%s3 + $0xe0] sm:$0x1]
    %v4298 = vld [vmem:[%s3 + $0xe8] sm:$0x1]
    %v4299 = vsel %vm41, %v4293, 0.0
    %4300 = vadd.xlane.f32.xlu0 %v4299
    %v4301 = vpop.xlane.xlu0 %4300
    %v4302 = vsel %vm41, %v4294, 0.0
    %4303 = vadd.xlane.f32.xlu0 %v4302
    %v4304 = vpop.xlane.xlu0 %4303
    %v4305 = vsel %vm41, %v4295, 0.0
    %4306 = vadd.xlane.f32.xlu0 %v4305
    %v4307 = vpop.xlane.xlu0 %4306
    %v4308 = vsel %vm41, %v4296, 0.0
    %4309 = vadd.xlane.f32.xlu0 %v4308
    %v4310 = vpop.xlane.xlu0 %4309
    %v4311 = vmul.f32 %v4301, %v54
    %v4312 = vmul.f32 %v4304, %v54
    %v4313 = vmul.f32 %v4307, %v54
    %v4314 = vmul.f32 %v4310, %v54
    %v4315 = vsub.f32 %v4293, %v4311
    %v4316 = vsub.f32 %v4294, %v4312
    %v4317 = vsub.f32 %v4295, %v4313
    %v4318 = vsub.f32 %v4296, %v4314
    %v4319 = vmul.f32 %v4315, %v4315
    %v4320 = vmul.f32 %v4316, %v4316
    %v4321 = vmul.f32 %v4317, %v4317
    %v4322 = vmul.f32 %v4318, %v4318
    %v4323 = vsel %vm41, %v4319, 0.0
    %4324 = vadd.xlane.f32.xlu0 %v4323
    %v4325 = vpop.xlane.xlu0 %4324
    %v4326 = vsel %vm41, %v4320, 0.0
    %4327 = vadd.xlane.f32.xlu0 %v4326
    %v4328 = vpop.xlane.xlu0 %4327
    %v4329 = vsel %vm41, %v4321, 0.0
    %4330 = vadd.xlane.f32.xlu0 %v4329
    %v4331 = vpop.xlane.xlu0 %4330
    %v4332 = vsel %vm41, %v4322, 0.0
    %4333 = vadd.xlane.f32.xlu0 %v4332
    %v4334 = vpop.xlane.xlu0 %4333
    %v4335 = vmul.f32 %v4325, %v54
    %v4336 = vmul.f32 %v4328, %v54
    %v4337 = vmul.f32 %v4331, %v54
    %v4338 = vmul.f32 %v4334, %v54
    %v4339 = vadd.f32 %v4335, 1e-05
    %v4340 = vadd.f32 %v4336, 1e-05
    %v4341 = vadd.f32 %v4337, 1e-05
    %v4342 = vadd.f32 %v4338, 1e-05
    %v4343 = vrsqrt.pop %v4339
    %v4344 = vrsqrt.pop %v4340
    %v4345 = vrsqrt.pop %v4341
    %v4346 = vrsqrt.pop %v4342
    %v4347 = vmul.f32 %v4315, %v4343
    %v4348 = vmul.f32 %v4316, %v4344
    %v4349 = vmul.f32 %v4317, %v4345
    %v4350 = vmul.f32 %v4318, %v4346
    %v4351 = vlaneseq
    %v4352 = vshrl.u32 %v4351, 7
    %v4353 = vsub.s32 0, %v4352
    %v4354 = vrot.slane %v4297, %v4353
    %v4355 = vmul.f32 %v4347, %v4354
    %v4356 = vmul.f32 %v4348, %v4354
    %v4357 = vmul.f32 %v4349, %v4354
    %v4358 = vmul.f32 %v4350, %v4354
    %v4359 = vlaneseq
    %v4360 = vshrl.u32 %v4359, 7
    %v4361 = vsub.s32 0, %v4360
    %v4362 = vrot.slane %v4298, %v4361
    %v4363 = vadd.f32 %v4355, %v4362
    %v4364 = vadd.f32 %v4356, %v4362
    %v4365 = vadd.f32 %v4357, %v4362
    %v4366 = vadd.f32 %v4358, %v4362
    %v4367 = vpack.c.bf16 %v4364, %v4363
    %v4368 = vpack.c.bf16 %v4366, %v4365
    %v4369 = vld [vmem:[%s2 + $0x1b0] sm:$0xf]
    %v4370 = vld [vmem:[%s2 + $0x1b4] sm:$0xf]
    %v4371 = vld [vmem:[%s2 + $0x1b8] sm:$0xf]
    %v4372 = vld [vmem:[%s2 + $0x1bc] sm:$0xf]
    %v4377 = vunpack.c.l.b16 %v4369
    %v4378 = vunpack.c.l.b16 %v4370
    %v4379 = vunpack.c.l.b16 %v4371
    %v4380 = vunpack.c.l.b16 %v4372
    %v4381 = vpack.c.b16 %v4378, %v4377
    %v4382 = vpack.c.b16 %v4380, %v4379
    %v4386 = vsel %vm41, %v4367, 0
    %v4389 = vsel %vm41, %v4368, 0
    %4391 = vmatprep.subr.bf16.mxu0 0
    %4392 = vmatpush1.bf16.msra.mxu0 0
    %4393 = vmatprep.subr.bf16.mxu0 0
    %4394 = vmatpush1.bf16.msra.mxu0 0
    %4395 = vmatprep.subr.bf16.mxu0 0
    %4396 = vmatpush1.bf16.msra.mxu0 0
    %4397 = vmatprep.subr.bf16.mxu0 0
    %4398 = vmatpush1.bf16.msra.mxu0 0
    %4399 = vmatprep.subr.bf16.mxu0 0
    %4400 = vmatpush1.bf16.msra.mxu0 0
    %4401 = vmatprep.subr.bf16.mxu0 0
    %4402 = vmatpush1.bf16.msra.mxu0 0
    %4403 = vmatprep.subr.bf16.mxu0 0
    %4404 = vmatpush1.bf16.msra.mxu0 %v4382
    %4405 = vmatprep.subr.bf16.mxu0 0
    %4406 = vmatpush1.bf16.msra.mxu0 %v4381
    %4407 = vmatprep.subr.bf16.mxu0 0
    %4408 = vmatpush2.bf16.msra.mxu0 0
    %4409 = vmatprep.subr.bf16.mxu0 0
    %4410 = vmatpush2.bf16.msra.mxu0 0
    %4411 = vmatprep.subr.bf16.mxu0 0
    %4412 = vmatpush2.bf16.msra.mxu0 0
    %4413 = vmatprep.subr.bf16.mxu0 0
    %4414 = vmatpush2.bf16.msra.mxu0 0
    %4415 = vmatprep.subr.bf16.mxu0 0
    %4416 = vmatpush2.bf16.msra.mxu0 0
    %4417 = vmatprep.subr.bf16.mxu0 0
    %4418 = vmatpush2.bf16.msra.mxu0 0
    %4419 = vmatprep.subr.bf16.mxu0 0
    %4420 = vmatpush2.bf16.msra.mxu0 0
    %4421 = vmatprep.subr.bf16.mxu0 0
    %4422 = vmatpush2.bf16.msra.mxu0 0
    %4423 = vmatprep.mubr.bf16.mxu0 0
    %4424 = vmatmul.mubr.bf16.gmra.mxu0 %v4386
    %v4425 = vpop.f32.mrf.mxu0
    %v4426 = vadd.f32 0.0, %v4425
    %v4427 = vpop.f32.mrf.mxu0
    %v4428 = vpop.f32.mrf.mxu0
    %v4429 = vadd.f32 0.0, %v4428
    %v4430 = vpop.f32.mrf.mxu0
    %4431 = vmatprep.mubr.bf16.mxu0 0
    %4432 = vmatmul.mubr.bf16.gmra.mxu0 %v4389
    %v4433 = vpop.f32.mrf.mxu0
    %v4434 = vadd.f32 0.0, %v4433
    %v4435 = vpop.f32.mrf.mxu0
    %v4436 = vpop.f32.mrf.mxu0
    %v4437 = vadd.f32 0.0, %v4436
    %v4438 = vpop.f32.mrf.mxu0
    %4439 = vdwg.mxu0
    %v4440 = vld [vmem:[%s2 + $0x1c0] sm:$0xf]
    %v4441 = vld [vmem:[%s2 + $0x1c4] sm:$0xf]
    %v4442 = vld [vmem:[%s2 + $0x1c8] sm:$0xf]
    %v4443 = vld [vmem:[%s2 + $0x1cc] sm:$0xf]
    %v4448 = vunpack.c.l.b16 %v4440
    %v4449 = vunpack.c.l.b16 %v4441
    %v4450 = vunpack.c.l.b16 %v4442
    %v4451 = vunpack.c.l.b16 %v4443
    %v4452 = vpack.c.b16 %v4449, %v4448
    %v4453 = vpack.c.b16 %v4451, %v4450
    %4456 = vmatprep.subr.bf16.mxu0 0
    %4457 = vmatpush1.bf16.msra.mxu0 0
    %4458 = vmatprep.subr.bf16.mxu0 0
    %4459 = vmatpush1.bf16.msra.mxu0 0
    %4460 = vmatprep.subr.bf16.mxu0 0
    %4461 = vmatpush1.bf16.msra.mxu0 0
    %4462 = vmatprep.subr.bf16.mxu0 0
    %4463 = vmatpush1.bf16.msra.mxu0 0
    %4464 = vmatprep.subr.bf16.mxu0 0
    %4465 = vmatpush1.bf16.msra.mxu0 0
    %4466 = vmatprep.subr.bf16.mxu0 0
    %4467 = vmatpush1.bf16.msra.mxu0 0
    %4468 = vmatprep.subr.bf16.mxu0 0
    %4469 = vmatpush1.bf16.msra.mxu0 %v4453
    %4470 = vmatprep.subr.bf16.mxu0 0
    %4471 = vmatpush1.bf16.msra.mxu0 %v4452
    %4472 = vmatprep.subr.bf16.mxu0 0
    %4473 = vmatpush2.bf16.msra.mxu0 0
    %4474 = vmatprep.subr.bf16.mxu0 0
    %4475 = vmatpush2.bf16.msra.mxu0 0
    %4476 = vmatprep.subr.bf16.mxu0 0
    %4477 = vmatpush2.bf16.msra.mxu0 0
    %4478 = vmatprep.subr.bf16.mxu0 0
    %4479 = vmatpush2.bf16.msra.mxu0 0
    %4480 = vmatprep.subr.bf16.mxu0 0
    %4481 = vmatpush2.bf16.msra.mxu0 0
    %4482 = vmatprep.subr.bf16.mxu0 0
    %4483 = vmatpush2.bf16.msra.mxu0 0
    %4484 = vmatprep.subr.bf16.mxu0 0
    %4485 = vmatpush2.bf16.msra.mxu0 0
    %4486 = vmatprep.subr.bf16.mxu0 0
    %4487 = vmatpush2.bf16.msra.mxu0 0
    %4488 = vmatprep.mubr.bf16.mxu0 0
    %4489 = vmatmul.mubr.bf16.gmra.mxu0 %v4386
    %v4490 = vpop.f32.mrf.mxu0
    %v4491 = vadd.f32 0.0, %v4490
    %v4492 = vpop.f32.mrf.mxu0
    %v4493 = vpop.f32.mrf.mxu0
    %v4494 = vadd.f32 0.0, %v4493
    %v4495 = vpop.f32.mrf.mxu0
    %4496 = vmatprep.mubr.bf16.mxu0 0
    %4497 = vmatmul.mubr.bf16.gmra.mxu0 %v4389
    %v4498 = vpop.f32.mrf.mxu0
    %v4499 = vadd.f32 0.0, %v4498
    %v4500 = vpop.f32.mrf.mxu0
    %v4501 = vpop.f32.mrf.mxu0
    %v4502 = vadd.f32 0.0, %v4501
    %v4503 = vpop.f32.mrf.mxu0
    %4504 = vdwg.mxu0
    %v4505 = vld [vmem:[%s2 + $0x1d0] sm:$0xf]
    %v4506 = vld [vmem:[%s2 + $0x1d4] sm:$0xf]
    %v4507 = vld [vmem:[%s2 + $0x1d8] sm:$0xf]
    %v4508 = vld [vmem:[%s2 + $0x1dc] sm:$0xf]
    %v4513 = vunpack.c.l.b16 %v4505
    %v4514 = vunpack.c.l.b16 %v4506
    %v4515 = vunpack.c.l.b16 %v4507
    %v4516 = vunpack.c.l.b16 %v4508
    %v4517 = vpack.c.b16 %v4514, %v4513
    %v4518 = vpack.c.b16 %v4516, %v4515
    %4521 = vmatprep.subr.bf16.mxu0 0
    %4522 = vmatpush1.bf16.msra.mxu0 0
    %4523 = vmatprep.subr.bf16.mxu0 0
    %4524 = vmatpush1.bf16.msra.mxu0 0
    %4525 = vmatprep.subr.bf16.mxu0 0
    %4526 = vmatpush1.bf16.msra.mxu0 0
    %4527 = vmatprep.subr.bf16.mxu0 0
    %4528 = vmatpush1.bf16.msra.mxu0 0
    %4529 = vmatprep.subr.bf16.mxu0 0
    %4530 = vmatpush1.bf16.msra.mxu0 0
    %4531 = vmatprep.subr.bf16.mxu0 0
    %4532 = vmatpush1.bf16.msra.mxu0 0
    %4533 = vmatprep.subr.bf16.mxu0 0
    %4534 = vmatpush1.bf16.msra.mxu0 %v4518
    %4535 = vmatprep.subr.bf16.mxu0 0
    %4536 = vmatpush1.bf16.msra.mxu0 %v4517
    %4537 = vmatprep.subr.bf16.mxu0 0
    %4538 = vmatpush2.bf16.msra.mxu0 0
    %4539 = vmatprep.subr.bf16.mxu0 0
    %4540 = vmatpush2.bf16.msra.mxu0 0
    %4541 = vmatprep.subr.bf16.mxu0 0
    %4542 = vmatpush2.bf16.msra.mxu0 0
    %4543 = vmatprep.subr.bf16.mxu0 0
    %4544 = vmatpush2.bf16.msra.mxu0 0
    %4545 = vmatprep.subr.bf16.mxu0 0
    %4546 = vmatpush2.bf16.msra.mxu0 0
    %4547 = vmatprep.subr.bf16.mxu0 0
    %4548 = vmatpush2.bf16.msra.mxu0 0
    %4549 = vmatprep.subr.bf16.mxu0 0
    %4550 = vmatpush2.bf16.msra.mxu0 0
    %4551 = vmatprep.subr.bf16.mxu0 0
    %4552 = vmatpush2.bf16.msra.mxu0 0
    %4553 = vmatprep.mubr.bf16.mxu0 0
    %4554 = vmatmul.mubr.bf16.gmra.mxu0 %v4386
    %v4555 = vpop.f32.mrf.mxu0
    %v4556 = vadd.f32 0.0, %v4555
    %v4557 = vpop.f32.mrf.mxu0
    %v4558 = vpop.f32.mrf.mxu0
    %v4559 = vadd.f32 0.0, %v4558
    %v4560 = vpop.f32.mrf.mxu0
    %4561 = vmatprep.mubr.bf16.mxu0 0
    %4562 = vmatmul.mubr.bf16.gmra.mxu0 %v4389
    %v4563 = vpop.f32.mrf.mxu0
    %v4564 = vadd.f32 0.0, %v4563
    %v4565 = vpop.f32.mrf.mxu0
    %v4566 = vpop.f32.mrf.mxu0
    %v4567 = vadd.f32 0.0, %v4566
    %v4568 = vpop.f32.mrf.mxu0
    %4569 = vdwg.mxu0
    %v4570 = vpack.c.bf16 %v4429, %v4426
    %v4571 = vpack.c.bf16 %v4437, %v4434
    %v4572 = vpack.c.bf16 %v4494, %v4491
    %v4573 = vpack.c.bf16 %v4502, %v4499
    %v4574 = vpack.c.bf16 %v4559, %v4556
    %v4575 = vpack.c.bf16 %v4567, %v4564
    %v4577 = vsel %vm1672, %v4570, 0
    %v4580 = vsel %vm1672, %v4572, 0
    %4582 = vmatprep.subr.bf16.mxu0 0
    %4583 = vmatpush1.bf16.xpose.msra.mxu0 0
    %4584 = vmatprep.subr.bf16.mxu0 0
    %4585 = vmatpush1.bf16.xpose.msra.mxu0 0
    %4586 = vmatprep.subr.bf16.mxu0 0
    %4587 = vmatpush1.bf16.xpose.msra.mxu0 0
    %4588 = vmatprep.subr.bf16.mxu0 0
    %4589 = vmatpush1.bf16.xpose.msra.mxu0 0
    %4590 = vmatprep.subr.bf16.mxu0 0
    %4591 = vmatpush1.bf16.xpose.msra.mxu0 0
    %4592 = vmatprep.subr.bf16.mxu0 0
    %4593 = vmatpush1.bf16.xpose.msra.mxu0 0
    %4594 = vmatprep.subr.bf16.mxu0 0
    %4595 = vmatpush1.bf16.xpose.msra.mxu0 0
    %4596 = vmatprep.subr.bf16.mxu0 0
    %4597 = vmatpush1.bf16.xpose.msra.mxu0 %v4580
    %4598 = vmatprep.subr.bf16.mxu0 0
    %4599 = vmatpush2.bf16.xpose.msra.mxu0 0
    %4600 = vmatprep.subr.bf16.mxu0 0
    %4601 = vmatpush2.bf16.xpose.msra.mxu0 0
    %4602 = vmatprep.subr.bf16.mxu0 0
    %4603 = vmatpush2.bf16.xpose.msra.mxu0 0
    %4604 = vmatprep.subr.bf16.mxu0 0
    %4605 = vmatpush2.bf16.xpose.msra.mxu0 0
    %4606 = vmatprep.subr.bf16.mxu0 0
    %4607 = vmatpush2.bf16.xpose.msra.mxu0 0
    %4608 = vmatprep.subr.bf16.mxu0 0
    %4609 = vmatpush2.bf16.xpose.msra.mxu0 0
    %4610 = vmatprep.subr.bf16.mxu0 0
    %4611 = vmatpush2.bf16.xpose.msra.mxu0 0
    %4612 = vmatprep.subr.bf16.mxu0 0
    %4613 = vmatpush2.bf16.xpose.msra.mxu0 0
    %4614 = vmatprep.mubr.bf16.mxu0 0
    %4615 = vmatmul.mubr.bf16.gmra.mxu0 %v4577
    %v4616 = vpop.f32.mrf.mxu0
    %v4617 = vadd.f32 0.0, %v4616
    %v4618 = vpop.f32.mrf.mxu0
    %v4619 = vpop.f32.mrf.mxu0
    %v4620 = vadd.f32 0.0, %v4619
    %v4621 = vpop.f32.mrf.mxu0
    %4622 = vdwg.mxu0
    %v4624 = vsel %vm1672, %v4571, 0
    %v4627 = vsel %vm1672, %v4573, 0
    %4629 = vmatprep.subr.bf16.mxu0 0
    %4630 = vmatpush1.bf16.xpose.msra.mxu0 0
    %4631 = vmatprep.subr.bf16.mxu0 0
    %4632 = vmatpush1.bf16.xpose.msra.mxu0 0
    %4633 = vmatprep.subr.bf16.mxu0 0
    %4634 = vmatpush1.bf16.xpose.msra.mxu0 0
    %4635 = vmatprep.subr.bf16.mxu0 0
    %4636 = vmatpush1.bf16.xpose.msra.mxu0 0
    %4637 = vmatprep.subr.bf16.mxu0 0
    %4638 = vmatpush1.bf16.xpose.msra.mxu0 0
    %4639 = vmatprep.subr.bf16.mxu0 0
    %4640 = vmatpush1.bf16.xpose.msra.mxu0 0
    %4641 = vmatprep.subr.bf16.mxu0 0
    %4642 = vmatpush1.bf16.xpose.msra.mxu0 0
    %4643 = vmatprep.subr.bf16.mxu0 0
    %4644 = vmatpush1.bf16.xpose.msra.mxu0 %v4627
    %4645 = vmatprep.subr.bf16.mxu0 0
    %4646 = vmatpush2.bf16.xpose.msra.mxu0 0
    %4647 = vmatprep.subr.bf16.mxu0 0
    %4648 = vmatpush2.bf16.xpose.msra.mxu0 0
    %4649 = vmatprep.subr.bf16.mxu0 0
    %4650 = vmatpush2.bf16.xpose.msra.mxu0 0
    %4651 = vmatprep.subr.bf16.mxu0 0
    %4652 = vmatpush2.bf16.xpose.msra.mxu0 0
    %4653 = vmatprep.subr.bf16.mxu0 0
    %4654 = vmatpush2.bf16.xpose.msra.mxu0 0
    %4655 = vmatprep.subr.bf16.mxu0 0
    %4656 = vmatpush2.bf16.xpose.msra.mxu0 0
    %4657 = vmatprep.subr.bf16.mxu0 0
    %4658 = vmatpush2.bf16.xpose.msra.mxu0 0
    %4659 = vmatprep.subr.bf16.mxu0 0
    %4660 = vmatpush2.bf16.xpose.msra.mxu0 0
    %4661 = vmatprep.mubr.bf16.mxu0 0
    %4662 = vmatmul.mubr.bf16.gmra.mxu0 %v4624
    %v4663 = vpop.f32.mrf.mxu0
    %v4664 = vadd.f32 0.0, %v4663
    %v4665 = vpop.f32.mrf.mxu0
    %v4666 = vpop.f32.mrf.mxu0
    %v4667 = vadd.f32 0.0, %v4666
    %v4668 = vpop.f32.mrf.mxu0
    %4669 = vdwg.mxu0
    %v4670 = vmul.f32 %v4617, 0.35355338
    %v4671 = vmul.f32 %v4620, 0.35355338
    %v4672 = vmul.f32 %v4664, 0.35355338
    %v4673 = vmul.f32 %v4667, 0.35355338
    %v4674 = vsel %vm701, %v4670, -inf
    %4675 = vmax.xlane.f32.xlu0 %v4674
    %v4676 = vpop.xlane.xlu0 %4675
    %v4677 = vsel %vm701, %v4671, -inf
    %4678 = vmax.xlane.f32.xlu0 %v4677
    %v4679 = vpop.xlane.xlu0 %4678
    %v4680 = vsel %vm701, %v4672, -inf
    %4681 = vmax.xlane.f32.xlu0 %v4680
    %v4682 = vpop.xlane.xlu0 %4681
    %v4683 = vsel %vm701, %v4673, -inf
    %4684 = vmax.xlane.f32.xlu0 %v4683
    %v4685 = vpop.xlane.xlu0 %4684
    %v4686 = vsub.f32 %v4670, %v4676
    %v4687 = vsub.f32 %v4671, %v4679
    %v4688 = vsub.f32 %v4672, %v4682
    %v4689 = vsub.f32 %v4673, %v4685
    %v4690 = vmul.f32 %v4686, 1.442695
    %v4691 = vpow.pop %v4690
    %v4692 = vmul.f32 %v4687, 1.442695
    %v4693 = vpow.pop %v4692
    %v4694 = vmul.f32 %v4688, 1.442695
    %v4695 = vpow.pop %v4694
    %v4696 = vmul.f32 %v4689, 1.442695
    %v4697 = vpow.pop %v4696
    %v4698 = vsel %vm701, %v4691, 0.0
    %4699 = vadd.xlane.f32.xlu0 %v4698
    %v4700 = vpop.xlane.xlu0 %4699
    %v4701 = vsel %vm701, %v4693, 0.0
    %4702 = vadd.xlane.f32.xlu0 %v4701
    %v4703 = vpop.xlane.xlu0 %4702
    %v4704 = vsel %vm701, %v4695, 0.0
    %4705 = vadd.xlane.f32.xlu0 %v4704
    %v4706 = vpop.xlane.xlu0 %4705
    %v4707 = vsel %vm701, %v4697, 0.0
    %4708 = vadd.xlane.f32.xlu0 %v4707
    %v4709 = vpop.xlane.xlu0 %4708
    %v4710 = vrcp.pop %v4700
    %v4711 = vrcp.pop %v4703
    %v4712 = vrcp.pop %v4706
    %v4713 = vrcp.pop %v4709
    %v4714 = vmul.f32 %v4691, %v4710
    %v4715 = vmul.f32 %v4693, %v4711
    %v4716 = vmul.f32 %v4695, %v4712
    %v4717 = vmul.f32 %v4697, %v4713
    %v4718 = vpack.c.bf16 %v4715, %v4714
    %v4719 = vpack.c.bf16 %v4717, %v4716
    %v4721 = vsel %vm701, %v4718, 0
    %4723 = vmatprep.subr.bf16.mxu0 0
    %4724 = vmatpush1.bf16.msra.mxu0 0
    %4725 = vmatprep.subr.bf16.mxu0 0
    %4726 = vmatpush1.bf16.msra.mxu0 0
    %4727 = vmatprep.subr.bf16.mxu0 0
    %4728 = vmatpush1.bf16.msra.mxu0 0
    %4729 = vmatprep.subr.bf16.mxu0 0
    %4730 = vmatpush1.bf16.msra.mxu0 0
    %4731 = vmatprep.subr.bf16.mxu0 0
    %4732 = vmatpush1.bf16.msra.mxu0 0
    %4733 = vmatprep.subr.bf16.mxu0 0
    %4734 = vmatpush1.bf16.msra.mxu0 0
    %4735 = vmatprep.subr.bf16.mxu0 0
    %4736 = vmatpush1.bf16.msra.mxu0 0
    %4737 = vmatprep.subr.bf16.mxu0 0
    %4738 = vmatpush1.bf16.msra.mxu0 %v4574
    %4739 = vmatprep.subr.bf16.mxu0 0
    %4740 = vmatpush2.bf16.msra.mxu0 0
    %4741 = vmatprep.subr.bf16.mxu0 0
    %4742 = vmatpush2.bf16.msra.mxu0 0
    %4743 = vmatprep.subr.bf16.mxu0 0
    %4744 = vmatpush2.bf16.msra.mxu0 0
    %4745 = vmatprep.subr.bf16.mxu0 0
    %4746 = vmatpush2.bf16.msra.mxu0 0
    %4747 = vmatprep.subr.bf16.mxu0 0
    %4748 = vmatpush2.bf16.msra.mxu0 0
    %4749 = vmatprep.subr.bf16.mxu0 0
    %4750 = vmatpush2.bf16.msra.mxu0 0
    %4751 = vmatprep.subr.bf16.mxu0 0
    %4752 = vmatpush2.bf16.msra.mxu0 0
    %4753 = vmatprep.subr.bf16.mxu0 0
    %4754 = vmatpush2.bf16.msra.mxu0 0
    %4755 = vmatprep.mubr.bf16.mxu0 0
    %4756 = vmatmul.mubr.bf16.gmra.mxu0 %v4721
    %v4757 = vpop.f32.mrf.mxu0
    %v4758 = vadd.f32 0.0, %v4757
    %v4759 = vpop.f32.mrf.mxu0
    %v4760 = vpop.f32.mrf.mxu0
    %v4761 = vadd.f32 0.0, %v4760
    %v4762 = vpop.f32.mrf.mxu0
    %4763 = vdwg.mxu0
    %v4765 = vsel %vm701, %v4719, 0
    %4767 = vmatprep.subr.bf16.mxu0 0
    %4768 = vmatpush1.bf16.msra.mxu0 0
    %4769 = vmatprep.subr.bf16.mxu0 0
    %4770 = vmatpush1.bf16.msra.mxu0 0
    %4771 = vmatprep.subr.bf16.mxu0 0
    %4772 = vmatpush1.bf16.msra.mxu0 0
    %4773 = vmatprep.subr.bf16.mxu0 0
    %4774 = vmatpush1.bf16.msra.mxu0 0
    %4775 = vmatprep.subr.bf16.mxu0 0
    %4776 = vmatpush1.bf16.msra.mxu0 0
    %4777 = vmatprep.subr.bf16.mxu0 0
    %4778 = vmatpush1.bf16.msra.mxu0 0
    %4779 = vmatprep.subr.bf16.mxu0 0
    %4780 = vmatpush1.bf16.msra.mxu0 0
    %4781 = vmatprep.subr.bf16.mxu0 0
    %4782 = vmatpush1.bf16.msra.mxu0 %v4575
    %4783 = vmatprep.subr.bf16.mxu0 0
    %4784 = vmatpush2.bf16.msra.mxu0 0
    %4785 = vmatprep.subr.bf16.mxu0 0
    %4786 = vmatpush2.bf16.msra.mxu0 0
    %4787 = vmatprep.subr.bf16.mxu0 0
    %4788 = vmatpush2.bf16.msra.mxu0 0
    %4789 = vmatprep.subr.bf16.mxu0 0
    %4790 = vmatpush2.bf16.msra.mxu0 0
    %4791 = vmatprep.subr.bf16.mxu0 0
    %4792 = vmatpush2.bf16.msra.mxu0 0
    %4793 = vmatprep.subr.bf16.mxu0 0
    %4794 = vmatpush2.bf16.msra.mxu0 0
    %4795 = vmatprep.subr.bf16.mxu0 0
    %4796 = vmatpush2.bf16.msra.mxu0 0
    %4797 = vmatprep.subr.bf16.mxu0 0
    %4798 = vmatpush2.bf16.msra.mxu0 0
    %4799 = vmatprep.mubr.bf16.mxu0 0
    %4800 = vmatmul.mubr.bf16.gmra.mxu0 %v4765
    %v4801 = vpop.f32.mrf.mxu0
    %v4802 = vadd.f32 0.0, %v4801
    %v4803 = vpop.f32.mrf.mxu0
    %v4804 = vpop.f32.mrf.mxu0
    %v4805 = vadd.f32 0.0, %v4804
    %v4806 = vpop.f32.mrf.mxu0
    %4807 = vdwg.mxu0
    %4809 = vrot.lane.b32.xlu0 %v4570, 120
    %v4810 = vpop.permute.xlu0 %4809
    %4812 = vrot.lane.b32.xlu0 %v4572, 120
    %v4813 = vpop.permute.xlu0 %4812
    %v4815 = vsel %vm1672, %v4810, 0
    %v4818 = vsel %vm1672, %v4813, 0
    %4820 = vmatprep.subr.bf16.mxu0 0
    %4821 = vmatpush1.bf16.xpose.msra.mxu0 0
    %4822 = vmatprep.subr.bf16.mxu0 0
    %4823 = vmatpush1.bf16.xpose.msra.mxu0 0
    %4824 = vmatprep.subr.bf16.mxu0 0
    %4825 = vmatpush1.bf16.xpose.msra.mxu0 0
    %4826 = vmatprep.subr.bf16.mxu0 0
    %4827 = vmatpush1.bf16.xpose.msra.mxu0 0
    %4828 = vmatprep.subr.bf16.mxu0 0
    %4829 = vmatpush1.bf16.xpose.msra.mxu0 0
    %4830 = vmatprep.subr.bf16.mxu0 0
    %4831 = vmatpush1.bf16.xpose.msra.mxu0 0
    %4832 = vmatprep.subr.bf16.mxu0 0
    %4833 = vmatpush1.bf16.xpose.msra.mxu0 0
    %4834 = vmatprep.subr.bf16.mxu0 0
    %4835 = vmatpush1.bf16.xpose.msra.mxu0 %v4818
    %4836 = vmatprep.subr.bf16.mxu0 0
    %4837 = vmatpush2.bf16.xpose.msra.mxu0 0
    %4838 = vmatprep.subr.bf16.mxu0 0
    %4839 = vmatpush2.bf16.xpose.msra.mxu0 0
    %4840 = vmatprep.subr.bf16.mxu0 0
    %4841 = vmatpush2.bf16.xpose.msra.mxu0 0
    %4842 = vmatprep.subr.bf16.mxu0 0
    %4843 = vmatpush2.bf16.xpose.msra.mxu0 0
    %4844 = vmatprep.subr.bf16.mxu0 0
    %4845 = vmatpush2.bf16.xpose.msra.mxu0 0
    %4846 = vmatprep.subr.bf16.mxu0 0
    %4847 = vmatpush2.bf16.xpose.msra.mxu0 0
    %4848 = vmatprep.subr.bf16.mxu0 0
    %4849 = vmatpush2.bf16.xpose.msra.mxu0 0
    %4850 = vmatprep.subr.bf16.mxu0 0
    %4851 = vmatpush2.bf16.xpose.msra.mxu0 0
    %4852 = vmatprep.mubr.bf16.mxu0 0
    %4853 = vmatmul.mubr.bf16.gmra.mxu0 %v4815
    %v4854 = vpop.f32.mrf.mxu0
    %v4855 = vadd.f32 0.0, %v4854
    %v4856 = vpop.f32.mrf.mxu0
    %v4857 = vpop.f32.mrf.mxu0
    %v4858 = vadd.f32 0.0, %v4857
    %v4859 = vpop.f32.mrf.mxu0
    %4860 = vdwg.mxu0
    %4862 = vrot.lane.b32.xlu0 %v4571, 120
    %v4863 = vpop.permute.xlu0 %4862
    %4865 = vrot.lane.b32.xlu0 %v4573, 120
    %v4866 = vpop.permute.xlu0 %4865
    %v4868 = vsel %vm1672, %v4863, 0
    %v4871 = vsel %vm1672, %v4866, 0
    %4873 = vmatprep.subr.bf16.mxu0 0
    %4874 = vmatpush1.bf16.xpose.msra.mxu0 0
    %4875 = vmatprep.subr.bf16.mxu0 0
    %4876 = vmatpush1.bf16.xpose.msra.mxu0 0
    %4877 = vmatprep.subr.bf16.mxu0 0
    %4878 = vmatpush1.bf16.xpose.msra.mxu0 0
    %4879 = vmatprep.subr.bf16.mxu0 0
    %4880 = vmatpush1.bf16.xpose.msra.mxu0 0
    %4881 = vmatprep.subr.bf16.mxu0 0
    %4882 = vmatpush1.bf16.xpose.msra.mxu0 0
    %4883 = vmatprep.subr.bf16.mxu0 0
    %4884 = vmatpush1.bf16.xpose.msra.mxu0 0
    %4885 = vmatprep.subr.bf16.mxu0 0
    %4886 = vmatpush1.bf16.xpose.msra.mxu0 0
    %4887 = vmatprep.subr.bf16.mxu0 0
    %4888 = vmatpush1.bf16.xpose.msra.mxu0 %v4871
    %4889 = vmatprep.subr.bf16.mxu0 0
    %4890 = vmatpush2.bf16.xpose.msra.mxu0 0
    %4891 = vmatprep.subr.bf16.mxu0 0
    %4892 = vmatpush2.bf16.xpose.msra.mxu0 0
    %4893 = vmatprep.subr.bf16.mxu0 0
    %4894 = vmatpush2.bf16.xpose.msra.mxu0 0
    %4895 = vmatprep.subr.bf16.mxu0 0
    %4896 = vmatpush2.bf16.xpose.msra.mxu0 0
    %4897 = vmatprep.subr.bf16.mxu0 0
    %4898 = vmatpush2.bf16.xpose.msra.mxu0 0
    %4899 = vmatprep.subr.bf16.mxu0 0
    %4900 = vmatpush2.bf16.xpose.msra.mxu0 0
    %4901 = vmatprep.subr.bf16.mxu0 0
    %4902 = vmatpush2.bf16.xpose.msra.mxu0 0
    %4903 = vmatprep.subr.bf16.mxu0 0
    %4904 = vmatpush2.bf16.xpose.msra.mxu0 0
    %4905 = vmatprep.mubr.bf16.mxu0 0
    %4906 = vmatmul.mubr.bf16.gmra.mxu0 %v4868
    %v4907 = vpop.f32.mrf.mxu0
    %v4908 = vadd.f32 0.0, %v4907
    %v4909 = vpop.f32.mrf.mxu0
    %v4910 = vpop.f32.mrf.mxu0
    %v4911 = vadd.f32 0.0, %v4910
    %v4912 = vpop.f32.mrf.mxu0
    %4913 = vdwg.mxu0
    %v4914 = vmul.f32 %v4855, 0.35355338
    %v4915 = vmul.f32 %v4858, 0.35355338
    %v4916 = vmul.f32 %v4908, 0.35355338
    %v4917 = vmul.f32 %v4911, 0.35355338
    %v4918 = vsel %vm701, %v4914, -inf
    %4919 = vmax.xlane.f32.xlu0 %v4918
    %v4920 = vpop.xlane.xlu0 %4919
    %v4921 = vsel %vm701, %v4915, -inf
    %4922 = vmax.xlane.f32.xlu0 %v4921
    %v4923 = vpop.xlane.xlu0 %4922
    %v4924 = vsel %vm701, %v4916, -inf
    %4925 = vmax.xlane.f32.xlu0 %v4924
    %v4926 = vpop.xlane.xlu0 %4925
    %v4927 = vsel %vm701, %v4917, -inf
    %4928 = vmax.xlane.f32.xlu0 %v4927
    %v4929 = vpop.xlane.xlu0 %4928
    %v4930 = vsub.f32 %v4914, %v4920
    %v4931 = vsub.f32 %v4915, %v4923
    %v4932 = vsub.f32 %v4916, %v4926
    %v4933 = vsub.f32 %v4917, %v4929
    %v4934 = vmul.f32 %v4930, 1.442695
    %v4935 = vpow.pop %v4934
    %v4936 = vmul.f32 %v4931, 1.442695
    %v4937 = vpow.pop %v4936
    %v4938 = vmul.f32 %v4932, 1.442695
    %v4939 = vpow.pop %v4938
    %v4940 = vmul.f32 %v4933, 1.442695
    %v4941 = vpow.pop %v4940
    %v4942 = vsel %vm701, %v4935, 0.0
    %4943 = vadd.xlane.f32.xlu0 %v4942
    %v4944 = vpop.xlane.xlu0 %4943
    %v4945 = vsel %vm701, %v4937, 0.0
    %4946 = vadd.xlane.f32.xlu0 %v4945
    %v4947 = vpop.xlane.xlu0 %4946
    %v4948 = vsel %vm701, %v4939, 0.0
    %4949 = vadd.xlane.f32.xlu0 %v4948
    %v4950 = vpop.xlane.xlu0 %4949
    %v4951 = vsel %vm701, %v4941, 0.0
    %4952 = vadd.xlane.f32.xlu0 %v4951
    %v4953 = vpop.xlane.xlu0 %4952
    %v4954 = vrcp.pop %v4944
    %v4955 = vrcp.pop %v4947
    %v4956 = vrcp.pop %v4950
    %v4957 = vrcp.pop %v4953
    %v4958 = vmul.f32 %v4935, %v4954
    %v4959 = vmul.f32 %v4937, %v4955
    %v4960 = vmul.f32 %v4939, %v4956
    %v4961 = vmul.f32 %v4941, %v4957
    %v4962 = vpack.c.bf16 %v4959, %v4958
    %v4963 = vpack.c.bf16 %v4961, %v4960
    %4965 = vrot.lane.b32.xlu0 %v4574, 120
    %v4966 = vpop.permute.xlu0 %4965
    %v4969 = vsel %vm701, %v4962, 0
    %4971 = vmatprep.subr.bf16.mxu0 0
    %4972 = vmatpush1.bf16.msra.mxu0 0
    %4973 = vmatprep.subr.bf16.mxu0 0
    %4974 = vmatpush1.bf16.msra.mxu0 0
    %4975 = vmatprep.subr.bf16.mxu0 0
    %4976 = vmatpush1.bf16.msra.mxu0 0
    %4977 = vmatprep.subr.bf16.mxu0 0
    %4978 = vmatpush1.bf16.msra.mxu0 0
    %4979 = vmatprep.subr.bf16.mxu0 0
    %4980 = vmatpush1.bf16.msra.mxu0 0
    %4981 = vmatprep.subr.bf16.mxu0 0
    %4982 = vmatpush1.bf16.msra.mxu0 0
    %4983 = vmatprep.subr.bf16.mxu0 0
    %4984 = vmatpush1.bf16.msra.mxu0 0
    %4985 = vmatprep.subr.bf16.mxu0 0
    %4986 = vmatpush1.bf16.msra.mxu0 %v4966
    %4987 = vmatprep.subr.bf16.mxu0 0
    %4988 = vmatpush2.bf16.msra.mxu0 0
    %4989 = vmatprep.subr.bf16.mxu0 0
    %4990 = vmatpush2.bf16.msra.mxu0 0
    %4991 = vmatprep.subr.bf16.mxu0 0
    %4992 = vmatpush2.bf16.msra.mxu0 0
    %4993 = vmatprep.subr.bf16.mxu0 0
    %4994 = vmatpush2.bf16.msra.mxu0 0
    %4995 = vmatprep.subr.bf16.mxu0 0
    %4996 = vmatpush2.bf16.msra.mxu0 0
    %4997 = vmatprep.subr.bf16.mxu0 0
    %4998 = vmatpush2.bf16.msra.mxu0 0
    %4999 = vmatprep.subr.bf16.mxu0 0
    %5000 = vmatpush2.bf16.msra.mxu0 0
    %5001 = vmatprep.subr.bf16.mxu0 0
    %5002 = vmatpush2.bf16.msra.mxu0 0
    %5003 = vmatprep.mubr.bf16.mxu0 0
    %5004 = vmatmul.mubr.bf16.gmra.mxu0 %v4969
    %v5005 = vpop.f32.mrf.mxu0
    %v5006 = vadd.f32 0.0, %v5005
    %v5007 = vpop.f32.mrf.mxu0
    %v5008 = vpop.f32.mrf.mxu0
    %v5009 = vadd.f32 0.0, %v5008
    %v5010 = vpop.f32.mrf.mxu0
    %5011 = vdwg.mxu0
    %5013 = vrot.lane.b32.xlu0 %v4575, 120
    %v5014 = vpop.permute.xlu0 %5013
    %v5017 = vsel %vm701, %v4963, 0
    %5019 = vmatprep.subr.bf16.mxu0 0
    %5020 = vmatpush1.bf16.msra.mxu0 0
    %5021 = vmatprep.subr.bf16.mxu0 0
    %5022 = vmatpush1.bf16.msra.mxu0 0
    %5023 = vmatprep.subr.bf16.mxu0 0
    %5024 = vmatpush1.bf16.msra.mxu0 0
    %5025 = vmatprep.subr.bf16.mxu0 0
    %5026 = vmatpush1.bf16.msra.mxu0 0
    %5027 = vmatprep.subr.bf16.mxu0 0
    %5028 = vmatpush1.bf16.msra.mxu0 0
    %5029 = vmatprep.subr.bf16.mxu0 0
    %5030 = vmatpush1.bf16.msra.mxu0 0
    %5031 = vmatprep.subr.bf16.mxu0 0
    %5032 = vmatpush1.bf16.msra.mxu0 0
    %5033 = vmatprep.subr.bf16.mxu0 0
    %5034 = vmatpush1.bf16.msra.mxu0 %v5014
    %5035 = vmatprep.subr.bf16.mxu0 0
    %5036 = vmatpush2.bf16.msra.mxu0 0
    %5037 = vmatprep.subr.bf16.mxu0 0
    %5038 = vmatpush2.bf16.msra.mxu0 0
    %5039 = vmatprep.subr.bf16.mxu0 0
    %5040 = vmatpush2.bf16.msra.mxu0 0
    %5041 = vmatprep.subr.bf16.mxu0 0
    %5042 = vmatpush2.bf16.msra.mxu0 0
    %5043 = vmatprep.subr.bf16.mxu0 0
    %5044 = vmatpush2.bf16.msra.mxu0 0
    %5045 = vmatprep.subr.bf16.mxu0 0
    %5046 = vmatpush2.bf16.msra.mxu0 0
    %5047 = vmatprep.subr.bf16.mxu0 0
    %5048 = vmatpush2.bf16.msra.mxu0 0
    %5049 = vmatprep.subr.bf16.mxu0 0
    %5050 = vmatpush2.bf16.msra.mxu0 0
    %5051 = vmatprep.mubr.bf16.mxu0 0
    %5052 = vmatmul.mubr.bf16.gmra.mxu0 %v5017
    %v5053 = vpop.f32.mrf.mxu0
    %v5054 = vadd.f32 0.0, %v5053
    %v5055 = vpop.f32.mrf.mxu0
    %v5056 = vpop.f32.mrf.mxu0
    %v5057 = vadd.f32 0.0, %v5056
    %v5058 = vpop.f32.mrf.mxu0
    %5059 = vdwg.mxu0
    %5060 = vrot.lane.b32.xlu0 %v4570, 112
    %v5061 = vpop.permute.xlu0 %5060
    %5062 = vrot.lane.b32.xlu0 %v4572, 112
    %v5063 = vpop.permute.xlu0 %5062
    %v5065 = vsel %vm1672, %v5061, 0
    %v5068 = vsel %vm1672, %v5063, 0
    %5070 = vmatprep.subr.bf16.mxu0 0
    %5071 = vmatpush1.bf16.xpose.msra.mxu0 0
    %5072 = vmatprep.subr.bf16.mxu0 0
    %5073 = vmatpush1.bf16.xpose.msra.mxu0 0
    %5074 = vmatprep.subr.bf16.mxu0 0
    %5075 = vmatpush1.bf16.xpose.msra.mxu0 0
    %5076 = vmatprep.subr.bf16.mxu0 0
    %5077 = vmatpush1.bf16.xpose.msra.mxu0 0
    %5078 = vmatprep.subr.bf16.mxu0 0
    %5079 = vmatpush1.bf16.xpose.msra.mxu0 0
    %5080 = vmatprep.subr.bf16.mxu0 0
    %5081 = vmatpush1.bf16.xpose.msra.mxu0 0
    %5082 = vmatprep.subr.bf16.mxu0 0
    %5083 = vmatpush1.bf16.xpose.msra.mxu0 0
    %5084 = vmatprep.subr.bf16.mxu0 0
    %5085 = vmatpush1.bf16.xpose.msra.mxu0 %v5068
    %5086 = vmatprep.subr.bf16.mxu0 0
    %5087 = vmatpush2.bf16.xpose.msra.mxu0 0
    %5088 = vmatprep.subr.bf16.mxu0 0
    %5089 = vmatpush2.bf16.xpose.msra.mxu0 0
    %5090 = vmatprep.subr.bf16.mxu0 0
    %5091 = vmatpush2.bf16.xpose.msra.mxu0 0
    %5092 = vmatprep.subr.bf16.mxu0 0
    %5093 = vmatpush2.bf16.xpose.msra.mxu0 0
    %5094 = vmatprep.subr.bf16.mxu0 0
    %5095 = vmatpush2.bf16.xpose.msra.mxu0 0
    %5096 = vmatprep.subr.bf16.mxu0 0
    %5097 = vmatpush2.bf16.xpose.msra.mxu0 0
    %5098 = vmatprep.subr.bf16.mxu0 0
    %5099 = vmatpush2.bf16.xpose.msra.mxu0 0
    %5100 = vmatprep.subr.bf16.mxu0 0
    %5101 = vmatpush2.bf16.xpose.msra.mxu0 0
    %5102 = vmatprep.mubr.bf16.mxu0 0
    %5103 = vmatmul.mubr.bf16.gmra.mxu0 %v5065
    %v5104 = vpop.f32.mrf.mxu0
    %v5105 = vadd.f32 0.0, %v5104
    %v5106 = vpop.f32.mrf.mxu0
    %v5107 = vpop.f32.mrf.mxu0
    %v5108 = vadd.f32 0.0, %v5107
    %v5109 = vpop.f32.mrf.mxu0
    %5110 = vdwg.mxu0
    %5111 = vrot.lane.b32.xlu0 %v4571, 112
    %v5112 = vpop.permute.xlu0 %5111
    %5113 = vrot.lane.b32.xlu0 %v4573, 112
    %v5114 = vpop.permute.xlu0 %5113
    %v5116 = vsel %vm1672, %v5112, 0
    %v5119 = vsel %vm1672, %v5114, 0
    %5121 = vmatprep.subr.bf16.mxu0 0
    %5122 = vmatpush1.bf16.xpose.msra.mxu0 0
    %5123 = vmatprep.subr.bf16.mxu0 0
    %5124 = vmatpush1.bf16.xpose.msra.mxu0 0
    %5125 = vmatprep.subr.bf16.mxu0 0
    %5126 = vmatpush1.bf16.xpose.msra.mxu0 0
    %5127 = vmatprep.subr.bf16.mxu0 0
    %5128 = vmatpush1.bf16.xpose.msra.mxu0 0
    %5129 = vmatprep.subr.bf16.mxu0 0
    %5130 = vmatpush1.bf16.xpose.msra.mxu0 0
    %5131 = vmatprep.subr.bf16.mxu0 0
    %5132 = vmatpush1.bf16.xpose.msra.mxu0 0
    %5133 = vmatprep.subr.bf16.mxu0 0
    %5134 = vmatpush1.bf16.xpose.msra.mxu0 0
    %5135 = vmatprep.subr.bf16.mxu0 0
    %5136 = vmatpush1.bf16.xpose.msra.mxu0 %v5119
    %5137 = vmatprep.subr.bf16.mxu0 0
    %5138 = vmatpush2.bf16.xpose.msra.mxu0 0
    %5139 = vmatprep.subr.bf16.mxu0 0
    %5140 = vmatpush2.bf16.xpose.msra.mxu0 0
    %5141 = vmatprep.subr.bf16.mxu0 0
    %5142 = vmatpush2.bf16.xpose.msra.mxu0 0
    %5143 = vmatprep.subr.bf16.mxu0 0
    %5144 = vmatpush2.bf16.xpose.msra.mxu0 0
    %5145 = vmatprep.subr.bf16.mxu0 0
    %5146 = vmatpush2.bf16.xpose.msra.mxu0 0
    %5147 = vmatprep.subr.bf16.mxu0 0
    %5148 = vmatpush2.bf16.xpose.msra.mxu0 0
    %5149 = vmatprep.subr.bf16.mxu0 0
    %5150 = vmatpush2.bf16.xpose.msra.mxu0 0
    %5151 = vmatprep.subr.bf16.mxu0 0
    %5152 = vmatpush2.bf16.xpose.msra.mxu0 0
    %5153 = vmatprep.mubr.bf16.mxu0 0
    %5154 = vmatmul.mubr.bf16.gmra.mxu0 %v5116
    %v5155 = vpop.f32.mrf.mxu0
    %v5156 = vadd.f32 0.0, %v5155
    %v5157 = vpop.f32.mrf.mxu0
    %v5158 = vpop.f32.mrf.mxu0
    %v5159 = vadd.f32 0.0, %v5158
    %v5160 = vpop.f32.mrf.mxu0
    %5161 = vdwg.mxu0
    %v5162 = vmul.f32 %v5105, 0.35355338
    %v5163 = vmul.f32 %v5108, 0.35355338
    %v5164 = vmul.f32 %v5156, 0.35355338
    %v5165 = vmul.f32 %v5159, 0.35355338
    %v5166 = vsel %vm701, %v5162, -inf
    %5167 = vmax.xlane.f32.xlu0 %v5166
    %v5168 = vpop.xlane.xlu0 %5167
    %v5169 = vsel %vm701, %v5163, -inf
    %5170 = vmax.xlane.f32.xlu0 %v5169
    %v5171 = vpop.xlane.xlu0 %5170
    %v5172 = vsel %vm701, %v5164, -inf
    %5173 = vmax.xlane.f32.xlu0 %v5172
    %v5174 = vpop.xlane.xlu0 %5173
    %v5175 = vsel %vm701, %v5165, -inf
    %5176 = vmax.xlane.f32.xlu0 %v5175
    %v5177 = vpop.xlane.xlu0 %5176
    %v5178 = vsub.f32 %v5162, %v5168
    %v5179 = vsub.f32 %v5163, %v5171
    %v5180 = vsub.f32 %v5164, %v5174
    %v5181 = vsub.f32 %v5165, %v5177
    %v5182 = vmul.f32 %v5178, 1.442695
    %v5183 = vpow.pop %v5182
    %v5184 = vmul.f32 %v5179, 1.442695
    %v5185 = vpow.pop %v5184
    %v5186 = vmul.f32 %v5180, 1.442695
    %v5187 = vpow.pop %v5186
    %v5188 = vmul.f32 %v5181, 1.442695
    %v5189 = vpow.pop %v5188
    %v5190 = vsel %vm701, %v5183, 0.0
    %5191 = vadd.xlane.f32.xlu0 %v5190
    %v5192 = vpop.xlane.xlu0 %5191
    %v5193 = vsel %vm701, %v5185, 0.0
    %5194 = vadd.xlane.f32.xlu0 %v5193
    %v5195 = vpop.xlane.xlu0 %5194
    %v5196 = vsel %vm701, %v5187, 0.0
    %5197 = vadd.xlane.f32.xlu0 %v5196
    %v5198 = vpop.xlane.xlu0 %5197
    %v5199 = vsel %vm701, %v5189, 0.0
    %5200 = vadd.xlane.f32.xlu0 %v5199
    %v5201 = vpop.xlane.xlu0 %5200
    %v5202 = vrcp.pop %v5192
    %v5203 = vrcp.pop %v5195
    %v5204 = vrcp.pop %v5198
    %v5205 = vrcp.pop %v5201
    %v5206 = vmul.f32 %v5183, %v5202
    %v5207 = vmul.f32 %v5185, %v5203
    %v5208 = vmul.f32 %v5187, %v5204
    %v5209 = vmul.f32 %v5189, %v5205
    %v5210 = vpack.c.bf16 %v5207, %v5206
    %v5211 = vpack.c.bf16 %v5209, %v5208
    %5212 = vrot.lane.b32.xlu0 %v4574, 112
    %v5213 = vpop.permute.xlu0 %5212
    %v5216 = vsel %vm701, %v5210, 0
    %5218 = vmatprep.subr.bf16.mxu0 0
    %5219 = vmatpush1.bf16.msra.mxu0 0
    %5220 = vmatprep.subr.bf16.mxu0 0
    %5221 = vmatpush1.bf16.msra.mxu0 0
    %5222 = vmatprep.subr.bf16.mxu0 0
    %5223 = vmatpush1.bf16.msra.mxu0 0
    %5224 = vmatprep.subr.bf16.mxu0 0
    %5225 = vmatpush1.bf16.msra.mxu0 0
    %5226 = vmatprep.subr.bf16.mxu0 0
    %5227 = vmatpush1.bf16.msra.mxu0 0
    %5228 = vmatprep.subr.bf16.mxu0 0
    %5229 = vmatpush1.bf16.msra.mxu0 0
    %5230 = vmatprep.subr.bf16.mxu0 0
    %5231 = vmatpush1.bf16.msra.mxu0 0
    %5232 = vmatprep.subr.bf16.mxu0 0
    %5233 = vmatpush1.bf16.msra.mxu0 %v5213
    %5234 = vmatprep.subr.bf16.mxu0 0
    %5235 = vmatpush2.bf16.msra.mxu0 0
    %5236 = vmatprep.subr.bf16.mxu0 0
    %5237 = vmatpush2.bf16.msra.mxu0 0
    %5238 = vmatprep.subr.bf16.mxu0 0
    %5239 = vmatpush2.bf16.msra.mxu0 0
    %5240 = vmatprep.subr.bf16.mxu0 0
    %5241 = vmatpush2.bf16.msra.mxu0 0
    %5242 = vmatprep.subr.bf16.mxu0 0
    %5243 = vmatpush2.bf16.msra.mxu0 0
    %5244 = vmatprep.subr.bf16.mxu0 0
    %5245 = vmatpush2.bf16.msra.mxu0 0
    %5246 = vmatprep.subr.bf16.mxu0 0
    %5247 = vmatpush2.bf16.msra.mxu0 0
    %5248 = vmatprep.subr.bf16.mxu0 0
    %5249 = vmatpush2.bf16.msra.mxu0 0
    %5250 = vmatprep.mubr.bf16.mxu0 0
    %5251 = vmatmul.mubr.bf16.gmra.mxu0 %v5216
    %v5252 = vpop.f32.mrf.mxu0
    %v5253 = vadd.f32 0.0, %v5252
    %v5254 = vpop.f32.mrf.mxu0
    %v5255 = vpop.f32.mrf.mxu0
    %v5256 = vadd.f32 0.0, %v5255
    %v5257 = vpop.f32.mrf.mxu0
    %5258 = vdwg.mxu0
    %5259 = vrot.lane.b32.xlu0 %v4575, 112
    %v5260 = vpop.permute.xlu0 %5259
    %v5263 = vsel %vm701, %v5211, 0
    %5265 = vmatprep.subr.bf16.mxu0 0
    %5266 = vmatpush1.bf16.msra.mxu0 0
    %5267 = vmatprep.subr.bf16.mxu0 0
    %5268 = vmatpush1.bf16.msra.mxu0 0
    %5269 = vmatprep.subr.bf16.mxu0 0
    %5270 = vmatpush1.bf16.msra.mxu0 0
    %5271 = vmatprep.subr.bf16.mxu0 0
    %5272 = vmatpush1.bf16.msra.mxu0 0
    %5273 = vmatprep.subr.bf16.mxu0 0
    %5274 = vmatpush1.bf16.msra.mxu0 0
    %5275 = vmatprep.subr.bf16.mxu0 0
    %5276 = vmatpush1.bf16.msra.mxu0 0
    %5277 = vmatprep.subr.bf16.mxu0 0
    %5278 = vmatpush1.bf16.msra.mxu0 0
    %5279 = vmatprep.subr.bf16.mxu0 0
    %5280 = vmatpush1.bf16.msra.mxu0 %v5260
    %5281 = vmatprep.subr.bf16.mxu0 0
    %5282 = vmatpush2.bf16.msra.mxu0 0
    %5283 = vmatprep.subr.bf16.mxu0 0
    %5284 = vmatpush2.bf16.msra.mxu0 0
    %5285 = vmatprep.subr.bf16.mxu0 0
    %5286 = vmatpush2.bf16.msra.mxu0 0
    %5287 = vmatprep.subr.bf16.mxu0 0
    %5288 = vmatpush2.bf16.msra.mxu0 0
    %5289 = vmatprep.subr.bf16.mxu0 0
    %5290 = vmatpush2.bf16.msra.mxu0 0
    %5291 = vmatprep.subr.bf16.mxu0 0
    %5292 = vmatpush2.bf16.msra.mxu0 0
    %5293 = vmatprep.subr.bf16.mxu0 0
    %5294 = vmatpush2.bf16.msra.mxu0 0
    %5295 = vmatprep.subr.bf16.mxu0 0
    %5296 = vmatpush2.bf16.msra.mxu0 0
    %5297 = vmatprep.mubr.bf16.mxu0 0
    %5298 = vmatmul.mubr.bf16.gmra.mxu0 %v5263
    %v5299 = vpop.f32.mrf.mxu0
    %v5300 = vadd.f32 0.0, %v5299
    %v5301 = vpop.f32.mrf.mxu0
    %v5302 = vpop.f32.mrf.mxu0
    %v5303 = vadd.f32 0.0, %v5302
    %v5304 = vpop.f32.mrf.mxu0
    %5305 = vdwg.mxu0
    %5306 = vrot.lane.b32.xlu0 %v4570, 104
    %v5307 = vpop.permute.xlu0 %5306
    %5308 = vrot.lane.b32.xlu0 %v4572, 104
    %v5309 = vpop.permute.xlu0 %5308
    %v5311 = vsel %vm1672, %v5307, 0
    %v5314 = vsel %vm1672, %v5309, 0
    %5316 = vmatprep.subr.bf16.mxu0 0
    %5317 = vmatpush1.bf16.xpose.msra.mxu0 0
    %5318 = vmatprep.subr.bf16.mxu0 0
    %5319 = vmatpush1.bf16.xpose.msra.mxu0 0
    %5320 = vmatprep.subr.bf16.mxu0 0
    %5321 = vmatpush1.bf16.xpose.msra.mxu0 0
    %5322 = vmatprep.subr.bf16.mxu0 0
    %5323 = vmatpush1.bf16.xpose.msra.mxu0 0
    %5324 = vmatprep.subr.bf16.mxu0 0
    %5325 = vmatpush1.bf16.xpose.msra.mxu0 0
    %5326 = vmatprep.subr.bf16.mxu0 0
    %5327 = vmatpush1.bf16.xpose.msra.mxu0 0
    %5328 = vmatprep.subr.bf16.mxu0 0
    %5329 = vmatpush1.bf16.xpose.msra.mxu0 0
    %5330 = vmatprep.subr.bf16.mxu0 0
    %5331 = vmatpush1.bf16.xpose.msra.mxu0 %v5314
    %5332 = vmatprep.subr.bf16.mxu0 0
    %5333 = vmatpush2.bf16.xpose.msra.mxu0 0
    %5334 = vmatprep.subr.bf16.mxu0 0
    %5335 = vmatpush2.bf16.xpose.msra.mxu0 0
    %5336 = vmatprep.subr.bf16.mxu0 0
    %5337 = vmatpush2.bf16.xpose.msra.mxu0 0
    %5338 = vmatprep.subr.bf16.mxu0 0
    %5339 = vmatpush2.bf16.xpose.msra.mxu0 0
    %5340 = vmatprep.subr.bf16.mxu0 0
    %5341 = vmatpush2.bf16.xpose.msra.mxu0 0
    %5342 = vmatprep.subr.bf16.mxu0 0
    %5343 = vmatpush2.bf16.xpose.msra.mxu0 0
    %5344 = vmatprep.subr.bf16.mxu0 0
    %5345 = vmatpush2.bf16.xpose.msra.mxu0 0
    %5346 = vmatprep.subr.bf16.mxu0 0
    %5347 = vmatpush2.bf16.xpose.msra.mxu0 0
    %5348 = vmatprep.mubr.bf16.mxu0 0
    %5349 = vmatmul.mubr.bf16.gmra.mxu0 %v5311
    %v5350 = vpop.f32.mrf.mxu0
    %v5351 = vadd.f32 0.0, %v5350
    %v5352 = vpop.f32.mrf.mxu0
    %v5353 = vpop.f32.mrf.mxu0
    %v5354 = vadd.f32 0.0, %v5353
    %v5355 = vpop.f32.mrf.mxu0
    %5356 = vdwg.mxu0
    %5357 = vrot.lane.b32.xlu0 %v4571, 104
    %v5358 = vpop.permute.xlu0 %5357
    %5359 = vrot.lane.b32.xlu0 %v4573, 104
    %v5360 = vpop.permute.xlu0 %5359
    %v5362 = vsel %vm1672, %v5358, 0
    %v5365 = vsel %vm1672, %v5360, 0
    %5367 = vmatprep.subr.bf16.mxu0 0
    %5368 = vmatpush1.bf16.xpose.msra.mxu0 0
    %5369 = vmatprep.subr.bf16.mxu0 0
    %5370 = vmatpush1.bf16.xpose.msra.mxu0 0
    %5371 = vmatprep.subr.bf16.mxu0 0
    %5372 = vmatpush1.bf16.xpose.msra.mxu0 0
    %5373 = vmatprep.subr.bf16.mxu0 0
    %5374 = vmatpush1.bf16.xpose.msra.mxu0 0
    %5375 = vmatprep.subr.bf16.mxu0 0
    %5376 = vmatpush1.bf16.xpose.msra.mxu0 0
    %5377 = vmatprep.subr.bf16.mxu0 0
    %5378 = vmatpush1.bf16.xpose.msra.mxu0 0
    %5379 = vmatprep.subr.bf16.mxu0 0
    %5380 = vmatpush1.bf16.xpose.msra.mxu0 0
    %5381 = vmatprep.subr.bf16.mxu0 0
    %5382 = vmatpush1.bf16.xpose.msra.mxu0 %v5365
    %5383 = vmatprep.subr.bf16.mxu0 0
    %5384 = vmatpush2.bf16.xpose.msra.mxu0 0
    %5385 = vmatprep.subr.bf16.mxu0 0
    %5386 = vmatpush2.bf16.xpose.msra.mxu0 0
    %5387 = vmatprep.subr.bf16.mxu0 0
    %5388 = vmatpush2.bf16.xpose.msra.mxu0 0
    %5389 = vmatprep.subr.bf16.mxu0 0
    %5390 = vmatpush2.bf16.xpose.msra.mxu0 0
    %5391 = vmatprep.subr.bf16.mxu0 0
    %5392 = vmatpush2.bf16.xpose.msra.mxu0 0
    %5393 = vmatprep.subr.bf16.mxu0 0
    %5394 = vmatpush2.bf16.xpose.msra.mxu0 0
    %5395 = vmatprep.subr.bf16.mxu0 0
    %5396 = vmatpush2.bf16.xpose.msra.mxu0 0
    %5397 = vmatprep.subr.bf16.mxu0 0
    %5398 = vmatpush2.bf16.xpose.msra.mxu0 0
    %5399 = vmatprep.mubr.bf16.mxu0 0
    %5400 = vmatmul.mubr.bf16.gmra.mxu0 %v5362
    %v5401 = vpop.f32.mrf.mxu0
    %v5402 = vadd.f32 0.0, %v5401
    %v5403 = vpop.f32.mrf.mxu0
    %v5404 = vpop.f32.mrf.mxu0
    %v5405 = vadd.f32 0.0, %v5404
    %v5406 = vpop.f32.mrf.mxu0
    %5407 = vdwg.mxu0
    %v5408 = vmul.f32 %v5351, 0.35355338
    %v5409 = vmul.f32 %v5354, 0.35355338
    %v5410 = vmul.f32 %v5402, 0.35355338
    %v5411 = vmul.f32 %v5405, 0.35355338
    %v5412 = vsel %vm701, %v5408, -inf
    %5413 = vmax.xlane.f32.xlu0 %v5412
    %v5414 = vpop.xlane.xlu0 %5413
    %v5415 = vsel %vm701, %v5409, -inf
    %5416 = vmax.xlane.f32.xlu0 %v5415
    %v5417 = vpop.xlane.xlu0 %5416
    %v5418 = vsel %vm701, %v5410, -inf
    %5419 = vmax.xlane.f32.xlu0 %v5418
    %v5420 = vpop.xlane.xlu0 %5419
    %v5421 = vsel %vm701, %v5411, -inf
    %5422 = vmax.xlane.f32.xlu0 %v5421
    %v5423 = vpop.xlane.xlu0 %5422
    %v5424 = vsub.f32 %v5408, %v5414
    %v5425 = vsub.f32 %v5409, %v5417
    %v5426 = vsub.f32 %v5410, %v5420
    %v5427 = vsub.f32 %v5411, %v5423
    %v5428 = vmul.f32 %v5424, 1.442695
    %v5429 = vpow.pop %v5428
    %v5430 = vmul.f32 %v5425, 1.442695
    %v5431 = vpow.pop %v5430
    %v5432 = vmul.f32 %v5426, 1.442695
    %v5433 = vpow.pop %v5432
    %v5434 = vmul.f32 %v5427, 1.442695
    %v5435 = vpow.pop %v5434
    %v5436 = vsel %vm701, %v5429, 0.0
    %5437 = vadd.xlane.f32.xlu0 %v5436
    %v5438 = vpop.xlane.xlu0 %5437
    %v5439 = vsel %vm701, %v5431, 0.0
    %5440 = vadd.xlane.f32.xlu0 %v5439
    %v5441 = vpop.xlane.xlu0 %5440
    %v5442 = vsel %vm701, %v5433, 0.0
    %5443 = vadd.xlane.f32.xlu0 %v5442
    %v5444 = vpop.xlane.xlu0 %5443
    %v5445 = vsel %vm701, %v5435, 0.0
    %5446 = vadd.xlane.f32.xlu0 %v5445
    %v5447 = vpop.xlane.xlu0 %5446
    %v5448 = vrcp.pop %v5438
    %v5449 = vrcp.pop %v5441
    %v5450 = vrcp.pop %v5444
    %v5451 = vrcp.pop %v5447
    %v5452 = vmul.f32 %v5429, %v5448
    %v5453 = vmul.f32 %v5431, %v5449
    %v5454 = vmul.f32 %v5433, %v5450
    %v5455 = vmul.f32 %v5435, %v5451
    %v5456 = vpack.c.bf16 %v5453, %v5452
    %v5457 = vpack.c.bf16 %v5455, %v5454
    %5458 = vrot.lane.b32.xlu0 %v4574, 104
    %v5459 = vpop.permute.xlu0 %5458
    %v5462 = vsel %vm701, %v5456, 0
    %5464 = vmatprep.subr.bf16.mxu0 0
    %5465 = vmatpush1.bf16.msra.mxu0 0
    %5466 = vmatprep.subr.bf16.mxu0 0
    %5467 = vmatpush1.bf16.msra.mxu0 0
    %5468 = vmatprep.subr.bf16.mxu0 0
    %5469 = vmatpush1.bf16.msra.mxu0 0
    %5470 = vmatprep.subr.bf16.mxu0 0
    %5471 = vmatpush1.bf16.msra.mxu0 0
    %5472 = vmatprep.subr.bf16.mxu0 0
    %5473 = vmatpush1.bf16.msra.mxu0 0
    %5474 = vmatprep.subr.bf16.mxu0 0
    %5475 = vmatpush1.bf16.msra.mxu0 0
    %5476 = vmatprep.subr.bf16.mxu0 0
    %5477 = vmatpush1.bf16.msra.mxu0 0
    %5478 = vmatprep.subr.bf16.mxu0 0
    %5479 = vmatpush1.bf16.msra.mxu0 %v5459
    %5480 = vmatprep.subr.bf16.mxu0 0
    %5481 = vmatpush2.bf16.msra.mxu0 0
    %5482 = vmatprep.subr.bf16.mxu0 0
    %5483 = vmatpush2.bf16.msra.mxu0 0
    %5484 = vmatprep.subr.bf16.mxu0 0
    %5485 = vmatpush2.bf16.msra.mxu0 0
    %5486 = vmatprep.subr.bf16.mxu0 0
    %5487 = vmatpush2.bf16.msra.mxu0 0
    %5488 = vmatprep.subr.bf16.mxu0 0
    %5489 = vmatpush2.bf16.msra.mxu0 0
    %5490 = vmatprep.subr.bf16.mxu0 0
    %5491 = vmatpush2.bf16.msra.mxu0 0
    %5492 = vmatprep.subr.bf16.mxu0 0
    %5493 = vmatpush2.bf16.msra.mxu0 0
    %5494 = vmatprep.subr.bf16.mxu0 0
    %5495 = vmatpush2.bf16.msra.mxu0 0
    %5496 = vmatprep.mubr.bf16.mxu0 0
    %5497 = vmatmul.mubr.bf16.gmra.mxu0 %v5462
    %v5498 = vpop.f32.mrf.mxu0
    %v5499 = vadd.f32 0.0, %v5498
    %v5500 = vpop.f32.mrf.mxu0
    %v5501 = vpop.f32.mrf.mxu0
    %v5502 = vadd.f32 0.0, %v5501
    %v5503 = vpop.f32.mrf.mxu0
    %5504 = vdwg.mxu0
    %5505 = vrot.lane.b32.xlu0 %v4575, 104
    %v5506 = vpop.permute.xlu0 %5505
    %v5509 = vsel %vm701, %v5457, 0
    %5511 = vmatprep.subr.bf16.mxu0 0
    %5512 = vmatpush1.bf16.msra.mxu0 0
    %5513 = vmatprep.subr.bf16.mxu0 0
    %5514 = vmatpush1.bf16.msra.mxu0 0
    %5515 = vmatprep.subr.bf16.mxu0 0
    %5516 = vmatpush1.bf16.msra.mxu0 0
    %5517 = vmatprep.subr.bf16.mxu0 0
    %5518 = vmatpush1.bf16.msra.mxu0 0
    %5519 = vmatprep.subr.bf16.mxu0 0
    %5520 = vmatpush1.bf16.msra.mxu0 0
    %5521 = vmatprep.subr.bf16.mxu0 0
    %5522 = vmatpush1.bf16.msra.mxu0 0
    %5523 = vmatprep.subr.bf16.mxu0 0
    %5524 = vmatpush1.bf16.msra.mxu0 0
    %5525 = vmatprep.subr.bf16.mxu0 0
    %5526 = vmatpush1.bf16.msra.mxu0 %v5506
    %5527 = vmatprep.subr.bf16.mxu0 0
    %5528 = vmatpush2.bf16.msra.mxu0 0
    %5529 = vmatprep.subr.bf16.mxu0 0
    %5530 = vmatpush2.bf16.msra.mxu0 0
    %5531 = vmatprep.subr.bf16.mxu0 0
    %5532 = vmatpush2.bf16.msra.mxu0 0
    %5533 = vmatprep.subr.bf16.mxu0 0
    %5534 = vmatpush2.bf16.msra.mxu0 0
    %5535 = vmatprep.subr.bf16.mxu0 0
    %5536 = vmatpush2.bf16.msra.mxu0 0
    %5537 = vmatprep.subr.bf16.mxu0 0
    %5538 = vmatpush2.bf16.msra.mxu0 0
    %5539 = vmatprep.subr.bf16.mxu0 0
    %5540 = vmatpush2.bf16.msra.mxu0 0
    %5541 = vmatprep.subr.bf16.mxu0 0
    %5542 = vmatpush2.bf16.msra.mxu0 0
    %5543 = vmatprep.mubr.bf16.mxu0 0
    %5544 = vmatmul.mubr.bf16.gmra.mxu0 %v5509
    %v5545 = vpop.f32.mrf.mxu0
    %v5546 = vadd.f32 0.0, %v5545
    %v5547 = vpop.f32.mrf.mxu0
    %v5548 = vpop.f32.mrf.mxu0
    %v5549 = vadd.f32 0.0, %v5548
    %v5550 = vpop.f32.mrf.mxu0
    %5551 = vdwg.mxu0
    %5556 = vrot.lane.b32.xlu0 %v5006, 8
    %v5557 = vpop.permute.xlu0 %5556
    %5558 = vrot.lane.b32.xlu0 %v5009, 8
    %v5559 = vpop.permute.xlu0 %5558
    %5560 = vrot.lane.b32.xlu0 %v5054, 8
    %v5561 = vpop.permute.xlu0 %5560
    %5562 = vrot.lane.b32.xlu0 %v5057, 8
    %v5563 = vpop.permute.xlu0 %5562
    %5572 = vrot.lane.b32.xlu0 %v5253, 16
    %v5573 = vpop.permute.xlu0 %5572
    %5574 = vrot.lane.b32.xlu0 %v5256, 16
    %v5575 = vpop.permute.xlu0 %5574
    %5576 = vrot.lane.b32.xlu0 %v5300, 16
    %v5577 = vpop.permute.xlu0 %5576
    %5578 = vrot.lane.b32.xlu0 %v5303, 16
    %v5579 = vpop.permute.xlu0 %5578
    %5588 = vrot.lane.b32.xlu0 %v5499, 24
    %v5589 = vpop.permute.xlu0 %5588
    %5590 = vrot.lane.b32.xlu0 %v5502, 24
    %v5591 = vpop.permute.xlu0 %5590
    %5592 = vrot.lane.b32.xlu0 %v5546, 24
    %v5593 = vpop.permute.xlu0 %5592
    %5594 = vrot.lane.b32.xlu0 %v5549, 24
    %v5595 = vpop.permute.xlu0 %5594
    %v5600 = vsel %vm1672, %v4758, %v5557
    %v5601 = vsel %vm1672, %v4761, %v5559
    %v5602 = vsel %vm1672, %v4802, %v5561
    %v5603 = vsel %vm1672, %v4805, %v5563
    %v5604 = vsel %vm701, %v5600, %v5573
    %v5605 = vsel %vm701, %v5601, %v5575
    %v5606 = vsel %vm701, %v5602, %v5577
    %v5607 = vsel %vm701, %v5603, %v5579
    %v5608 = vsel %vm2705, %v5604, %v5589
    %v5609 = vsel %vm2705, %v5605, %v5591
    %v5610 = vsel %vm2705, %v5606, %v5593
    %v5611 = vsel %vm2705, %v5607, %v5595
    %v5612 = vpack.c.bf16 %v5609, %v5608
    %v5613 = vpack.c.bf16 %v5611, %v5610
    %v5614 = vld [vmem:[%s2 + $0x1e0] sm:$0xf]
    %v5615 = vld [vmem:[%s2 + $0x1e4] sm:$0xf]
    %v5616 = vld [vmem:[%s2 + $0x1e8] sm:$0xf]
    %v5617 = vld [vmem:[%s2 + $0x1ec] sm:$0xf]
    %v5618 = vld [vmem:[%s3 + $0xf0] sm:$0x1]
    %v5619 = vlaneseq
    %v5620 = vshrl.u32 %v5619, 7
    %v5621 = vsub.s32 0, %v5620
    %v5622 = vrot.slane %v5618, %v5621
    %v5627 = vunpack.c.l.b16 %v5614
    %v5628 = vunpack.c.l.b16 %v5615
    %v5629 = vunpack.c.l.b16 %v5616
    %v5630 = vunpack.c.l.b16 %v5617
    %v5631 = vpack.c.b16 %v5628, %v5627
    %v5632 = vpack.c.b16 %v5630, %v5629
    %v5636 = vsel %vm41, %v5612, 0
    %v5639 = vsel %vm41, %v5613, 0
    %5641 = vmatprep.subr.bf16.mxu0 0
    %5642 = vmatpush1.bf16.msra.mxu0 0
    %5643 = vmatprep.subr.bf16.mxu0 0
    %5644 = vmatpush1.bf16.msra.mxu0 0
    %5645 = vmatprep.subr.bf16.mxu0 0
    %5646 = vmatpush1.bf16.msra.mxu0 0
    %5647 = vmatprep.subr.bf16.mxu0 0
    %5648 = vmatpush1.bf16.msra.mxu0 0
    %5649 = vmatprep.subr.bf16.mxu0 0
    %5650 = vmatpush1.bf16.msra.mxu0 0
    %5651 = vmatprep.subr.bf16.mxu0 0
    %5652 = vmatpush1.bf16.msra.mxu0 0
    %5653 = vmatprep.subr.bf16.mxu0 0
    %5654 = vmatpush1.bf16.msra.mxu0 %v5632
    %5655 = vmatprep.subr.bf16.mxu0 0
    %5656 = vmatpush1.bf16.msra.mxu0 %v5631
    %5657 = vmatprep.subr.bf16.mxu0 0
    %5658 = vmatpush2.bf16.msra.mxu0 0
    %5659 = vmatprep.subr.bf16.mxu0 0
    %5660 = vmatpush2.bf16.msra.mxu0 0
    %5661 = vmatprep.subr.bf16.mxu0 0
    %5662 = vmatpush2.bf16.msra.mxu0 0
    %5663 = vmatprep.subr.bf16.mxu0 0
    %5664 = vmatpush2.bf16.msra.mxu0 0
    %5665 = vmatprep.subr.bf16.mxu0 0
    %5666 = vmatpush2.bf16.msra.mxu0 0
    %5667 = vmatprep.subr.bf16.mxu0 0
    %5668 = vmatpush2.bf16.msra.mxu0 0
    %5669 = vmatprep.subr.bf16.mxu0 0
    %5670 = vmatpush2.bf16.msra.mxu0 0
    %5671 = vmatprep.subr.bf16.mxu0 0
    %5672 = vmatpush2.bf16.msra.mxu0 0
    %5673 = vmatprep.mubr.bf16.mxu0 0
    %5674 = vmatmul.mubr.bf16.gmra.mxu0 %v5636
    %v5675 = vpop.f32.mrf.mxu0
    %v5676 = vadd.f32 %v5622, %v5675
    %v5677 = vpop.f32.mrf.mxu0
    %v5678 = vpop.f32.mrf.mxu0
    %v5679 = vadd.f32 %v5622, %v5678
    %v5680 = vpop.f32.mrf.mxu0
    %5681 = vmatprep.mubr.bf16.mxu0 0
    %5682 = vmatmul.mubr.bf16.gmra.mxu0 %v5639
    %v5683 = vpop.f32.mrf.mxu0
    %v5684 = vadd.f32 %v5622, %v5683
    %v5685 = vpop.f32.mrf.mxu0
    %v5686 = vpop.f32.mrf.mxu0
    %v5687 = vadd.f32 %v5622, %v5686
    %v5688 = vpop.f32.mrf.mxu0
    %5689 = vdwg.mxu0
    %v5690 = vadd.f32 %v4293, %v5676
    %v5691 = vadd.f32 %v4294, %v5679
    %v5692 = vadd.f32 %v4295, %v5684
    %v5693 = vadd.f32 %v4296, %v5687
    %v5694 = vld [vmem:[%s3 + $0xf8] sm:$0x1]
    %v5695 = vld [vmem:[%s3 + $0x100] sm:$0x1]
    %v5696 = vsel %vm41, %v5690, 0.0
    %5697 = vadd.xlane.f32.xlu0 %v5696
    %v5698 = vpop.xlane.xlu0 %5697
    %v5699 = vsel %vm41, %v5691, 0.0
    %5700 = vadd.xlane.f32.xlu0 %v5699
    %v5701 = vpop.xlane.xlu0 %5700
    %v5702 = vsel %vm41, %v5692, 0.0
    %5703 = vadd.xlane.f32.xlu0 %v5702
    %v5704 = vpop.xlane.xlu0 %5703
    %v5705 = vsel %vm41, %v5693, 0.0
    %5706 = vadd.xlane.f32.xlu0 %v5705
    %v5707 = vpop.xlane.xlu0 %5706
    %v5708 = vmul.f32 %v5698, %v54
    %v5709 = vmul.f32 %v5701, %v54
    %v5710 = vmul.f32 %v5704, %v54
    %v5711 = vmul.f32 %v5707, %v54
    %v5712 = vsub.f32 %v5690, %v5708
    %v5713 = vsub.f32 %v5691, %v5709
    %v5714 = vsub.f32 %v5692, %v5710
    %v5715 = vsub.f32 %v5693, %v5711
    %v5716 = vmul.f32 %v5712, %v5712
    %v5717 = vmul.f32 %v5713, %v5713
    %v5718 = vmul.f32 %v5714, %v5714
    %v5719 = vmul.f32 %v5715, %v5715
    %v5720 = vsel %vm41, %v5716, 0.0
    %5721 = vadd.xlane.f32.xlu0 %v5720
    %v5722 = vpop.xlane.xlu0 %5721
    %v5723 = vsel %vm41, %v5717, 0.0
    %5724 = vadd.xlane.f32.xlu0 %v5723
    %v5725 = vpop.xlane.xlu0 %5724
    %v5726 = vsel %vm41, %v5718, 0.0
    %5727 = vadd.xlane.f32.xlu0 %v5726
    %v5728 = vpop.xlane.xlu0 %5727
    %v5729 = vsel %vm41, %v5719, 0.0
    %5730 = vadd.xlane.f32.xlu0 %v5729
    %v5731 = vpop.xlane.xlu0 %5730
    %v5732 = vmul.f32 %v5722, %v54
    %v5733 = vmul.f32 %v5725, %v54
    %v5734 = vmul.f32 %v5728, %v54
    %v5735 = vmul.f32 %v5731, %v54
    %v5736 = vadd.f32 %v5732, 1e-05
    %v5737 = vadd.f32 %v5733, 1e-05
    %v5738 = vadd.f32 %v5734, 1e-05
    %v5739 = vadd.f32 %v5735, 1e-05
    %v5740 = vrsqrt.pop %v5736
    %v5741 = vrsqrt.pop %v5737
    %v5742 = vrsqrt.pop %v5738
    %v5743 = vrsqrt.pop %v5739
    %v5744 = vmul.f32 %v5712, %v5740
    %v5745 = vmul.f32 %v5713, %v5741
    %v5746 = vmul.f32 %v5714, %v5742
    %v5747 = vmul.f32 %v5715, %v5743
    %v5748 = vlaneseq
    %v5749 = vshrl.u32 %v5748, 7
    %v5750 = vsub.s32 0, %v5749
    %v5751 = vrot.slane %v5694, %v5750
    %v5752 = vmul.f32 %v5744, %v5751
    %v5753 = vmul.f32 %v5745, %v5751
    %v5754 = vmul.f32 %v5746, %v5751
    %v5755 = vmul.f32 %v5747, %v5751
    %v5756 = vlaneseq
    %v5757 = vshrl.u32 %v5756, 7
    %v5758 = vsub.s32 0, %v5757
    %v5759 = vrot.slane %v5695, %v5758
    %v5760 = vadd.f32 %v5752, %v5759
    %v5761 = vadd.f32 %v5753, %v5759
    %v5762 = vadd.f32 %v5754, %v5759
    %v5763 = vadd.f32 %v5755, %v5759
    %v5764 = vpack.c.bf16 %v5761, %v5760
    %v5765 = vpack.c.bf16 %v5763, %v5762
    %v5766 = vld [vmem:[%s2 + $0x1f0] sm:$0xf]
    %v5767 = vld [vmem:[%s2 + $0x1f4] sm:$0xf]
    %v5768 = vld [vmem:[%s2 + $0x1f8] sm:$0xf]
    %v5769 = vld [vmem:[%s2 + $0x1fc] sm:$0xf]
    %v5770 = vld [vmem:[%s3 + $0x108] sm:$0x1]
    %v5771 = vlaneseq
    %v5772 = vshrl.u32 %v5771, 7
    %v5773 = vsub.s32 0, %v5772
    %v5774 = vrot.slane %v5770, %v5773
    %v5779 = vunpack.c.l.b16 %v5766
    %v5780 = vunpack.c.l.b16 %v5767
    %v5781 = vunpack.c.l.b16 %v5768
    %v5782 = vunpack.c.l.b16 %v5769
    %v5783 = vpack.c.b16 %v5780, %v5779
    %v5784 = vpack.c.b16 %v5782, %v5781
    %v5788 = vsel %vm41, %v5764, 0
    %v5791 = vsel %vm41, %v5765, 0
    %5793 = vmatprep.subr.bf16.mxu0 0
    %5794 = vmatpush1.bf16.msra.mxu0 0
    %5795 = vmatprep.subr.bf16.mxu0 0
    %5796 = vmatpush1.bf16.msra.mxu0 0
    %5797 = vmatprep.subr.bf16.mxu0 0
    %5798 = vmatpush1.bf16.msra.mxu0 0
    %5799 = vmatprep.subr.bf16.mxu0 0
    %5800 = vmatpush1.bf16.msra.mxu0 0
    %5801 = vmatprep.subr.bf16.mxu0 0
    %5802 = vmatpush1.bf16.msra.mxu0 0
    %5803 = vmatprep.subr.bf16.mxu0 0
    %5804 = vmatpush1.bf16.msra.mxu0 0
    %5805 = vmatprep.subr.bf16.mxu0 0
    %5806 = vmatpush1.bf16.msra.mxu0 %v5784
    %5807 = vmatprep.subr.bf16.mxu0 0
    %5808 = vmatpush1.bf16.msra.mxu0 %v5783
    %5809 = vmatprep.subr.bf16.mxu0 0
    %5810 = vmatpush2.bf16.msra.mxu0 0
    %5811 = vmatprep.subr.bf16.mxu0 0
    %5812 = vmatpush2.bf16.msra.mxu0 0
    %5813 = vmatprep.subr.bf16.mxu0 0
    %5814 = vmatpush2.bf16.msra.mxu0 0
    %5815 = vmatprep.subr.bf16.mxu0 0
    %5816 = vmatpush2.bf16.msra.mxu0 0
    %5817 = vmatprep.subr.bf16.mxu0 0
    %5818 = vmatpush2.bf16.msra.mxu0 0
    %5819 = vmatprep.subr.bf16.mxu0 0
    %5820 = vmatpush2.bf16.msra.mxu0 0
    %5821 = vmatprep.subr.bf16.mxu0 0
    %5822 = vmatpush2.bf16.msra.mxu0 0
    %5823 = vmatprep.subr.bf16.mxu0 0
    %5824 = vmatpush2.bf16.msra.mxu0 0
    %5825 = vmatprep.mubr.bf16.mxu0 0
    %5826 = vmatmul.mubr.bf16.gmra.mxu0 %v5788
    %v5827 = vpop.f32.mrf.mxu0
    %v5828 = vadd.f32 %v5774, %v5827
    %v5829 = vpop.f32.mrf.mxu0
    %v5830 = vpop.f32.mrf.mxu0
    %v5831 = vadd.f32 %v5774, %v5830
    %v5832 = vpop.f32.mrf.mxu0
    %5833 = vmatprep.mubr.bf16.mxu0 0
    %5834 = vmatmul.mubr.bf16.gmra.mxu0 %v5791
    %v5835 = vpop.f32.mrf.mxu0
    %v5836 = vadd.f32 %v5774, %v5835
    %v5837 = vpop.f32.mrf.mxu0
    %v5838 = vpop.f32.mrf.mxu0
    %v5839 = vadd.f32 %v5774, %v5838
    %v5840 = vpop.f32.mrf.mxu0
    %5841 = vdwg.mxu0
    %v5842 = vld [vmem:[%s2 + $0x200] sm:$0xf]
    %v5843 = vld [vmem:[%s2 + $0x204] sm:$0xf]
    %v5844 = vld [vmem:[%s2 + $0x208] sm:$0xf]
    %v5845 = vld [vmem:[%s2 + $0x20c] sm:$0xf]
    %v5846 = vld [vmem:[%s3 + $0x110] sm:$0x1]
    %v5847 = vlaneseq
    %v5848 = vshrl.u32 %v5847, 7
    %v5849 = vsub.s32 0, %v5848
    %v5850 = vrot.slane %v5846, %v5849
    %v5855 = vunpack.c.l.b16 %v5842
    %v5856 = vunpack.c.l.b16 %v5843
    %v5857 = vunpack.c.l.b16 %v5844
    %v5858 = vunpack.c.l.b16 %v5845
    %v5859 = vpack.c.b16 %v5856, %v5855
    %v5860 = vpack.c.b16 %v5858, %v5857
    %5863 = vmatprep.subr.bf16.mxu0 0
    %5864 = vmatpush1.bf16.msra.mxu0 0
    %5865 = vmatprep.subr.bf16.mxu0 0
    %5866 = vmatpush1.bf16.msra.mxu0 0
    %5867 = vmatprep.subr.bf16.mxu0 0
    %5868 = vmatpush1.bf16.msra.mxu0 0
    %5869 = vmatprep.subr.bf16.mxu0 0
    %5870 = vmatpush1.bf16.msra.mxu0 0
    %5871 = vmatprep.subr.bf16.mxu0 0
    %5872 = vmatpush1.bf16.msra.mxu0 0
    %5873 = vmatprep.subr.bf16.mxu0 0
    %5874 = vmatpush1.bf16.msra.mxu0 0
    %5875 = vmatprep.subr.bf16.mxu0 0
    %5876 = vmatpush1.bf16.msra.mxu0 %v5860
    %5877 = vmatprep.subr.bf16.mxu0 0
    %5878 = vmatpush1.bf16.msra.mxu0 %v5859
    %5879 = vmatprep.subr.bf16.mxu0 0
    %5880 = vmatpush2.bf16.msra.mxu0 0
    %5881 = vmatprep.subr.bf16.mxu0 0
    %5882 = vmatpush2.bf16.msra.mxu0 0
    %5883 = vmatprep.subr.bf16.mxu0 0
    %5884 = vmatpush2.bf16.msra.mxu0 0
    %5885 = vmatprep.subr.bf16.mxu0 0
    %5886 = vmatpush2.bf16.msra.mxu0 0
    %5887 = vmatprep.subr.bf16.mxu0 0
    %5888 = vmatpush2.bf16.msra.mxu0 0
    %5889 = vmatprep.subr.bf16.mxu0 0
    %5890 = vmatpush2.bf16.msra.mxu0 0
    %5891 = vmatprep.subr.bf16.mxu0 0
    %5892 = vmatpush2.bf16.msra.mxu0 0
    %5893 = vmatprep.subr.bf16.mxu0 0
    %5894 = vmatpush2.bf16.msra.mxu0 0
    %5895 = vmatprep.mubr.bf16.mxu0 0
    %5896 = vmatmul.mubr.bf16.gmra.mxu0 %v5788
    %v5897 = vpop.f32.mrf.mxu0
    %v5898 = vadd.f32 %v5850, %v5897
    %v5899 = vpop.f32.mrf.mxu0
    %v5900 = vpop.f32.mrf.mxu0
    %v5901 = vadd.f32 %v5850, %v5900
    %v5902 = vpop.f32.mrf.mxu0
    %5903 = vmatprep.mubr.bf16.mxu0 0
    %5904 = vmatmul.mubr.bf16.gmra.mxu0 %v5791
    %v5905 = vpop.f32.mrf.mxu0
    %v5906 = vadd.f32 %v5850, %v5905
    %v5907 = vpop.f32.mrf.mxu0
    %v5908 = vpop.f32.mrf.mxu0
    %v5909 = vadd.f32 %v5850, %v5908
    %v5910 = vpop.f32.mrf.mxu0
    %5911 = vdwg.mxu0
    %v5912 = vmul.f32 %v5898, 0.5
    %v5913 = vmul.f32 %v5901, 0.5
    %v5914 = vmul.f32 %v5906, 0.5
    %v5915 = vmul.f32 %v5909, 0.5
    %v5916 = vmul.f32 %v5898, 0.70710677
    %v5917 = vmul.f32 %v5901, 0.70710677
    %v5918 = vmul.f32 %v5906, 0.70710677
    %v5919 = vmul.f32 %v5909, 0.70710677
    %v5920 = verf.f32.pop %v5916
    %v5921 = verf.f32.pop %v5917
    %v5922 = verf.f32.pop %v5918
    %v5923 = verf.f32.pop %v5919
    %v5924 = vadd.f32 %v5920, 1.0
    %v5925 = vadd.f32 %v5921, 1.0
    %v5926 = vadd.f32 %v5922, 1.0
    %v5927 = vadd.f32 %v5923, 1.0
    %v5928 = vmul.f32 %v5912, %v5924
    %v5929 = vmul.f32 %v5913, %v5925
    %v5930 = vmul.f32 %v5914, %v5926
    %v5931 = vmul.f32 %v5915, %v5927
    %v5932 = vmul.f32 %v5828, %v5928
    %v5933 = vmul.f32 %v5831, %v5929
    %v5934 = vmul.f32 %v5836, %v5930
    %v5935 = vmul.f32 %v5839, %v5931
    %v5936 = vpack.c.bf16 %v5933, %v5932
    %v5937 = vpack.c.bf16 %v5935, %v5934
    %v5938 = vld [vmem:[%s2 + $0x210] sm:$0xf]
    %v5939 = vld [vmem:[%s2 + $0x214] sm:$0xf]
    %v5940 = vld [vmem:[%s2 + $0x218] sm:$0xf]
    %v5941 = vld [vmem:[%s2 + $0x21c] sm:$0xf]
    %v5942 = vld [vmem:[%s2 + $0x220] sm:$0xf]
    %v5943 = vld [vmem:[%s2 + $0x224] sm:$0xf]
    %v5944 = vld [vmem:[%s2 + $0x228] sm:$0xf]
    %v5945 = vld [vmem:[%s2 + $0x22c] sm:$0xf]
    %v5946 = vld [vmem:[%s2 + $0x230] sm:$0xf]
    %v5947 = vld [vmem:[%s2 + $0x234] sm:$0xf]
    %v5948 = vld [vmem:[%s2 + $0x238] sm:$0xf]
    %v5949 = vld [vmem:[%s2 + $0x23c] sm:$0xf]
    %v5950 = vld [vmem:[%s2 + $0x240] sm:$0xf]
    %v5951 = vld [vmem:[%s2 + $0x244] sm:$0xf]
    %v5952 = vld [vmem:[%s2 + $0x248] sm:$0xf]
    %v5953 = vld [vmem:[%s2 + $0x24c] sm:$0xf]
    %v5954 = vld [vmem:[%s3 + $0x118] sm:$0x1]
    %v5955 = vlaneseq
    %v5956 = vshrl.u32 %v5955, 7
    %v5957 = vsub.s32 0, %v5956
    %v5958 = vrot.slane %v5954, %v5957
    %v5975 = vunpack.c.l.b16 %v5938
    %v5976 = vunpack.c.l.b16 %v5939
    %v5977 = vunpack.c.l.b16 %v5940
    %v5978 = vunpack.c.l.b16 %v5941
    %v5979 = vunpack.c.l.b16 %v5942
    %v5980 = vunpack.c.l.b16 %v5943
    %v5981 = vunpack.c.l.b16 %v5944
    %v5982 = vunpack.c.l.b16 %v5945
    %v5983 = vunpack.c.l.b16 %v5946
    %v5984 = vunpack.c.l.b16 %v5947
    %v5985 = vunpack.c.l.b16 %v5948
    %v5986 = vunpack.c.l.b16 %v5949
    %v5987 = vunpack.c.l.b16 %v5950
    %v5988 = vunpack.c.l.b16 %v5951
    %v5989 = vunpack.c.l.b16 %v5952
    %v5990 = vunpack.c.l.b16 %v5953
    %v5991 = vpack.c.b16 %v5976, %v5975
    %v5992 = vpack.c.b16 %v5978, %v5977
    %v5993 = vpack.c.b16 %v5980, %v5979
    %v5994 = vpack.c.b16 %v5982, %v5981
    %v5995 = vpack.c.b16 %v5984, %v5983
    %v5996 = vpack.c.b16 %v5986, %v5985
    %v5997 = vpack.c.b16 %v5988, %v5987
    %v5998 = vpack.c.b16 %v5990, %v5989
    %6007 = vmatprep.subr.bf16.mxu0 0
    %6008 = vmatpush1.bf16.msra.mxu0 %v5998
    %6009 = vmatprep.subr.bf16.mxu0 0
    %6010 = vmatpush1.bf16.msra.mxu0 %v5997
    %6011 = vmatprep.subr.bf16.mxu0 0
    %6012 = vmatpush1.bf16.msra.mxu0 %v5996
    %6013 = vmatprep.subr.bf16.mxu0 0
    %6014 = vmatpush1.bf16.msra.mxu0 %v5995
    %6015 = vmatprep.subr.bf16.mxu0 0
    %6016 = vmatpush1.bf16.msra.mxu0 %v5994
    %6017 = vmatprep.subr.bf16.mxu0 0
    %6018 = vmatpush1.bf16.msra.mxu0 %v5993
    %6019 = vmatprep.subr.bf16.mxu0 0
    %6020 = vmatpush1.bf16.msra.mxu0 %v5992
    %6021 = vmatprep.subr.bf16.mxu0 0
    %6022 = vmatpush1.bf16.msra.mxu0 %v5991
    %6023 = vmatprep.subr.bf16.mxu0 0
    %6024 = vmatpush2.bf16.msra.mxu0 0
    %6025 = vmatprep.subr.bf16.mxu0 0
    %6026 = vmatpush2.bf16.msra.mxu0 0
    %6027 = vmatprep.subr.bf16.mxu0 0
    %6028 = vmatpush2.bf16.msra.mxu0 0
    %6029 = vmatprep.subr.bf16.mxu0 0
    %6030 = vmatpush2.bf16.msra.mxu0 0
    %6031 = vmatprep.subr.bf16.mxu0 0
    %6032 = vmatpush2.bf16.msra.mxu0 0
    %6033 = vmatprep.subr.bf16.mxu0 0
    %6034 = vmatpush2.bf16.msra.mxu0 0
    %6035 = vmatprep.subr.bf16.mxu0 0
    %6036 = vmatpush2.bf16.msra.mxu0 0
    %6037 = vmatprep.subr.bf16.mxu0 0
    %6038 = vmatpush2.bf16.msra.mxu0 0
    %6039 = vmatprep.mubr.bf16.mxu0 0
    %6040 = vmatmul.mubr.bf16.gmra.mxu0 %v5936
    %v6041 = vpop.f32.mrf.mxu0
    %v6042 = vadd.f32 %v5958, %v6041
    %v6043 = vpop.f32.mrf.mxu0
    %v6044 = vpop.f32.mrf.mxu0
    %v6045 = vadd.f32 %v5958, %v6044
    %v6046 = vpop.f32.mrf.mxu0
    %6047 = vmatprep.mubr.bf16.mxu0 0
    %6048 = vmatmul.mubr.bf16.gmra.mxu0 %v5937
    %v6049 = vpop.f32.mrf.mxu0
    %v6050 = vadd.f32 %v5958, %v6049
    %v6051 = vpop.f32.mrf.mxu0
    %v6052 = vpop.f32.mrf.mxu0
    %v6053 = vadd.f32 %v5958, %v6052
    %v6054 = vpop.f32.mrf.mxu0
    %6055 = vdwg.mxu0
    %v6056 = vadd.f32 %v5690, %v6042
    %v6057 = vadd.f32 %v5691, %v6045
    %v6058 = vadd.f32 %v5692, %v6050
    %v6059 = vadd.f32 %v5693, %v6053
    %v6060 = vsel %vm41, %v6056, 0.0
    %v6061 = vsel %vm41, %v6057, 0.0
    %v6062 = vadd.f32 %v6060, %v6061
    %v6063 = vrot.slane %v6062, 4
    %v6064 = vadd.f32 %v6062, %v6063
    %v6065 = vrot.slane %v6064, 2
    %v6066 = vadd.f32 %v6064, %v6065
    %v6067 = vrot.slane %v6066, 1
    %v6068 = vadd.f32 %v6066, %v6067
    %v6069 = vsel %vm41, %v6058, 0.0
    %v6070 = vsel %vm41, %v6059, 0.0
    %v6071 = vadd.f32 %v6069, %v6070
    %v6072 = vrot.slane %v6071, 4
    %v6073 = vadd.f32 %v6071, %v6072
    %v6074 = vrot.slane %v6073, 2
    %v6075 = vadd.f32 %v6073, %v6074
    %v6076 = vrot.slane %v6075, 1
    %v6077 = vadd.f32 %v6075, %v6076
    %v6078 = vrcp.pop 16.0
    %v6079 = vmul.f32 %v6068, %v6078
    %v6080 = vmul.f32 %v6077, %v6078
    %v6081 = vld [vmem:[%s3 + $0x120] sm:$0x1]
    %v6082 = vld [vmem:[%s3 + $0x128] sm:$0x1]
    %vm6085 = vcmask 1041409
    %v6086 = vsel %vm6085, %v6080, %v6079
    %vm6088 = vcmask 254976
    %v6089 = vsel %vm6088, %v6086, 0.0
    %6090 = vadd.xlane.f32.xlu0 %v6089
    %v6091 = vpop.xlane.xlu0 %6090
    %v6092 = vmul.f32 %v6091, %v54
    %v6094 = vrot.slane %v6092, 1
    %v6097 = vsub.f32 %v6079, %v6092
    %v6098 = vsub.f32 %v6080, %v6094
    %v6099 = vmul.f32 %v6097, %v6097
    %v6100 = vmul.f32 %v6098, %v6098
    %v6103 = vrot.slane %v6100, 7
    %v6104 = vsel %vm6085, %v6103, %v6099
    %v6106 = vsel %vm6088, %v6104, 0.0
    %6107 = vadd.xlane.f32.xlu0 %v6106
    %v6108 = vpop.xlane.xlu0 %6107
    %v6109 = vmul.f32 %v6108, %v54
    %v6110 = vadd.f32 %v6109, 1e-05
    %v6111 = vrsqrt.pop %v6110
    %v6113 = vrot.slane %v6111, 1
    %v6116 = vmul.f32 %v6097, %v6111
    %v6117 = vmul.f32 %v6098, %v6113
    %v6118 = vlaneseq
    %v6119 = vshrl.u32 %v6118, 7
    %v6120 = vsub.s32 0, %v6119
    %v6121 = vrot.slane %v6081, %v6120
    %v6122 = vmul.f32 %v6116, %v6121
    %v6123 = vmul.f32 %v6117, %v6121
    %v6124 = vlaneseq
    %v6125 = vshrl.u32 %v6124, 7
    %v6126 = vsub.s32 0, %v6125
    %v6127 = vrot.slane %v6082, %v6126
    %v6128 = vadd.f32 %v6122, %v6127
    %v6129 = vadd.f32 %v6123, %v6127
    %v6130 = vpack.c.bf16 %v6128, %v6128
    %v6131 = vpack.c.bf16 %v6129, %v6129
    %v6132 = vld [vmem:[%s2 + $0x250] sm:$0xf]
    %v6133 = vld [vmem:[%s2 + $0x254] sm:$0xf]
    %v6134 = vld [vmem:[%s2 + $0x258] sm:$0xf]
    %v6135 = vld [vmem:[%s2 + $0x25c] sm:$0xf]
    %v6136 = vld [vmem:[%s3 + $0x130] sm:$0x1]
    %v6137 = vlaneseq
    %v6138 = vshrl.u32 %v6137, 7
    %v6139 = vsub.s32 0, %v6138
    %v6140 = vrot.slane %v6136, %v6139
    %v6143 = vunpack.c.l.b16 %v6130
    %v6144 = vunpack.c.l.b16 %v6131
    %v6145 = vrot.slane %v6144, 7
    %v6146 = vsel %vm6085, %v6145, %v6143
    %v6147 = vpack.c.b16 %v6146, %v6146
    %v6152 = vunpack.c.l.b16 %v6132
    %v6153 = vunpack.c.l.b16 %v6133
    %v6154 = vunpack.c.l.b16 %v6134
    %v6155 = vunpack.c.l.b16 %v6135
    %v6156 = vpack.c.b16 %v6153, %v6152
    %v6157 = vpack.c.b16 %v6155, %v6154
    %v6161 = vsel %vm41, %v6147, 0
    %6163 = vmatprep.subr.bf16.mxu0 0
    %6164 = vmatpush1.bf16.msra.mxu0 0
    %6165 = vmatprep.subr.bf16.mxu0 0
    %6166 = vmatpush1.bf16.msra.mxu0 0
    %6167 = vmatprep.subr.bf16.mxu0 0
    %6168 = vmatpush1.bf16.msra.mxu0 0
    %6169 = vmatprep.subr.bf16.mxu0 0
    %6170 = vmatpush1.bf16.msra.mxu0 0
    %6171 = vmatprep.subr.bf16.mxu0 0
    %6172 = vmatpush1.bf16.msra.mxu0 0
    %6173 = vmatprep.subr.bf16.mxu0 0
    %6174 = vmatpush1.bf16.msra.mxu0 0
    %6175 = vmatprep.subr.bf16.mxu0 0
    %6176 = vmatpush1.bf16.msra.mxu0 %v6157
    %6177 = vmatprep.subr.bf16.mxu0 0
    %6178 = vmatpush1.bf16.msra.mxu0 %v6156
    %6179 = vmatprep.subr.bf16.mxu0 0
    %6180 = vmatpush2.bf16.msra.mxu0 0
    %6181 = vmatprep.subr.bf16.mxu0 0
    %6182 = vmatpush2.bf16.msra.mxu0 0
    %6183 = vmatprep.subr.bf16.mxu0 0
    %6184 = vmatpush2.bf16.msra.mxu0 0
    %6185 = vmatprep.subr.bf16.mxu0 0
    %6186 = vmatpush2.bf16.msra.mxu0 0
    %6187 = vmatprep.subr.bf16.mxu0 0
    %6188 = vmatpush2.bf16.msra.mxu0 0
    %6189 = vmatprep.subr.bf16.mxu0 0
    %6190 = vmatpush2.bf16.msra.mxu0 0
    %6191 = vmatprep.subr.bf16.mxu0 0
    %6192 = vmatpush2.bf16.msra.mxu0 0
    %6193 = vmatprep.subr.bf16.mxu0 0
    %6194 = vmatpush2.bf16.msra.mxu0 0
    %6195 = vmatprep.mubr.bf16.mxu0 0
    %6196 = vmatmul.mubr.bf16.gmra.mxu0 %v6161
    %v6197 = vpop.f32.mrf.mxu0
    %v6198 = vadd.f32 %v6140, %v6197
    %v6199 = vpop.f32.mrf.mxu0
    %v6200 = vpop.f32.mrf.mxu0
    %v6201 = vpop.f32.mrf.mxu0
    %6202 = vdwg.mxu0
    %6203 = vst [vmem:[#allocation2] sm:$0x3] %v6198
    // Predicated region
    $region18: #{forward.1} parent=1 // pred_check
      _
    $region19: #{forward.1} parent=1 // pred_check_branch
      %6205 = sbr.rel (0) target = $region21
    $region20: #{forward.1} parent=1 // pred_region
      %s6207 = ssub.s32 32, 32
      %6208 = vsyncadd [#allocation3], %s6207
      %s6210 = sshll.u32 [#allocation2], 4
      %s6211 = int_to_ptr.vmem [resolvable:$true] %s6210
      %6213 = dma.vmem_to_hbm [thread:$0]  %s6211, 32, %s4, [#allocation3]
    $region21: #{forward.1} parent=1 // pred_fallthru
      _
    // Predicated region
    $region22: #{forward.1} parent=1 // pred_check
      _
    $region23: #{forward.1} parent=1 // pred_check_branch
      %6215 = sbr.rel (0) target = $region25
    $region24: #{forward.1} parent=1 // pred_region
      %6216 = dma.done [#allocation3], 32
    $region25: #{forward.1} parent=1 // pred_fallthru
      _
    %6217 = vsyncpa [#allocation3], 1

</llo_original>
